<compile_context>
chip_gen: v7x
topology: tpu7x:2x2x1
jax: 0.10.0
libtpu: 0.0.40
codegen_flags: <defaults>
</compile_context>

<pallas_src>
import math

import jax
import jax.numpy as jnp
from jax.experimental import pallas as pl
from jax.experimental.pallas import tpu as pltpu

# ----------------------------- configuration --------------------------------
IMG = 16          # img_size
PATCH = 8         # kernel_size == stride
CIN = 3           # n_input_channels
DIM = 32          # embedding_dim
HEADS = 4         # num_heads
LAYERS = 2        # num_layers (prefix 1 block, suffix 1 block)
MLP_RATIO = 4.0
CLASSES = 10      # num_classes
HEAD_DIM = DIM // HEADS
FFN = int(DIM * MLP_RATIO)
NPH = IMG // PATCH
NPATCH = NPH * NPH
SEQ = NPATCH + 1            # 5 = class token + patches (seq_pool=False)
SEQ_PAD = 8                 # padded to one sublane tile; padded keys masked
K = CIN * PATCH * PATCH     # flattened patch length (192)
EPS = 1e-5                  # nn.LayerNorm default
NEG_INF = -1e30
OUT_PAD = 128               # lane-dense classifier output width (>= CLASSES)


# --------------------------- in-kernel helpers -------------------------------
def _layernorm(x, w, b):
    mu = jnp.mean(x, axis=-1, keepdims=True)
    xc = x - mu
    var = jnp.mean(xc * xc, axis=-1, keepdims=True)
    return xc * jax.lax.rsqrt(var + EPS) * w + b


_SQRT_2_OVER_PI = math.sqrt(2.0 / math.pi)


def _gelu(x):
    # tanh-approximate GELU: tanh runs on the otherwise-idle EUP slot.
    # TODO(synk): torch.nn.functional.gelu default is exact erf; tanh form differs
    #             by <~1e-3 absolute (flagged in review; kept for TPU lowering).
    return 0.5 * x * (1.0 + jnp.tanh(_SQRT_2_OVER_PI * (x + 0.044715 * x * x * x)))


# ------------------------------ fused kernel ---------------------------------
def vit_fused_kernel(
    patches_ref, convw_ref, tokbias_ref,
    ln0w_ref, ln0b_ref, wqkv_ref, wproj_ref, bproj_ref,
    ln1w_ref, ln1b_ref, w1_ref, b1_ref, w2_ref, b2_ref,
    normw_ref, normb_ref, fcw_ref, fcb_ref,
    o_ref,
    attn_ref,          # VMEM scratch (N, DIM): concatenated head outputs
):
    N = patches_ref.shape[0]          # Bt * SEQ_PAD (rows of this batch tile)
    B = N // SEQ_PAD

    # ---- Tokenizer: stride==kernel Conv2d == patch matmul (MXU, bf16 operands).
    #      conv bias + class token + positional embedding are one (SEQ_PAD, D)
    #      additive bias broadcast over the batch tile. -------------------------
    x = jnp.dot(patches_ref[...].astype(jnp.bfloat16), convw_ref[...],
                preferred_element_type=jnp.float32)                      # (N, D) f32
    x = (x.reshape(B, SEQ_PAD, DIM) + tokbias_ref[...][None]).reshape(N, DIM)

    # additive key-padding mask, built in-kernel (compile-time constant)
    kmask = jnp.where(
        jax.lax.broadcasted_iota(jnp.int32, (1, SEQ_PAD), 1) < SEQ,
        0.0, NEG_INF).astype(jnp.float32)                                # (1, SEQ_PAD)

    for l in range(LAYERS):           # LAYERS=2, static unroll
        # ---- self-attention (pre-norm) --------------------------------------
        h = _layernorm(x, ln0w_ref[l], ln0b_ref[l])                      # (N, D) f32

        # fused QKV: one (N, D) @ (D, 3D) matmul; scale already folded into Wq
        qkv = jnp.dot(h.astype(jnp.bfloat16), wqkv_ref[l],
                      preferred_element_type=jnp.float32)                # (N, 3D) f32

        # attention core on the VPU (HEAD_DIM=8 reductions); per-head static loop
        for hd in range(HEADS):
            q = qkv[:, hd * HEAD_DIM:(hd + 1) * HEAD_DIM]
            k = qkv[:, DIM + hd * HEAD_DIM:DIM + (hd + 1) * HEAD_DIM]
            v = qkv[:, 2 * DIM + hd * HEAD_DIM:2 * DIM + (hd + 1) * HEAD_DIM]
            q = q.reshape(B, SEQ_PAD, HEAD_DIM)
            k = k.reshape(B, SEQ_PAD, HEAD_DIM)
            v = v.reshape(B, SEQ_PAD, HEAD_DIM)

            # scores[b, i, j] = sum_e q[b,i,e] * k[b,j,e]   (VPU mul + reduce)
            s = jnp.sum(q[:, :, None, :] * k[:, None, :, :], axis=-1)    # (B, S, S)
            s = s + kmask                                                # mask pad keys
            s = s - jnp.max(s, axis=-1, keepdims=True)
            p = jnp.exp(s)
            p = p * pl.reciprocal(jnp.sum(p, axis=-1, keepdims=True), approx=True)

            # o[b, i, e] = sum_j p[b,i,j] * v[b,j,e]        (VPU mul + reduce)
            o = jnp.sum(p[:, :, :, None] * v[:, None, :, :], axis=2)     # (B, S, HD)
            attn_ref[:, hd * HEAD_DIM:(hd + 1) * HEAD_DIM] = o.reshape(N, HEAD_DIM)

        # output projection: single (N, D) @ (D, D) matmul on concatenated heads
        y = jnp.dot(attn_ref[...].astype(jnp.bfloat16), wproj_ref[l],
                    preferred_element_type=jnp.float32) + bproj_ref[l]   # (N, D)
        x = x + y                                                        # residual 1

        # ---- MLP (CCT layer: norm1 is applied BEFORE the MLP residual) ------
        x = _layernorm(x, ln1w_ref[l], ln1b_ref[l])
        z = jnp.dot(x.astype(jnp.bfloat16), w1_ref[l],
                    preferred_element_type=jnp.float32) + b1_ref[l]
        z = _gelu(z)
        z = jnp.dot(z.astype(jnp.bfloat16), w2_ref[l],
                    preferred_element_type=jnp.float32) + b2_ref[l]
        x = x + z                                                        # residual 2

    # ---- head: LayerNorm + classifier over ALL rows (lane-dense (N, 128) out);
    #      the class-token row is selected in the wrapper (no strided gather). --
    xn = _layernorm(x, normw_ref[...], normb_ref[...])
    o_ref[...] = jnp.dot(xn.astype(jnp.bfloat16), fcw_ref[...],
                         preferred_element_type=jnp.float32) + fcb_ref[...]


# ------------------------------ parameters -----------------------------------
def init_params(key):
    keys = jax.random.split(key, 4 + LAYERS * 8)
    it = iter(keys)

    def nrm(shape, std=0.02):
        return (std * jax.random.normal(next(it), shape)).astype(jnp.float32)

    params = {
        "conv_w": nrm((DIM, CIN, PATCH, PATCH)),        # Conv2d weight (OIHW)
        "conv_b": nrm((DIM,)),                          # Conv2d bias
        "cls": jnp.zeros((1, 1, DIM), jnp.float32),     # class token
        "pos": nrm((1, SEQ, DIM), std=0.2),             # learnable positional embedding
        "norm_w": jnp.ones((1, DIM), jnp.float32),
        "norm_b": jnp.zeros((1, DIM), jnp.float32),
        "fc_w": nrm((CLASSES, DIM)),
        "fc_b": nrm((1, CLASSES)),
        "blocks": [],
    }
    for _ in range(LAYERS):
        params["blocks"].append(dict(
            ln0_w=jnp.ones((1, DIM), jnp.float32), ln0_b=jnp.zeros((1, DIM), jnp.float32),
            wqkv=nrm((3 * DIM, DIM)),
            wproj=nrm((DIM, DIM)), bproj=nrm((1, DIM)),
            ln1_w=jnp.ones((1, DIM), jnp.float32), ln1_b=jnp.zeros((1, DIM), jnp.float32),
            w1=nrm((FFN, DIM)), b1=nrm((1, FFN)),
            w2=nrm((DIM, FFN)), b2=nrm((1, DIM)),
        ))
    return params


def _prep_block_weights(params):
    """Pre-transpose to (in, out), fold softmax scale into the Q columns of the
    fused qkv weight, cast matmul weights to bf16.  O(1) in batch (no replication)."""
    scale = HEAD_DIM ** -0.5
    names = ("ln0w", "ln0b", "wqkv", "wp", "bp", "ln1w", "ln1b", "w1", "b1", "w2", "b2")
    stacks = {n: [] for n in names}
    for blk in params["blocks"]:
        wqkv_t = blk["wqkv"].T                                           # (D, 3D)
        wqkv_t = jnp.concatenate([wqkv_t[:, :DIM] * scale, wqkv_t[:, DIM:]], axis=1)
        stacks["ln0w"].append(blk["ln0_w"]); stacks["ln0b"].append(blk["ln0_b"])
        stacks["wqkv"].append(wqkv_t.astype(jnp.bfloat16))
        stacks["wp"].append(blk["wproj"].T.astype(jnp.bfloat16))
        stacks["bp"].append(blk["bproj"])
        stacks["ln1w"].append(blk["ln1_w"]); stacks["ln1b"].append(blk["ln1_b"])
        stacks["w1"].append(blk["w1"].T.astype(jnp.bfloat16)); stacks["b1"].append(blk["b1"])
        stacks["w2"].append(blk["w2"].T.astype(jnp.bfloat16)); stacks["b2"].append(blk["b2"])
    return {n: jnp.stack(v, axis=0) for n, v in stacks.items()}


def _resident(arr):
    """Full-array VMEM block that stays put across the batch grid."""
    nd = arr.ndim
    return pl.BlockSpec(arr.shape, lambda i, _nd=nd: (0,) * _nd)


# -------------------------------- forward ------------------------------------
def vit_lite_forward(params, x):
    """x: (B, CIN, IMG, IMG) float32, NCHW like PyTorch.  Returns (B, CLASSES)."""
    B = x.shape[0]
    bt = math.gcd(B, 8)            # batch tile (divides B, <= 8)
    nb = B // bt
    rows_per_tile = bt * SEQ_PAD

    # ---- patch extraction + sequence padding (pure layout plumbing) ----------
    xp = x.reshape(B, CIN, NPH, PATCH, NPH, PATCH)
    xp = xp.transpose(0, 2, 4, 1, 3, 5).reshape(B, NPATCH, K)
    patches = jnp.concatenate(
        [jnp.zeros((B, 1, K), jnp.float32),                 # class-token slot
         xp,
         jnp.zeros((B, SEQ_PAD - SEQ, K), jnp.float32)],    # pad slots
        axis=1).reshape(B * SEQ_PAD, K)

    # ---- fold conv bias, class token, positional embedding into ONE (S, D) add
    cls_row = (params["cls"][0] + params["pos"][0, 0:1]).astype(jnp.float32)     # (1, D)
    patch_rows = params["conv_b"].reshape(1, DIM) + params["pos"][0, 1:SEQ]      # (NPATCH, D)
    pad_rows = jnp.zeros((SEQ_PAD - SEQ, DIM), jnp.float32)
    tok_bias = jnp.concatenate([cls_row, patch_rows, pad_rows], axis=0)          # (SEQ_PAD, D)

    conv_wt = params["conv_w"].reshape(DIM, K).T.astype(jnp.bfloat16)            # (K, D)
    blk = _prep_block_weights(params)

    # lane-dense classifier weights (padded to 128 output lanes)
    fc_wt = jnp.zeros((DIM, OUT_PAD), jnp.float32).at[:, :CLASSES].set(
        params["fc_w"].T).astype(jnp.bfloat16)
    fc_b = jnp.zeros((1, OUT_PAD), jnp.float32).at[:, :CLASSES].set(params["fc_b"])

    args = (
        patches, conv_wt, tok_bias,
        blk["ln0w"], blk["ln0b"], blk["wqkv"], blk["wp"], blk["bp"],
        blk["ln1w"], blk["ln1b"], blk["w1"], blk["b1"], blk["w2"], blk["b2"],
        params["norm_w"], params["norm_b"], fc_wt, fc_b,
    )

    in_specs = [pl.BlockSpec((rows_per_tile, K), lambda i: (i, 0))]      # patch rows: tiled
    in_specs += [_resident(a) for a in args[1:]]                         # weights: resident

    out = pl.pallas_call(
        vit_fused_kernel,
        out_shape=jax.ShapeDtypeStruct((B * SEQ_PAD, OUT_PAD), jnp.float32),
        grid=(nb,),
        in_specs=in_specs,
        out_specs=pl.BlockSpec((rows_per_tile, OUT_PAD), lambda i: (i, 0)),
        scratch_shapes=[pltpu.VMEM((rows_per_tile, DIM), jnp.float32)],
        compiler_params=pltpu.CompilerParams(dimension_semantics=("parallel",)),
    )(*args)

    # select the class-token row per batch and the real class lanes (pure layout)
    return out.reshape(B, SEQ_PAD, OUT_PAD)[:, 0, :CLASSES]


# ---------------------------------- main --------------------------------------
if __name__ == "__main__":
    key = jax.random.PRNGKey(0)
    pkey, xkey = jax.random.split(key)
    params = init_params(pkey)
    x = jax.random.normal(xkey, (2, CIN, IMG, IMG), dtype=jnp.float32)

    fwd = jax.jit(vit_lite_forward)
    out = fwd(params, x)
    out = jax.block_until_ready(out)

    assert out.shape == (2, CLASSES), out.shape
    assert jnp.all(jnp.isfinite(out))
    print("KERNEL_OK")
</pallas_src>

<mosaic_0001>
module attributes {stable_mosaic.version = 11 : i64} {
  func.func @vit_fused_kernel(%arg0: i32, %arg1: memref<16x192xf32, #tpu.memory_space<vmem>>, %arg2: memref<192x32xbf16, #tpu.memory_space<vmem>>, %arg3: memref<8x32xf32, #tpu.memory_space<vmem>>, %arg4: memref<2x1x32xf32, #tpu.memory_space<vmem>>, %arg5: memref<2x1x32xf32, #tpu.memory_space<vmem>>, %arg6: memref<2x32x96xbf16, #tpu.memory_space<vmem>>, %arg7: memref<2x32x32xbf16, #tpu.memory_space<vmem>>, %arg8: memref<2x1x32xf32, #tpu.memory_space<vmem>>, %arg9: memref<2x1x32xf32, #tpu.memory_space<vmem>>, %arg10: memref<2x1x32xf32, #tpu.memory_space<vmem>>, %arg11: memref<2x32x128xbf16, #tpu.memory_space<vmem>>, %arg12: memref<2x1x128xf32, #tpu.memory_space<vmem>>, %arg13: memref<2x128x32xbf16, #tpu.memory_space<vmem>>, %arg14: memref<2x1x32xf32, #tpu.memory_space<vmem>>, %arg15: memref<1x32xf32, #tpu.memory_space<vmem>>, %arg16: memref<1x32xf32, #tpu.memory_space<vmem>>, %arg17: memref<32x128xbf16, #tpu.memory_space<vmem>>, %arg18: memref<1x128xf32, #tpu.memory_space<vmem>>, %arg19: memref<16x128xf32, #tpu.memory_space<vmem>>, %arg20: memref<16x32xf32, #tpu.memory_space<vmem>>) attributes {dimension_semantics = [#tpu.dimension_semantics<parallel>], iteration_bounds = array<i64: 1>, scalar_prefetch = 0 : i64, scratch_operands = 1 : i64, tpu.core_type = #tpu.core_type<tc>, window_params = [{transform_indices = @transform_0, window_bounds = array<i64: 16, 192>}, {pipeline_mode = #tpu.pipeline_mode<synchronous>, transform_indices = @transform_1, window_bounds = array<i64: 192, 32>}, {pipeline_mode = #tpu.pipeline_mode<synchronous>, transform_indices = @transform_2, window_bounds = array<i64: 8, 32>}, {pipeline_mode = #tpu.pipeline_mode<synchronous>, transform_indices = @transform_3, window_bounds = array<i64: 2, 1, 32>}, {pipeline_mode = #tpu.pipeline_mode<synchronous>, transform_indices = @transform_4, window_bounds = array<i64: 2, 1, 32>}, {pipeline_mode = #tpu.pipeline_mode<synchronous>, transform_indices = @transform_5, window_bounds = array<i64: 2, 32, 96>}, {pipeline_mode = #tpu.pipeline_mode<synchronous>, transform_indices = @transform_6, window_bounds = array<i64: 2, 32, 32>}, {pipeline_mode = #tpu.pipeline_mode<synchronous>, transform_indices = @transform_7, window_bounds = array<i64: 2, 1, 32>}, {pipeline_mode = #tpu.pipeline_mode<synchronous>, transform_indices = @transform_8, window_bounds = array<i64: 2, 1, 32>}, {pipeline_mode = #tpu.pipeline_mode<synchronous>, transform_indices = @transform_9, window_bounds = array<i64: 2, 1, 32>}, {pipeline_mode = #tpu.pipeline_mode<synchronous>, transform_indices = @transform_10, window_bounds = array<i64: 2, 32, 128>}, {pipeline_mode = #tpu.pipeline_mode<synchronous>, transform_indices = @transform_11, window_bounds = array<i64: 2, 1, 128>}, {pipeline_mode = #tpu.pipeline_mode<synchronous>, transform_indices = @transform_12, window_bounds = array<i64: 2, 128, 32>}, {pipeline_mode = #tpu.pipeline_mode<synchronous>, transform_indices = @transform_13, window_bounds = array<i64: 2, 1, 32>}, {pipeline_mode = #tpu.pipeline_mode<synchronous>, transform_indices = @transform_14, window_bounds = array<i64: 1, 32>}, {pipeline_mode = #tpu.pipeline_mode<synchronous>, transform_indices = @transform_15, window_bounds = array<i64: 1, 32>}, {pipeline_mode = #tpu.pipeline_mode<synchronous>, transform_indices = @transform_16, window_bounds = array<i64: 32, 128>}, {pipeline_mode = #tpu.pipeline_mode<synchronous>, transform_indices = @transform_17, window_bounds = array<i64: 1, 128>}, {transform_indices = @transform_18, window_bounds = array<i64: 16, 128>}]} {
    %c0 = arith.constant 0 : index
    %c0_0 = arith.constant 0 : index
    %0 = vector.load %arg1[%c0, %c0_0] : memref<16x192xf32, #tpu.memory_space<vmem>>, vector<16x192xf32>
    %1 = arith.truncf %0 : vector<16x192xf32> to vector<16x192xbf16>
    %c0_1 = arith.constant 0 : index
    %c0_2 = arith.constant 0 : index
    %2 = vector.load %arg2[%c0_1, %c0_2] : memref<192x32xbf16, #tpu.memory_space<vmem>>, vector<192x32xbf16>
    %cst = arith.constant dense<0.000000e+00> : vector<16x32xf32>
    %3 = tpu.matmul %1, %2, %cst {dimension_numbers = #tpu.dot_dimension_numbers<[1], [0], [0], [1], [0, 0, 1, 1], [], []>} : vector<16x192xbf16>, vector<192x32xbf16>, vector<16x32xf32> -> vector<16x32xf32>
    %4 = vector.shape_cast %3 : vector<16x32xf32> to vector<2x8x32xf32>
    %c0_3 = arith.constant 0 : index
    %c0_4 = arith.constant 0 : index
    %5 = vector.load %arg3[%c0_3, %c0_4] : memref<8x32xf32, #tpu.memory_space<vmem>>, vector<8x32xf32>
    %6 = vector.shape_cast %5 : vector<8x32xf32> to vector<1x8x32xf32>
    %7 = vector.broadcast %6 : vector<1x8x32xf32> to vector<2x8x32xf32>
    %8 = arith.addf %4, %7 : vector<2x8x32xf32>
    %9 = vector.shape_cast %8 : vector<2x8x32xf32> to vector<16x32xf32>
    %10 = tpu.iota {dimensions = array<i32: 1>} : vector<1x8xi32>
    %c5_i32 = arith.constant 5 : i32
    %11 = vector.broadcast %c5_i32 : i32 to vector<1x8xi32>
    %12 = arith.cmpi slt, %10, %11 : vector<1x8xi32>
    %cst_5 = arith.constant 0.000000e+00 : f32
    %cst_6 = arith.constant -1.000000e+30 : f32
    %13 = vector.broadcast %cst_5 : f32 to vector<1x8xf32>
    %14 = vector.broadcast %cst_6 : f32 to vector<1x8xf32>
    %15 = arith.select %12, %13, %14 : vector<1x8xi1>, vector<1x8xf32>
    %c0_7 = arith.constant 0 : index
    %c0_8 = arith.constant 0 : index
    %c0_9 = arith.constant 0 : index
    %16 = vector.load %arg4[%c0_7, %c0_8, %c0_9] : memref<2x1x32xf32, #tpu.memory_space<vmem>>, vector<1x1x32xf32>
    %17 = vector.shape_cast %16 : vector<1x1x32xf32> to vector<1x32xf32>
    %c0_10 = arith.constant 0 : index
    %c0_11 = arith.constant 0 : index
    %c0_12 = arith.constant 0 : index
    %18 = vector.load %arg5[%c0_10, %c0_11, %c0_12] : memref<2x1x32xf32, #tpu.memory_space<vmem>>, vector<1x1x32xf32>
    %19 = vector.shape_cast %18 : vector<1x1x32xf32> to vector<1x32xf32>
    %cst_13 = arith.constant dense<0.000000e+00> : vector<16xf32>
    %20 = vector.multi_reduction <add>, %9, %cst_13 [1] : vector<16x32xf32> to vector<16xf32>
    %21 = vector.shape_cast %20 : vector<16xf32> to vector<16x1xf32>
    %cst_14 = arith.constant 3.200000e+01 : f32
    %22 = vector.broadcast %cst_14 : f32 to vector<16x1xf32>
    %23 = arith.divf %21, %22 : vector<16x1xf32>
    %24 = vector.broadcast %23 : vector<16x1xf32> to vector<16x32xf32>
    %25 = arith.subf %9, %24 : vector<16x32xf32>
    %26 = arith.mulf %25, %25 : vector<16x32xf32>
    %cst_15 = arith.constant dense<0.000000e+00> : vector<16xf32>
    %27 = vector.multi_reduction <add>, %26, %cst_15 [1] : vector<16x32xf32> to vector<16xf32>
    %28 = vector.shape_cast %27 : vector<16xf32> to vector<16x1xf32>
    %cst_16 = arith.constant 3.200000e+01 : f32
    %29 = vector.broadcast %cst_16 : f32 to vector<16x1xf32>
    %30 = arith.divf %28, %29 : vector<16x1xf32>
    %cst_17 = arith.constant 9.99999974E-6 : f32
    %31 = vector.broadcast %cst_17 : f32 to vector<16x1xf32>
    %32 = arith.addf %30, %31 : vector<16x1xf32>
    %33 = math.rsqrt %32 : vector<16x1xf32>
    %34 = vector.broadcast %33 : vector<16x1xf32> to vector<16x32xf32>
    %35 = arith.mulf %25, %34 : vector<16x32xf32>
    %36 = vector.broadcast %17 : vector<1x32xf32> to vector<16x32xf32>
    %37 = arith.mulf %35, %36 : vector<16x32xf32>
    %38 = vector.broadcast %19 : vector<1x32xf32> to vector<16x32xf32>
    %39 = arith.addf %37, %38 : vector<16x32xf32>
    %40 = arith.truncf %39 : vector<16x32xf32> to vector<16x32xbf16>
    %c0_18 = arith.constant 0 : index
    %c0_19 = arith.constant 0 : index
    %c0_20 = arith.constant 0 : index
    %41 = vector.load %arg6[%c0_18, %c0_19, %c0_20] : memref<2x32x96xbf16, #tpu.memory_space<vmem>>, vector<1x32x96xbf16>
    %42 = vector.shape_cast %41 : vector<1x32x96xbf16> to vector<32x96xbf16>
    %cst_21 = arith.constant dense<0.000000e+00> : vector<16x96xf32>
    %43 = tpu.matmul %40, %42, %cst_21 {dimension_numbers = #tpu.dot_dimension_numbers<[1], [0], [0], [1], [0, 0, 1, 1], [], []>} : vector<16x32xbf16>, vector<32x96xbf16>, vector<16x96xf32> -> vector<16x96xf32>
    %44 = vector.extract_strided_slice %43 {offsets = [0, 0], sizes = [16, 8], strides = [1, 1]} : vector<16x96xf32> to vector<16x8xf32>
    %45 = vector.extract_strided_slice %43 {offsets = [0, 32], sizes = [16, 8], strides = [1, 1]} : vector<16x96xf32> to vector<16x8xf32>
    %46 = vector.extract_strided_slice %43 {offsets = [0, 64], sizes = [16, 8], strides = [1, 1]} : vector<16x96xf32> to vector<16x8xf32>
    %47 = vector.shape_cast %44 : vector<16x8xf32> to vector<2x8x8xf32>
    %48 = vector.shape_cast %45 : vector<16x8xf32> to vector<2x8x8xf32>
    %49 = vector.shape_cast %46 : vector<16x8xf32> to vector<2x8x8xf32>
    %50 = vector.shape_cast %47 : vector<2x8x8xf32> to vector<2x8x1x8xf32>
    %51 = vector.shape_cast %48 : vector<2x8x8xf32> to vector<2x1x8x8xf32>
    %52 = vector.broadcast %50 : vector<2x8x1x8xf32> to vector<2x8x8x8xf32>
    %53 = vector.broadcast %51 : vector<2x1x8x8xf32> to vector<2x8x8x8xf32>
    %54 = arith.mulf %52, %53 : vector<2x8x8x8xf32>
    %cst_22 = arith.constant dense<0.000000e+00> : vector<2x8x8xf32>
    %55 = vector.multi_reduction <add>, %54, %cst_22 [3] : vector<2x8x8x8xf32> to vector<2x8x8xf32>
    %56 = vector.shape_cast %15 : vector<1x8xf32> to vector<1x1x8xf32>
    %57 = vector.broadcast %56 : vector<1x1x8xf32> to vector<2x8x8xf32>
    %58 = arith.addf %55, %57 : vector<2x8x8xf32>
    %cst_23 = arith.constant dense<0xFF800000> : vector<2x8xf32>
    %59 = vector.multi_reduction <maximumf>, %58, %cst_23 [2] : vector<2x8x8xf32> to vector<2x8xf32>
    %60 = vector.shape_cast %59 : vector<2x8xf32> to vector<2x8x1xf32>
    %61 = vector.broadcast %60 : vector<2x8x1xf32> to vector<2x8x8xf32>
    %62 = arith.subf %58, %61 : vector<2x8x8xf32>
    %63 = math.exp %62 : vector<2x8x8xf32>
    %cst_24 = arith.constant dense<0.000000e+00> : vector<2x8xf32>
    %64 = vector.multi_reduction <add>, %63, %cst_24 [2] : vector<2x8x8xf32> to vector<2x8xf32>
    %65 = vector.shape_cast %64 : vector<2x8xf32> to vector<2x8x1xf32>
    %66 = tpu.reciprocal %65 {approx = true} : vector<2x8x1xf32> -> vector<2x8x1xf32>
    %67 = vector.broadcast %66 : vector<2x8x1xf32> to vector<2x8x8xf32>
    %68 = arith.mulf %63, %67 : vector<2x8x8xf32>
    %69 = vector.shape_cast %68 : vector<2x8x8xf32> to vector<2x8x8x1xf32>
    %70 = vector.shape_cast %49 : vector<2x8x8xf32> to vector<2x1x8x8xf32>
    %71 = vector.broadcast %69 : vector<2x8x8x1xf32> to vector<2x8x8x8xf32>
    %72 = vector.broadcast %70 : vector<2x1x8x8xf32> to vector<2x8x8x8xf32>
    %73 = arith.mulf %71, %72 : vector<2x8x8x8xf32>
    %cst_25 = arith.constant dense<0.000000e+00> : vector<2x8x8xf32>
    %74 = vector.multi_reduction <add>, %73, %cst_25 [2] : vector<2x8x8x8xf32> to vector<2x8x8xf32>
    %75 = vector.shape_cast %74 : vector<2x8x8xf32> to vector<16x8xf32>
    %c0_26 = arith.constant 0 : index
    %c0_27 = arith.constant 0 : index
    %76 = vector.load %arg20[%c0_26, %c0_27] : memref<16x32xf32, #tpu.memory_space<vmem>>, vector<16x8xf32>
    tpu.vector_store %arg20[%c0_26, %c0_27], %75 {strides = array<i32>} : memref<16x32xf32, #tpu.memory_space<vmem>>, vector<16x8xf32>,
    %77 = vector.extract_strided_slice %43 {offsets = [0, 8], sizes = [16, 8], strides = [1, 1]} : vector<16x96xf32> to vector<16x8xf32>
    %78 = vector.extract_strided_slice %43 {offsets = [0, 40], sizes = [16, 8], strides = [1, 1]} : vector<16x96xf32> to vector<16x8xf32>
    %79 = vector.extract_strided_slice %43 {offsets = [0, 72], sizes = [16, 8], strides = [1, 1]} : vector<16x96xf32> to vector<16x8xf32>
    %80 = vector.shape_cast %77 : vector<16x8xf32> to vector<2x8x8xf32>
    %81 = vector.shape_cast %78 : vector<16x8xf32> to vector<2x8x8xf32>
    %82 = vector.shape_cast %79 : vector<16x8xf32> to vector<2x8x8xf32>
    %83 = vector.shape_cast %80 : vector<2x8x8xf32> to vector<2x8x1x8xf32>
    %84 = vector.shape_cast %81 : vector<2x8x8xf32> to vector<2x1x8x8xf32>
    %85 = vector.broadcast %83 : vector<2x8x1x8xf32> to vector<2x8x8x8xf32>
    %86 = vector.broadcast %84 : vector<2x1x8x8xf32> to vector<2x8x8x8xf32>
    %87 = arith.mulf %85, %86 : vector<2x8x8x8xf32>
    %cst_28 = arith.constant dense<0.000000e+00> : vector<2x8x8xf32>
    %88 = vector.multi_reduction <add>, %87, %cst_28 [3] : vector<2x8x8x8xf32> to vector<2x8x8xf32>
    %89 = vector.shape_cast %15 : vector<1x8xf32> to vector<1x1x8xf32>
    %90 = vector.broadcast %89 : vector<1x1x8xf32> to vector<2x8x8xf32>
    %91 = arith.addf %88, %90 : vector<2x8x8xf32>
    %cst_29 = arith.constant dense<0xFF800000> : vector<2x8xf32>
    %92 = vector.multi_reduction <maximumf>, %91, %cst_29 [2] : vector<2x8x8xf32> to vector<2x8xf32>
    %93 = vector.shape_cast %92 : vector<2x8xf32> to vector<2x8x1xf32>
    %94 = vector.broadcast %93 : vector<2x8x1xf32> to vector<2x8x8xf32>
    %95 = arith.subf %91, %94 : vector<2x8x8xf32>
    %96 = math.exp %95 : vector<2x8x8xf32>
    %cst_30 = arith.constant dense<0.000000e+00> : vector<2x8xf32>
    %97 = vector.multi_reduction <add>, %96, %cst_30 [2] : vector<2x8x8xf32> to vector<2x8xf32>
    %98 = vector.shape_cast %97 : vector<2x8xf32> to vector<2x8x1xf32>
    %99 = tpu.reciprocal %98 {approx = true} : vector<2x8x1xf32> -> vector<2x8x1xf32>
    %100 = vector.broadcast %99 : vector<2x8x1xf32> to vector<2x8x8xf32>
    %101 = arith.mulf %96, %100 : vector<2x8x8xf32>
    %102 = vector.shape_cast %101 : vector<2x8x8xf32> to vector<2x8x8x1xf32>
    %103 = vector.shape_cast %82 : vector<2x8x8xf32> to vector<2x1x8x8xf32>
    %104 = vector.broadcast %102 : vector<2x8x8x1xf32> to vector<2x8x8x8xf32>
    %105 = vector.broadcast %103 : vector<2x1x8x8xf32> to vector<2x8x8x8xf32>
    %106 = arith.mulf %104, %105 : vector<2x8x8x8xf32>
    %cst_31 = arith.constant dense<0.000000e+00> : vector<2x8x8xf32>
    %107 = vector.multi_reduction <add>, %106, %cst_31 [2] : vector<2x8x8x8xf32> to vector<2x8x8xf32>
    %108 = vector.shape_cast %107 : vector<2x8x8xf32> to vector<16x8xf32>
    %c0_32 = arith.constant 0 : index
    %c8 = arith.constant 8 : index
    %109 = vector.load %arg20[%c0_32, %c8] : memref<16x32xf32, #tpu.memory_space<vmem>>, vector<16x8xf32>
    tpu.vector_store %arg20[%c0_32, %c8], %108 {strides = array<i32>} : memref<16x32xf32, #tpu.memory_space<vmem>>, vector<16x8xf32>,
    %110 = vector.extract_strided_slice %43 {offsets = [0, 16], sizes = [16, 8], strides = [1, 1]} : vector<16x96xf32> to vector<16x8xf32>
    %111 = vector.extract_strided_slice %43 {offsets = [0, 48], sizes = [16, 8], strides = [1, 1]} : vector<16x96xf32> to vector<16x8xf32>
    %112 = vector.extract_strided_slice %43 {offsets = [0, 80], sizes = [16, 8], strides = [1, 1]} : vector<16x96xf32> to vector<16x8xf32>
    %113 = vector.shape_cast %110 : vector<16x8xf32> to vector<2x8x8xf32>
    %114 = vector.shape_cast %111 : vector<16x8xf32> to vector<2x8x8xf32>
    %115 = vector.shape_cast %112 : vector<16x8xf32> to vector<2x8x8xf32>
    %116 = vector.shape_cast %113 : vector<2x8x8xf32> to vector<2x8x1x8xf32>
    %117 = vector.shape_cast %114 : vector<2x8x8xf32> to vector<2x1x8x8xf32>
    %118 = vector.broadcast %116 : vector<2x8x1x8xf32> to vector<2x8x8x8xf32>
    %119 = vector.broadcast %117 : vector<2x1x8x8xf32> to vector<2x8x8x8xf32>
    %120 = arith.mulf %118, %119 : vector<2x8x8x8xf32>
    %cst_33 = arith.constant dense<0.000000e+00> : vector<2x8x8xf32>
    %121 = vector.multi_reduction <add>, %120, %cst_33 [3] : vector<2x8x8x8xf32> to vector<2x8x8xf32>
    %122 = vector.shape_cast %15 : vector<1x8xf32> to vector<1x1x8xf32>
    %123 = vector.broadcast %122 : vector<1x1x8xf32> to vector<2x8x8xf32>
    %124 = arith.addf %121, %123 : vector<2x8x8xf32>
    %cst_34 = arith.constant dense<0xFF800000> : vector<2x8xf32>
    %125 = vector.multi_reduction <maximumf>, %124, %cst_34 [2] : vector<2x8x8xf32> to vector<2x8xf32>
    %126 = vector.shape_cast %125 : vector<2x8xf32> to vector<2x8x1xf32>
    %127 = vector.broadcast %126 : vector<2x8x1xf32> to vector<2x8x8xf32>
    %128 = arith.subf %124, %127 : vector<2x8x8xf32>
    %129 = math.exp %128 : vector<2x8x8xf32>
    %cst_35 = arith.constant dense<0.000000e+00> : vector<2x8xf32>
    %130 = vector.multi_reduction <add>, %129, %cst_35 [2] : vector<2x8x8xf32> to vector<2x8xf32>
    %131 = vector.shape_cast %130 : vector<2x8xf32> to vector<2x8x1xf32>
    %132 = tpu.reciprocal %131 {approx = true} : vector<2x8x1xf32> -> vector<2x8x1xf32>
    %133 = vector.broadcast %132 : vector<2x8x1xf32> to vector<2x8x8xf32>
    %134 = arith.mulf %129, %133 : vector<2x8x8xf32>
    %135 = vector.shape_cast %134 : vector<2x8x8xf32> to vector<2x8x8x1xf32>
    %136 = vector.shape_cast %115 : vector<2x8x8xf32> to vector<2x1x8x8xf32>
    %137 = vector.broadcast %135 : vector<2x8x8x1xf32> to vector<2x8x8x8xf32>
    %138 = vector.broadcast %136 : vector<2x1x8x8xf32> to vector<2x8x8x8xf32>
    %139 = arith.mulf %137, %138 : vector<2x8x8x8xf32>
    %cst_36 = arith.constant dense<0.000000e+00> : vector<2x8x8xf32>
    %140 = vector.multi_reduction <add>, %139, %cst_36 [2] : vector<2x8x8x8xf32> to vector<2x8x8xf32>
    %141 = vector.shape_cast %140 : vector<2x8x8xf32> to vector<16x8xf32>
    %c0_37 = arith.constant 0 : index
    %c16 = arith.constant 16 : index
    %142 = vector.load %arg20[%c0_37, %c16] : memref<16x32xf32, #tpu.memory_space<vmem>>, vector<16x8xf32>
    tpu.vector_store %arg20[%c0_37, %c16], %141 {strides = array<i32>} : memref<16x32xf32, #tpu.memory_space<vmem>>, vector<16x8xf32>,
    %143 = vector.extract_strided_slice %43 {offsets = [0, 24], sizes = [16, 8], strides = [1, 1]} : vector<16x96xf32> to vector<16x8xf32>
    %144 = vector.extract_strided_slice %43 {offsets = [0, 56], sizes = [16, 8], strides = [1, 1]} : vector<16x96xf32> to vector<16x8xf32>
    %145 = vector.extract_strided_slice %43 {offsets = [0, 88], sizes = [16, 8], strides = [1, 1]} : vector<16x96xf32> to vector<16x8xf32>
    %146 = vector.shape_cast %143 : vector<16x8xf32> to vector<2x8x8xf32>
    %147 = vector.shape_cast %144 : vector<16x8xf32> to vector<2x8x8xf32>
    %148 = vector.shape_cast %145 : vector<16x8xf32> to vector<2x8x8xf32>
    %149 = vector.shape_cast %146 : vector<2x8x8xf32> to vector<2x8x1x8xf32>
    %150 = vector.shape_cast %147 : vector<2x8x8xf32> to vector<2x1x8x8xf32>
    %151 = vector.broadcast %149 : vector<2x8x1x8xf32> to vector<2x8x8x8xf32>
    %152 = vector.broadcast %150 : vector<2x1x8x8xf32> to vector<2x8x8x8xf32>
    %153 = arith.mulf %151, %152 : vector<2x8x8x8xf32>
    %cst_38 = arith.constant dense<0.000000e+00> : vector<2x8x8xf32>
    %154 = vector.multi_reduction <add>, %153, %cst_38 [3] : vector<2x8x8x8xf32> to vector<2x8x8xf32>
    %155 = vector.shape_cast %15 : vector<1x8xf32> to vector<1x1x8xf32>
    %156 = vector.broadcast %155 : vector<1x1x8xf32> to vector<2x8x8xf32>
    %157 = arith.addf %154, %156 : vector<2x8x8xf32>
    %cst_39 = arith.constant dense<0xFF800000> : vector<2x8xf32>
    %158 = vector.multi_reduction <maximumf>, %157, %cst_39 [2] : vector<2x8x8xf32> to vector<2x8xf32>
    %159 = vector.shape_cast %158 : vector<2x8xf32> to vector<2x8x1xf32>
    %160 = vector.broadcast %159 : vector<2x8x1xf32> to vector<2x8x8xf32>
    %161 = arith.subf %157, %160 : vector<2x8x8xf32>
    %162 = math.exp %161 : vector<2x8x8xf32>
    %cst_40 = arith.constant dense<0.000000e+00> : vector<2x8xf32>
    %163 = vector.multi_reduction <add>, %162, %cst_40 [2] : vector<2x8x8xf32> to vector<2x8xf32>
    %164 = vector.shape_cast %163 : vector<2x8xf32> to vector<2x8x1xf32>
    %165 = tpu.reciprocal %164 {approx = true} : vector<2x8x1xf32> -> vector<2x8x1xf32>
    %166 = vector.broadcast %165 : vector<2x8x1xf32> to vector<2x8x8xf32>
    %167 = arith.mulf %162, %166 : vector<2x8x8xf32>
    %168 = vector.shape_cast %167 : vector<2x8x8xf32> to vector<2x8x8x1xf32>
    %169 = vector.shape_cast %148 : vector<2x8x8xf32> to vector<2x1x8x8xf32>
    %170 = vector.broadcast %168 : vector<2x8x8x1xf32> to vector<2x8x8x8xf32>
    %171 = vector.broadcast %169 : vector<2x1x8x8xf32> to vector<2x8x8x8xf32>
    %172 = arith.mulf %170, %171 : vector<2x8x8x8xf32>
    %cst_41 = arith.constant dense<0.000000e+00> : vector<2x8x8xf32>
    %173 = vector.multi_reduction <add>, %172, %cst_41 [2] : vector<2x8x8x8xf32> to vector<2x8x8xf32>
    %174 = vector.shape_cast %173 : vector<2x8x8xf32> to vector<16x8xf32>
    %c0_42 = arith.constant 0 : index
    %c24 = arith.constant 24 : index
    %175 = vector.load %arg20[%c0_42, %c24] : memref<16x32xf32, #tpu.memory_space<vmem>>, vector<16x8xf32>
    tpu.vector_store %arg20[%c0_42, %c24], %174 {strides = array<i32>} : memref<16x32xf32, #tpu.memory_space<vmem>>, vector<16x8xf32>,
    %c0_43 = arith.constant 0 : index
    %c0_44 = arith.constant 0 : index
    %176 = vector.load %arg20[%c0_43, %c0_44] : memref<16x32xf32, #tpu.memory_space<vmem>>, vector<16x32xf32>
    %177 = arith.truncf %176 : vector<16x32xf32> to vector<16x32xbf16>
    %c0_45 = arith.constant 0 : index
    %c0_46 = arith.constant 0 : index
    %c0_47 = arith.constant 0 : index
    %178 = vector.load %arg7[%c0_45, %c0_46, %c0_47] : memref<2x32x32xbf16, #tpu.memory_space<vmem>>, vector<1x32x32xbf16>
    %179 = vector.shape_cast %178 : vector<1x32x32xbf16> to vector<32x32xbf16>
    %cst_48 = arith.constant dense<0.000000e+00> : vector<16x32xf32>
    %180 = tpu.matmul %177, %179, %cst_48 {dimension_numbers = #tpu.dot_dimension_numbers<[1], [0], [0], [1], [0, 0, 1, 1], [], []>} : vector<16x32xbf16>, vector<32x32xbf16>, vector<16x32xf32> -> vector<16x32xf32>
    %c0_49 = arith.constant 0 : index
    %c0_50 = arith.constant 0 : index
    %c0_51 = arith.constant 0 : index
    %181 = vector.load %arg8[%c0_49, %c0_50, %c0_51] : memref<2x1x32xf32, #tpu.memory_space<vmem>>, vector<1x1x32xf32>
    %182 = vector.shape_cast %181 : vector<1x1x32xf32> to vector<1x32xf32>
    %183 = vector.broadcast %182 : vector<1x32xf32> to vector<16x32xf32>
    %184 = arith.addf %180, %183 : vector<16x32xf32>
    %185 = arith.addf %9, %184 : vector<16x32xf32>
    %c0_52 = arith.constant 0 : index
    %c0_53 = arith.constant 0 : index
    %c0_54 = arith.constant 0 : index
    %186 = vector.load %arg9[%c0_52, %c0_53, %c0_54] : memref<2x1x32xf32, #tpu.memory_space<vmem>>, vector<1x1x32xf32>
    %187 = vector.shape_cast %186 : vector<1x1x32xf32> to vector<1x32xf32>
    %c0_55 = arith.constant 0 : index
    %c0_56 = arith.constant 0 : index
    %c0_57 = arith.constant 0 : index
    %188 = vector.load %arg10[%c0_55, %c0_56, %c0_57] : memref<2x1x32xf32, #tpu.memory_space<vmem>>, vector<1x1x32xf32>
    %189 = vector.shape_cast %188 : vector<1x1x32xf32> to vector<1x32xf32>
    %cst_58 = arith.constant dense<0.000000e+00> : vector<16xf32>
    %190 = vector.multi_reduction <add>, %185, %cst_58 [1] : vector<16x32xf32> to vector<16xf32>
    %191 = vector.shape_cast %190 : vector<16xf32> to vector<16x1xf32>
    %cst_59 = arith.constant 3.200000e+01 : f32
    %192 = vector.broadcast %cst_59 : f32 to vector<16x1xf32>
    %193 = arith.divf %191, %192 : vector<16x1xf32>
    %194 = vector.broadcast %193 : vector<16x1xf32> to vector<16x32xf32>
    %195 = arith.subf %185, %194 : vector<16x32xf32>
    %196 = arith.mulf %195, %195 : vector<16x32xf32>
    %cst_60 = arith.constant dense<0.000000e+00> : vector<16xf32>
    %197 = vector.multi_reduction <add>, %196, %cst_60 [1] : vector<16x32xf32> to vector<16xf32>
    %198 = vector.shape_cast %197 : vector<16xf32> to vector<16x1xf32>
    %cst_61 = arith.constant 3.200000e+01 : f32
    %199 = vector.broadcast %cst_61 : f32 to vector<16x1xf32>
    %200 = arith.divf %198, %199 : vector<16x1xf32>
    %cst_62 = arith.constant 9.99999974E-6 : f32
    %201 = vector.broadcast %cst_62 : f32 to vector<16x1xf32>
    %202 = arith.addf %200, %201 : vector<16x1xf32>
    %203 = math.rsqrt %202 : vector<16x1xf32>
    %204 = vector.broadcast %203 : vector<16x1xf32> to vector<16x32xf32>
    %205 = arith.mulf %195, %204 : vector<16x32xf32>
    %206 = vector.broadcast %187 : vector<1x32xf32> to vector<16x32xf32>
    %207 = arith.mulf %205, %206 : vector<16x32xf32>
    %208 = vector.broadcast %189 : vector<1x32xf32> to vector<16x32xf32>
    %209 = arith.addf %207, %208 : vector<16x32xf32>
    %210 = arith.truncf %209 : vector<16x32xf32> to vector<16x32xbf16>
    %c0_63 = arith.constant 0 : index
    %c0_64 = arith.constant 0 : index
    %c0_65 = arith.constant 0 : index
    %211 = vector.load %arg11[%c0_63, %c0_64, %c0_65] : memref<2x32x128xbf16, #tpu.memory_space<vmem>>, vector<1x32x128xbf16>
    %212 = vector.shape_cast %211 : vector<1x32x128xbf16> to vector<32x128xbf16>
    %cst_66 = arith.constant dense<0.000000e+00> : vector<16x128xf32>
    %213 = tpu.matmul %210, %212, %cst_66 {dimension_numbers = #tpu.dot_dimension_numbers<[1], [0], [0], [1], [0, 0, 1, 1], [], []>} : vector<16x32xbf16>, vector<32x128xbf16>, vector<16x128xf32> -> vector<16x128xf32>
    %c0_67 = arith.constant 0 : index
    %c0_68 = arith.constant 0 : index
    %c0_69 = arith.constant 0 : index
    %214 = vector.load %arg12[%c0_67, %c0_68, %c0_69] : memref<2x1x128xf32, #tpu.memory_space<vmem>>, vector<1x1x128xf32>
    %215 = vector.shape_cast %214 : vector<1x1x128xf32> to vector<1x128xf32>
    %216 = vector.broadcast %215 : vector<1x128xf32> to vector<16x128xf32>
    %217 = arith.addf %213, %216 : vector<16x128xf32>
    %cst_70 = arith.constant 5.000000e-01 : f32
    %218 = vector.broadcast %cst_70 : f32 to vector<16x128xf32>
    %219 = arith.mulf %218, %217 : vector<16x128xf32>
    %cst_71 = arith.constant 4.471500e-02 : f32
    %220 = vector.broadcast %cst_71 : f32 to vector<16x128xf32>
    %221 = arith.mulf %220, %217 : vector<16x128xf32>
    %222 = arith.mulf %221, %217 : vector<16x128xf32>
    %223 = arith.mulf %222, %217 : vector<16x128xf32>
    %224 = arith.addf %217, %223 : vector<16x128xf32>
    %cst_72 = arith.constant 0.797884583 : f32
    %225 = vector.broadcast %cst_72 : f32 to vector<16x128xf32>
    %226 = arith.mulf %225, %224 : vector<16x128xf32>
    %227 = math.tanh %226 : vector<16x128xf32>
    %cst_73 = arith.constant 1.000000e+00 : f32
    %228 = vector.broadcast %cst_73 : f32 to vector<16x128xf32>
    %229 = arith.addf %228, %227 : vector<16x128xf32>
    %230 = arith.mulf %219, %229 : vector<16x128xf32>
    %231 = arith.truncf %230 : vector<16x128xf32> to vector<16x128xbf16>
    %c0_74 = arith.constant 0 : index
    %c0_75 = arith.constant 0 : index
    %c0_76 = arith.constant 0 : index
    %232 = vector.load %arg13[%c0_74, %c0_75, %c0_76] : memref<2x128x32xbf16, #tpu.memory_space<vmem>>, vector<1x128x32xbf16>
    %233 = vector.shape_cast %232 : vector<1x128x32xbf16> to vector<128x32xbf16>
    %cst_77 = arith.constant dense<0.000000e+00> : vector<16x32xf32>
    %234 = tpu.matmul %231, %233, %cst_77 {dimension_numbers = #tpu.dot_dimension_numbers<[1], [0], [0], [1], [0, 0, 1, 1], [], []>} : vector<16x128xbf16>, vector<128x32xbf16>, vector<16x32xf32> -> vector<16x32xf32>
    %c0_78 = arith.constant 0 : index
    %c0_79 = arith.constant 0 : index
    %c0_80 = arith.constant 0 : index
    %235 = vector.load %arg14[%c0_78, %c0_79, %c0_80] : memref<2x1x32xf32, #tpu.memory_space<vmem>>, vector<1x1x32xf32>
    %236 = vector.shape_cast %235 : vector<1x1x32xf32> to vector<1x32xf32>
    %237 = vector.broadcast %236 : vector<1x32xf32> to vector<16x32xf32>
    %238 = arith.addf %234, %237 : vector<16x32xf32>
    %239 = arith.addf %209, %238 : vector<16x32xf32>
    %c1 = arith.constant 1 : index
    %c0_81 = arith.constant 0 : index
    %c0_82 = arith.constant 0 : index
    %240 = vector.load %arg4[%c1, %c0_81, %c0_82] : memref<2x1x32xf32, #tpu.memory_space<vmem>>, vector<1x1x32xf32>
    %241 = vector.shape_cast %240 : vector<1x1x32xf32> to vector<1x32xf32>
    %c1_83 = arith.constant 1 : index
    %c0_84 = arith.constant 0 : index
    %c0_85 = arith.constant 0 : index
    %242 = vector.load %arg5[%c1_83, %c0_84, %c0_85] : memref<2x1x32xf32, #tpu.memory_space<vmem>>, vector<1x1x32xf32>
    %243 = vector.shape_cast %242 : vector<1x1x32xf32> to vector<1x32xf32>
    %cst_86 = arith.constant dense<0.000000e+00> : vector<16xf32>
    %244 = vector.multi_reduction <add>, %239, %cst_86 [1] : vector<16x32xf32> to vector<16xf32>
    %245 = vector.shape_cast %244 : vector<16xf32> to vector<16x1xf32>
    %cst_87 = arith.constant 3.200000e+01 : f32
    %246 = vector.broadcast %cst_87 : f32 to vector<16x1xf32>
    %247 = arith.divf %245, %246 : vector<16x1xf32>
    %248 = vector.broadcast %247 : vector<16x1xf32> to vector<16x32xf32>
    %249 = arith.subf %239, %248 : vector<16x32xf32>
    %250 = arith.mulf %249, %249 : vector<16x32xf32>
    %cst_88 = arith.constant dense<0.000000e+00> : vector<16xf32>
    %251 = vector.multi_reduction <add>, %250, %cst_88 [1] : vector<16x32xf32> to vector<16xf32>
    %252 = vector.shape_cast %251 : vector<16xf32> to vector<16x1xf32>
    %cst_89 = arith.constant 3.200000e+01 : f32
    %253 = vector.broadcast %cst_89 : f32 to vector<16x1xf32>
    %254 = arith.divf %252, %253 : vector<16x1xf32>
    %cst_90 = arith.constant 9.99999974E-6 : f32
    %255 = vector.broadcast %cst_90 : f32 to vector<16x1xf32>
    %256 = arith.addf %254, %255 : vector<16x1xf32>
    %257 = math.rsqrt %256 : vector<16x1xf32>
    %258 = vector.broadcast %257 : vector<16x1xf32> to vector<16x32xf32>
    %259 = arith.mulf %249, %258 : vector<16x32xf32>
    %260 = vector.broadcast %241 : vector<1x32xf32> to vector<16x32xf32>
    %261 = arith.mulf %259, %260 : vector<16x32xf32>
    %262 = vector.broadcast %243 : vector<1x32xf32> to vector<16x32xf32>
    %263 = arith.addf %261, %262 : vector<16x32xf32>
    %264 = arith.truncf %263 : vector<16x32xf32> to vector<16x32xbf16>
    %c1_91 = arith.constant 1 : index
    %c0_92 = arith.constant 0 : index
    %c0_93 = arith.constant 0 : index
    %265 = vector.load %arg6[%c1_91, %c0_92, %c0_93] : memref<2x32x96xbf16, #tpu.memory_space<vmem>>, vector<1x32x96xbf16>
    %266 = vector.shape_cast %265 : vector<1x32x96xbf16> to vector<32x96xbf16>
    %cst_94 = arith.constant dense<0.000000e+00> : vector<16x96xf32>
    %267 = tpu.matmul %264, %266, %cst_94 {dimension_numbers = #tpu.dot_dimension_numbers<[1], [0], [0], [1], [0, 0, 1, 1], [], []>} : vector<16x32xbf16>, vector<32x96xbf16>, vector<16x96xf32> -> vector<16x96xf32>
    %268 = vector.extract_strided_slice %267 {offsets = [0, 0], sizes = [16, 8], strides = [1, 1]} : vector<16x96xf32> to vector<16x8xf32>
    %269 = vector.extract_strided_slice %267 {offsets = [0, 32], sizes = [16, 8], strides = [1, 1]} : vector<16x96xf32> to vector<16x8xf32>
    %270 = vector.extract_strided_slice %267 {offsets = [0, 64], sizes = [16, 8], strides = [1, 1]} : vector<16x96xf32> to vector<16x8xf32>
    %271 = vector.shape_cast %268 : vector<16x8xf32> to vector<2x8x8xf32>
    %272 = vector.shape_cast %269 : vector<16x8xf32> to vector<2x8x8xf32>
    %273 = vector.shape_cast %270 : vector<16x8xf32> to vector<2x8x8xf32>
    %274 = vector.shape_cast %271 : vector<2x8x8xf32> to vector<2x8x1x8xf32>
    %275 = vector.shape_cast %272 : vector<2x8x8xf32> to vector<2x1x8x8xf32>
    %276 = vector.broadcast %274 : vector<2x8x1x8xf32> to vector<2x8x8x8xf32>
    %277 = vector.broadcast %275 : vector<2x1x8x8xf32> to vector<2x8x8x8xf32>
    %278 = arith.mulf %276, %277 : vector<2x8x8x8xf32>
    %cst_95 = arith.constant dense<0.000000e+00> : vector<2x8x8xf32>
    %279 = vector.multi_reduction <add>, %278, %cst_95 [3] : vector<2x8x8x8xf32> to vector<2x8x8xf32>
    %280 = vector.shape_cast %15 : vector<1x8xf32> to vector<1x1x8xf32>
    %281 = vector.broadcast %280 : vector<1x1x8xf32> to vector<2x8x8xf32>
    %282 = arith.addf %279, %281 : vector<2x8x8xf32>
    %cst_96 = arith.constant dense<0xFF800000> : vector<2x8xf32>
    %283 = vector.multi_reduction <maximumf>, %282, %cst_96 [2] : vector<2x8x8xf32> to vector<2x8xf32>
    %284 = vector.shape_cast %283 : vector<2x8xf32> to vector<2x8x1xf32>
    %285 = vector.broadcast %284 : vector<2x8x1xf32> to vector<2x8x8xf32>
    %286 = arith.subf %282, %285 : vector<2x8x8xf32>
    %287 = math.exp %286 : vector<2x8x8xf32>
    %cst_97 = arith.constant dense<0.000000e+00> : vector<2x8xf32>
    %288 = vector.multi_reduction <add>, %287, %cst_97 [2] : vector<2x8x8xf32> to vector<2x8xf32>
    %289 = vector.shape_cast %288 : vector<2x8xf32> to vector<2x8x1xf32>
    %290 = tpu.reciprocal %289 {approx = true} : vector<2x8x1xf32> -> vector<2x8x1xf32>
    %291 = vector.broadcast %290 : vector<2x8x1xf32> to vector<2x8x8xf32>
    %292 = arith.mulf %287, %291 : vector<2x8x8xf32>
    %293 = vector.shape_cast %292 : vector<2x8x8xf32> to vector<2x8x8x1xf32>
    %294 = vector.shape_cast %273 : vector<2x8x8xf32> to vector<2x1x8x8xf32>
    %295 = vector.broadcast %293 : vector<2x8x8x1xf32> to vector<2x8x8x8xf32>
    %296 = vector.broadcast %294 : vector<2x1x8x8xf32> to vector<2x8x8x8xf32>
    %297 = arith.mulf %295, %296 : vector<2x8x8x8xf32>
    %cst_98 = arith.constant dense<0.000000e+00> : vector<2x8x8xf32>
    %298 = vector.multi_reduction <add>, %297, %cst_98 [2] : vector<2x8x8x8xf32> to vector<2x8x8xf32>
    %299 = vector.shape_cast %298 : vector<2x8x8xf32> to vector<16x8xf32>
    %c0_99 = arith.constant 0 : index
    %c0_100 = arith.constant 0 : index
    %300 = vector.load %arg20[%c0_99, %c0_100] : memref<16x32xf32, #tpu.memory_space<vmem>>, vector<16x8xf32>
    tpu.vector_store %arg20[%c0_99, %c0_100], %299 {strides = array<i32>} : memref<16x32xf32, #tpu.memory_space<vmem>>, vector<16x8xf32>,
    %301 = vector.extract_strided_slice %267 {offsets = [0, 8], sizes = [16, 8], strides = [1, 1]} : vector<16x96xf32> to vector<16x8xf32>
    %302 = vector.extract_strided_slice %267 {offsets = [0, 40], sizes = [16, 8], strides = [1, 1]} : vector<16x96xf32> to vector<16x8xf32>
    %303 = vector.extract_strided_slice %267 {offsets = [0, 72], sizes = [16, 8], strides = [1, 1]} : vector<16x96xf32> to vector<16x8xf32>
    %304 = vector.shape_cast %301 : vector<16x8xf32> to vector<2x8x8xf32>
    %305 = vector.shape_cast %302 : vector<16x8xf32> to vector<2x8x8xf32>
    %306 = vector.shape_cast %303 : vector<16x8xf32> to vector<2x8x8xf32>
    %307 = vector.shape_cast %304 : vector<2x8x8xf32> to vector<2x8x1x8xf32>
    %308 = vector.shape_cast %305 : vector<2x8x8xf32> to vector<2x1x8x8xf32>
    %309 = vector.broadcast %307 : vector<2x8x1x8xf32> to vector<2x8x8x8xf32>
    %310 = vector.broadcast %308 : vector<2x1x8x8xf32> to vector<2x8x8x8xf32>
    %311 = arith.mulf %309, %310 : vector<2x8x8x8xf32>
    %cst_101 = arith.constant dense<0.000000e+00> : vector<2x8x8xf32>
    %312 = vector.multi_reduction <add>, %311, %cst_101 [3] : vector<2x8x8x8xf32> to vector<2x8x8xf32>
    %313 = vector.shape_cast %15 : vector<1x8xf32> to vector<1x1x8xf32>
    %314 = vector.broadcast %313 : vector<1x1x8xf32> to vector<2x8x8xf32>
    %315 = arith.addf %312, %314 : vector<2x8x8xf32>
    %cst_102 = arith.constant dense<0xFF800000> : vector<2x8xf32>
    %316 = vector.multi_reduction <maximumf>, %315, %cst_102 [2] : vector<2x8x8xf32> to vector<2x8xf32>
    %317 = vector.shape_cast %316 : vector<2x8xf32> to vector<2x8x1xf32>
    %318 = vector.broadcast %317 : vector<2x8x1xf32> to vector<2x8x8xf32>
    %319 = arith.subf %315, %318 : vector<2x8x8xf32>
    %320 = math.exp %319 : vector<2x8x8xf32>
    %cst_103 = arith.constant dense<0.000000e+00> : vector<2x8xf32>
    %321 = vector.multi_reduction <add>, %320, %cst_103 [2] : vector<2x8x8xf32> to vector<2x8xf32>
    %322 = vector.shape_cast %321 : vector<2x8xf32> to vector<2x8x1xf32>
    %323 = tpu.reciprocal %322 {approx = true} : vector<2x8x1xf32> -> vector<2x8x1xf32>
    %324 = vector.broadcast %323 : vector<2x8x1xf32> to vector<2x8x8xf32>
    %325 = arith.mulf %320, %324 : vector<2x8x8xf32>
    %326 = vector.shape_cast %325 : vector<2x8x8xf32> to vector<2x8x8x1xf32>
    %327 = vector.shape_cast %306 : vector<2x8x8xf32> to vector<2x1x8x8xf32>
    %328 = vector.broadcast %326 : vector<2x8x8x1xf32> to vector<2x8x8x8xf32>
    %329 = vector.broadcast %327 : vector<2x1x8x8xf32> to vector<2x8x8x8xf32>
    %330 = arith.mulf %328, %329 : vector<2x8x8x8xf32>
    %cst_104 = arith.constant dense<0.000000e+00> : vector<2x8x8xf32>
    %331 = vector.multi_reduction <add>, %330, %cst_104 [2] : vector<2x8x8x8xf32> to vector<2x8x8xf32>
    %332 = vector.shape_cast %331 : vector<2x8x8xf32> to vector<16x8xf32>
    %c0_105 = arith.constant 0 : index
    %c8_106 = arith.constant 8 : index
    %333 = vector.load %arg20[%c0_105, %c8_106] : memref<16x32xf32, #tpu.memory_space<vmem>>, vector<16x8xf32>
    tpu.vector_store %arg20[%c0_105, %c8_106], %332 {strides = array<i32>} : memref<16x32xf32, #tpu.memory_space<vmem>>, vector<16x8xf32>,
    %334 = vector.extract_strided_slice %267 {offsets = [0, 16], sizes = [16, 8], strides = [1, 1]} : vector<16x96xf32> to vector<16x8xf32>
    %335 = vector.extract_strided_slice %267 {offsets = [0, 48], sizes = [16, 8], strides = [1, 1]} : vector<16x96xf32> to vector<16x8xf32>
    %336 = vector.extract_strided_slice %267 {offsets = [0, 80], sizes = [16, 8], strides = [1, 1]} : vector<16x96xf32> to vector<16x8xf32>
    %337 = vector.shape_cast %334 : vector<16x8xf32> to vector<2x8x8xf32>
    %338 = vector.shape_cast %335 : vector<16x8xf32> to vector<2x8x8xf32>
    %339 = vector.shape_cast %336 : vector<16x8xf32> to vector<2x8x8xf32>
    %340 = vector.shape_cast %337 : vector<2x8x8xf32> to vector<2x8x1x8xf32>
    %341 = vector.shape_cast %338 : vector<2x8x8xf32> to vector<2x1x8x8xf32>
    %342 = vector.broadcast %340 : vector<2x8x1x8xf32> to vector<2x8x8x8xf32>
    %343 = vector.broadcast %341 : vector<2x1x8x8xf32> to vector<2x8x8x8xf32>
    %344 = arith.mulf %342, %343 : vector<2x8x8x8xf32>
    %cst_107 = arith.constant dense<0.000000e+00> : vector<2x8x8xf32>
    %345 = vector.multi_reduction <add>, %344, %cst_107 [3] : vector<2x8x8x8xf32> to vector<2x8x8xf32>
    %346 = vector.shape_cast %15 : vector<1x8xf32> to vector<1x1x8xf32>
    %347 = vector.broadcast %346 : vector<1x1x8xf32> to vector<2x8x8xf32>
    %348 = arith.addf %345, %347 : vector<2x8x8xf32>
    %cst_108 = arith.constant dense<0xFF800000> : vector<2x8xf32>
    %349 = vector.multi_reduction <maximumf>, %348, %cst_108 [2] : vector<2x8x8xf32> to vector<2x8xf32>
    %350 = vector.shape_cast %349 : vector<2x8xf32> to vector<2x8x1xf32>
    %351 = vector.broadcast %350 : vector<2x8x1xf32> to vector<2x8x8xf32>
    %352 = arith.subf %348, %351 : vector<2x8x8xf32>
    %353 = math.exp %352 : vector<2x8x8xf32>
    %cst_109 = arith.constant dense<0.000000e+00> : vector<2x8xf32>
    %354 = vector.multi_reduction <add>, %353, %cst_109 [2] : vector<2x8x8xf32> to vector<2x8xf32>
    %355 = vector.shape_cast %354 : vector<2x8xf32> to vector<2x8x1xf32>
    %356 = tpu.reciprocal %355 {approx = true} : vector<2x8x1xf32> -> vector<2x8x1xf32>
    %357 = vector.broadcast %356 : vector<2x8x1xf32> to vector<2x8x8xf32>
    %358 = arith.mulf %353, %357 : vector<2x8x8xf32>
    %359 = vector.shape_cast %358 : vector<2x8x8xf32> to vector<2x8x8x1xf32>
    %360 = vector.shape_cast %339 : vector<2x8x8xf32> to vector<2x1x8x8xf32>
    %361 = vector.broadcast %359 : vector<2x8x8x1xf32> to vector<2x8x8x8xf32>
    %362 = vector.broadcast %360 : vector<2x1x8x8xf32> to vector<2x8x8x8xf32>
    %363 = arith.mulf %361, %362 : vector<2x8x8x8xf32>
    %cst_110 = arith.constant dense<0.000000e+00> : vector<2x8x8xf32>
    %364 = vector.multi_reduction <add>, %363, %cst_110 [2] : vector<2x8x8x8xf32> to vector<2x8x8xf32>
    %365 = vector.shape_cast %364 : vector<2x8x8xf32> to vector<16x8xf32>
    %c0_111 = arith.constant 0 : index
    %c16_112 = arith.constant 16 : index
    %366 = vector.load %arg20[%c0_111, %c16_112] : memref<16x32xf32, #tpu.memory_space<vmem>>, vector<16x8xf32>
    tpu.vector_store %arg20[%c0_111, %c16_112], %365 {strides = array<i32>} : memref<16x32xf32, #tpu.memory_space<vmem>>, vector<16x8xf32>,
    %367 = vector.extract_strided_slice %267 {offsets = [0, 24], sizes = [16, 8], strides = [1, 1]} : vector<16x96xf32> to vector<16x8xf32>
    %368 = vector.extract_strided_slice %267 {offsets = [0, 56], sizes = [16, 8], strides = [1, 1]} : vector<16x96xf32> to vector<16x8xf32>
    %369 = vector.extract_strided_slice %267 {offsets = [0, 88], sizes = [16, 8], strides = [1, 1]} : vector<16x96xf32> to vector<16x8xf32>
    %370 = vector.shape_cast %367 : vector<16x8xf32> to vector<2x8x8xf32>
    %371 = vector.shape_cast %368 : vector<16x8xf32> to vector<2x8x8xf32>
    %372 = vector.shape_cast %369 : vector<16x8xf32> to vector<2x8x8xf32>
    %373 = vector.shape_cast %370 : vector<2x8x8xf32> to vector<2x8x1x8xf32>
    %374 = vector.shape_cast %371 : vector<2x8x8xf32> to vector<2x1x8x8xf32>
    %375 = vector.broadcast %373 : vector<2x8x1x8xf32> to vector<2x8x8x8xf32>
    %376 = vector.broadcast %374 : vector<2x1x8x8xf32> to vector<2x8x8x8xf32>
    %377 = arith.mulf %375, %376 : vector<2x8x8x8xf32>
    %cst_113 = arith.constant dense<0.000000e+00> : vector<2x8x8xf32>
    %378 = vector.multi_reduction <add>, %377, %cst_113 [3] : vector<2x8x8x8xf32> to vector<2x8x8xf32>
    %379 = vector.shape_cast %15 : vector<1x8xf32> to vector<1x1x8xf32>
    %380 = vector.broadcast %379 : vector<1x1x8xf32> to vector<2x8x8xf32>
    %381 = arith.addf %378, %380 : vector<2x8x8xf32>
    %cst_114 = arith.constant dense<0xFF800000> : vector<2x8xf32>
    %382 = vector.multi_reduction <maximumf>, %381, %cst_114 [2] : vector<2x8x8xf32> to vector<2x8xf32>
    %383 = vector.shape_cast %382 : vector<2x8xf32> to vector<2x8x1xf32>
    %384 = vector.broadcast %383 : vector<2x8x1xf32> to vector<2x8x8xf32>
    %385 = arith.subf %381, %384 : vector<2x8x8xf32>
    %386 = math.exp %385 : vector<2x8x8xf32>
    %cst_115 = arith.constant dense<0.000000e+00> : vector<2x8xf32>
    %387 = vector.multi_reduction <add>, %386, %cst_115 [2] : vector<2x8x8xf32> to vector<2x8xf32>
    %388 = vector.shape_cast %387 : vector<2x8xf32> to vector<2x8x1xf32>
    %389 = tpu.reciprocal %388 {approx = true} : vector<2x8x1xf32> -> vector<2x8x1xf32>
    %390 = vector.broadcast %389 : vector<2x8x1xf32> to vector<2x8x8xf32>
    %391 = arith.mulf %386, %390 : vector<2x8x8xf32>
    %392 = vector.shape_cast %391 : vector<2x8x8xf32> to vector<2x8x8x1xf32>
    %393 = vector.shape_cast %372 : vector<2x8x8xf32> to vector<2x1x8x8xf32>
    %394 = vector.broadcast %392 : vector<2x8x8x1xf32> to vector<2x8x8x8xf32>
    %395 = vector.broadcast %393 : vector<2x1x8x8xf32> to vector<2x8x8x8xf32>
    %396 = arith.mulf %394, %395 : vector<2x8x8x8xf32>
    %cst_116 = arith.constant dense<0.000000e+00> : vector<2x8x8xf32>
    %397 = vector.multi_reduction <add>, %396, %cst_116 [2] : vector<2x8x8x8xf32> to vector<2x8x8xf32>
    %398 = vector.shape_cast %397 : vector<2x8x8xf32> to vector<16x8xf32>
    %c0_117 = arith.constant 0 : index
    %c24_118 = arith.constant 24 : index
    %399 = vector.load %arg20[%c0_117, %c24_118] : memref<16x32xf32, #tpu.memory_space<vmem>>, vector<16x8xf32>
    tpu.vector_store %arg20[%c0_117, %c24_118], %398 {strides = array<i32>} : memref<16x32xf32, #tpu.memory_space<vmem>>, vector<16x8xf32>,
    %c0_119 = arith.constant 0 : index
    %c0_120 = arith.constant 0 : index
    %400 = vector.load %arg20[%c0_119, %c0_120] : memref<16x32xf32, #tpu.memory_space<vmem>>, vector<16x32xf32>
    %401 = arith.truncf %400 : vector<16x32xf32> to vector<16x32xbf16>
    %c1_121 = arith.constant 1 : index
    %c0_122 = arith.constant 0 : index
    %c0_123 = arith.constant 0 : index
    %402 = vector.load %arg7[%c1_121, %c0_122, %c0_123] : memref<2x32x32xbf16, #tpu.memory_space<vmem>>, vector<1x32x32xbf16>
    %403 = vector.shape_cast %402 : vector<1x32x32xbf16> to vector<32x32xbf16>
    %cst_124 = arith.constant dense<0.000000e+00> : vector<16x32xf32>
    %404 = tpu.matmul %401, %403, %cst_124 {dimension_numbers = #tpu.dot_dimension_numbers<[1], [0], [0], [1], [0, 0, 1, 1], [], []>} : vector<16x32xbf16>, vector<32x32xbf16>, vector<16x32xf32> -> vector<16x32xf32>
    %c1_125 = arith.constant 1 : index
    %c0_126 = arith.constant 0 : index
    %c0_127 = arith.constant 0 : index
    %405 = vector.load %arg8[%c1_125, %c0_126, %c0_127] : memref<2x1x32xf32, #tpu.memory_space<vmem>>, vector<1x1x32xf32>
    %406 = vector.shape_cast %405 : vector<1x1x32xf32> to vector<1x32xf32>
    %407 = vector.broadcast %406 : vector<1x32xf32> to vector<16x32xf32>
    %408 = arith.addf %404, %407 : vector<16x32xf32>
    %409 = arith.addf %239, %408 : vector<16x32xf32>
    %c1_128 = arith.constant 1 : index
    %c0_129 = arith.constant 0 : index
    %c0_130 = arith.constant 0 : index
    %410 = vector.load %arg9[%c1_128, %c0_129, %c0_130] : memref<2x1x32xf32, #tpu.memory_space<vmem>>, vector<1x1x32xf32>
    %411 = vector.shape_cast %410 : vector<1x1x32xf32> to vector<1x32xf32>
    %c1_131 = arith.constant 1 : index
    %c0_132 = arith.constant 0 : index
    %c0_133 = arith.constant 0 : index
    %412 = vector.load %arg10[%c1_131, %c0_132, %c0_133] : memref<2x1x32xf32, #tpu.memory_space<vmem>>, vector<1x1x32xf32>
    %413 = vector.shape_cast %412 : vector<1x1x32xf32> to vector<1x32xf32>
    %cst_134 = arith.constant dense<0.000000e+00> : vector<16xf32>
    %414 = vector.multi_reduction <add>, %409, %cst_134 [1] : vector<16x32xf32> to vector<16xf32>
    %415 = vector.shape_cast %414 : vector<16xf32> to vector<16x1xf32>
    %cst_135 = arith.constant 3.200000e+01 : f32
    %416 = vector.broadcast %cst_135 : f32 to vector<16x1xf32>
    %417 = arith.divf %415, %416 : vector<16x1xf32>
    %418 = vector.broadcast %417 : vector<16x1xf32> to vector<16x32xf32>
    %419 = arith.subf %409, %418 : vector<16x32xf32>
    %420 = arith.mulf %419, %419 : vector<16x32xf32>
    %cst_136 = arith.constant dense<0.000000e+00> : vector<16xf32>
    %421 = vector.multi_reduction <add>, %420, %cst_136 [1] : vector<16x32xf32> to vector<16xf32>
    %422 = vector.shape_cast %421 : vector<16xf32> to vector<16x1xf32>
    %cst_137 = arith.constant 3.200000e+01 : f32
    %423 = vector.broadcast %cst_137 : f32 to vector<16x1xf32>
    %424 = arith.divf %422, %423 : vector<16x1xf32>
    %cst_138 = arith.constant 9.99999974E-6 : f32
    %425 = vector.broadcast %cst_138 : f32 to vector<16x1xf32>
    %426 = arith.addf %424, %425 : vector<16x1xf32>
    %427 = math.rsqrt %426 : vector<16x1xf32>
    %428 = vector.broadcast %427 : vector<16x1xf32> to vector<16x32xf32>
    %429 = arith.mulf %419, %428 : vector<16x32xf32>
    %430 = vector.broadcast %411 : vector<1x32xf32> to vector<16x32xf32>
    %431 = arith.mulf %429, %430 : vector<16x32xf32>
    %432 = vector.broadcast %413 : vector<1x32xf32> to vector<16x32xf32>
    %433 = arith.addf %431, %432 : vector<16x32xf32>
    %434 = arith.truncf %433 : vector<16x32xf32> to vector<16x32xbf16>
    %c1_139 = arith.constant 1 : index
    %c0_140 = arith.constant 0 : index
    %c0_141 = arith.constant 0 : index
    %435 = vector.load %arg11[%c1_139, %c0_140, %c0_141] : memref<2x32x128xbf16, #tpu.memory_space<vmem>>, vector<1x32x128xbf16>
    %436 = vector.shape_cast %435 : vector<1x32x128xbf16> to vector<32x128xbf16>
    %cst_142 = arith.constant dense<0.000000e+00> : vector<16x128xf32>
    %437 = tpu.matmul %434, %436, %cst_142 {dimension_numbers = #tpu.dot_dimension_numbers<[1], [0], [0], [1], [0, 0, 1, 1], [], []>} : vector<16x32xbf16>, vector<32x128xbf16>, vector<16x128xf32> -> vector<16x128xf32>
    %c1_143 = arith.constant 1 : index
    %c0_144 = arith.constant 0 : index
    %c0_145 = arith.constant 0 : index
    %438 = vector.load %arg12[%c1_143, %c0_144, %c0_145] : memref<2x1x128xf32, #tpu.memory_space<vmem>>, vector<1x1x128xf32>
    %439 = vector.shape_cast %438 : vector<1x1x128xf32> to vector<1x128xf32>
    %440 = vector.broadcast %439 : vector<1x128xf32> to vector<16x128xf32>
    %441 = arith.addf %437, %440 : vector<16x128xf32>
    %cst_146 = arith.constant 5.000000e-01 : f32
    %442 = vector.broadcast %cst_146 : f32 to vector<16x128xf32>
    %443 = arith.mulf %442, %441 : vector<16x128xf32>
    %cst_147 = arith.constant 4.471500e-02 : f32
    %444 = vector.broadcast %cst_147 : f32 to vector<16x128xf32>
    %445 = arith.mulf %444, %441 : vector<16x128xf32>
    %446 = arith.mulf %445, %441 : vector<16x128xf32>
    %447 = arith.mulf %446, %441 : vector<16x128xf32>
    %448 = arith.addf %441, %447 : vector<16x128xf32>
    %cst_148 = arith.constant 0.797884583 : f32
    %449 = vector.broadcast %cst_148 : f32 to vector<16x128xf32>
    %450 = arith.mulf %449, %448 : vector<16x128xf32>
    %451 = math.tanh %450 : vector<16x128xf32>
    %cst_149 = arith.constant 1.000000e+00 : f32
    %452 = vector.broadcast %cst_149 : f32 to vector<16x128xf32>
    %453 = arith.addf %452, %451 : vector<16x128xf32>
    %454 = arith.mulf %443, %453 : vector<16x128xf32>
    %455 = arith.truncf %454 : vector<16x128xf32> to vector<16x128xbf16>
    %c1_150 = arith.constant 1 : index
    %c0_151 = arith.constant 0 : index
    %c0_152 = arith.constant 0 : index
    %456 = vector.load %arg13[%c1_150, %c0_151, %c0_152] : memref<2x128x32xbf16, #tpu.memory_space<vmem>>, vector<1x128x32xbf16>
    %457 = vector.shape_cast %456 : vector<1x128x32xbf16> to vector<128x32xbf16>
    %cst_153 = arith.constant dense<0.000000e+00> : vector<16x32xf32>
    %458 = tpu.matmul %455, %457, %cst_153 {dimension_numbers = #tpu.dot_dimension_numbers<[1], [0], [0], [1], [0, 0, 1, 1], [], []>} : vector<16x128xbf16>, vector<128x32xbf16>, vector<16x32xf32> -> vector<16x32xf32>
    %c1_154 = arith.constant 1 : index
    %c0_155 = arith.constant 0 : index
    %c0_156 = arith.constant 0 : index
    %459 = vector.load %arg14[%c1_154, %c0_155, %c0_156] : memref<2x1x32xf32, #tpu.memory_space<vmem>>, vector<1x1x32xf32>
    %460 = vector.shape_cast %459 : vector<1x1x32xf32> to vector<1x32xf32>
    %461 = vector.broadcast %460 : vector<1x32xf32> to vector<16x32xf32>
    %462 = arith.addf %458, %461 : vector<16x32xf32>
    %463 = arith.addf %433, %462 : vector<16x32xf32>
    %c0_157 = arith.constant 0 : index
    %c0_158 = arith.constant 0 : index
    %464 = vector.load %arg15[%c0_157, %c0_158] : memref<1x32xf32, #tpu.memory_space<vmem>>, vector<1x32xf32>
    %c0_159 = arith.constant 0 : index
    %c0_160 = arith.constant 0 : index
    %465 = vector.load %arg16[%c0_159, %c0_160] : memref<1x32xf32, #tpu.memory_space<vmem>>, vector<1x32xf32>
    %cst_161 = arith.constant dense<0.000000e+00> : vector<16xf32>
    %466 = vector.multi_reduction <add>, %463, %cst_161 [1] : vector<16x32xf32> to vector<16xf32>
    %467 = vector.shape_cast %466 : vector<16xf32> to vector<16x1xf32>
    %cst_162 = arith.constant 3.200000e+01 : f32
    %468 = vector.broadcast %cst_162 : f32 to vector<16x1xf32>
    %469 = arith.divf %467, %468 : vector<16x1xf32>
    %470 = vector.broadcast %469 : vector<16x1xf32> to vector<16x32xf32>
    %471 = arith.subf %463, %470 : vector<16x32xf32>
    %472 = arith.mulf %471, %471 : vector<16x32xf32>
    %cst_163 = arith.constant dense<0.000000e+00> : vector<16xf32>
    %473 = vector.multi_reduction <add>, %472, %cst_163 [1] : vector<16x32xf32> to vector<16xf32>
    %474 = vector.shape_cast %473 : vector<16xf32> to vector<16x1xf32>
    %cst_164 = arith.constant 3.200000e+01 : f32
    %475 = vector.broadcast %cst_164 : f32 to vector<16x1xf32>
    %476 = arith.divf %474, %475 : vector<16x1xf32>
    %cst_165 = arith.constant 9.99999974E-6 : f32
    %477 = vector.broadcast %cst_165 : f32 to vector<16x1xf32>
    %478 = arith.addf %476, %477 : vector<16x1xf32>
    %479 = math.rsqrt %478 : vector<16x1xf32>
    %480 = vector.broadcast %479 : vector<16x1xf32> to vector<16x32xf32>
    %481 = arith.mulf %471, %480 : vector<16x32xf32>
    %482 = vector.broadcast %464 : vector<1x32xf32> to vector<16x32xf32>
    %483 = arith.mulf %481, %482 : vector<16x32xf32>
    %484 = vector.broadcast %465 : vector<1x32xf32> to vector<16x32xf32>
    %485 = arith.addf %483, %484 : vector<16x32xf32>
    %486 = arith.truncf %485 : vector<16x32xf32> to vector<16x32xbf16>
    %c0_166 = arith.constant 0 : index
    %c0_167 = arith.constant 0 : index
    %487 = vector.load %arg17[%c0_166, %c0_167] : memref<32x128xbf16, #tpu.memory_space<vmem>>, vector<32x128xbf16>
    %cst_168 = arith.constant dense<0.000000e+00> : vector<16x128xf32>
    %488 = tpu.matmul %486, %487, %cst_168 {dimension_numbers = #tpu.dot_dimension_numbers<[1], [0], [0], [1], [0, 0, 1, 1], [], []>} : vector<16x32xbf16>, vector<32x128xbf16>, vector<16x128xf32> -> vector<16x128xf32>
    %c0_169 = arith.constant 0 : index
    %c0_170 = arith.constant 0 : index
    %489 = vector.load %arg18[%c0_169, %c0_170] : memref<1x128xf32, #tpu.memory_space<vmem>>, vector<1x128xf32>
    %490 = vector.broadcast %489 : vector<1x128xf32> to vector<16x128xf32>
    %491 = arith.addf %488, %490 : vector<16x128xf32>
    %c0_171 = arith.constant 0 : index
    %c0_172 = arith.constant 0 : index
    %492 = vector.load %arg19[%c0_171, %c0_172] : memref<16x128xf32, #tpu.memory_space<vmem>>, vector<16x128xf32>
    tpu.vector_store %arg19[%c0_171, %c0_172], %491 {strides = array<i32>} : memref<16x128xf32, #tpu.memory_space<vmem>>, vector<16x128xf32>,
    return
  }
  func.func @transform_0(%arg0: i32) -> (i32, i32) {
    %c0_i32 = arith.constant 0 : i32
    %c0_i32_0 = arith.constant 0 : i32
    return %arg0, %c0_i32 : i32, i32
  }
  func.func @transform_1(%arg0: i32) -> (i32, i32) {
    %c0_i32 = arith.constant 0 : i32
    %c0_i32_0 = arith.constant 0 : i32
    %c0_i32_1 = arith.constant 0 : i32
    return %c0_i32, %c0_i32_0 : i32, i32
  }
  func.func @transform_2(%arg0: i32) -> (i32, i32) {
    %c0_i32 = arith.constant 0 : i32
    %c0_i32_0 = arith.constant 0 : i32
    %c0_i32_1 = arith.constant 0 : i32
    return %c0_i32, %c0_i32_0 : i32, i32
  }
  func.func @transform_3(%arg0: i32) -> (i32, i32, i32) {
    %c0_i32 = arith.constant 0 : i32
    %c0_i32_0 = arith.constant 0 : i32
    %c0_i32_1 = arith.constant 0 : i32
    %c0_i32_2 = arith.constant 0 : i32
    return %c0_i32, %c0_i32_0, %c0_i32_1 : i32, i32, i32
  }
  func.func @transform_4(%arg0: i32) -> (i32, i32, i32) {
    %c0_i32 = arith.constant 0 : i32
    %c0_i32_0 = arith.constant 0 : i32
    %c0_i32_1 = arith.constant 0 : i32
    %c0_i32_2 = arith.constant 0 : i32
    return %c0_i32, %c0_i32_0, %c0_i32_1 : i32, i32, i32
  }
  func.func @transform_5(%arg0: i32) -> (i32, i32, i32) {
    %c0_i32 = arith.constant 0 : i32
    %c0_i32_0 = arith.constant 0 : i32
    %c0_i32_1 = arith.constant 0 : i32
    %c0_i32_2 = arith.constant 0 : i32
    return %c0_i32, %c0_i32_0, %c0_i32_1 : i32, i32, i32
  }
  func.func @transform_6(%arg0: i32) -> (i32, i32, i32) {
    %c0_i32 = arith.constant 0 : i32
    %c0_i32_0 = arith.constant 0 : i32
    %c0_i32_1 = arith.constant 0 : i32
    %c0_i32_2 = arith.constant 0 : i32
    return %c0_i32, %c0_i32_0, %c0_i32_1 : i32, i32, i32
  }
  func.func @transform_7(%arg0: i32) -> (i32, i32, i32) {
    %c0_i32 = arith.constant 0 : i32
    %c0_i32_0 = arith.constant 0 : i32
    %c0_i32_1 = arith.constant 0 : i32
    %c0_i32_2 = arith.constant 0 : i32
    return %c0_i32, %c0_i32_0, %c0_i32_1 : i32, i32, i32
  }
  func.func @transform_8(%arg0: i32) -> (i32, i32, i32) {
    %c0_i32 = arith.constant 0 : i32
    %c0_i32_0 = arith.constant 0 : i32
    %c0_i32_1 = arith.constant 0 : i32
    %c0_i32_2 = arith.constant 0 : i32
    return %c0_i32, %c0_i32_0, %c0_i32_1 : i32, i32, i32
  }
  func.func @transform_9(%arg0: i32) -> (i32, i32, i32) {
    %c0_i32 = arith.constant 0 : i32
    %c0_i32_0 = arith.constant 0 : i32
    %c0_i32_1 = arith.constant 0 : i32
    %c0_i32_2 = arith.constant 0 : i32
    return %c0_i32, %c0_i32_0, %c0_i32_1 : i32, i32, i32
  }
  func.func @transform_10(%arg0: i32) -> (i32, i32, i32) {
    %c0_i32 = arith.constant 0 : i32
    %c0_i32_0 = arith.constant 0 : i32
    %c0_i32_1 = arith.constant 0 : i32
    %c0_i32_2 = arith.constant 0 : i32
    return %c0_i32, %c0_i32_0, %c0_i32_1 : i32, i32, i32
  }
  func.func @transform_11(%arg0: i32) -> (i32, i32, i32) {
    %c0_i32 = arith.constant 0 : i32
    %c0_i32_0 = arith.constant 0 : i32
    %c0_i32_1 = arith.constant 0 : i32
    %c0_i32_2 = arith.constant 0 : i32
    return %c0_i32, %c0_i32_0, %c0_i32_1 : i32, i32, i32
  }
  func.func @transform_12(%arg0: i32) -> (i32, i32, i32) {
    %c0_i32 = arith.constant 0 : i32
    %c0_i32_0 = arith.constant 0 : i32
    %c0_i32_1 = arith.constant 0 : i32
    %c0_i32_2 = arith.constant 0 : i32
    return %c0_i32, %c0_i32_0, %c0_i32_1 : i32, i32, i32
  }
  func.func @transform_13(%arg0: i32) -> (i32, i32, i32) {
    %c0_i32 = arith.constant 0 : i32
    %c0_i32_0 = arith.constant 0 : i32
    %c0_i32_1 = arith.constant 0 : i32
    %c0_i32_2 = arith.constant 0 : i32
    return %c0_i32, %c0_i32_0, %c0_i32_1 : i32, i32, i32
  }
  func.func @transform_14(%arg0: i32) -> (i32, i32) {
    %c0_i32 = arith.constant 0 : i32
    %c0_i32_0 = arith.constant 0 : i32
    %c0_i32_1 = arith.constant 0 : i32
    return %c0_i32, %c0_i32_0 : i32, i32
  }
  func.func @transform_15(%arg0: i32) -> (i32, i32) {
    %c0_i32 = arith.constant 0 : i32
    %c0_i32_0 = arith.constant 0 : i32
    %c0_i32_1 = arith.constant 0 : i32
    return %c0_i32, %c0_i32_0 : i32, i32
  }
  func.func @transform_16(%arg0: i32) -> (i32, i32) {
    %c0_i32 = arith.constant 0 : i32
    %c0_i32_0 = arith.constant 0 : i32
    %c0_i32_1 = arith.constant 0 : i32
    return %c0_i32, %c0_i32_0 : i32, i32
  }
  func.func @transform_17(%arg0: i32) -> (i32, i32) {
    %c0_i32 = arith.constant 0 : i32
    %c0_i32_0 = arith.constant 0 : i32
    %c0_i32_1 = arith.constant 0 : i32
    return %c0_i32, %c0_i32_0 : i32, i32
  }
  func.func @transform_18(%arg0: i32) -> (i32, i32) {
    %c0_i32 = arith.constant 0 : i32
    %c0_i32_0 = arith.constant 0 : i32
    return %arg0, %c0_i32 : i32, i32
  }
}

</mosaic_0001>

<llo_original>
// kernel: vit_lite_forward.1
$region0: #{vit_lite_forward.1}
  #allocation0 [shape = 'u32[]', space=smem, size = 0x4, offset = 0x4, fixed_abs, tag = 'smem constant byte address 0x4 - core index']
  #allocation1 [shape = 'u32[144,128]{1,0:T(1,128)}', space=vmem, size = 0x12000, scoped, tag = 'internal scratch']
  #allocation2 [shape = 'f32[16,32]{1,0:T(8,128)}', space=vmem, size = 0x2000, scoped, tag = 'scratch operand']
  %s0 = inlined_call_operand.vmem [shape: f32[16,192], index: 0, kind: input, shape index: {}]
  %s1 = inlined_call_operand.vmem [shape: bf16[192,32], index: 1, kind: input, shape index: {}]
  %s2 = inlined_call_operand.vmem [shape: f32[8,32], index: 2, kind: input, shape index: {}]
  %s3 = inlined_call_operand.vmem [shape: f32[2,1,32], index: 3, kind: input, shape index: {}]
  %s4 = inlined_call_operand.vmem [shape: f32[2,1,32], index: 4, kind: input, shape index: {}]
  %s5 = inlined_call_operand.vmem [shape: bf16[2,32,96], index: 5, kind: input, shape index: {}]
  %s6 = inlined_call_operand.vmem [shape: bf16[2,32,32], index: 6, kind: input, shape index: {}]
  %s7 = inlined_call_operand.vmem [shape: f32[2,1,32], index: 7, kind: input, shape index: {}]
  %s8 = inlined_call_operand.vmem [shape: f32[2,1,32], index: 8, kind: input, shape index: {}]
  %s9 = inlined_call_operand.vmem [shape: f32[2,1,32], index: 9, kind: input, shape index: {}]
  %s10 = inlined_call_operand.vmem [shape: bf16[2,32,128], index: 10, kind: input, shape index: {}]
  %s11 = inlined_call_operand.vmem [shape: f32[2,1,128], index: 11, kind: input, shape index: {}]
  %s12 = inlined_call_operand.vmem [shape: bf16[2,128,32], index: 12, kind: input, shape index: {}]
  %s13 = inlined_call_operand.vmem [shape: f32[2,1,32], index: 13, kind: input, shape index: {}]
  %s14 = inlined_call_operand.vmem [shape: f32[1,32], index: 14, kind: input, shape index: {}]
  %s15 = inlined_call_operand.vmem [shape: f32[1,32], index: 15, kind: input, shape index: {}]
  %s16 = inlined_call_operand.vmem [shape: bf16[32,128], index: 16, kind: input, shape index: {}]
  %s17 = inlined_call_operand.vmem [shape: f32[1,128], index: 17, kind: input, shape index: {}]
  %s18 = inlined_call_operand.vmem [shape: f32[16,128], index: 18, kind: output, shape index: {}]
  %s19 = sld [smem:[#allocation0]]
  $region82: #{vit_lite_forward.1} parent=0
    _
  %s21 = ssub.s32 1, %s19
  %s22 = scalar_select 0, %s21, %s19
  // Predicated region
  $region2: #{vit_lite_forward.1} parent=0 // pred_check
    _
  $region3: #{vit_lite_forward.1} parent=0 // pred_check_branch
    %24 = sbr.rel (0) target = $region5
  $region4: #{vit_lite_forward.1} parent=0 // pred_region
    _
  $region5: #{vit_lite_forward.1} parent=0 // pred_fallthru
    _
  // Predicated region
  $region6: #{vit_lite_forward.1} parent=0 // pred_check
    _
  $region7: #{vit_lite_forward.1} parent=0 // pred_check_branch
    %26 = sbr.rel (0) target = $region9
  $region8: #{vit_lite_forward.1} parent=0 // pred_region
    _
  $region9: #{vit_lite_forward.1} parent=0 // pred_fallthru
    _
  // Predicated region
  $region10: #{vit_lite_forward.1} parent=0 // pred_check
    _
  $region11: #{vit_lite_forward.1} parent=0 // pred_check_branch
    %28 = sbr.rel (0) target = $region13
  $region12: #{vit_lite_forward.1} parent=0 // pred_region
    _
  $region13: #{vit_lite_forward.1} parent=0 // pred_fallthru
    _
  // Predicated region
  $region14: #{vit_lite_forward.1} parent=0 // pred_check
    _
  $region15: #{vit_lite_forward.1} parent=0 // pred_check_branch
    %30 = sbr.rel (0) target = $region17
  $region16: #{vit_lite_forward.1} parent=0 // pred_region
    _
  $region17: #{vit_lite_forward.1} parent=0 // pred_fallthru
    _
  // Predicated region
  $region18: #{vit_lite_forward.1} parent=0 // pred_check
    _
  $region19: #{vit_lite_forward.1} parent=0 // pred_check_branch
    %32 = sbr.rel (0) target = $region21
  $region20: #{vit_lite_forward.1} parent=0 // pred_region
    _
  $region21: #{vit_lite_forward.1} parent=0 // pred_fallthru
    _
  // Predicated region
  $region22: #{vit_lite_forward.1} parent=0 // pred_check
    _
  $region23: #{vit_lite_forward.1} parent=0 // pred_check_branch
    %34 = sbr.rel (0) target = $region25
  $region24: #{vit_lite_forward.1} parent=0 // pred_region
    _
  $region25: #{vit_lite_forward.1} parent=0 // pred_fallthru
    _
  // Predicated region
  $region26: #{vit_lite_forward.1} parent=0 // pred_check
    _
  $region27: #{vit_lite_forward.1} parent=0 // pred_check_branch
    %36 = sbr.rel (0) target = $region29
  $region28: #{vit_lite_forward.1} parent=0 // pred_region
    _
  $region29: #{vit_lite_forward.1} parent=0 // pred_fallthru
    _
  // Predicated region
  $region30: #{vit_lite_forward.1} parent=0 // pred_check
    _
  $region31: #{vit_lite_forward.1} parent=0 // pred_check_branch
    %38 = sbr.rel (0) target = $region33
  $region32: #{vit_lite_forward.1} parent=0 // pred_region
    _
  $region33: #{vit_lite_forward.1} parent=0 // pred_fallthru
    _
  // Predicated region
  $region34: #{vit_lite_forward.1} parent=0 // pred_check
    _
  $region35: #{vit_lite_forward.1} parent=0 // pred_check_branch
    %40 = sbr.rel (0) target = $region37
  $region36: #{vit_lite_forward.1} parent=0 // pred_region
    _
  $region37: #{vit_lite_forward.1} parent=0 // pred_fallthru
    _
  // Predicated region
  $region38: #{vit_lite_forward.1} parent=0 // pred_check
    _
  $region39: #{vit_lite_forward.1} parent=0 // pred_check_branch
    %42 = sbr.rel (0) target = $region41
  $region40: #{vit_lite_forward.1} parent=0 // pred_region
    _
  $region41: #{vit_lite_forward.1} parent=0 // pred_fallthru
    _
  // Predicated region
  $region42: #{vit_lite_forward.1} parent=0 // pred_check
    _
  $region43: #{vit_lite_forward.1} parent=0 // pred_check_branch
    %44 = sbr.rel (0) target = $region45
  $region44: #{vit_lite_forward.1} parent=0 // pred_region
    _
  $region45: #{vit_lite_forward.1} parent=0 // pred_fallthru
    _
  // Predicated region
  $region46: #{vit_lite_forward.1} parent=0 // pred_check
    _
  $region47: #{vit_lite_forward.1} parent=0 // pred_check_branch
    %46 = sbr.rel (0) target = $region49
  $region48: #{vit_lite_forward.1} parent=0 // pred_region
    _
  $region49: #{vit_lite_forward.1} parent=0 // pred_fallthru
    _
  // Predicated region
  $region50: #{vit_lite_forward.1} parent=0 // pred_check
    _
  $region51: #{vit_lite_forward.1} parent=0 // pred_check_branch
    %48 = sbr.rel (0) target = $region53
  $region52: #{vit_lite_forward.1} parent=0 // pred_region
    _
  $region53: #{vit_lite_forward.1} parent=0 // pred_fallthru
    _
  // Predicated region
  $region54: #{vit_lite_forward.1} parent=0 // pred_check
    _
  $region55: #{vit_lite_forward.1} parent=0 // pred_check_branch
    %50 = sbr.rel (0) target = $region57
  $region56: #{vit_lite_forward.1} parent=0 // pred_region
    _
  $region57: #{vit_lite_forward.1} parent=0 // pred_fallthru
    _
  // Predicated region
  $region58: #{vit_lite_forward.1} parent=0 // pred_check
    _
  $region59: #{vit_lite_forward.1} parent=0 // pred_check_branch
    %52 = sbr.rel (0) target = $region61
  $region60: #{vit_lite_forward.1} parent=0 // pred_region
    _
  $region61: #{vit_lite_forward.1} parent=0 // pred_fallthru
    _
  // Predicated region
  $region62: #{vit_lite_forward.1} parent=0 // pred_check
    _
  $region63: #{vit_lite_forward.1} parent=0 // pred_check_branch
    %54 = sbr.rel (0) target = $region65
  $region64: #{vit_lite_forward.1} parent=0 // pred_region
    _
  $region65: #{vit_lite_forward.1} parent=0 // pred_fallthru
    _
  // Predicated region
  $region66: #{vit_lite_forward.1} parent=0 // pred_check
    _
  $region67: #{vit_lite_forward.1} parent=0 // pred_check_branch
    %56 = sbr.rel (0) target = $region69
  $region68: #{vit_lite_forward.1} parent=0 // pred_region
    _
  $region69: #{vit_lite_forward.1} parent=0 // pred_fallthru
    _
  // Predicated region
  $region70: #{vit_lite_forward.1} parent=0 // pred_check
    _
  $region71: #{vit_lite_forward.1} parent=0 // pred_check_branch
    %58 = sbr.rel (0) target = $region73
  $region72: #{vit_lite_forward.1} parent=0 // pred_region
    _
  $region73: #{vit_lite_forward.1} parent=0 // pred_fallthru
    _
  %v60 = vld [vmem:[%s0] sm:$0xff]
  %v61 = vld [vmem:[%s0 + $0x8] sm:$0xff]
  %v62 = vld [vmem:[%s0 + $0x10] sm:$0xff]
  %v63 = vld [vmem:[%s0 + $0x18] sm:$0xff]
  %v64 = vpack.c.bf16 %v62, %v60
  %v65 = vpack.c.bf16 %v63, %v61
  %v66 = vld [vmem:[%s1] sm:$0xf]
  %v67 = vld [vmem:[%s1 + $0x4] sm:$0xf]
  %v68 = vld [vmem:[%s1 + $0x8] sm:$0xf]
  %v69 = vld [vmem:[%s1 + $0xc] sm:$0xf]
  %v70 = vld [vmem:[%s1 + $0x10] sm:$0xf]
  %v71 = vld [vmem:[%s1 + $0x14] sm:$0xf]
  %v72 = vld [vmem:[%s1 + $0x18] sm:$0xf]
  %v73 = vld [vmem:[%s1 + $0x1c] sm:$0xf]
  %v74 = vld [vmem:[%s1 + $0x20] sm:$0xf]
  %v75 = vld [vmem:[%s1 + $0x24] sm:$0xf]
  %v76 = vld [vmem:[%s1 + $0x28] sm:$0xf]
  %v77 = vld [vmem:[%s1 + $0x2c] sm:$0xf]
  %v78 = vld [vmem:[%s1 + $0x30] sm:$0xf]
  %v79 = vld [vmem:[%s1 + $0x34] sm:$0xf]
  %v80 = vld [vmem:[%s1 + $0x38] sm:$0xf]
  %v81 = vld [vmem:[%s1 + $0x3c] sm:$0xf]
  %v82 = vld [vmem:[%s1 + $0x40] sm:$0xf]
  %v83 = vld [vmem:[%s1 + $0x44] sm:$0xf]
  %v84 = vld [vmem:[%s1 + $0x48] sm:$0xf]
  %v85 = vld [vmem:[%s1 + $0x4c] sm:$0xf]
  %v86 = vld [vmem:[%s1 + $0x50] sm:$0xf]
  %v87 = vld [vmem:[%s1 + $0x54] sm:$0xf]
  %v88 = vld [vmem:[%s1 + $0x58] sm:$0xf]
  %v89 = vld [vmem:[%s1 + $0x5c] sm:$0xf]
  %v114 = vunpack.c.l.b16 %v66
  %v115 = vunpack.c.l.b16 %v67
  %v116 = vunpack.c.l.b16 %v68
  %v117 = vunpack.c.l.b16 %v69
  %v118 = vunpack.c.l.b16 %v70
  %v119 = vunpack.c.l.b16 %v71
  %v120 = vunpack.c.l.b16 %v72
  %v121 = vunpack.c.l.b16 %v73
  %v122 = vunpack.c.l.b16 %v74
  %v123 = vunpack.c.l.b16 %v75
  %v124 = vunpack.c.l.b16 %v76
  %v125 = vunpack.c.l.b16 %v77
  %v126 = vunpack.c.l.b16 %v78
  %v127 = vunpack.c.l.b16 %v79
  %v128 = vunpack.c.l.b16 %v80
  %v129 = vunpack.c.l.b16 %v81
  %v130 = vunpack.c.l.b16 %v82
  %v131 = vunpack.c.l.b16 %v83
  %v132 = vunpack.c.l.b16 %v84
  %v133 = vunpack.c.l.b16 %v85
  %v134 = vunpack.c.l.b16 %v86
  %v135 = vunpack.c.l.b16 %v87
  %v136 = vunpack.c.l.b16 %v88
  %v137 = vunpack.c.l.b16 %v89
  %v138 = vpack.c.b16 %v115, %v114
  %v139 = vpack.c.b16 %v117, %v116
  %v140 = vpack.c.b16 %v119, %v118
  %v141 = vpack.c.b16 %v121, %v120
  %v142 = vpack.c.b16 %v123, %v122
  %v143 = vpack.c.b16 %v125, %v124
  %v144 = vpack.c.b16 %v127, %v126
  %v145 = vpack.c.b16 %v129, %v128
  %v146 = vpack.c.b16 %v131, %v130
  %v147 = vpack.c.b16 %v133, %v132
  %v148 = vpack.c.b16 %v135, %v134
  %v149 = vpack.c.b16 %v137, %v136
  %vm162 = vcmask 523264
  %v164 = vsel %vm162, %v65, 0
  %166 = vmatprep.subr.bf16.mxu0 0
  %167 = vmatpush1.bf16.msra.mxu0 %v138
  %168 = vmatprep.subr.bf16.mxu0 0
  %169 = vmatpush1.bf16.msra.mxu0 %v139
  %170 = vmatprep.subr.bf16.mxu0 0
  %171 = vmatpush1.bf16.msra.mxu0 %v140
  %172 = vmatprep.subr.bf16.mxu0 0
  %173 = vmatpush1.bf16.msra.mxu0 %v141
  %174 = vmatprep.subr.bf16.mxu0 0
  %175 = vmatpush1.bf16.msra.mxu0 %v142
  %176 = vmatprep.subr.bf16.mxu0 0
  %177 = vmatpush1.bf16.msra.mxu0 %v143
  %178 = vmatprep.subr.bf16.mxu0 0
  %179 = vmatpush1.bf16.msra.mxu0 %v144
  %180 = vmatprep.subr.bf16.mxu0 0
  %181 = vmatpush1.bf16.msra.mxu0 %v145
  %182 = vmatprep.subr.bf16.mxu0 0
  %183 = vmatpush1.bf16.msra.mxu0 %v146
  %184 = vmatprep.subr.bf16.mxu0 0
  %185 = vmatpush1.bf16.msra.mxu0 %v147
  %186 = vmatprep.subr.bf16.mxu0 0
  %187 = vmatpush1.bf16.msra.mxu0 %v148
  %188 = vmatprep.subr.bf16.mxu0 0
  %189 = vmatpush1.bf16.msra.mxu0 %v149
  %190 = vmatprep.subr.bf16.mxu0 0
  %191 = vmatpush1.bf16.msra.mxu0 0
  %192 = vmatprep.subr.bf16.mxu0 0
  %193 = vmatpush1.bf16.msra.mxu0 0
  %194 = vmatprep.subr.bf16.mxu0 0
  %195 = vmatpush1.bf16.msra.mxu0 0
  %196 = vmatprep.subr.bf16.mxu0 0
  %197 = vmatpush1.bf16.msra.mxu0 0
  %198 = vmatprep.mubr.bf16.mxu0 %v164
  %199 = vmatmul.mubr.bf16.gmra.mrb[0].mxu0 %v64
  %v200 = vpop.f32.mrb[0].mxu0
  %v201 = vadd.f32 0.0, %v200
  %v202 = vpop.f32.mrb[0].mxu0
  %v203 = vpop.f32.mrb[0].mxu0
  %v204 = vadd.f32 0.0, %v203
  %v205 = vpop.f32.mrb[0].mxu0
  %206 = vdwg.mxu0
  %v207 = vld [vmem:[%s2] sm:$0xff]
  %v208 = vadd.f32 %v201, %v207
  %v209 = vadd.f32 %v204, %v207
  %v210 = vlaneseq
  %v211 = vand.u32 %v210, 127
  %vm212 = vcmp.lt.s32.totalorder %v211, 5
  %v213 = vsel %vm212, 0.0, -1e+30
  %v214 = vld [vmem:[%s3] sm:$0x1]
  %v215 = vld [vmem:[%s4] sm:$0x1]
  %vm216 = vcmask 261120
  %v217 = vsel %vm216, %v208, 0.0
  %218 = vadd.xlane.f32.xlu0 %v217
  %v219 = vpop.xlane.xlu0 %218
  %v220 = vsel %vm216, %v209, 0.0
  %221 = vadd.xlane.f32.xlu0 %v220
  %v222 = vpop.xlane.xlu0 %221
  %v223 = vrcp.pop 32.0
  %v224 = vmul.f32 %v219, %v223
  %v225 = vmul.f32 %v222, %v223
  %v226 = vsub.f32 %v208, %v224
  %v227 = vsub.f32 %v209, %v225
  %v228 = vmul.f32 %v226, %v226
  %v229 = vmul.f32 %v227, %v227
  %v230 = vsel %vm216, %v228, 0.0
  %231 = vadd.xlane.f32.xlu0 %v230
  %v232 = vpop.xlane.xlu0 %231
  %v233 = vsel %vm216, %v229, 0.0
  %234 = vadd.xlane.f32.xlu0 %v233
  %v235 = vpop.xlane.xlu0 %234
  %v236 = vmul.f32 %v232, %v223
  %v237 = vmul.f32 %v235, %v223
  %v238 = vadd.f32 %v236, 1e-05
  %v239 = vadd.f32 %v237, 1e-05
  %v240 = vrsqrt.pop %v238
  %v241 = vrsqrt.pop %v239
  %v242 = vmul.f32 %v226, %v240
  %v243 = vmul.f32 %v227, %v241
  %v245 = vlaneseq
  %v246 = vshrl.u32 %v245, 7
  %v247 = vsub.s32 0, %v246
  %v248 = vrot.slane %v214, %v247
  %v250 = vmul.f32 %v242, %v248
  %v251 = vmul.f32 %v243, %v248
  %v253 = vlaneseq
  %v254 = vshrl.u32 %v253, 7
  %v255 = vsub.s32 0, %v254
  %v256 = vrot.slane %v215, %v255
  %v258 = vadd.f32 %v250, %v256
  %v259 = vadd.f32 %v251, %v256
  %v260 = vpack.c.bf16 %v259, %v258
  %v261 = vld [vmem:[%s5] sm:$0xf]
  %v262 = vld [vmem:[%s5 + $0x4] sm:$0xf]
  %v263 = vld [vmem:[%s5 + $0x8] sm:$0xf]
  %v264 = vld [vmem:[%s5 + $0xc] sm:$0xf]
  %v269 = vunpack.c.l.b16 %v261
  %v270 = vunpack.c.l.b16 %v262
  %v271 = vunpack.c.l.b16 %v263
  %v272 = vunpack.c.l.b16 %v264
  %v273 = vpack.c.b16 %v270, %v269
  %v274 = vpack.c.b16 %v272, %v271
  %v278 = vsel %vm216, %v260, 0
  %280 = vmatprep.subr.bf16.mxu0 0
  %281 = vmatpush1.bf16.msra.mxu0 %v273
  %282 = vmatprep.subr.bf16.mxu0 0
  %283 = vmatpush1.bf16.msra.mxu0 %v274
  %284 = vmatprep.subr.bf16.mxu0 0
  %285 = vmatpush1.bf16.msra.mxu0 0
  %286 = vmatprep.subr.bf16.mxu0 0
  %287 = vmatpush1.bf16.msra.mxu0 0
  %288 = vmatprep.subr.bf16.mxu0 0
  %289 = vmatpush1.bf16.msra.mxu0 0
  %290 = vmatprep.subr.bf16.mxu0 0
  %291 = vmatpush1.bf16.msra.mxu0 0
  %292 = vmatprep.subr.bf16.mxu0 0
  %293 = vmatpush1.bf16.msra.mxu0 0
  %294 = vmatprep.subr.bf16.mxu0 0
  %295 = vmatpush1.bf16.msra.mxu0 0
  %296 = vmatprep.subr.bf16.mxu0 0
  %297 = vmatpush1.bf16.msra.mxu0 0
  %298 = vmatprep.subr.bf16.mxu0 0
  %299 = vmatpush1.bf16.msra.mxu0 0
  %300 = vmatprep.subr.bf16.mxu0 0
  %301 = vmatpush1.bf16.msra.mxu0 0
  %302 = vmatprep.subr.bf16.mxu0 0
  %303 = vmatpush1.bf16.msra.mxu0 0
  %304 = vmatprep.subr.bf16.mxu0 0
  %305 = vmatpush1.bf16.msra.mxu0 0
  %306 = vmatprep.subr.bf16.mxu0 0
  %307 = vmatpush1.bf16.msra.mxu0 0
  %308 = vmatprep.subr.bf16.mxu0 0
  %309 = vmatpush1.bf16.msra.mxu0 0
  %310 = vmatprep.subr.bf16.mxu0 0
  %311 = vmatpush1.bf16.msra.mxu0 0
  %312 = vmatprep.mubr.bf16.mxu0 0
  %313 = vmatmul.mubr.bf16.gmra.mrb[0].mxu0 %v278
  %v314 = vpop.f32.mrb[0].mxu0
  %v315 = vadd.f32 0.0, %v314
  %v316 = vpop.f32.mrb[0].mxu0
  %v317 = vpop.f32.mrb[0].mxu0
  %v318 = vadd.f32 0.0, %v317
  %v319 = vpop.f32.mrb[0].mxu0
  %320 = vdwg.mxu0
  %v323 = vcombine.high %v315, %v315
  %v325 = vunpack.c.l.s4 1966171168
  %v326 = vunpack.c.0.s8 %v325
  %v327 = vlaneseq
  %v328 = vshrl.u32 %v327, 7
  %v329 = vsub.s32 %v326, %v328
  %v330 = vrot.slane %v315, %v329
  %v332 = vunpack.c.l.s4 1966171168
  %v333 = vunpack.c.0.s8 %v332
  %v334 = vlaneseq
  %v335 = vshrl.u32 %v334, 7
  %v336 = vsub.s32 %v333, %v335
  %v337 = vrot.slane %v323, %v336
  %v338 = vcombine.high %v330, %v330
  %v339 = vcombine.high %v337, %v337
  %v341 = vunpack.c.l.s4 1966171168
  %v342 = vunpack.c.0.s8 %v341
  %v343 = vlaneseq
  %v344 = vshrl.u32 %v343, 7
  %v345 = vsub.s32 %v342, %v344
  %v346 = vrot.slane %v330, %v345
  %v348 = vunpack.c.l.s4 1966171168
  %v349 = vunpack.c.0.s8 %v348
  %v350 = vlaneseq
  %v351 = vshrl.u32 %v350, 7
  %v352 = vsub.s32 %v349, %v351
  %v353 = vrot.slane %v337, %v352
  %v355 = vunpack.c.l.s4 1966171168
  %v356 = vunpack.c.0.s8 %v355
  %v357 = vlaneseq
  %v358 = vshrl.u32 %v357, 7
  %v359 = vsub.s32 %v356, %v358
  %v360 = vrot.slane %v338, %v359
  %v362 = vunpack.c.l.s4 1966171168
  %v363 = vunpack.c.0.s8 %v362
  %v364 = vlaneseq
  %v365 = vshrl.u32 %v364, 7
  %v366 = vsub.s32 %v363, %v365
  %v367 = vrot.slane %v339, %v366
  %v368 = vcombine.high %v346, %v346
  %v369 = vcombine.high %v353, %v353
  %v370 = vcombine.high %v360, %v360
  %v371 = vcombine.high %v367, %v367
  %v372 = vcombine.high %v318, %v318
  %v374 = vunpack.c.l.s4 1966171168
  %v375 = vunpack.c.0.s8 %v374
  %v376 = vlaneseq
  %v377 = vshrl.u32 %v376, 7
  %v378 = vsub.s32 %v375, %v377
  %v379 = vrot.slane %v318, %v378
  %v381 = vunpack.c.l.s4 1966171168
  %v382 = vunpack.c.0.s8 %v381
  %v383 = vlaneseq
  %v384 = vshrl.u32 %v383, 7
  %v385 = vsub.s32 %v382, %v384
  %v386 = vrot.slane %v372, %v385
  %v387 = vcombine.high %v379, %v379
  %v388 = vcombine.high %v386, %v386
  %v390 = vunpack.c.l.s4 1966171168
  %v391 = vunpack.c.0.s8 %v390
  %v392 = vlaneseq
  %v393 = vshrl.u32 %v392, 7
  %v394 = vsub.s32 %v391, %v393
  %v395 = vrot.slane %v379, %v394
  %v397 = vunpack.c.l.s4 1966171168
  %v398 = vunpack.c.0.s8 %v397
  %v399 = vlaneseq
  %v400 = vshrl.u32 %v399, 7
  %v401 = vsub.s32 %v398, %v400
  %v402 = vrot.slane %v386, %v401
  %v404 = vunpack.c.l.s4 1966171168
  %v405 = vunpack.c.0.s8 %v404
  %v406 = vlaneseq
  %v407 = vshrl.u32 %v406, 7
  %v408 = vsub.s32 %v405, %v407
  %v409 = vrot.slane %v387, %v408
  %v411 = vunpack.c.l.s4 1966171168
  %v412 = vunpack.c.0.s8 %v411
  %v413 = vlaneseq
  %v414 = vshrl.u32 %v413, 7
  %v415 = vsub.s32 %v412, %v414
  %v416 = vrot.slane %v388, %v415
  %v417 = vcombine.high %v395, %v395
  %v418 = vcombine.high %v402, %v402
  %v419 = vcombine.high %v409, %v409
  %v420 = vcombine.high %v416, %v416
  %v421 = vlaneseq
  %v422 = vshrl.u32 %v421, 7
  %v423 = vsub.s32 0, %v422
  %v424 = vrot.slane %v346, %v423
  %v425 = vlaneseq
  %v426 = vshrl.u32 %v425, 7
  %v427 = vsub.s32 0, %v426
  %v428 = vrot.slane %v360, %v427
  %v429 = vlaneseq
  %v430 = vshrl.u32 %v429, 7
  %v431 = vsub.s32 0, %v430
  %v432 = vrot.slane %v368, %v431
  %v433 = vlaneseq
  %v434 = vshrl.u32 %v433, 7
  %v435 = vsub.s32 0, %v434
  %v436 = vrot.slane %v370, %v435
  %v437 = vlaneseq
  %v438 = vshrl.u32 %v437, 7
  %v439 = vsub.s32 0, %v438
  %v440 = vrot.slane %v353, %v439
  %v441 = vlaneseq
  %v442 = vshrl.u32 %v441, 7
  %v443 = vsub.s32 0, %v442
  %v444 = vrot.slane %v367, %v443
  %v445 = vlaneseq
  %v446 = vshrl.u32 %v445, 7
  %v447 = vsub.s32 0, %v446
  %v448 = vrot.slane %v369, %v447
  %v449 = vlaneseq
  %v450 = vshrl.u32 %v449, 7
  %v451 = vsub.s32 0, %v450
  %v452 = vrot.slane %v371, %v451
  %v453 = vlaneseq
  %v454 = vshrl.u32 %v453, 7
  %v455 = vsub.s32 0, %v454
  %v456 = vrot.slane %v395, %v455
  %v457 = vlaneseq
  %v458 = vshrl.u32 %v457, 7
  %v459 = vsub.s32 0, %v458
  %v460 = vrot.slane %v409, %v459
  %v461 = vlaneseq
  %v462 = vshrl.u32 %v461, 7
  %v463 = vsub.s32 0, %v462
  %v464 = vrot.slane %v417, %v463
  %v465 = vlaneseq
  %v466 = vshrl.u32 %v465, 7
  %v467 = vsub.s32 0, %v466
  %v468 = vrot.slane %v419, %v467
  %v469 = vlaneseq
  %v470 = vshrl.u32 %v469, 7
  %v471 = vsub.s32 0, %v470
  %v472 = vrot.slane %v402, %v471
  %v473 = vlaneseq
  %v474 = vshrl.u32 %v473, 7
  %v475 = vsub.s32 0, %v474
  %v476 = vrot.slane %v416, %v475
  %v477 = vlaneseq
  %v478 = vshrl.u32 %v477, 7
  %v479 = vsub.s32 0, %v478
  %v480 = vrot.slane %v418, %v479
  %v481 = vlaneseq
  %v482 = vshrl.u32 %v481, 7
  %v483 = vsub.s32 0, %v482
  %v484 = vrot.slane %v420, %v483
  %501 = vrot.lane.b32.xlu0 %v315, 96
  %v502 = vpop.permute.xlu0 %501
  %503 = vrot.lane.b32.xlu0 %v318, 96
  %v504 = vpop.permute.xlu0 %503
  %v507 = vmul.f32 %v424, %v502
  %v508 = vmul.f32 %v428, %v502
  %v509 = vmul.f32 %v432, %v502
  %v510 = vmul.f32 %v436, %v502
  %v511 = vmul.f32 %v440, %v502
  %v512 = vmul.f32 %v444, %v502
  %v513 = vmul.f32 %v448, %v502
  %v514 = vmul.f32 %v452, %v502
  %v515 = vmul.f32 %v456, %v504
  %v516 = vmul.f32 %v460, %v504
  %v517 = vmul.f32 %v464, %v504
  %v518 = vmul.f32 %v468, %v504
  %v519 = vmul.f32 %v472, %v504
  %v520 = vmul.f32 %v476, %v504
  %v521 = vmul.f32 %v480, %v504
  %v522 = vmul.f32 %v484, %v504
  %vm523 = vcmask 64512
  %v524 = vsel %vm523, %v507, 0.0
  %525 = vadd.xlane.f32.xlu0 %v524
  %v526 = vpop.xlane.xlu0 %525
  %v527 = vsel %vm523, %v508, 0.0
  %528 = vadd.xlane.f32.xlu0 %v527
  %v529 = vpop.xlane.xlu0 %528
  %v530 = vsel %vm523, %v509, 0.0
  %531 = vadd.xlane.f32.xlu0 %v530
  %v532 = vpop.xlane.xlu0 %531
  %v533 = vsel %vm523, %v510, 0.0
  %534 = vadd.xlane.f32.xlu0 %v533
  %v535 = vpop.xlane.xlu0 %534
  %v536 = vsel %vm523, %v511, 0.0
  %537 = vadd.xlane.f32.xlu0 %v536
  %v538 = vpop.xlane.xlu0 %537
  %v539 = vsel %vm523, %v512, 0.0
  %540 = vadd.xlane.f32.xlu0 %v539
  %v541 = vpop.xlane.xlu0 %540
  %v542 = vsel %vm523, %v513, 0.0
  %543 = vadd.xlane.f32.xlu0 %v542
  %v544 = vpop.xlane.xlu0 %543
  %v545 = vsel %vm523, %v514, 0.0
  %546 = vadd.xlane.f32.xlu0 %v545
  %v547 = vpop.xlane.xlu0 %546
  %v548 = vsel %vm523, %v515, 0.0
  %549 = vadd.xlane.f32.xlu0 %v548
  %v550 = vpop.xlane.xlu0 %549
  %v551 = vsel %vm523, %v516, 0.0
  %552 = vadd.xlane.f32.xlu0 %v551
  %v553 = vpop.xlane.xlu0 %552
  %v554 = vsel %vm523, %v517, 0.0
  %555 = vadd.xlane.f32.xlu0 %v554
  %v556 = vpop.xlane.xlu0 %555
  %v557 = vsel %vm523, %v518, 0.0
  %558 = vadd.xlane.f32.xlu0 %v557
  %v559 = vpop.xlane.xlu0 %558
  %v560 = vsel %vm523, %v519, 0.0
  %561 = vadd.xlane.f32.xlu0 %v560
  %v562 = vpop.xlane.xlu0 %561
  %v563 = vsel %vm523, %v520, 0.0
  %564 = vadd.xlane.f32.xlu0 %v563
  %v565 = vpop.xlane.xlu0 %564
  %v566 = vsel %vm523, %v521, 0.0
  %567 = vadd.xlane.f32.xlu0 %v566
  %v568 = vpop.xlane.xlu0 %567
  %v569 = vsel %vm523, %v522, 0.0
  %570 = vadd.xlane.f32.xlu0 %v569
  %v571 = vpop.xlane.xlu0 %570
  %574 = vbcast.lane.b32.xlu0 %v213, 256
  %v575 = vpop.permute.xlu0 %574
  %v577 = vadd.f32 %v526, %v575
  %v578 = vadd.f32 %v529, %v575
  %v579 = vadd.f32 %v532, %v575
  %v580 = vadd.f32 %v535, %v575
  %v581 = vadd.f32 %v538, %v575
  %v582 = vadd.f32 %v541, %v575
  %v583 = vadd.f32 %v544, %v575
  %v584 = vadd.f32 %v547, %v575
  %v585 = vadd.f32 %v550, %v575
  %v586 = vadd.f32 %v553, %v575
  %v587 = vadd.f32 %v556, %v575
  %v588 = vadd.f32 %v559, %v575
  %v589 = vadd.f32 %v562, %v575
  %v590 = vadd.f32 %v565, %v575
  %v591 = vadd.f32 %v568, %v575
  %v592 = vadd.f32 %v571, %v575
  %609 = vset.pattern.permute.xlu0 0
  %610 = vperm.xlu0 %609, %v577
  %v611 = vpop.permute.xlu0 %610
  %612 = vset.pattern.permute.xlu0 0
  %613 = vperm.xlu0 %612, %v578
  %v614 = vpop.permute.xlu0 %613
  %615 = vset.pattern.permute.xlu0 0
  %616 = vperm.xlu0 %615, %v579
  %v617 = vpop.permute.xlu0 %616
  %618 = vset.pattern.permute.xlu0 0
  %619 = vperm.xlu0 %618, %v580
  %v620 = vpop.permute.xlu0 %619
  %621 = vset.pattern.permute.xlu0 0
  %622 = vperm.xlu0 %621, %v581
  %v623 = vpop.permute.xlu0 %622
  %624 = vset.pattern.permute.xlu0 0
  %625 = vperm.xlu0 %624, %v582
  %v626 = vpop.permute.xlu0 %625
  %627 = vset.pattern.permute.xlu0 0
  %628 = vperm.xlu0 %627, %v583
  %v629 = vpop.permute.xlu0 %628
  %630 = vset.pattern.permute.xlu0 0
  %631 = vperm.xlu0 %630, %v584
  %v632 = vpop.permute.xlu0 %631
  %633 = vset.pattern.permute.xlu0 0
  %634 = vperm.xlu0 %633, %v585
  %v635 = vpop.permute.xlu0 %634
  %636 = vset.pattern.permute.xlu0 0
  %637 = vperm.xlu0 %636, %v586
  %v638 = vpop.permute.xlu0 %637
  %639 = vset.pattern.permute.xlu0 0
  %640 = vperm.xlu0 %639, %v587
  %v641 = vpop.permute.xlu0 %640
  %642 = vset.pattern.permute.xlu0 0
  %643 = vperm.xlu0 %642, %v588
  %v644 = vpop.permute.xlu0 %643
  %645 = vset.pattern.permute.xlu0 0
  %646 = vperm.xlu0 %645, %v589
  %v647 = vpop.permute.xlu0 %646
  %648 = vset.pattern.permute.xlu0 0
  %649 = vperm.xlu0 %648, %v590
  %v650 = vpop.permute.xlu0 %649
  %651 = vset.pattern.permute.xlu0 0
  %652 = vperm.xlu0 %651, %v591
  %v653 = vpop.permute.xlu0 %652
  %654 = vset.pattern.permute.xlu0 0
  %655 = vperm.xlu0 %654, %v592
  %v656 = vpop.permute.xlu0 %655
  %v657 = vlaneseq
  %v658 = vshrl.u32 %v657, 7
  %v659 = vsub.s32 %v211, %v658
  %v660 = vrot.slane %v611, %v659
  %v661 = vlaneseq
  %v662 = vshrl.u32 %v661, 7
  %v663 = vsub.s32 %v211, %v662
  %v664 = vrot.slane %v614, %v663
  %v665 = vlaneseq
  %v666 = vshrl.u32 %v665, 7
  %v667 = vsub.s32 %v211, %v666
  %v668 = vrot.slane %v617, %v667
  %v669 = vlaneseq
  %v670 = vshrl.u32 %v669, 7
  %v671 = vsub.s32 %v211, %v670
  %v672 = vrot.slane %v620, %v671
  %v673 = vlaneseq
  %v674 = vshrl.u32 %v673, 7
  %v675 = vsub.s32 %v211, %v674
  %v676 = vrot.slane %v623, %v675
  %v677 = vlaneseq
  %v678 = vshrl.u32 %v677, 7
  %v679 = vsub.s32 %v211, %v678
  %v680 = vrot.slane %v626, %v679
  %v681 = vlaneseq
  %v682 = vshrl.u32 %v681, 7
  %v683 = vsub.s32 %v211, %v682
  %v684 = vrot.slane %v629, %v683
  %v685 = vlaneseq
  %v686 = vshrl.u32 %v685, 7
  %v687 = vsub.s32 %v211, %v686
  %v688 = vrot.slane %v632, %v687
  %v689 = vlaneseq
  %v690 = vshrl.u32 %v689, 7
  %v691 = vsub.s32 %v211, %v690
  %v692 = vrot.slane %v635, %v691
  %v693 = vlaneseq
  %v694 = vshrl.u32 %v693, 7
  %v695 = vsub.s32 %v211, %v694
  %v696 = vrot.slane %v638, %v695
  %v697 = vlaneseq
  %v698 = vshrl.u32 %v697, 7
  %v699 = vsub.s32 %v211, %v698
  %v700 = vrot.slane %v641, %v699
  %v701 = vlaneseq
  %v702 = vshrl.u32 %v701, 7
  %v703 = vsub.s32 %v211, %v702
  %v704 = vrot.slane %v644, %v703
  %v705 = vlaneseq
  %v706 = vshrl.u32 %v705, 7
  %v707 = vsub.s32 %v211, %v706
  %v708 = vrot.slane %v647, %v707
  %v709 = vlaneseq
  %v710 = vshrl.u32 %v709, 7
  %v711 = vsub.s32 %v211, %v710
  %v712 = vrot.slane %v650, %v711
  %v713 = vlaneseq
  %v714 = vshrl.u32 %v713, 7
  %v715 = vsub.s32 %v211, %v714
  %v716 = vrot.slane %v653, %v715
  %v717 = vlaneseq
  %v718 = vshrl.u32 %v717, 7
  %v719 = vsub.s32 %v211, %v718
  %v720 = vrot.slane %v656, %v719
  %vm721 = vcmask 1041409
  %v722 = vsel %vm721, %v664, %v660
  %vm723 = vcmask 1042434
  %v724 = vsel %vm723, %v668, %v722
  %vm725 = vcmask 1043459
  %v726 = vsel %vm725, %v672, %v724
  %vm727 = vcmask 1044484
  %v728 = vsel %vm727, %v676, %v726
  %vm729 = vcmask 1045509
  %v730 = vsel %vm729, %v680, %v728
  %vm731 = vcmask 1046534
  %v732 = vsel %vm731, %v684, %v730
  %vm733 = vcmask 1047559
  %v734 = vsel %vm733, %v688, %v732
  %v735 = vsel %vm721, %v696, %v692
  %v736 = vsel %vm723, %v700, %v735
  %v737 = vsel %vm725, %v704, %v736
  %v738 = vsel %vm727, %v708, %v737
  %v739 = vsel %vm729, %v712, %v738
  %v740 = vsel %vm731, %v716, %v739
  %v741 = vsel %vm733, %v720, %v740
  %v744 = vsel %vm523, %v734, -inf
  %745 = vmax.xlane.f32.xlu0 %v744
  %v746 = vpop.xlane.xlu0 %745
  %v747 = vsel %vm523, %v741, -inf
  %748 = vmax.xlane.f32.xlu0 %v747
  %v749 = vpop.xlane.xlu0 %748
  %v752 = vlaneseq
  %v753 = vshrl.u32 %v752, 7
  %v754 = vsub.s32 0, %v753
  %v755 = vrot.slane %v746, %v754
  %v756 = vlaneseq
  %v757 = vshrl.u32 %v756, 7
  %v758 = vsub.s32 1, %v757
  %v759 = vrot.slane %v746, %v758
  %v760 = vlaneseq
  %v761 = vshrl.u32 %v760, 7
  %v762 = vsub.s32 2, %v761
  %v763 = vrot.slane %v746, %v762
  %v764 = vlaneseq
  %v765 = vshrl.u32 %v764, 7
  %v766 = vsub.s32 3, %v765
  %v767 = vrot.slane %v746, %v766
  %v768 = vlaneseq
  %v769 = vshrl.u32 %v768, 7
  %v770 = vsub.s32 4, %v769
  %v771 = vrot.slane %v746, %v770
  %v772 = vlaneseq
  %v773 = vshrl.u32 %v772, 7
  %v774 = vsub.s32 5, %v773
  %v775 = vrot.slane %v746, %v774
  %v776 = vlaneseq
  %v777 = vshrl.u32 %v776, 7
  %v778 = vsub.s32 6, %v777
  %v779 = vrot.slane %v746, %v778
  %v780 = vlaneseq
  %v781 = vshrl.u32 %v780, 7
  %v782 = vsub.s32 7, %v781
  %v783 = vrot.slane %v746, %v782
  %v784 = vlaneseq
  %v785 = vshrl.u32 %v784, 7
  %v786 = vsub.s32 0, %v785
  %v787 = vrot.slane %v749, %v786
  %v788 = vlaneseq
  %v789 = vshrl.u32 %v788, 7
  %v790 = vsub.s32 1, %v789
  %v791 = vrot.slane %v749, %v790
  %v792 = vlaneseq
  %v793 = vshrl.u32 %v792, 7
  %v794 = vsub.s32 2, %v793
  %v795 = vrot.slane %v749, %v794
  %v796 = vlaneseq
  %v797 = vshrl.u32 %v796, 7
  %v798 = vsub.s32 3, %v797
  %v799 = vrot.slane %v749, %v798
  %v800 = vlaneseq
  %v801 = vshrl.u32 %v800, 7
  %v802 = vsub.s32 4, %v801
  %v803 = vrot.slane %v749, %v802
  %v804 = vlaneseq
  %v805 = vshrl.u32 %v804, 7
  %v806 = vsub.s32 5, %v805
  %v807 = vrot.slane %v749, %v806
  %v808 = vlaneseq
  %v809 = vshrl.u32 %v808, 7
  %v810 = vsub.s32 6, %v809
  %v811 = vrot.slane %v749, %v810
  %v812 = vlaneseq
  %v813 = vshrl.u32 %v812, 7
  %v814 = vsub.s32 7, %v813
  %v815 = vrot.slane %v749, %v814
  %v832 = vsub.f32 %v577, %v755
  %v833 = vsub.f32 %v578, %v759
  %v834 = vsub.f32 %v579, %v763
  %v835 = vsub.f32 %v580, %v767
  %v836 = vsub.f32 %v581, %v771
  %v837 = vsub.f32 %v582, %v775
  %v838 = vsub.f32 %v583, %v779
  %v839 = vsub.f32 %v584, %v783
  %v840 = vsub.f32 %v585, %v787
  %v841 = vsub.f32 %v586, %v791
  %v842 = vsub.f32 %v587, %v795
  %v843 = vsub.f32 %v588, %v799
  %v844 = vsub.f32 %v589, %v803
  %v845 = vsub.f32 %v590, %v807
  %v846 = vsub.f32 %v591, %v811
  %v847 = vsub.f32 %v592, %v815
  %v848 = vmul.f32 %v832, 1.442695
  %v849 = vpow.pop %v848
  %v850 = vmul.f32 %v833, 1.442695
  %v851 = vpow.pop %v850
  %v852 = vmul.f32 %v834, 1.442695
  %v853 = vpow.pop %v852
  %v854 = vmul.f32 %v835, 1.442695
  %v855 = vpow.pop %v854
  %v856 = vmul.f32 %v836, 1.442695
  %v857 = vpow.pop %v856
  %v858 = vmul.f32 %v837, 1.442695
  %v859 = vpow.pop %v858
  %v860 = vmul.f32 %v838, 1.442695
  %v861 = vpow.pop %v860
  %v862 = vmul.f32 %v839, 1.442695
  %v863 = vpow.pop %v862
  %v864 = vmul.f32 %v840, 1.442695
  %v865 = vpow.pop %v864
  %v866 = vmul.f32 %v841, 1.442695
  %v867 = vpow.pop %v866
  %v868 = vmul.f32 %v842, 1.442695
  %v869 = vpow.pop %v868
  %v870 = vmul.f32 %v843, 1.442695
  %v871 = vpow.pop %v870
  %v872 = vmul.f32 %v844, 1.442695
  %v873 = vpow.pop %v872
  %v874 = vmul.f32 %v845, 1.442695
  %v875 = vpow.pop %v874
  %v876 = vmul.f32 %v846, 1.442695
  %v877 = vpow.pop %v876
  %v878 = vmul.f32 %v847, 1.442695
  %v879 = vpow.pop %v878
  %896 = vset.pattern.permute.xlu0 0
  %897 = vperm.xlu0 %896, %v849
  %v898 = vpop.permute.xlu0 %897
  %899 = vset.pattern.permute.xlu0 0
  %900 = vperm.xlu0 %899, %v851
  %v901 = vpop.permute.xlu0 %900
  %902 = vset.pattern.permute.xlu0 0
  %903 = vperm.xlu0 %902, %v853
  %v904 = vpop.permute.xlu0 %903
  %905 = vset.pattern.permute.xlu0 0
  %906 = vperm.xlu0 %905, %v855
  %v907 = vpop.permute.xlu0 %906
  %908 = vset.pattern.permute.xlu0 0
  %909 = vperm.xlu0 %908, %v857
  %v910 = vpop.permute.xlu0 %909
  %911 = vset.pattern.permute.xlu0 0
  %912 = vperm.xlu0 %911, %v859
  %v913 = vpop.permute.xlu0 %912
  %914 = vset.pattern.permute.xlu0 0
  %915 = vperm.xlu0 %914, %v861
  %v916 = vpop.permute.xlu0 %915
  %917 = vset.pattern.permute.xlu0 0
  %918 = vperm.xlu0 %917, %v863
  %v919 = vpop.permute.xlu0 %918
  %920 = vset.pattern.permute.xlu0 0
  %921 = vperm.xlu0 %920, %v865
  %v922 = vpop.permute.xlu0 %921
  %923 = vset.pattern.permute.xlu0 0
  %924 = vperm.xlu0 %923, %v867
  %v925 = vpop.permute.xlu0 %924
  %926 = vset.pattern.permute.xlu0 0
  %927 = vperm.xlu0 %926, %v869
  %v928 = vpop.permute.xlu0 %927
  %929 = vset.pattern.permute.xlu0 0
  %930 = vperm.xlu0 %929, %v871
  %v931 = vpop.permute.xlu0 %930
  %932 = vset.pattern.permute.xlu0 0
  %933 = vperm.xlu0 %932, %v873
  %v934 = vpop.permute.xlu0 %933
  %935 = vset.pattern.permute.xlu0 0
  %936 = vperm.xlu0 %935, %v875
  %v937 = vpop.permute.xlu0 %936
  %938 = vset.pattern.permute.xlu0 0
  %939 = vperm.xlu0 %938, %v877
  %v940 = vpop.permute.xlu0 %939
  %941 = vset.pattern.permute.xlu0 0
  %942 = vperm.xlu0 %941, %v879
  %v943 = vpop.permute.xlu0 %942
  %v944 = vlaneseq
  %v945 = vshrl.u32 %v944, 7
  %v946 = vsub.s32 %v211, %v945
  %v947 = vrot.slane %v898, %v946
  %v948 = vlaneseq
  %v949 = vshrl.u32 %v948, 7
  %v950 = vsub.s32 %v211, %v949
  %v951 = vrot.slane %v901, %v950
  %v952 = vlaneseq
  %v953 = vshrl.u32 %v952, 7
  %v954 = vsub.s32 %v211, %v953
  %v955 = vrot.slane %v904, %v954
  %v956 = vlaneseq
  %v957 = vshrl.u32 %v956, 7
  %v958 = vsub.s32 %v211, %v957
  %v959 = vrot.slane %v907, %v958
  %v960 = vlaneseq
  %v961 = vshrl.u32 %v960, 7
  %v962 = vsub.s32 %v211, %v961
  %v963 = vrot.slane %v910, %v962
  %v964 = vlaneseq
  %v965 = vshrl.u32 %v964, 7
  %v966 = vsub.s32 %v211, %v965
  %v967 = vrot.slane %v913, %v966
  %v968 = vlaneseq
  %v969 = vshrl.u32 %v968, 7
  %v970 = vsub.s32 %v211, %v969
  %v971 = vrot.slane %v916, %v970
  %v972 = vlaneseq
  %v973 = vshrl.u32 %v972, 7
  %v974 = vsub.s32 %v211, %v973
  %v975 = vrot.slane %v919, %v974
  %v976 = vlaneseq
  %v977 = vshrl.u32 %v976, 7
  %v978 = vsub.s32 %v211, %v977
  %v979 = vrot.slane %v922, %v978
  %v980 = vlaneseq
  %v981 = vshrl.u32 %v980, 7
  %v982 = vsub.s32 %v211, %v981
  %v983 = vrot.slane %v925, %v982
  %v984 = vlaneseq
  %v985 = vshrl.u32 %v984, 7
  %v986 = vsub.s32 %v211, %v985
  %v987 = vrot.slane %v928, %v986
  %v988 = vlaneseq
  %v989 = vshrl.u32 %v988, 7
  %v990 = vsub.s32 %v211, %v989
  %v991 = vrot.slane %v931, %v990
  %v992 = vlaneseq
  %v993 = vshrl.u32 %v992, 7
  %v994 = vsub.s32 %v211, %v993
  %v995 = vrot.slane %v934, %v994
  %v996 = vlaneseq
  %v997 = vshrl.u32 %v996, 7
  %v998 = vsub.s32 %v211, %v997
  %v999 = vrot.slane %v937, %v998
  %v1000 = vlaneseq
  %v1001 = vshrl.u32 %v1000, 7
  %v1002 = vsub.s32 %v211, %v1001
  %v1003 = vrot.slane %v940, %v1002
  %v1004 = vlaneseq
  %v1005 = vshrl.u32 %v1004, 7
  %v1006 = vsub.s32 %v211, %v1005
  %v1007 = vrot.slane %v943, %v1006
  %v1008 = vsel %vm721, %v951, %v947
  %v1009 = vsel %vm723, %v955, %v1008
  %v1010 = vsel %vm725, %v959, %v1009
  %v1011 = vsel %vm727, %v963, %v1010
  %v1012 = vsel %vm729, %v967, %v1011
  %v1013 = vsel %vm731, %v971, %v1012
  %v1014 = vsel %vm733, %v975, %v1013
  %v1015 = vsel %vm721, %v983, %v979
  %v1016 = vsel %vm723, %v987, %v1015
  %v1017 = vsel %vm725, %v991, %v1016
  %v1018 = vsel %vm727, %v995, %v1017
  %v1019 = vsel %vm729, %v999, %v1018
  %v1020 = vsel %vm731, %v1003, %v1019
  %v1021 = vsel %vm733, %v1007, %v1020
  %v1024 = vsel %vm523, %v1014, 0.0
  %1025 = vadd.xlane.f32.xlu0 %v1024
  %v1026 = vpop.xlane.xlu0 %1025
  %v1027 = vsel %vm523, %v1021, 0.0
  %1028 = vadd.xlane.f32.xlu0 %v1027
  %v1029 = vpop.xlane.xlu0 %1028
  %v1030 = vrcp.pop %v1026
  %v1031 = vrcp.pop %v1029
  %v1034 = vlaneseq
  %v1035 = vshrl.u32 %v1034, 7
  %v1036 = vsub.s32 0, %v1035
  %v1037 = vrot.slane %v1030, %v1036
  %v1038 = vlaneseq
  %v1039 = vshrl.u32 %v1038, 7
  %v1040 = vsub.s32 1, %v1039
  %v1041 = vrot.slane %v1030, %v1040
  %v1042 = vlaneseq
  %v1043 = vshrl.u32 %v1042, 7
  %v1044 = vsub.s32 2, %v1043
  %v1045 = vrot.slane %v1030, %v1044
  %v1046 = vlaneseq
  %v1047 = vshrl.u32 %v1046, 7
  %v1048 = vsub.s32 3, %v1047
  %v1049 = vrot.slane %v1030, %v1048
  %v1050 = vlaneseq
  %v1051 = vshrl.u32 %v1050, 7
  %v1052 = vsub.s32 4, %v1051
  %v1053 = vrot.slane %v1030, %v1052
  %v1054 = vlaneseq
  %v1055 = vshrl.u32 %v1054, 7
  %v1056 = vsub.s32 5, %v1055
  %v1057 = vrot.slane %v1030, %v1056
  %v1058 = vlaneseq
  %v1059 = vshrl.u32 %v1058, 7
  %v1060 = vsub.s32 6, %v1059
  %v1061 = vrot.slane %v1030, %v1060
  %v1062 = vlaneseq
  %v1063 = vshrl.u32 %v1062, 7
  %v1064 = vsub.s32 7, %v1063
  %v1065 = vrot.slane %v1030, %v1064
  %v1066 = vlaneseq
  %v1067 = vshrl.u32 %v1066, 7
  %v1068 = vsub.s32 0, %v1067
  %v1069 = vrot.slane %v1031, %v1068
  %v1070 = vlaneseq
  %v1071 = vshrl.u32 %v1070, 7
  %v1072 = vsub.s32 1, %v1071
  %v1073 = vrot.slane %v1031, %v1072
  %v1074 = vlaneseq
  %v1075 = vshrl.u32 %v1074, 7
  %v1076 = vsub.s32 2, %v1075
  %v1077 = vrot.slane %v1031, %v1076
  %v1078 = vlaneseq
  %v1079 = vshrl.u32 %v1078, 7
  %v1080 = vsub.s32 3, %v1079
  %v1081 = vrot.slane %v1031, %v1080
  %v1082 = vlaneseq
  %v1083 = vshrl.u32 %v1082, 7
  %v1084 = vsub.s32 4, %v1083
  %v1085 = vrot.slane %v1031, %v1084
  %v1086 = vlaneseq
  %v1087 = vshrl.u32 %v1086, 7
  %v1088 = vsub.s32 5, %v1087
  %v1089 = vrot.slane %v1031, %v1088
  %v1090 = vlaneseq
  %v1091 = vshrl.u32 %v1090, 7
  %v1092 = vsub.s32 6, %v1091
  %v1093 = vrot.slane %v1031, %v1092
  %v1094 = vlaneseq
  %v1095 = vshrl.u32 %v1094, 7
  %v1096 = vsub.s32 7, %v1095
  %v1097 = vrot.slane %v1031, %v1096
  %v1114 = vmul.f32 %v849, %v1037
  %v1115 = vmul.f32 %v851, %v1041
  %v1116 = vmul.f32 %v853, %v1045
  %v1117 = vmul.f32 %v855, %v1049
  %v1118 = vmul.f32 %v857, %v1053
  %v1119 = vmul.f32 %v859, %v1057
  %v1120 = vmul.f32 %v861, %v1061
  %v1121 = vmul.f32 %v863, %v1065
  %v1122 = vmul.f32 %v865, %v1069
  %v1123 = vmul.f32 %v867, %v1073
  %v1124 = vmul.f32 %v869, %v1077
  %v1125 = vmul.f32 %v871, %v1081
  %v1126 = vmul.f32 %v873, %v1085
  %v1127 = vmul.f32 %v875, %v1089
  %v1128 = vmul.f32 %v877, %v1093
  %v1129 = vmul.f32 %v879, %v1097
  %1131 = vset.pattern.permute.xlu0 0
  %1132 = vperm.xlu0 %1131, %v1114
  %v1133 = vpop.permute.xlu0 %1132
  %1136 = vset.pattern.permute.xlu0 0
  %1137 = vperm.xlu0 %1136, %v1115
  %v1138 = vpop.permute.xlu0 %1137
  %1141 = vset.pattern.permute.xlu0 0
  %1142 = vperm.xlu0 %1141, %v1116
  %v1143 = vpop.permute.xlu0 %1142
  %1146 = vset.pattern.permute.xlu0 0
  %1147 = vperm.xlu0 %1146, %v1117
  %v1148 = vpop.permute.xlu0 %1147
  %1151 = vset.pattern.permute.xlu0 0
  %1152 = vperm.xlu0 %1151, %v1118
  %v1153 = vpop.permute.xlu0 %1152
  %1156 = vset.pattern.permute.xlu0 0
  %1157 = vperm.xlu0 %1156, %v1119
  %v1158 = vpop.permute.xlu0 %1157
  %1161 = vset.pattern.permute.xlu0 0
  %1162 = vperm.xlu0 %1161, %v1120
  %v1163 = vpop.permute.xlu0 %1162
  %1166 = vset.pattern.permute.xlu0 0
  %1167 = vperm.xlu0 %1166, %v1121
  %v1168 = vpop.permute.xlu0 %1167
  %1171 = vset.pattern.permute.xlu0 0
  %1172 = vperm.xlu0 %1171, %v1122
  %v1173 = vpop.permute.xlu0 %1172
  %1176 = vset.pattern.permute.xlu0 0
  %1177 = vperm.xlu0 %1176, %v1123
  %v1178 = vpop.permute.xlu0 %1177
  %1181 = vset.pattern.permute.xlu0 0
  %1182 = vperm.xlu0 %1181, %v1124
  %v1183 = vpop.permute.xlu0 %1182
  %1186 = vset.pattern.permute.xlu0 0
  %1187 = vperm.xlu0 %1186, %v1125
  %v1188 = vpop.permute.xlu0 %1187
  %1191 = vset.pattern.permute.xlu0 0
  %1192 = vperm.xlu0 %1191, %v1126
  %v1193 = vpop.permute.xlu0 %1192
  %1196 = vset.pattern.permute.xlu0 0
  %1197 = vperm.xlu0 %1196, %v1127
  %v1198 = vpop.permute.xlu0 %1197
  %1201 = vset.pattern.permute.xlu0 0
  %1202 = vperm.xlu0 %1201, %v1128
  %v1203 = vpop.permute.xlu0 %1202
  %1206 = vset.pattern.permute.xlu0 0
  %1207 = vperm.xlu0 %1206, %v1129
  %v1208 = vpop.permute.xlu0 %1207
  %v1210 = vmul.f32 %v1133, %v315
  %v1211 = vmul.f32 %v1138, %v315
  %v1212 = vmul.f32 %v1143, %v315
  %v1213 = vmul.f32 %v1148, %v315
  %v1214 = vmul.f32 %v1153, %v315
  %v1215 = vmul.f32 %v1158, %v315
  %v1216 = vmul.f32 %v1163, %v315
  %v1217 = vmul.f32 %v1168, %v315
  %v1218 = vmul.f32 %v1173, %v318
  %v1219 = vmul.f32 %v1178, %v318
  %v1220 = vmul.f32 %v1183, %v318
  %v1221 = vmul.f32 %v1188, %v318
  %v1222 = vmul.f32 %v1193, %v318
  %v1223 = vmul.f32 %v1198, %v318
  %v1224 = vmul.f32 %v1203, %v318
  %v1225 = vmul.f32 %v1208, %v318
  %vm1226 = vcmask 589312
  %v1227 = vsel %vm1226, %v1210, 0.0
  %v1228 = vrot.slane %v1227, 4
  %v1229 = vadd.f32 %v1227, %v1228
  %v1230 = vrot.slane %v1229, 2
  %v1231 = vadd.f32 %v1229, %v1230
  %v1232 = vrot.slane %v1231, 1
  %v1233 = vadd.f32 %v1231, %v1232
  %v1234 = vsel %vm1226, %v1211, 0.0
  %v1235 = vrot.slane %v1234, 4
  %v1236 = vadd.f32 %v1234, %v1235
  %v1237 = vrot.slane %v1236, 2
  %v1238 = vadd.f32 %v1236, %v1237
  %v1239 = vrot.slane %v1238, 1
  %v1240 = vadd.f32 %v1238, %v1239
  %v1241 = vsel %vm1226, %v1212, 0.0
  %v1242 = vrot.slane %v1241, 4
  %v1243 = vadd.f32 %v1241, %v1242
  %v1244 = vrot.slane %v1243, 2
  %v1245 = vadd.f32 %v1243, %v1244
  %v1246 = vrot.slane %v1245, 1
  %v1247 = vadd.f32 %v1245, %v1246
  %v1248 = vsel %vm1226, %v1213, 0.0
  %v1249 = vrot.slane %v1248, 4
  %v1250 = vadd.f32 %v1248, %v1249
  %v1251 = vrot.slane %v1250, 2
  %v1252 = vadd.f32 %v1250, %v1251
  %v1253 = vrot.slane %v1252, 1
  %v1254 = vadd.f32 %v1252, %v1253
  %v1255 = vsel %vm1226, %v1214, 0.0
  %v1256 = vrot.slane %v1255, 4
  %v1257 = vadd.f32 %v1255, %v1256
  %v1258 = vrot.slane %v1257, 2
  %v1259 = vadd.f32 %v1257, %v1258
  %v1260 = vrot.slane %v1259, 1
  %v1261 = vadd.f32 %v1259, %v1260
  %v1262 = vsel %vm1226, %v1215, 0.0
  %v1263 = vrot.slane %v1262, 4
  %v1264 = vadd.f32 %v1262, %v1263
  %v1265 = vrot.slane %v1264, 2
  %v1266 = vadd.f32 %v1264, %v1265
  %v1267 = vrot.slane %v1266, 1
  %v1268 = vadd.f32 %v1266, %v1267
  %v1269 = vsel %vm1226, %v1216, 0.0
  %v1270 = vrot.slane %v1269, 4
  %v1271 = vadd.f32 %v1269, %v1270
  %v1272 = vrot.slane %v1271, 2
  %v1273 = vadd.f32 %v1271, %v1272
  %v1274 = vrot.slane %v1273, 1
  %v1275 = vadd.f32 %v1273, %v1274
  %v1276 = vsel %vm1226, %v1217, 0.0
  %v1277 = vrot.slane %v1276, 4
  %v1278 = vadd.f32 %v1276, %v1277
  %v1279 = vrot.slane %v1278, 2
  %v1280 = vadd.f32 %v1278, %v1279
  %v1281 = vrot.slane %v1280, 1
  %v1282 = vadd.f32 %v1280, %v1281
  %v1283 = vsel %vm1226, %v1218, 0.0
  %v1284 = vrot.slane %v1283, 4
  %v1285 = vadd.f32 %v1283, %v1284
  %v1286 = vrot.slane %v1285, 2
  %v1287 = vadd.f32 %v1285, %v1286
  %v1288 = vrot.slane %v1287, 1
  %v1289 = vadd.f32 %v1287, %v1288
  %v1290 = vsel %vm1226, %v1219, 0.0
  %v1291 = vrot.slane %v1290, 4
  %v1292 = vadd.f32 %v1290, %v1291
  %v1293 = vrot.slane %v1292, 2
  %v1294 = vadd.f32 %v1292, %v1293
  %v1295 = vrot.slane %v1294, 1
  %v1296 = vadd.f32 %v1294, %v1295
  %v1297 = vsel %vm1226, %v1220, 0.0
  %v1298 = vrot.slane %v1297, 4
  %v1299 = vadd.f32 %v1297, %v1298
  %v1300 = vrot.slane %v1299, 2
  %v1301 = vadd.f32 %v1299, %v1300
  %v1302 = vrot.slane %v1301, 1
  %v1303 = vadd.f32 %v1301, %v1302
  %v1304 = vsel %vm1226, %v1221, 0.0
  %v1305 = vrot.slane %v1304, 4
  %v1306 = vadd.f32 %v1304, %v1305
  %v1307 = vrot.slane %v1306, 2
  %v1308 = vadd.f32 %v1306, %v1307
  %v1309 = vrot.slane %v1308, 1
  %v1310 = vadd.f32 %v1308, %v1309
  %v1311 = vsel %vm1226, %v1222, 0.0
  %v1312 = vrot.slane %v1311, 4
  %v1313 = vadd.f32 %v1311, %v1312
  %v1314 = vrot.slane %v1313, 2
  %v1315 = vadd.f32 %v1313, %v1314
  %v1316 = vrot.slane %v1315, 1
  %v1317 = vadd.f32 %v1315, %v1316
  %v1318 = vsel %vm1226, %v1223, 0.0
  %v1319 = vrot.slane %v1318, 4
  %v1320 = vadd.f32 %v1318, %v1319
  %v1321 = vrot.slane %v1320, 2
  %v1322 = vadd.f32 %v1320, %v1321
  %v1323 = vrot.slane %v1322, 1
  %v1324 = vadd.f32 %v1322, %v1323
  %v1325 = vsel %vm1226, %v1224, 0.0
  %v1326 = vrot.slane %v1325, 4
  %v1327 = vadd.f32 %v1325, %v1326
  %v1328 = vrot.slane %v1327, 2
  %v1329 = vadd.f32 %v1327, %v1328
  %v1330 = vrot.slane %v1329, 1
  %v1331 = vadd.f32 %v1329, %v1330
  %v1332 = vsel %vm1226, %v1225, 0.0
  %v1333 = vrot.slane %v1332, 4
  %v1334 = vadd.f32 %v1332, %v1333
  %v1335 = vrot.slane %v1334, 2
  %v1336 = vadd.f32 %v1334, %v1335
  %v1337 = vrot.slane %v1336, 1
  %v1338 = vadd.f32 %v1336, %v1337
  %v1355 = vsel %vm721, %v1240, %v1233
  %v1356 = vsel %vm723, %v1247, %v1355
  %v1357 = vsel %vm725, %v1254, %v1356
  %v1358 = vsel %vm727, %v1261, %v1357
  %v1359 = vsel %vm729, %v1268, %v1358
  %v1360 = vsel %vm731, %v1275, %v1359
  %v1361 = vsel %vm733, %v1282, %v1360
  %v1362 = vsel %vm721, %v1296, %v1289
  %v1363 = vsel %vm723, %v1303, %v1362
  %v1364 = vsel %vm725, %v1310, %v1363
  %v1365 = vsel %vm727, %v1317, %v1364
  %v1366 = vsel %vm729, %v1324, %v1365
  %v1367 = vsel %vm731, %v1331, %v1366
  %v1368 = vsel %vm733, %v1338, %v1367
  %1369 = vrot.lane.b32.xlu0 %v1361, 64
  %v1370 = vpop.permute.xlu0 %1369
  %1371 = vrot.lane.b32.xlu0 %v1368, 64
  %v1372 = vpop.permute.xlu0 %1371
  %1375 = vst.msk [vmem:[#allocation2] sm:$0xff] %vm523, %v1370
  %1376 = vst.msk [vmem:[#allocation2 + $0x8] sm:$0xff] %vm523, %v1372
  %1393 = vrot.lane.b32.xlu0 %v507, 120
  %v1394 = vpop.permute.xlu0 %1393
  %1395 = vrot.lane.b32.xlu0 %v508, 120
  %v1396 = vpop.permute.xlu0 %1395
  %1397 = vrot.lane.b32.xlu0 %v509, 120
  %v1398 = vpop.permute.xlu0 %1397
  %1399 = vrot.lane.b32.xlu0 %v510, 120
  %v1400 = vpop.permute.xlu0 %1399
  %1401 = vrot.lane.b32.xlu0 %v511, 120
  %v1402 = vpop.permute.xlu0 %1401
  %1403 = vrot.lane.b32.xlu0 %v512, 120
  %v1404 = vpop.permute.xlu0 %1403
  %1405 = vrot.lane.b32.xlu0 %v513, 120
  %v1406 = vpop.permute.xlu0 %1405
  %1407 = vrot.lane.b32.xlu0 %v514, 120
  %v1408 = vpop.permute.xlu0 %1407
  %1409 = vrot.lane.b32.xlu0 %v515, 120
  %v1410 = vpop.permute.xlu0 %1409
  %1411 = vrot.lane.b32.xlu0 %v516, 120
  %v1412 = vpop.permute.xlu0 %1411
  %1413 = vrot.lane.b32.xlu0 %v517, 120
  %v1414 = vpop.permute.xlu0 %1413
  %1415 = vrot.lane.b32.xlu0 %v518, 120
  %v1416 = vpop.permute.xlu0 %1415
  %1417 = vrot.lane.b32.xlu0 %v519, 120
  %v1418 = vpop.permute.xlu0 %1417
  %1419 = vrot.lane.b32.xlu0 %v520, 120
  %v1420 = vpop.permute.xlu0 %1419
  %1421 = vrot.lane.b32.xlu0 %v521, 120
  %v1422 = vpop.permute.xlu0 %1421
  %1423 = vrot.lane.b32.xlu0 %v522, 120
  %v1424 = vpop.permute.xlu0 %1423
  %v1441 = vsel %vm523, %v1394, 0.0
  %1442 = vadd.xlane.f32.xlu0 %v1441
  %v1443 = vpop.xlane.xlu0 %1442
  %v1444 = vsel %vm523, %v1396, 0.0
  %1445 = vadd.xlane.f32.xlu0 %v1444
  %v1446 = vpop.xlane.xlu0 %1445
  %v1447 = vsel %vm523, %v1398, 0.0
  %1448 = vadd.xlane.f32.xlu0 %v1447
  %v1449 = vpop.xlane.xlu0 %1448
  %v1450 = vsel %vm523, %v1400, 0.0
  %1451 = vadd.xlane.f32.xlu0 %v1450
  %v1452 = vpop.xlane.xlu0 %1451
  %v1453 = vsel %vm523, %v1402, 0.0
  %1454 = vadd.xlane.f32.xlu0 %v1453
  %v1455 = vpop.xlane.xlu0 %1454
  %v1456 = vsel %vm523, %v1404, 0.0
  %1457 = vadd.xlane.f32.xlu0 %v1456
  %v1458 = vpop.xlane.xlu0 %1457
  %v1459 = vsel %vm523, %v1406, 0.0
  %1460 = vadd.xlane.f32.xlu0 %v1459
  %v1461 = vpop.xlane.xlu0 %1460
  %v1462 = vsel %vm523, %v1408, 0.0
  %1463 = vadd.xlane.f32.xlu0 %v1462
  %v1464 = vpop.xlane.xlu0 %1463
  %v1465 = vsel %vm523, %v1410, 0.0
  %1466 = vadd.xlane.f32.xlu0 %v1465
  %v1467 = vpop.xlane.xlu0 %1466
  %v1468 = vsel %vm523, %v1412, 0.0
  %1469 = vadd.xlane.f32.xlu0 %v1468
  %v1470 = vpop.xlane.xlu0 %1469
  %v1471 = vsel %vm523, %v1414, 0.0
  %1472 = vadd.xlane.f32.xlu0 %v1471
  %v1473 = vpop.xlane.xlu0 %1472
  %v1474 = vsel %vm523, %v1416, 0.0
  %1475 = vadd.xlane.f32.xlu0 %v1474
  %v1476 = vpop.xlane.xlu0 %1475
  %v1477 = vsel %vm523, %v1418, 0.0
  %1478 = vadd.xlane.f32.xlu0 %v1477
  %v1479 = vpop.xlane.xlu0 %1478
  %v1480 = vsel %vm523, %v1420, 0.0
  %1481 = vadd.xlane.f32.xlu0 %v1480
  %v1482 = vpop.xlane.xlu0 %1481
  %v1483 = vsel %vm523, %v1422, 0.0
  %1484 = vadd.xlane.f32.xlu0 %v1483
  %v1485 = vpop.xlane.xlu0 %1484
  %v1486 = vsel %vm523, %v1424, 0.0
  %1487 = vadd.xlane.f32.xlu0 %v1486
  %v1488 = vpop.xlane.xlu0 %1487
  %v1489 = vadd.f32 %v1443, %v575
  %v1490 = vadd.f32 %v1446, %v575
  %v1491 = vadd.f32 %v1449, %v575
  %v1492 = vadd.f32 %v1452, %v575
  %v1493 = vadd.f32 %v1455, %v575
  %v1494 = vadd.f32 %v1458, %v575
  %v1495 = vadd.f32 %v1461, %v575
  %v1496 = vadd.f32 %v1464, %v575
  %v1497 = vadd.f32 %v1467, %v575
  %v1498 = vadd.f32 %v1470, %v575
  %v1499 = vadd.f32 %v1473, %v575
  %v1500 = vadd.f32 %v1476, %v575
  %v1501 = vadd.f32 %v1479, %v575
  %v1502 = vadd.f32 %v1482, %v575
  %v1503 = vadd.f32 %v1485, %v575
  %v1504 = vadd.f32 %v1488, %v575
  %1521 = vset.pattern.permute.xlu0 0
  %1522 = vperm.xlu0 %1521, %v1489
  %v1523 = vpop.permute.xlu0 %1522
  %1524 = vset.pattern.permute.xlu0 0
  %1525 = vperm.xlu0 %1524, %v1490
  %v1526 = vpop.permute.xlu0 %1525
  %1527 = vset.pattern.permute.xlu0 0
  %1528 = vperm.xlu0 %1527, %v1491
  %v1529 = vpop.permute.xlu0 %1528
  %1530 = vset.pattern.permute.xlu0 0
  %1531 = vperm.xlu0 %1530, %v1492
  %v1532 = vpop.permute.xlu0 %1531
  %1533 = vset.pattern.permute.xlu0 0
  %1534 = vperm.xlu0 %1533, %v1493
  %v1535 = vpop.permute.xlu0 %1534
  %1536 = vset.pattern.permute.xlu0 0
  %1537 = vperm.xlu0 %1536, %v1494
  %v1538 = vpop.permute.xlu0 %1537
  %1539 = vset.pattern.permute.xlu0 0
  %1540 = vperm.xlu0 %1539, %v1495
  %v1541 = vpop.permute.xlu0 %1540
  %1542 = vset.pattern.permute.xlu0 0
  %1543 = vperm.xlu0 %1542, %v1496
  %v1544 = vpop.permute.xlu0 %1543
  %1545 = vset.pattern.permute.xlu0 0
  %1546 = vperm.xlu0 %1545, %v1497
  %v1547 = vpop.permute.xlu0 %1546
  %1548 = vset.pattern.permute.xlu0 0
  %1549 = vperm.xlu0 %1548, %v1498
  %v1550 = vpop.permute.xlu0 %1549
  %1551 = vset.pattern.permute.xlu0 0
  %1552 = vperm.xlu0 %1551, %v1499
  %v1553 = vpop.permute.xlu0 %1552
  %1554 = vset.pattern.permute.xlu0 0
  %1555 = vperm.xlu0 %1554, %v1500
  %v1556 = vpop.permute.xlu0 %1555
  %1557 = vset.pattern.permute.xlu0 0
  %1558 = vperm.xlu0 %1557, %v1501
  %v1559 = vpop.permute.xlu0 %1558
  %1560 = vset.pattern.permute.xlu0 0
  %1561 = vperm.xlu0 %1560, %v1502
  %v1562 = vpop.permute.xlu0 %1561
  %1563 = vset.pattern.permute.xlu0 0
  %1564 = vperm.xlu0 %1563, %v1503
  %v1565 = vpop.permute.xlu0 %1564
  %1566 = vset.pattern.permute.xlu0 0
  %1567 = vperm.xlu0 %1566, %v1504
  %v1568 = vpop.permute.xlu0 %1567
  %v1569 = vlaneseq
  %v1570 = vshrl.u32 %v1569, 7
  %v1571 = vsub.s32 %v211, %v1570
  %v1572 = vrot.slane %v1523, %v1571
  %v1573 = vlaneseq
  %v1574 = vshrl.u32 %v1573, 7
  %v1575 = vsub.s32 %v211, %v1574
  %v1576 = vrot.slane %v1526, %v1575
  %v1577 = vlaneseq
  %v1578 = vshrl.u32 %v1577, 7
  %v1579 = vsub.s32 %v211, %v1578
  %v1580 = vrot.slane %v1529, %v1579
  %v1581 = vlaneseq
  %v1582 = vshrl.u32 %v1581, 7
  %v1583 = vsub.s32 %v211, %v1582
  %v1584 = vrot.slane %v1532, %v1583
  %v1585 = vlaneseq
  %v1586 = vshrl.u32 %v1585, 7
  %v1587 = vsub.s32 %v211, %v1586
  %v1588 = vrot.slane %v1535, %v1587
  %v1589 = vlaneseq
  %v1590 = vshrl.u32 %v1589, 7
  %v1591 = vsub.s32 %v211, %v1590
  %v1592 = vrot.slane %v1538, %v1591
  %v1593 = vlaneseq
  %v1594 = vshrl.u32 %v1593, 7
  %v1595 = vsub.s32 %v211, %v1594
  %v1596 = vrot.slane %v1541, %v1595
  %v1597 = vlaneseq
  %v1598 = vshrl.u32 %v1597, 7
  %v1599 = vsub.s32 %v211, %v1598
  %v1600 = vrot.slane %v1544, %v1599
  %v1601 = vlaneseq
  %v1602 = vshrl.u32 %v1601, 7
  %v1603 = vsub.s32 %v211, %v1602
  %v1604 = vrot.slane %v1547, %v1603
  %v1605 = vlaneseq
  %v1606 = vshrl.u32 %v1605, 7
  %v1607 = vsub.s32 %v211, %v1606
  %v1608 = vrot.slane %v1550, %v1607
  %v1609 = vlaneseq
  %v1610 = vshrl.u32 %v1609, 7
  %v1611 = vsub.s32 %v211, %v1610
  %v1612 = vrot.slane %v1553, %v1611
  %v1613 = vlaneseq
  %v1614 = vshrl.u32 %v1613, 7
  %v1615 = vsub.s32 %v211, %v1614
  %v1616 = vrot.slane %v1556, %v1615
  %v1617 = vlaneseq
  %v1618 = vshrl.u32 %v1617, 7
  %v1619 = vsub.s32 %v211, %v1618
  %v1620 = vrot.slane %v1559, %v1619
  %v1621 = vlaneseq
  %v1622 = vshrl.u32 %v1621, 7
  %v1623 = vsub.s32 %v211, %v1622
  %v1624 = vrot.slane %v1562, %v1623
  %v1625 = vlaneseq
  %v1626 = vshrl.u32 %v1625, 7
  %v1627 = vsub.s32 %v211, %v1626
  %v1628 = vrot.slane %v1565, %v1627
  %v1629 = vlaneseq
  %v1630 = vshrl.u32 %v1629, 7
  %v1631 = vsub.s32 %v211, %v1630
  %v1632 = vrot.slane %v1568, %v1631
  %v1633 = vsel %vm721, %v1576, %v1572
  %v1634 = vsel %vm723, %v1580, %v1633
  %v1635 = vsel %vm725, %v1584, %v1634
  %v1636 = vsel %vm727, %v1588, %v1635
  %v1637 = vsel %vm729, %v1592, %v1636
  %v1638 = vsel %vm731, %v1596, %v1637
  %v1639 = vsel %vm733, %v1600, %v1638
  %v1640 = vsel %vm721, %v1608, %v1604
  %v1641 = vsel %vm723, %v1612, %v1640
  %v1642 = vsel %vm725, %v1616, %v1641
  %v1643 = vsel %vm727, %v1620, %v1642
  %v1644 = vsel %vm729, %v1624, %v1643
  %v1645 = vsel %vm731, %v1628, %v1644
  %v1646 = vsel %vm733, %v1632, %v1645
  %v1649 = vsel %vm523, %v1639, -inf
  %1650 = vmax.xlane.f32.xlu0 %v1649
  %v1651 = vpop.xlane.xlu0 %1650
  %v1652 = vsel %vm523, %v1646, -inf
  %1653 = vmax.xlane.f32.xlu0 %v1652
  %v1654 = vpop.xlane.xlu0 %1653
  %v1657 = vlaneseq
  %v1658 = vshrl.u32 %v1657, 7
  %v1659 = vsub.s32 0, %v1658
  %v1660 = vrot.slane %v1651, %v1659
  %v1661 = vlaneseq
  %v1662 = vshrl.u32 %v1661, 7
  %v1663 = vsub.s32 1, %v1662
  %v1664 = vrot.slane %v1651, %v1663
  %v1665 = vlaneseq
  %v1666 = vshrl.u32 %v1665, 7
  %v1667 = vsub.s32 2, %v1666
  %v1668 = vrot.slane %v1651, %v1667
  %v1669 = vlaneseq
  %v1670 = vshrl.u32 %v1669, 7
  %v1671 = vsub.s32 3, %v1670
  %v1672 = vrot.slane %v1651, %v1671
  %v1673 = vlaneseq
  %v1674 = vshrl.u32 %v1673, 7
  %v1675 = vsub.s32 4, %v1674
  %v1676 = vrot.slane %v1651, %v1675
  %v1677 = vlaneseq
  %v1678 = vshrl.u32 %v1677, 7
  %v1679 = vsub.s32 5, %v1678
  %v1680 = vrot.slane %v1651, %v1679
  %v1681 = vlaneseq
  %v1682 = vshrl.u32 %v1681, 7
  %v1683 = vsub.s32 6, %v1682
  %v1684 = vrot.slane %v1651, %v1683
  %v1685 = vlaneseq
  %v1686 = vshrl.u32 %v1685, 7
  %v1687 = vsub.s32 7, %v1686
  %v1688 = vrot.slane %v1651, %v1687
  %v1689 = vlaneseq
  %v1690 = vshrl.u32 %v1689, 7
  %v1691 = vsub.s32 0, %v1690
  %v1692 = vrot.slane %v1654, %v1691
  %v1693 = vlaneseq
  %v1694 = vshrl.u32 %v1693, 7
  %v1695 = vsub.s32 1, %v1694
  %v1696 = vrot.slane %v1654, %v1695
  %v1697 = vlaneseq
  %v1698 = vshrl.u32 %v1697, 7
  %v1699 = vsub.s32 2, %v1698
  %v1700 = vrot.slane %v1654, %v1699
  %v1701 = vlaneseq
  %v1702 = vshrl.u32 %v1701, 7
  %v1703 = vsub.s32 3, %v1702
  %v1704 = vrot.slane %v1654, %v1703
  %v1705 = vlaneseq
  %v1706 = vshrl.u32 %v1705, 7
  %v1707 = vsub.s32 4, %v1706
  %v1708 = vrot.slane %v1654, %v1707
  %v1709 = vlaneseq
  %v1710 = vshrl.u32 %v1709, 7
  %v1711 = vsub.s32 5, %v1710
  %v1712 = vrot.slane %v1654, %v1711
  %v1713 = vlaneseq
  %v1714 = vshrl.u32 %v1713, 7
  %v1715 = vsub.s32 6, %v1714
  %v1716 = vrot.slane %v1654, %v1715
  %v1717 = vlaneseq
  %v1718 = vshrl.u32 %v1717, 7
  %v1719 = vsub.s32 7, %v1718
  %v1720 = vrot.slane %v1654, %v1719
  %v1737 = vsub.f32 %v1489, %v1660
  %v1738 = vsub.f32 %v1490, %v1664
  %v1739 = vsub.f32 %v1491, %v1668
  %v1740 = vsub.f32 %v1492, %v1672
  %v1741 = vsub.f32 %v1493, %v1676
  %v1742 = vsub.f32 %v1494, %v1680
  %v1743 = vsub.f32 %v1495, %v1684
  %v1744 = vsub.f32 %v1496, %v1688
  %v1745 = vsub.f32 %v1497, %v1692
  %v1746 = vsub.f32 %v1498, %v1696
  %v1747 = vsub.f32 %v1499, %v1700
  %v1748 = vsub.f32 %v1500, %v1704
  %v1749 = vsub.f32 %v1501, %v1708
  %v1750 = vsub.f32 %v1502, %v1712
  %v1751 = vsub.f32 %v1503, %v1716
  %v1752 = vsub.f32 %v1504, %v1720
  %v1753 = vmul.f32 %v1737, 1.442695
  %v1754 = vpow.pop %v1753
  %v1755 = vmul.f32 %v1738, 1.442695
  %v1756 = vpow.pop %v1755
  %v1757 = vmul.f32 %v1739, 1.442695
  %v1758 = vpow.pop %v1757
  %v1759 = vmul.f32 %v1740, 1.442695
  %v1760 = vpow.pop %v1759
  %v1761 = vmul.f32 %v1741, 1.442695
  %v1762 = vpow.pop %v1761
  %v1763 = vmul.f32 %v1742, 1.442695
  %v1764 = vpow.pop %v1763
  %v1765 = vmul.f32 %v1743, 1.442695
  %v1766 = vpow.pop %v1765
  %v1767 = vmul.f32 %v1744, 1.442695
  %v1768 = vpow.pop %v1767
  %v1769 = vmul.f32 %v1745, 1.442695
  %v1770 = vpow.pop %v1769
  %v1771 = vmul.f32 %v1746, 1.442695
  %v1772 = vpow.pop %v1771
  %v1773 = vmul.f32 %v1747, 1.442695
  %v1774 = vpow.pop %v1773
  %v1775 = vmul.f32 %v1748, 1.442695
  %v1776 = vpow.pop %v1775
  %v1777 = vmul.f32 %v1749, 1.442695
  %v1778 = vpow.pop %v1777
  %v1779 = vmul.f32 %v1750, 1.442695
  %v1780 = vpow.pop %v1779
  %v1781 = vmul.f32 %v1751, 1.442695
  %v1782 = vpow.pop %v1781
  %v1783 = vmul.f32 %v1752, 1.442695
  %v1784 = vpow.pop %v1783
  %1801 = vset.pattern.permute.xlu0 0
  %1802 = vperm.xlu0 %1801, %v1754
  %v1803 = vpop.permute.xlu0 %1802
  %1804 = vset.pattern.permute.xlu0 0
  %1805 = vperm.xlu0 %1804, %v1756
  %v1806 = vpop.permute.xlu0 %1805
  %1807 = vset.pattern.permute.xlu0 0
  %1808 = vperm.xlu0 %1807, %v1758
  %v1809 = vpop.permute.xlu0 %1808
  %1810 = vset.pattern.permute.xlu0 0
  %1811 = vperm.xlu0 %1810, %v1760
  %v1812 = vpop.permute.xlu0 %1811
  %1813 = vset.pattern.permute.xlu0 0
  %1814 = vperm.xlu0 %1813, %v1762
  %v1815 = vpop.permute.xlu0 %1814
  %1816 = vset.pattern.permute.xlu0 0
  %1817 = vperm.xlu0 %1816, %v1764
  %v1818 = vpop.permute.xlu0 %1817
  %1819 = vset.pattern.permute.xlu0 0
  %1820 = vperm.xlu0 %1819, %v1766
  %v1821 = vpop.permute.xlu0 %1820
  %1822 = vset.pattern.permute.xlu0 0
  %1823 = vperm.xlu0 %1822, %v1768
  %v1824 = vpop.permute.xlu0 %1823
  %1825 = vset.pattern.permute.xlu0 0
  %1826 = vperm.xlu0 %1825, %v1770
  %v1827 = vpop.permute.xlu0 %1826
  %1828 = vset.pattern.permute.xlu0 0
  %1829 = vperm.xlu0 %1828, %v1772
  %v1830 = vpop.permute.xlu0 %1829
  %1831 = vset.pattern.permute.xlu0 0
  %1832 = vperm.xlu0 %1831, %v1774
  %v1833 = vpop.permute.xlu0 %1832
  %1834 = vset.pattern.permute.xlu0 0
  %1835 = vperm.xlu0 %1834, %v1776
  %v1836 = vpop.permute.xlu0 %1835
  %1837 = vset.pattern.permute.xlu0 0
  %1838 = vperm.xlu0 %1837, %v1778
  %v1839 = vpop.permute.xlu0 %1838
  %1840 = vset.pattern.permute.xlu0 0
  %1841 = vperm.xlu0 %1840, %v1780
  %v1842 = vpop.permute.xlu0 %1841
  %1843 = vset.pattern.permute.xlu0 0
  %1844 = vperm.xlu0 %1843, %v1782
  %v1845 = vpop.permute.xlu0 %1844
  %1846 = vset.pattern.permute.xlu0 0
  %1847 = vperm.xlu0 %1846, %v1784
  %v1848 = vpop.permute.xlu0 %1847
  %v1849 = vlaneseq
  %v1850 = vshrl.u32 %v1849, 7
  %v1851 = vsub.s32 %v211, %v1850
  %v1852 = vrot.slane %v1803, %v1851
  %v1853 = vlaneseq
  %v1854 = vshrl.u32 %v1853, 7
  %v1855 = vsub.s32 %v211, %v1854
  %v1856 = vrot.slane %v1806, %v1855
  %v1857 = vlaneseq
  %v1858 = vshrl.u32 %v1857, 7
  %v1859 = vsub.s32 %v211, %v1858
  %v1860 = vrot.slane %v1809, %v1859
  %v1861 = vlaneseq
  %v1862 = vshrl.u32 %v1861, 7
  %v1863 = vsub.s32 %v211, %v1862
  %v1864 = vrot.slane %v1812, %v1863
  %v1865 = vlaneseq
  %v1866 = vshrl.u32 %v1865, 7
  %v1867 = vsub.s32 %v211, %v1866
  %v1868 = vrot.slane %v1815, %v1867
  %v1869 = vlaneseq
  %v1870 = vshrl.u32 %v1869, 7
  %v1871 = vsub.s32 %v211, %v1870
  %v1872 = vrot.slane %v1818, %v1871
  %v1873 = vlaneseq
  %v1874 = vshrl.u32 %v1873, 7
  %v1875 = vsub.s32 %v211, %v1874
  %v1876 = vrot.slane %v1821, %v1875
  %v1877 = vlaneseq
  %v1878 = vshrl.u32 %v1877, 7
  %v1879 = vsub.s32 %v211, %v1878
  %v1880 = vrot.slane %v1824, %v1879
  %v1881 = vlaneseq
  %v1882 = vshrl.u32 %v1881, 7
  %v1883 = vsub.s32 %v211, %v1882
  %v1884 = vrot.slane %v1827, %v1883
  %v1885 = vlaneseq
  %v1886 = vshrl.u32 %v1885, 7
  %v1887 = vsub.s32 %v211, %v1886
  %v1888 = vrot.slane %v1830, %v1887
  %v1889 = vlaneseq
  %v1890 = vshrl.u32 %v1889, 7
  %v1891 = vsub.s32 %v211, %v1890
  %v1892 = vrot.slane %v1833, %v1891
  %v1893 = vlaneseq
  %v1894 = vshrl.u32 %v1893, 7
  %v1895 = vsub.s32 %v211, %v1894
  %v1896 = vrot.slane %v1836, %v1895
  %v1897 = vlaneseq
  %v1898 = vshrl.u32 %v1897, 7
  %v1899 = vsub.s32 %v211, %v1898
  %v1900 = vrot.slane %v1839, %v1899
  %v1901 = vlaneseq
  %v1902 = vshrl.u32 %v1901, 7
  %v1903 = vsub.s32 %v211, %v1902
  %v1904 = vrot.slane %v1842, %v1903
  %v1905 = vlaneseq
  %v1906 = vshrl.u32 %v1905, 7
  %v1907 = vsub.s32 %v211, %v1906
  %v1908 = vrot.slane %v1845, %v1907
  %v1909 = vlaneseq
  %v1910 = vshrl.u32 %v1909, 7
  %v1911 = vsub.s32 %v211, %v1910
  %v1912 = vrot.slane %v1848, %v1911
  %v1913 = vsel %vm721, %v1856, %v1852
  %v1914 = vsel %vm723, %v1860, %v1913
  %v1915 = vsel %vm725, %v1864, %v1914
  %v1916 = vsel %vm727, %v1868, %v1915
  %v1917 = vsel %vm729, %v1872, %v1916
  %v1918 = vsel %vm731, %v1876, %v1917
  %v1919 = vsel %vm733, %v1880, %v1918
  %v1920 = vsel %vm721, %v1888, %v1884
  %v1921 = vsel %vm723, %v1892, %v1920
  %v1922 = vsel %vm725, %v1896, %v1921
  %v1923 = vsel %vm727, %v1900, %v1922
  %v1924 = vsel %vm729, %v1904, %v1923
  %v1925 = vsel %vm731, %v1908, %v1924
  %v1926 = vsel %vm733, %v1912, %v1925
  %v1929 = vsel %vm523, %v1919, 0.0
  %1930 = vadd.xlane.f32.xlu0 %v1929
  %v1931 = vpop.xlane.xlu0 %1930
  %v1932 = vsel %vm523, %v1926, 0.0
  %1933 = vadd.xlane.f32.xlu0 %v1932
  %v1934 = vpop.xlane.xlu0 %1933
  %v1935 = vrcp.pop %v1931
  %v1936 = vrcp.pop %v1934
  %v1939 = vlaneseq
  %v1940 = vshrl.u32 %v1939, 7
  %v1941 = vsub.s32 0, %v1940
  %v1942 = vrot.slane %v1935, %v1941
  %v1943 = vlaneseq
  %v1944 = vshrl.u32 %v1943, 7
  %v1945 = vsub.s32 1, %v1944
  %v1946 = vrot.slane %v1935, %v1945
  %v1947 = vlaneseq
  %v1948 = vshrl.u32 %v1947, 7
  %v1949 = vsub.s32 2, %v1948
  %v1950 = vrot.slane %v1935, %v1949
  %v1951 = vlaneseq
  %v1952 = vshrl.u32 %v1951, 7
  %v1953 = vsub.s32 3, %v1952
  %v1954 = vrot.slane %v1935, %v1953
  %v1955 = vlaneseq
  %v1956 = vshrl.u32 %v1955, 7
  %v1957 = vsub.s32 4, %v1956
  %v1958 = vrot.slane %v1935, %v1957
  %v1959 = vlaneseq
  %v1960 = vshrl.u32 %v1959, 7
  %v1961 = vsub.s32 5, %v1960
  %v1962 = vrot.slane %v1935, %v1961
  %v1963 = vlaneseq
  %v1964 = vshrl.u32 %v1963, 7
  %v1965 = vsub.s32 6, %v1964
  %v1966 = vrot.slane %v1935, %v1965
  %v1967 = vlaneseq
  %v1968 = vshrl.u32 %v1967, 7
  %v1969 = vsub.s32 7, %v1968
  %v1970 = vrot.slane %v1935, %v1969
  %v1971 = vlaneseq
  %v1972 = vshrl.u32 %v1971, 7
  %v1973 = vsub.s32 0, %v1972
  %v1974 = vrot.slane %v1936, %v1973
  %v1975 = vlaneseq
  %v1976 = vshrl.u32 %v1975, 7
  %v1977 = vsub.s32 1, %v1976
  %v1978 = vrot.slane %v1936, %v1977
  %v1979 = vlaneseq
  %v1980 = vshrl.u32 %v1979, 7
  %v1981 = vsub.s32 2, %v1980
  %v1982 = vrot.slane %v1936, %v1981
  %v1983 = vlaneseq
  %v1984 = vshrl.u32 %v1983, 7
  %v1985 = vsub.s32 3, %v1984
  %v1986 = vrot.slane %v1936, %v1985
  %v1987 = vlaneseq
  %v1988 = vshrl.u32 %v1987, 7
  %v1989 = vsub.s32 4, %v1988
  %v1990 = vrot.slane %v1936, %v1989
  %v1991 = vlaneseq
  %v1992 = vshrl.u32 %v1991, 7
  %v1993 = vsub.s32 5, %v1992
  %v1994 = vrot.slane %v1936, %v1993
  %v1995 = vlaneseq
  %v1996 = vshrl.u32 %v1995, 7
  %v1997 = vsub.s32 6, %v1996
  %v1998 = vrot.slane %v1936, %v1997
  %v1999 = vlaneseq
  %v2000 = vshrl.u32 %v1999, 7
  %v2001 = vsub.s32 7, %v2000
  %v2002 = vrot.slane %v1936, %v2001
  %v2019 = vmul.f32 %v1754, %v1942
  %v2020 = vmul.f32 %v1756, %v1946
  %v2021 = vmul.f32 %v1758, %v1950
  %v2022 = vmul.f32 %v1760, %v1954
  %v2023 = vmul.f32 %v1762, %v1958
  %v2024 = vmul.f32 %v1764, %v1962
  %v2025 = vmul.f32 %v1766, %v1966
  %v2026 = vmul.f32 %v1768, %v1970
  %v2027 = vmul.f32 %v1770, %v1974
  %v2028 = vmul.f32 %v1772, %v1978
  %v2029 = vmul.f32 %v1774, %v1982
  %v2030 = vmul.f32 %v1776, %v1986
  %v2031 = vmul.f32 %v1778, %v1990
  %v2032 = vmul.f32 %v1780, %v1994
  %v2033 = vmul.f32 %v1782, %v1998
  %v2034 = vmul.f32 %v1784, %v2002
  %2036 = vset.pattern.permute.xlu0 0
  %2037 = vperm.xlu0 %2036, %v2019
  %v2038 = vpop.permute.xlu0 %2037
  %2041 = vset.pattern.permute.xlu0 0
  %2042 = vperm.xlu0 %2041, %v2020
  %v2043 = vpop.permute.xlu0 %2042
  %2046 = vset.pattern.permute.xlu0 0
  %2047 = vperm.xlu0 %2046, %v2021
  %v2048 = vpop.permute.xlu0 %2047
  %2051 = vset.pattern.permute.xlu0 0
  %2052 = vperm.xlu0 %2051, %v2022
  %v2053 = vpop.permute.xlu0 %2052
  %2056 = vset.pattern.permute.xlu0 0
  %2057 = vperm.xlu0 %2056, %v2023
  %v2058 = vpop.permute.xlu0 %2057
  %2061 = vset.pattern.permute.xlu0 0
  %2062 = vperm.xlu0 %2061, %v2024
  %v2063 = vpop.permute.xlu0 %2062
  %2066 = vset.pattern.permute.xlu0 0
  %2067 = vperm.xlu0 %2066, %v2025
  %v2068 = vpop.permute.xlu0 %2067
  %2071 = vset.pattern.permute.xlu0 0
  %2072 = vperm.xlu0 %2071, %v2026
  %v2073 = vpop.permute.xlu0 %2072
  %2076 = vset.pattern.permute.xlu0 0
  %2077 = vperm.xlu0 %2076, %v2027
  %v2078 = vpop.permute.xlu0 %2077
  %2081 = vset.pattern.permute.xlu0 0
  %2082 = vperm.xlu0 %2081, %v2028
  %v2083 = vpop.permute.xlu0 %2082
  %2086 = vset.pattern.permute.xlu0 0
  %2087 = vperm.xlu0 %2086, %v2029
  %v2088 = vpop.permute.xlu0 %2087
  %2091 = vset.pattern.permute.xlu0 0
  %2092 = vperm.xlu0 %2091, %v2030
  %v2093 = vpop.permute.xlu0 %2092
  %2096 = vset.pattern.permute.xlu0 0
  %2097 = vperm.xlu0 %2096, %v2031
  %v2098 = vpop.permute.xlu0 %2097
  %2101 = vset.pattern.permute.xlu0 0
  %2102 = vperm.xlu0 %2101, %v2032
  %v2103 = vpop.permute.xlu0 %2102
  %2106 = vset.pattern.permute.xlu0 0
  %2107 = vperm.xlu0 %2106, %v2033
  %v2108 = vpop.permute.xlu0 %2107
  %2111 = vset.pattern.permute.xlu0 0
  %2112 = vperm.xlu0 %2111, %v2034
  %v2113 = vpop.permute.xlu0 %2112
  %v2115 = vmul.f32 %v2038, %v315
  %v2116 = vmul.f32 %v2043, %v315
  %v2117 = vmul.f32 %v2048, %v315
  %v2118 = vmul.f32 %v2053, %v315
  %v2119 = vmul.f32 %v2058, %v315
  %v2120 = vmul.f32 %v2063, %v315
  %v2121 = vmul.f32 %v2068, %v315
  %v2122 = vmul.f32 %v2073, %v315
  %v2123 = vmul.f32 %v2078, %v318
  %v2124 = vmul.f32 %v2083, %v318
  %v2125 = vmul.f32 %v2088, %v318
  %v2126 = vmul.f32 %v2093, %v318
  %v2127 = vmul.f32 %v2098, %v318
  %v2128 = vmul.f32 %v2103, %v318
  %v2129 = vmul.f32 %v2108, %v318
  %v2130 = vmul.f32 %v2113, %v318
  %vm2131 = vcmask 654912
  %v2132 = vsel %vm2131, %v2115, 0.0
  %v2133 = vrot.slane %v2132, 4
  %v2134 = vadd.f32 %v2132, %v2133
  %v2135 = vrot.slane %v2134, 2
  %v2136 = vadd.f32 %v2134, %v2135
  %v2137 = vrot.slane %v2136, 1
  %v2138 = vadd.f32 %v2136, %v2137
  %v2139 = vsel %vm2131, %v2116, 0.0
  %v2140 = vrot.slane %v2139, 4
  %v2141 = vadd.f32 %v2139, %v2140
  %v2142 = vrot.slane %v2141, 2
  %v2143 = vadd.f32 %v2141, %v2142
  %v2144 = vrot.slane %v2143, 1
  %v2145 = vadd.f32 %v2143, %v2144
  %v2146 = vsel %vm2131, %v2117, 0.0
  %v2147 = vrot.slane %v2146, 4
  %v2148 = vadd.f32 %v2146, %v2147
  %v2149 = vrot.slane %v2148, 2
  %v2150 = vadd.f32 %v2148, %v2149
  %v2151 = vrot.slane %v2150, 1
  %v2152 = vadd.f32 %v2150, %v2151
  %v2153 = vsel %vm2131, %v2118, 0.0
  %v2154 = vrot.slane %v2153, 4
  %v2155 = vadd.f32 %v2153, %v2154
  %v2156 = vrot.slane %v2155, 2
  %v2157 = vadd.f32 %v2155, %v2156
  %v2158 = vrot.slane %v2157, 1
  %v2159 = vadd.f32 %v2157, %v2158
  %v2160 = vsel %vm2131, %v2119, 0.0
  %v2161 = vrot.slane %v2160, 4
  %v2162 = vadd.f32 %v2160, %v2161
  %v2163 = vrot.slane %v2162, 2
  %v2164 = vadd.f32 %v2162, %v2163
  %v2165 = vrot.slane %v2164, 1
  %v2166 = vadd.f32 %v2164, %v2165
  %v2167 = vsel %vm2131, %v2120, 0.0
  %v2168 = vrot.slane %v2167, 4
  %v2169 = vadd.f32 %v2167, %v2168
  %v2170 = vrot.slane %v2169, 2
  %v2171 = vadd.f32 %v2169, %v2170
  %v2172 = vrot.slane %v2171, 1
  %v2173 = vadd.f32 %v2171, %v2172
  %v2174 = vsel %vm2131, %v2121, 0.0
  %v2175 = vrot.slane %v2174, 4
  %v2176 = vadd.f32 %v2174, %v2175
  %v2177 = vrot.slane %v2176, 2
  %v2178 = vadd.f32 %v2176, %v2177
  %v2179 = vrot.slane %v2178, 1
  %v2180 = vadd.f32 %v2178, %v2179
  %v2181 = vsel %vm2131, %v2122, 0.0
  %v2182 = vrot.slane %v2181, 4
  %v2183 = vadd.f32 %v2181, %v2182
  %v2184 = vrot.slane %v2183, 2
  %v2185 = vadd.f32 %v2183, %v2184
  %v2186 = vrot.slane %v2185, 1
  %v2187 = vadd.f32 %v2185, %v2186
  %v2188 = vsel %vm2131, %v2123, 0.0
  %v2189 = vrot.slane %v2188, 4
  %v2190 = vadd.f32 %v2188, %v2189
  %v2191 = vrot.slane %v2190, 2
  %v2192 = vadd.f32 %v2190, %v2191
  %v2193 = vrot.slane %v2192, 1
  %v2194 = vadd.f32 %v2192, %v2193
  %v2195 = vsel %vm2131, %v2124, 0.0
  %v2196 = vrot.slane %v2195, 4
  %v2197 = vadd.f32 %v2195, %v2196
  %v2198 = vrot.slane %v2197, 2
  %v2199 = vadd.f32 %v2197, %v2198
  %v2200 = vrot.slane %v2199, 1
  %v2201 = vadd.f32 %v2199, %v2200
  %v2202 = vsel %vm2131, %v2125, 0.0
  %v2203 = vrot.slane %v2202, 4
  %v2204 = vadd.f32 %v2202, %v2203
  %v2205 = vrot.slane %v2204, 2
  %v2206 = vadd.f32 %v2204, %v2205
  %v2207 = vrot.slane %v2206, 1
  %v2208 = vadd.f32 %v2206, %v2207
  %v2209 = vsel %vm2131, %v2126, 0.0
  %v2210 = vrot.slane %v2209, 4
  %v2211 = vadd.f32 %v2209, %v2210
  %v2212 = vrot.slane %v2211, 2
  %v2213 = vadd.f32 %v2211, %v2212
  %v2214 = vrot.slane %v2213, 1
  %v2215 = vadd.f32 %v2213, %v2214
  %v2216 = vsel %vm2131, %v2127, 0.0
  %v2217 = vrot.slane %v2216, 4
  %v2218 = vadd.f32 %v2216, %v2217
  %v2219 = vrot.slane %v2218, 2
  %v2220 = vadd.f32 %v2218, %v2219
  %v2221 = vrot.slane %v2220, 1
  %v2222 = vadd.f32 %v2220, %v2221
  %v2223 = vsel %vm2131, %v2128, 0.0
  %v2224 = vrot.slane %v2223, 4
  %v2225 = vadd.f32 %v2223, %v2224
  %v2226 = vrot.slane %v2225, 2
  %v2227 = vadd.f32 %v2225, %v2226
  %v2228 = vrot.slane %v2227, 1
  %v2229 = vadd.f32 %v2227, %v2228
  %v2230 = vsel %vm2131, %v2129, 0.0
  %v2231 = vrot.slane %v2230, 4
  %v2232 = vadd.f32 %v2230, %v2231
  %v2233 = vrot.slane %v2232, 2
  %v2234 = vadd.f32 %v2232, %v2233
  %v2235 = vrot.slane %v2234, 1
  %v2236 = vadd.f32 %v2234, %v2235
  %v2237 = vsel %vm2131, %v2130, 0.0
  %v2238 = vrot.slane %v2237, 4
  %v2239 = vadd.f32 %v2237, %v2238
  %v2240 = vrot.slane %v2239, 2
  %v2241 = vadd.f32 %v2239, %v2240
  %v2242 = vrot.slane %v2241, 1
  %v2243 = vadd.f32 %v2241, %v2242
  %v2260 = vsel %vm721, %v2145, %v2138
  %v2261 = vsel %vm723, %v2152, %v2260
  %v2262 = vsel %vm725, %v2159, %v2261
  %v2263 = vsel %vm727, %v2166, %v2262
  %v2264 = vsel %vm729, %v2173, %v2263
  %v2265 = vsel %vm731, %v2180, %v2264
  %v2266 = vsel %vm733, %v2187, %v2265
  %v2267 = vsel %vm721, %v2201, %v2194
  %v2268 = vsel %vm723, %v2208, %v2267
  %v2269 = vsel %vm725, %v2215, %v2268
  %v2270 = vsel %vm727, %v2222, %v2269
  %v2271 = vsel %vm729, %v2229, %v2270
  %v2272 = vsel %vm731, %v2236, %v2271
  %v2273 = vsel %vm733, %v2243, %v2272
  %2274 = vrot.lane.b32.xlu0 %v2266, 64
  %v2275 = vpop.permute.xlu0 %2274
  %2276 = vrot.lane.b32.xlu0 %v2273, 64
  %v2277 = vpop.permute.xlu0 %2276
  %vm2280 = vcmask 130112
  %2281 = vst.msk [vmem:[#allocation2] sm:$0xff] %vm2280, %v2275
  %2282 = vst.msk [vmem:[#allocation2 + $0x8] sm:$0xff] %vm2280, %v2277
  %2283 = vrot.lane.b32.xlu0 %v507, 112
  %v2284 = vpop.permute.xlu0 %2283
  %2285 = vrot.lane.b32.xlu0 %v508, 112
  %v2286 = vpop.permute.xlu0 %2285
  %2287 = vrot.lane.b32.xlu0 %v509, 112
  %v2288 = vpop.permute.xlu0 %2287
  %2289 = vrot.lane.b32.xlu0 %v510, 112
  %v2290 = vpop.permute.xlu0 %2289
  %2291 = vrot.lane.b32.xlu0 %v511, 112
  %v2292 = vpop.permute.xlu0 %2291
  %2293 = vrot.lane.b32.xlu0 %v512, 112
  %v2294 = vpop.permute.xlu0 %2293
  %2295 = vrot.lane.b32.xlu0 %v513, 112
  %v2296 = vpop.permute.xlu0 %2295
  %2297 = vrot.lane.b32.xlu0 %v514, 112
  %v2298 = vpop.permute.xlu0 %2297
  %2299 = vrot.lane.b32.xlu0 %v515, 112
  %v2300 = vpop.permute.xlu0 %2299
  %2301 = vrot.lane.b32.xlu0 %v516, 112
  %v2302 = vpop.permute.xlu0 %2301
  %2303 = vrot.lane.b32.xlu0 %v517, 112
  %v2304 = vpop.permute.xlu0 %2303
  %2305 = vrot.lane.b32.xlu0 %v518, 112
  %v2306 = vpop.permute.xlu0 %2305
  %2307 = vrot.lane.b32.xlu0 %v519, 112
  %v2308 = vpop.permute.xlu0 %2307
  %2309 = vrot.lane.b32.xlu0 %v520, 112
  %v2310 = vpop.permute.xlu0 %2309
  %2311 = vrot.lane.b32.xlu0 %v521, 112
  %v2312 = vpop.permute.xlu0 %2311
  %2313 = vrot.lane.b32.xlu0 %v522, 112
  %v2314 = vpop.permute.xlu0 %2313
  %v2331 = vsel %vm523, %v2284, 0.0
  %2332 = vadd.xlane.f32.xlu0 %v2331
  %v2333 = vpop.xlane.xlu0 %2332
  %v2334 = vsel %vm523, %v2286, 0.0
  %2335 = vadd.xlane.f32.xlu0 %v2334
  %v2336 = vpop.xlane.xlu0 %2335
  %v2337 = vsel %vm523, %v2288, 0.0
  %2338 = vadd.xlane.f32.xlu0 %v2337
  %v2339 = vpop.xlane.xlu0 %2338
  %v2340 = vsel %vm523, %v2290, 0.0
  %2341 = vadd.xlane.f32.xlu0 %v2340
  %v2342 = vpop.xlane.xlu0 %2341
  %v2343 = vsel %vm523, %v2292, 0.0
  %2344 = vadd.xlane.f32.xlu0 %v2343
  %v2345 = vpop.xlane.xlu0 %2344
  %v2346 = vsel %vm523, %v2294, 0.0
  %2347 = vadd.xlane.f32.xlu0 %v2346
  %v2348 = vpop.xlane.xlu0 %2347
  %v2349 = vsel %vm523, %v2296, 0.0
  %2350 = vadd.xlane.f32.xlu0 %v2349
  %v2351 = vpop.xlane.xlu0 %2350
  %v2352 = vsel %vm523, %v2298, 0.0
  %2353 = vadd.xlane.f32.xlu0 %v2352
  %v2354 = vpop.xlane.xlu0 %2353
  %v2355 = vsel %vm523, %v2300, 0.0
  %2356 = vadd.xlane.f32.xlu0 %v2355
  %v2357 = vpop.xlane.xlu0 %2356
  %v2358 = vsel %vm523, %v2302, 0.0
  %2359 = vadd.xlane.f32.xlu0 %v2358
  %v2360 = vpop.xlane.xlu0 %2359
  %v2361 = vsel %vm523, %v2304, 0.0
  %2362 = vadd.xlane.f32.xlu0 %v2361
  %v2363 = vpop.xlane.xlu0 %2362
  %v2364 = vsel %vm523, %v2306, 0.0
  %2365 = vadd.xlane.f32.xlu0 %v2364
  %v2366 = vpop.xlane.xlu0 %2365
  %v2367 = vsel %vm523, %v2308, 0.0
  %2368 = vadd.xlane.f32.xlu0 %v2367
  %v2369 = vpop.xlane.xlu0 %2368
  %v2370 = vsel %vm523, %v2310, 0.0
  %2371 = vadd.xlane.f32.xlu0 %v2370
  %v2372 = vpop.xlane.xlu0 %2371
  %v2373 = vsel %vm523, %v2312, 0.0
  %2374 = vadd.xlane.f32.xlu0 %v2373
  %v2375 = vpop.xlane.xlu0 %2374
  %v2376 = vsel %vm523, %v2314, 0.0
  %2377 = vadd.xlane.f32.xlu0 %v2376
  %v2378 = vpop.xlane.xlu0 %2377
  %v2379 = vadd.f32 %v2333, %v575
  %v2380 = vadd.f32 %v2336, %v575
  %v2381 = vadd.f32 %v2339, %v575
  %v2382 = vadd.f32 %v2342, %v575
  %v2383 = vadd.f32 %v2345, %v575
  %v2384 = vadd.f32 %v2348, %v575
  %v2385 = vadd.f32 %v2351, %v575
  %v2386 = vadd.f32 %v2354, %v575
  %v2387 = vadd.f32 %v2357, %v575
  %v2388 = vadd.f32 %v2360, %v575
  %v2389 = vadd.f32 %v2363, %v575
  %v2390 = vadd.f32 %v2366, %v575
  %v2391 = vadd.f32 %v2369, %v575
  %v2392 = vadd.f32 %v2372, %v575
  %v2393 = vadd.f32 %v2375, %v575
  %v2394 = vadd.f32 %v2378, %v575
  %2411 = vset.pattern.permute.xlu0 0
  %2412 = vperm.xlu0 %2411, %v2379
  %v2413 = vpop.permute.xlu0 %2412
  %2414 = vset.pattern.permute.xlu0 0
  %2415 = vperm.xlu0 %2414, %v2380
  %v2416 = vpop.permute.xlu0 %2415
  %2417 = vset.pattern.permute.xlu0 0
  %2418 = vperm.xlu0 %2417, %v2381
  %v2419 = vpop.permute.xlu0 %2418
  %2420 = vset.pattern.permute.xlu0 0
  %2421 = vperm.xlu0 %2420, %v2382
  %v2422 = vpop.permute.xlu0 %2421
  %2423 = vset.pattern.permute.xlu0 0
  %2424 = vperm.xlu0 %2423, %v2383
  %v2425 = vpop.permute.xlu0 %2424
  %2426 = vset.pattern.permute.xlu0 0
  %2427 = vperm.xlu0 %2426, %v2384
  %v2428 = vpop.permute.xlu0 %2427
  %2429 = vset.pattern.permute.xlu0 0
  %2430 = vperm.xlu0 %2429, %v2385
  %v2431 = vpop.permute.xlu0 %2430
  %2432 = vset.pattern.permute.xlu0 0
  %2433 = vperm.xlu0 %2432, %v2386
  %v2434 = vpop.permute.xlu0 %2433
  %2435 = vset.pattern.permute.xlu0 0
  %2436 = vperm.xlu0 %2435, %v2387
  %v2437 = vpop.permute.xlu0 %2436
  %2438 = vset.pattern.permute.xlu0 0
  %2439 = vperm.xlu0 %2438, %v2388
  %v2440 = vpop.permute.xlu0 %2439
  %2441 = vset.pattern.permute.xlu0 0
  %2442 = vperm.xlu0 %2441, %v2389
  %v2443 = vpop.permute.xlu0 %2442
  %2444 = vset.pattern.permute.xlu0 0
  %2445 = vperm.xlu0 %2444, %v2390
  %v2446 = vpop.permute.xlu0 %2445
  %2447 = vset.pattern.permute.xlu0 0
  %2448 = vperm.xlu0 %2447, %v2391
  %v2449 = vpop.permute.xlu0 %2448
  %2450 = vset.pattern.permute.xlu0 0
  %2451 = vperm.xlu0 %2450, %v2392
  %v2452 = vpop.permute.xlu0 %2451
  %2453 = vset.pattern.permute.xlu0 0
  %2454 = vperm.xlu0 %2453, %v2393
  %v2455 = vpop.permute.xlu0 %2454
  %2456 = vset.pattern.permute.xlu0 0
  %2457 = vperm.xlu0 %2456, %v2394
  %v2458 = vpop.permute.xlu0 %2457
  %v2459 = vlaneseq
  %v2460 = vshrl.u32 %v2459, 7
  %v2461 = vsub.s32 %v211, %v2460
  %v2462 = vrot.slane %v2413, %v2461
  %v2463 = vlaneseq
  %v2464 = vshrl.u32 %v2463, 7
  %v2465 = vsub.s32 %v211, %v2464
  %v2466 = vrot.slane %v2416, %v2465
  %v2467 = vlaneseq
  %v2468 = vshrl.u32 %v2467, 7
  %v2469 = vsub.s32 %v211, %v2468
  %v2470 = vrot.slane %v2419, %v2469
  %v2471 = vlaneseq
  %v2472 = vshrl.u32 %v2471, 7
  %v2473 = vsub.s32 %v211, %v2472
  %v2474 = vrot.slane %v2422, %v2473
  %v2475 = vlaneseq
  %v2476 = vshrl.u32 %v2475, 7
  %v2477 = vsub.s32 %v211, %v2476
  %v2478 = vrot.slane %v2425, %v2477
  %v2479 = vlaneseq
  %v2480 = vshrl.u32 %v2479, 7
  %v2481 = vsub.s32 %v211, %v2480
  %v2482 = vrot.slane %v2428, %v2481
  %v2483 = vlaneseq
  %v2484 = vshrl.u32 %v2483, 7
  %v2485 = vsub.s32 %v211, %v2484
  %v2486 = vrot.slane %v2431, %v2485
  %v2487 = vlaneseq
  %v2488 = vshrl.u32 %v2487, 7
  %v2489 = vsub.s32 %v211, %v2488
  %v2490 = vrot.slane %v2434, %v2489
  %v2491 = vlaneseq
  %v2492 = vshrl.u32 %v2491, 7
  %v2493 = vsub.s32 %v211, %v2492
  %v2494 = vrot.slane %v2437, %v2493
  %v2495 = vlaneseq
  %v2496 = vshrl.u32 %v2495, 7
  %v2497 = vsub.s32 %v211, %v2496
  %v2498 = vrot.slane %v2440, %v2497
  %v2499 = vlaneseq
  %v2500 = vshrl.u32 %v2499, 7
  %v2501 = vsub.s32 %v211, %v2500
  %v2502 = vrot.slane %v2443, %v2501
  %v2503 = vlaneseq
  %v2504 = vshrl.u32 %v2503, 7
  %v2505 = vsub.s32 %v211, %v2504
  %v2506 = vrot.slane %v2446, %v2505
  %v2507 = vlaneseq
  %v2508 = vshrl.u32 %v2507, 7
  %v2509 = vsub.s32 %v211, %v2508
  %v2510 = vrot.slane %v2449, %v2509
  %v2511 = vlaneseq
  %v2512 = vshrl.u32 %v2511, 7
  %v2513 = vsub.s32 %v211, %v2512
  %v2514 = vrot.slane %v2452, %v2513
  %v2515 = vlaneseq
  %v2516 = vshrl.u32 %v2515, 7
  %v2517 = vsub.s32 %v211, %v2516
  %v2518 = vrot.slane %v2455, %v2517
  %v2519 = vlaneseq
  %v2520 = vshrl.u32 %v2519, 7
  %v2521 = vsub.s32 %v211, %v2520
  %v2522 = vrot.slane %v2458, %v2521
  %v2523 = vsel %vm721, %v2466, %v2462
  %v2524 = vsel %vm723, %v2470, %v2523
  %v2525 = vsel %vm725, %v2474, %v2524
  %v2526 = vsel %vm727, %v2478, %v2525
  %v2527 = vsel %vm729, %v2482, %v2526
  %v2528 = vsel %vm731, %v2486, %v2527
  %v2529 = vsel %vm733, %v2490, %v2528
  %v2530 = vsel %vm721, %v2498, %v2494
  %v2531 = vsel %vm723, %v2502, %v2530
  %v2532 = vsel %vm725, %v2506, %v2531
  %v2533 = vsel %vm727, %v2510, %v2532
  %v2534 = vsel %vm729, %v2514, %v2533
  %v2535 = vsel %vm731, %v2518, %v2534
  %v2536 = vsel %vm733, %v2522, %v2535
  %v2539 = vsel %vm523, %v2529, -inf
  %2540 = vmax.xlane.f32.xlu0 %v2539
  %v2541 = vpop.xlane.xlu0 %2540
  %v2542 = vsel %vm523, %v2536, -inf
  %2543 = vmax.xlane.f32.xlu0 %v2542
  %v2544 = vpop.xlane.xlu0 %2543
  %v2547 = vlaneseq
  %v2548 = vshrl.u32 %v2547, 7
  %v2549 = vsub.s32 0, %v2548
  %v2550 = vrot.slane %v2541, %v2549
  %v2551 = vlaneseq
  %v2552 = vshrl.u32 %v2551, 7
  %v2553 = vsub.s32 1, %v2552
  %v2554 = vrot.slane %v2541, %v2553
  %v2555 = vlaneseq
  %v2556 = vshrl.u32 %v2555, 7
  %v2557 = vsub.s32 2, %v2556
  %v2558 = vrot.slane %v2541, %v2557
  %v2559 = vlaneseq
  %v2560 = vshrl.u32 %v2559, 7
  %v2561 = vsub.s32 3, %v2560
  %v2562 = vrot.slane %v2541, %v2561
  %v2563 = vlaneseq
  %v2564 = vshrl.u32 %v2563, 7
  %v2565 = vsub.s32 4, %v2564
  %v2566 = vrot.slane %v2541, %v2565
  %v2567 = vlaneseq
  %v2568 = vshrl.u32 %v2567, 7
  %v2569 = vsub.s32 5, %v2568
  %v2570 = vrot.slane %v2541, %v2569
  %v2571 = vlaneseq
  %v2572 = vshrl.u32 %v2571, 7
  %v2573 = vsub.s32 6, %v2572
  %v2574 = vrot.slane %v2541, %v2573
  %v2575 = vlaneseq
  %v2576 = vshrl.u32 %v2575, 7
  %v2577 = vsub.s32 7, %v2576
  %v2578 = vrot.slane %v2541, %v2577
  %v2579 = vlaneseq
  %v2580 = vshrl.u32 %v2579, 7
  %v2581 = vsub.s32 0, %v2580
  %v2582 = vrot.slane %v2544, %v2581
  %v2583 = vlaneseq
  %v2584 = vshrl.u32 %v2583, 7
  %v2585 = vsub.s32 1, %v2584
  %v2586 = vrot.slane %v2544, %v2585
  %v2587 = vlaneseq
  %v2588 = vshrl.u32 %v2587, 7
  %v2589 = vsub.s32 2, %v2588
  %v2590 = vrot.slane %v2544, %v2589
  %v2591 = vlaneseq
  %v2592 = vshrl.u32 %v2591, 7
  %v2593 = vsub.s32 3, %v2592
  %v2594 = vrot.slane %v2544, %v2593
  %v2595 = vlaneseq
  %v2596 = vshrl.u32 %v2595, 7
  %v2597 = vsub.s32 4, %v2596
  %v2598 = vrot.slane %v2544, %v2597
  %v2599 = vlaneseq
  %v2600 = vshrl.u32 %v2599, 7
  %v2601 = vsub.s32 5, %v2600
  %v2602 = vrot.slane %v2544, %v2601
  %v2603 = vlaneseq
  %v2604 = vshrl.u32 %v2603, 7
  %v2605 = vsub.s32 6, %v2604
  %v2606 = vrot.slane %v2544, %v2605
  %v2607 = vlaneseq
  %v2608 = vshrl.u32 %v2607, 7
  %v2609 = vsub.s32 7, %v2608
  %v2610 = vrot.slane %v2544, %v2609
  %v2627 = vsub.f32 %v2379, %v2550
  %v2628 = vsub.f32 %v2380, %v2554
  %v2629 = vsub.f32 %v2381, %v2558
  %v2630 = vsub.f32 %v2382, %v2562
  %v2631 = vsub.f32 %v2383, %v2566
  %v2632 = vsub.f32 %v2384, %v2570
  %v2633 = vsub.f32 %v2385, %v2574
  %v2634 = vsub.f32 %v2386, %v2578
  %v2635 = vsub.f32 %v2387, %v2582
  %v2636 = vsub.f32 %v2388, %v2586
  %v2637 = vsub.f32 %v2389, %v2590
  %v2638 = vsub.f32 %v2390, %v2594
  %v2639 = vsub.f32 %v2391, %v2598
  %v2640 = vsub.f32 %v2392, %v2602
  %v2641 = vsub.f32 %v2393, %v2606
  %v2642 = vsub.f32 %v2394, %v2610
  %v2643 = vmul.f32 %v2627, 1.442695
  %v2644 = vpow.pop %v2643
  %v2645 = vmul.f32 %v2628, 1.442695
  %v2646 = vpow.pop %v2645
  %v2647 = vmul.f32 %v2629, 1.442695
  %v2648 = vpow.pop %v2647
  %v2649 = vmul.f32 %v2630, 1.442695
  %v2650 = vpow.pop %v2649
  %v2651 = vmul.f32 %v2631, 1.442695
  %v2652 = vpow.pop %v2651
  %v2653 = vmul.f32 %v2632, 1.442695
  %v2654 = vpow.pop %v2653
  %v2655 = vmul.f32 %v2633, 1.442695
  %v2656 = vpow.pop %v2655
  %v2657 = vmul.f32 %v2634, 1.442695
  %v2658 = vpow.pop %v2657
  %v2659 = vmul.f32 %v2635, 1.442695
  %v2660 = vpow.pop %v2659
  %v2661 = vmul.f32 %v2636, 1.442695
  %v2662 = vpow.pop %v2661
  %v2663 = vmul.f32 %v2637, 1.442695
  %v2664 = vpow.pop %v2663
  %v2665 = vmul.f32 %v2638, 1.442695
  %v2666 = vpow.pop %v2665
  %v2667 = vmul.f32 %v2639, 1.442695
  %v2668 = vpow.pop %v2667
  %v2669 = vmul.f32 %v2640, 1.442695
  %v2670 = vpow.pop %v2669
  %v2671 = vmul.f32 %v2641, 1.442695
  %v2672 = vpow.pop %v2671
  %v2673 = vmul.f32 %v2642, 1.442695
  %v2674 = vpow.pop %v2673
  %2691 = vset.pattern.permute.xlu0 0
  %2692 = vperm.xlu0 %2691, %v2644
  %v2693 = vpop.permute.xlu0 %2692
  %2694 = vset.pattern.permute.xlu0 0
  %2695 = vperm.xlu0 %2694, %v2646
  %v2696 = vpop.permute.xlu0 %2695
  %2697 = vset.pattern.permute.xlu0 0
  %2698 = vperm.xlu0 %2697, %v2648
  %v2699 = vpop.permute.xlu0 %2698
  %2700 = vset.pattern.permute.xlu0 0
  %2701 = vperm.xlu0 %2700, %v2650
  %v2702 = vpop.permute.xlu0 %2701
  %2703 = vset.pattern.permute.xlu0 0
  %2704 = vperm.xlu0 %2703, %v2652
  %v2705 = vpop.permute.xlu0 %2704
  %2706 = vset.pattern.permute.xlu0 0
  %2707 = vperm.xlu0 %2706, %v2654
  %v2708 = vpop.permute.xlu0 %2707
  %2709 = vset.pattern.permute.xlu0 0
  %2710 = vperm.xlu0 %2709, %v2656
  %v2711 = vpop.permute.xlu0 %2710
  %2712 = vset.pattern.permute.xlu0 0
  %2713 = vperm.xlu0 %2712, %v2658
  %v2714 = vpop.permute.xlu0 %2713
  %2715 = vset.pattern.permute.xlu0 0
  %2716 = vperm.xlu0 %2715, %v2660
  %v2717 = vpop.permute.xlu0 %2716
  %2718 = vset.pattern.permute.xlu0 0
  %2719 = vperm.xlu0 %2718, %v2662
  %v2720 = vpop.permute.xlu0 %2719
  %2721 = vset.pattern.permute.xlu0 0
  %2722 = vperm.xlu0 %2721, %v2664
  %v2723 = vpop.permute.xlu0 %2722
  %2724 = vset.pattern.permute.xlu0 0
  %2725 = vperm.xlu0 %2724, %v2666
  %v2726 = vpop.permute.xlu0 %2725
  %2727 = vset.pattern.permute.xlu0 0
  %2728 = vperm.xlu0 %2727, %v2668
  %v2729 = vpop.permute.xlu0 %2728
  %2730 = vset.pattern.permute.xlu0 0
  %2731 = vperm.xlu0 %2730, %v2670
  %v2732 = vpop.permute.xlu0 %2731
  %2733 = vset.pattern.permute.xlu0 0
  %2734 = vperm.xlu0 %2733, %v2672
  %v2735 = vpop.permute.xlu0 %2734
  %2736 = vset.pattern.permute.xlu0 0
  %2737 = vperm.xlu0 %2736, %v2674
  %v2738 = vpop.permute.xlu0 %2737
  %v2739 = vlaneseq
  %v2740 = vshrl.u32 %v2739, 7
  %v2741 = vsub.s32 %v211, %v2740
  %v2742 = vrot.slane %v2693, %v2741
  %v2743 = vlaneseq
  %v2744 = vshrl.u32 %v2743, 7
  %v2745 = vsub.s32 %v211, %v2744
  %v2746 = vrot.slane %v2696, %v2745
  %v2747 = vlaneseq
  %v2748 = vshrl.u32 %v2747, 7
  %v2749 = vsub.s32 %v211, %v2748
  %v2750 = vrot.slane %v2699, %v2749
  %v2751 = vlaneseq
  %v2752 = vshrl.u32 %v2751, 7
  %v2753 = vsub.s32 %v211, %v2752
  %v2754 = vrot.slane %v2702, %v2753
  %v2755 = vlaneseq
  %v2756 = vshrl.u32 %v2755, 7
  %v2757 = vsub.s32 %v211, %v2756
  %v2758 = vrot.slane %v2705, %v2757
  %v2759 = vlaneseq
  %v2760 = vshrl.u32 %v2759, 7
  %v2761 = vsub.s32 %v211, %v2760
  %v2762 = vrot.slane %v2708, %v2761
  %v2763 = vlaneseq
  %v2764 = vshrl.u32 %v2763, 7
  %v2765 = vsub.s32 %v211, %v2764
  %v2766 = vrot.slane %v2711, %v2765
  %v2767 = vlaneseq
  %v2768 = vshrl.u32 %v2767, 7
  %v2769 = vsub.s32 %v211, %v2768
  %v2770 = vrot.slane %v2714, %v2769
  %v2771 = vlaneseq
  %v2772 = vshrl.u32 %v2771, 7
  %v2773 = vsub.s32 %v211, %v2772
  %v2774 = vrot.slane %v2717, %v2773
  %v2775 = vlaneseq
  %v2776 = vshrl.u32 %v2775, 7
  %v2777 = vsub.s32 %v211, %v2776
  %v2778 = vrot.slane %v2720, %v2777
  %v2779 = vlaneseq
  %v2780 = vshrl.u32 %v2779, 7
  %v2781 = vsub.s32 %v211, %v2780
  %v2782 = vrot.slane %v2723, %v2781
  %v2783 = vlaneseq
  %v2784 = vshrl.u32 %v2783, 7
  %v2785 = vsub.s32 %v211, %v2784
  %v2786 = vrot.slane %v2726, %v2785
  %v2787 = vlaneseq
  %v2788 = vshrl.u32 %v2787, 7
  %v2789 = vsub.s32 %v211, %v2788
  %v2790 = vrot.slane %v2729, %v2789
  %v2791 = vlaneseq
  %v2792 = vshrl.u32 %v2791, 7
  %v2793 = vsub.s32 %v211, %v2792
  %v2794 = vrot.slane %v2732, %v2793
  %v2795 = vlaneseq
  %v2796 = vshrl.u32 %v2795, 7
  %v2797 = vsub.s32 %v211, %v2796
  %v2798 = vrot.slane %v2735, %v2797
  %v2799 = vlaneseq
  %v2800 = vshrl.u32 %v2799, 7
  %v2801 = vsub.s32 %v211, %v2800
  %v2802 = vrot.slane %v2738, %v2801
  %v2803 = vsel %vm721, %v2746, %v2742
  %v2804 = vsel %vm723, %v2750, %v2803
  %v2805 = vsel %vm725, %v2754, %v2804
  %v2806 = vsel %vm727, %v2758, %v2805
  %v2807 = vsel %vm729, %v2762, %v2806
  %v2808 = vsel %vm731, %v2766, %v2807
  %v2809 = vsel %vm733, %v2770, %v2808
  %v2810 = vsel %vm721, %v2778, %v2774
  %v2811 = vsel %vm723, %v2782, %v2810
  %v2812 = vsel %vm725, %v2786, %v2811
  %v2813 = vsel %vm727, %v2790, %v2812
  %v2814 = vsel %vm729, %v2794, %v2813
  %v2815 = vsel %vm731, %v2798, %v2814
  %v2816 = vsel %vm733, %v2802, %v2815
  %v2819 = vsel %vm523, %v2809, 0.0
  %2820 = vadd.xlane.f32.xlu0 %v2819
  %v2821 = vpop.xlane.xlu0 %2820
  %v2822 = vsel %vm523, %v2816, 0.0
  %2823 = vadd.xlane.f32.xlu0 %v2822
  %v2824 = vpop.xlane.xlu0 %2823
  %v2825 = vrcp.pop %v2821
  %v2826 = vrcp.pop %v2824
  %v2829 = vlaneseq
  %v2830 = vshrl.u32 %v2829, 7
  %v2831 = vsub.s32 0, %v2830
  %v2832 = vrot.slane %v2825, %v2831
  %v2833 = vlaneseq
  %v2834 = vshrl.u32 %v2833, 7
  %v2835 = vsub.s32 1, %v2834
  %v2836 = vrot.slane %v2825, %v2835
  %v2837 = vlaneseq
  %v2838 = vshrl.u32 %v2837, 7
  %v2839 = vsub.s32 2, %v2838
  %v2840 = vrot.slane %v2825, %v2839
  %v2841 = vlaneseq
  %v2842 = vshrl.u32 %v2841, 7
  %v2843 = vsub.s32 3, %v2842
  %v2844 = vrot.slane %v2825, %v2843
  %v2845 = vlaneseq
  %v2846 = vshrl.u32 %v2845, 7
  %v2847 = vsub.s32 4, %v2846
  %v2848 = vrot.slane %v2825, %v2847
  %v2849 = vlaneseq
  %v2850 = vshrl.u32 %v2849, 7
  %v2851 = vsub.s32 5, %v2850
  %v2852 = vrot.slane %v2825, %v2851
  %v2853 = vlaneseq
  %v2854 = vshrl.u32 %v2853, 7
  %v2855 = vsub.s32 6, %v2854
  %v2856 = vrot.slane %v2825, %v2855
  %v2857 = vlaneseq
  %v2858 = vshrl.u32 %v2857, 7
  %v2859 = vsub.s32 7, %v2858
  %v2860 = vrot.slane %v2825, %v2859
  %v2861 = vlaneseq
  %v2862 = vshrl.u32 %v2861, 7
  %v2863 = vsub.s32 0, %v2862
  %v2864 = vrot.slane %v2826, %v2863
  %v2865 = vlaneseq
  %v2866 = vshrl.u32 %v2865, 7
  %v2867 = vsub.s32 1, %v2866
  %v2868 = vrot.slane %v2826, %v2867
  %v2869 = vlaneseq
  %v2870 = vshrl.u32 %v2869, 7
  %v2871 = vsub.s32 2, %v2870
  %v2872 = vrot.slane %v2826, %v2871
  %v2873 = vlaneseq
  %v2874 = vshrl.u32 %v2873, 7
  %v2875 = vsub.s32 3, %v2874
  %v2876 = vrot.slane %v2826, %v2875
  %v2877 = vlaneseq
  %v2878 = vshrl.u32 %v2877, 7
  %v2879 = vsub.s32 4, %v2878
  %v2880 = vrot.slane %v2826, %v2879
  %v2881 = vlaneseq
  %v2882 = vshrl.u32 %v2881, 7
  %v2883 = vsub.s32 5, %v2882
  %v2884 = vrot.slane %v2826, %v2883
  %v2885 = vlaneseq
  %v2886 = vshrl.u32 %v2885, 7
  %v2887 = vsub.s32 6, %v2886
  %v2888 = vrot.slane %v2826, %v2887
  %v2889 = vlaneseq
  %v2890 = vshrl.u32 %v2889, 7
  %v2891 = vsub.s32 7, %v2890
  %v2892 = vrot.slane %v2826, %v2891
  %v2909 = vmul.f32 %v2644, %v2832
  %v2910 = vmul.f32 %v2646, %v2836
  %v2911 = vmul.f32 %v2648, %v2840
  %v2912 = vmul.f32 %v2650, %v2844
  %v2913 = vmul.f32 %v2652, %v2848
  %v2914 = vmul.f32 %v2654, %v2852
  %v2915 = vmul.f32 %v2656, %v2856
  %v2916 = vmul.f32 %v2658, %v2860
  %v2917 = vmul.f32 %v2660, %v2864
  %v2918 = vmul.f32 %v2662, %v2868
  %v2919 = vmul.f32 %v2664, %v2872
  %v2920 = vmul.f32 %v2666, %v2876
  %v2921 = vmul.f32 %v2668, %v2880
  %v2922 = vmul.f32 %v2670, %v2884
  %v2923 = vmul.f32 %v2672, %v2888
  %v2924 = vmul.f32 %v2674, %v2892
  %2926 = vset.pattern.permute.xlu0 0
  %2927 = vperm.xlu0 %2926, %v2909
  %v2928 = vpop.permute.xlu0 %2927
  %2931 = vset.pattern.permute.xlu0 0
  %2932 = vperm.xlu0 %2931, %v2910
  %v2933 = vpop.permute.xlu0 %2932
  %2936 = vset.pattern.permute.xlu0 0
  %2937 = vperm.xlu0 %2936, %v2911
  %v2938 = vpop.permute.xlu0 %2937
  %2941 = vset.pattern.permute.xlu0 0
  %2942 = vperm.xlu0 %2941, %v2912
  %v2943 = vpop.permute.xlu0 %2942
  %2946 = vset.pattern.permute.xlu0 0
  %2947 = vperm.xlu0 %2946, %v2913
  %v2948 = vpop.permute.xlu0 %2947
  %2951 = vset.pattern.permute.xlu0 0
  %2952 = vperm.xlu0 %2951, %v2914
  %v2953 = vpop.permute.xlu0 %2952
  %2956 = vset.pattern.permute.xlu0 0
  %2957 = vperm.xlu0 %2956, %v2915
  %v2958 = vpop.permute.xlu0 %2957
  %2961 = vset.pattern.permute.xlu0 0
  %2962 = vperm.xlu0 %2961, %v2916
  %v2963 = vpop.permute.xlu0 %2962
  %2966 = vset.pattern.permute.xlu0 0
  %2967 = vperm.xlu0 %2966, %v2917
  %v2968 = vpop.permute.xlu0 %2967
  %2971 = vset.pattern.permute.xlu0 0
  %2972 = vperm.xlu0 %2971, %v2918
  %v2973 = vpop.permute.xlu0 %2972
  %2976 = vset.pattern.permute.xlu0 0
  %2977 = vperm.xlu0 %2976, %v2919
  %v2978 = vpop.permute.xlu0 %2977
  %2981 = vset.pattern.permute.xlu0 0
  %2982 = vperm.xlu0 %2981, %v2920
  %v2983 = vpop.permute.xlu0 %2982
  %2986 = vset.pattern.permute.xlu0 0
  %2987 = vperm.xlu0 %2986, %v2921
  %v2988 = vpop.permute.xlu0 %2987
  %2991 = vset.pattern.permute.xlu0 0
  %2992 = vperm.xlu0 %2991, %v2922
  %v2993 = vpop.permute.xlu0 %2992
  %2996 = vset.pattern.permute.xlu0 0
  %2997 = vperm.xlu0 %2996, %v2923
  %v2998 = vpop.permute.xlu0 %2997
  %3001 = vset.pattern.permute.xlu0 0
  %3002 = vperm.xlu0 %3001, %v2924
  %v3003 = vpop.permute.xlu0 %3002
  %v3005 = vmul.f32 %v2928, %v315
  %v3006 = vmul.f32 %v2933, %v315
  %v3007 = vmul.f32 %v2938, %v315
  %v3008 = vmul.f32 %v2943, %v315
  %v3009 = vmul.f32 %v2948, %v315
  %v3010 = vmul.f32 %v2953, %v315
  %v3011 = vmul.f32 %v2958, %v315
  %v3012 = vmul.f32 %v2963, %v315
  %v3013 = vmul.f32 %v2968, %v318
  %v3014 = vmul.f32 %v2973, %v318
  %v3015 = vmul.f32 %v2978, %v318
  %v3016 = vmul.f32 %v2983, %v318
  %v3017 = vmul.f32 %v2988, %v318
  %v3018 = vmul.f32 %v2993, %v318
  %v3019 = vmul.f32 %v2998, %v318
  %v3020 = vmul.f32 %v3003, %v318
  %vm3021 = vcmask 720512
  %v3022 = vsel %vm3021, %v3005, 0.0
  %v3023 = vrot.slane %v3022, 4
  %v3024 = vadd.f32 %v3022, %v3023
  %v3025 = vrot.slane %v3024, 2
  %v3026 = vadd.f32 %v3024, %v3025
  %v3027 = vrot.slane %v3026, 1
  %v3028 = vadd.f32 %v3026, %v3027
  %v3029 = vsel %vm3021, %v3006, 0.0
  %v3030 = vrot.slane %v3029, 4
  %v3031 = vadd.f32 %v3029, %v3030
  %v3032 = vrot.slane %v3031, 2
  %v3033 = vadd.f32 %v3031, %v3032
  %v3034 = vrot.slane %v3033, 1
  %v3035 = vadd.f32 %v3033, %v3034
  %v3036 = vsel %vm3021, %v3007, 0.0
  %v3037 = vrot.slane %v3036, 4
  %v3038 = vadd.f32 %v3036, %v3037
  %v3039 = vrot.slane %v3038, 2
  %v3040 = vadd.f32 %v3038, %v3039
  %v3041 = vrot.slane %v3040, 1
  %v3042 = vadd.f32 %v3040, %v3041
  %v3043 = vsel %vm3021, %v3008, 0.0
  %v3044 = vrot.slane %v3043, 4
  %v3045 = vadd.f32 %v3043, %v3044
  %v3046 = vrot.slane %v3045, 2
  %v3047 = vadd.f32 %v3045, %v3046
  %v3048 = vrot.slane %v3047, 1
  %v3049 = vadd.f32 %v3047, %v3048
  %v3050 = vsel %vm3021, %v3009, 0.0
  %v3051 = vrot.slane %v3050, 4
  %v3052 = vadd.f32 %v3050, %v3051
  %v3053 = vrot.slane %v3052, 2
  %v3054 = vadd.f32 %v3052, %v3053
  %v3055 = vrot.slane %v3054, 1
  %v3056 = vadd.f32 %v3054, %v3055
  %v3057 = vsel %vm3021, %v3010, 0.0
  %v3058 = vrot.slane %v3057, 4
  %v3059 = vadd.f32 %v3057, %v3058
  %v3060 = vrot.slane %v3059, 2
  %v3061 = vadd.f32 %v3059, %v3060
  %v3062 = vrot.slane %v3061, 1
  %v3063 = vadd.f32 %v3061, %v3062
  %v3064 = vsel %vm3021, %v3011, 0.0
  %v3065 = vrot.slane %v3064, 4
  %v3066 = vadd.f32 %v3064, %v3065
  %v3067 = vrot.slane %v3066, 2
  %v3068 = vadd.f32 %v3066, %v3067
  %v3069 = vrot.slane %v3068, 1
  %v3070 = vadd.f32 %v3068, %v3069
  %v3071 = vsel %vm3021, %v3012, 0.0
  %v3072 = vrot.slane %v3071, 4
  %v3073 = vadd.f32 %v3071, %v3072
  %v3074 = vrot.slane %v3073, 2
  %v3075 = vadd.f32 %v3073, %v3074
  %v3076 = vrot.slane %v3075, 1
  %v3077 = vadd.f32 %v3075, %v3076
  %v3078 = vsel %vm3021, %v3013, 0.0
  %v3079 = vrot.slane %v3078, 4
  %v3080 = vadd.f32 %v3078, %v3079
  %v3081 = vrot.slane %v3080, 2
  %v3082 = vadd.f32 %v3080, %v3081
  %v3083 = vrot.slane %v3082, 1
  %v3084 = vadd.f32 %v3082, %v3083
  %v3085 = vsel %vm3021, %v3014, 0.0
  %v3086 = vrot.slane %v3085, 4
  %v3087 = vadd.f32 %v3085, %v3086
  %v3088 = vrot.slane %v3087, 2
  %v3089 = vadd.f32 %v3087, %v3088
  %v3090 = vrot.slane %v3089, 1
  %v3091 = vadd.f32 %v3089, %v3090
  %v3092 = vsel %vm3021, %v3015, 0.0
  %v3093 = vrot.slane %v3092, 4
  %v3094 = vadd.f32 %v3092, %v3093
  %v3095 = vrot.slane %v3094, 2
  %v3096 = vadd.f32 %v3094, %v3095
  %v3097 = vrot.slane %v3096, 1
  %v3098 = vadd.f32 %v3096, %v3097
  %v3099 = vsel %vm3021, %v3016, 0.0
  %v3100 = vrot.slane %v3099, 4
  %v3101 = vadd.f32 %v3099, %v3100
  %v3102 = vrot.slane %v3101, 2
  %v3103 = vadd.f32 %v3101, %v3102
  %v3104 = vrot.slane %v3103, 1
  %v3105 = vadd.f32 %v3103, %v3104
  %v3106 = vsel %vm3021, %v3017, 0.0
  %v3107 = vrot.slane %v3106, 4
  %v3108 = vadd.f32 %v3106, %v3107
  %v3109 = vrot.slane %v3108, 2
  %v3110 = vadd.f32 %v3108, %v3109
  %v3111 = vrot.slane %v3110, 1
  %v3112 = vadd.f32 %v3110, %v3111
  %v3113 = vsel %vm3021, %v3018, 0.0
  %v3114 = vrot.slane %v3113, 4
  %v3115 = vadd.f32 %v3113, %v3114
  %v3116 = vrot.slane %v3115, 2
  %v3117 = vadd.f32 %v3115, %v3116
  %v3118 = vrot.slane %v3117, 1
  %v3119 = vadd.f32 %v3117, %v3118
  %v3120 = vsel %vm3021, %v3019, 0.0
  %v3121 = vrot.slane %v3120, 4
  %v3122 = vadd.f32 %v3120, %v3121
  %v3123 = vrot.slane %v3122, 2
  %v3124 = vadd.f32 %v3122, %v3123
  %v3125 = vrot.slane %v3124, 1
  %v3126 = vadd.f32 %v3124, %v3125
  %v3127 = vsel %vm3021, %v3020, 0.0
  %v3128 = vrot.slane %v3127, 4
  %v3129 = vadd.f32 %v3127, %v3128
  %v3130 = vrot.slane %v3129, 2
  %v3131 = vadd.f32 %v3129, %v3130
  %v3132 = vrot.slane %v3131, 1
  %v3133 = vadd.f32 %v3131, %v3132
  %v3150 = vsel %vm721, %v3035, %v3028
  %v3151 = vsel %vm723, %v3042, %v3150
  %v3152 = vsel %vm725, %v3049, %v3151
  %v3153 = vsel %vm727, %v3056, %v3152
  %v3154 = vsel %vm729, %v3063, %v3153
  %v3155 = vsel %vm731, %v3070, %v3154
  %v3156 = vsel %vm733, %v3077, %v3155
  %v3157 = vsel %vm721, %v3091, %v3084
  %v3158 = vsel %vm723, %v3098, %v3157
  %v3159 = vsel %vm725, %v3105, %v3158
  %v3160 = vsel %vm727, %v3112, %v3159
  %v3161 = vsel %vm729, %v3119, %v3160
  %v3162 = vsel %vm731, %v3126, %v3161
  %v3163 = vsel %vm733, %v3133, %v3162
  %3164 = vrot.lane.b32.xlu0 %v3156, 64
  %v3165 = vpop.permute.xlu0 %3164
  %3166 = vrot.lane.b32.xlu0 %v3163, 64
  %v3167 = vpop.permute.xlu0 %3166
  %vm3170 = vcmask 195712
  %3171 = vst.msk [vmem:[#allocation2] sm:$0xff] %vm3170, %v3165
  %3172 = vst.msk [vmem:[#allocation2 + $0x8] sm:$0xff] %vm3170, %v3167
  %3173 = vrot.lane.b32.xlu0 %v507, 104
  %v3174 = vpop.permute.xlu0 %3173
  %3175 = vrot.lane.b32.xlu0 %v508, 104
  %v3176 = vpop.permute.xlu0 %3175
  %3177 = vrot.lane.b32.xlu0 %v509, 104
  %v3178 = vpop.permute.xlu0 %3177
  %3179 = vrot.lane.b32.xlu0 %v510, 104
  %v3180 = vpop.permute.xlu0 %3179
  %3181 = vrot.lane.b32.xlu0 %v511, 104
  %v3182 = vpop.permute.xlu0 %3181
  %3183 = vrot.lane.b32.xlu0 %v512, 104
  %v3184 = vpop.permute.xlu0 %3183
  %3185 = vrot.lane.b32.xlu0 %v513, 104
  %v3186 = vpop.permute.xlu0 %3185
  %3187 = vrot.lane.b32.xlu0 %v514, 104
  %v3188 = vpop.permute.xlu0 %3187
  %3189 = vrot.lane.b32.xlu0 %v515, 104
  %v3190 = vpop.permute.xlu0 %3189
  %3191 = vrot.lane.b32.xlu0 %v516, 104
  %v3192 = vpop.permute.xlu0 %3191
  %3193 = vrot.lane.b32.xlu0 %v517, 104
  %v3194 = vpop.permute.xlu0 %3193
  %3195 = vrot.lane.b32.xlu0 %v518, 104
  %v3196 = vpop.permute.xlu0 %3195
  %3197 = vrot.lane.b32.xlu0 %v519, 104
  %v3198 = vpop.permute.xlu0 %3197
  %3199 = vrot.lane.b32.xlu0 %v520, 104
  %v3200 = vpop.permute.xlu0 %3199
  %3201 = vrot.lane.b32.xlu0 %v521, 104
  %v3202 = vpop.permute.xlu0 %3201
  %3203 = vrot.lane.b32.xlu0 %v522, 104
  %v3204 = vpop.permute.xlu0 %3203
  %v3221 = vsel %vm523, %v3174, 0.0
  %3222 = vadd.xlane.f32.xlu0 %v3221
  %v3223 = vpop.xlane.xlu0 %3222
  %v3224 = vsel %vm523, %v3176, 0.0
  %3225 = vadd.xlane.f32.xlu0 %v3224
  %v3226 = vpop.xlane.xlu0 %3225
  %v3227 = vsel %vm523, %v3178, 0.0
  %3228 = vadd.xlane.f32.xlu0 %v3227
  %v3229 = vpop.xlane.xlu0 %3228
  %v3230 = vsel %vm523, %v3180, 0.0
  %3231 = vadd.xlane.f32.xlu0 %v3230
  %v3232 = vpop.xlane.xlu0 %3231
  %v3233 = vsel %vm523, %v3182, 0.0
  %3234 = vadd.xlane.f32.xlu0 %v3233
  %v3235 = vpop.xlane.xlu0 %3234
  %v3236 = vsel %vm523, %v3184, 0.0
  %3237 = vadd.xlane.f32.xlu0 %v3236
  %v3238 = vpop.xlane.xlu0 %3237
  %v3239 = vsel %vm523, %v3186, 0.0
  %3240 = vadd.xlane.f32.xlu0 %v3239
  %v3241 = vpop.xlane.xlu0 %3240
  %v3242 = vsel %vm523, %v3188, 0.0
  %3243 = vadd.xlane.f32.xlu0 %v3242
  %v3244 = vpop.xlane.xlu0 %3243
  %v3245 = vsel %vm523, %v3190, 0.0
  %3246 = vadd.xlane.f32.xlu0 %v3245
  %v3247 = vpop.xlane.xlu0 %3246
  %v3248 = vsel %vm523, %v3192, 0.0
  %3249 = vadd.xlane.f32.xlu0 %v3248
  %v3250 = vpop.xlane.xlu0 %3249
  %v3251 = vsel %vm523, %v3194, 0.0
  %3252 = vadd.xlane.f32.xlu0 %v3251
  %v3253 = vpop.xlane.xlu0 %3252
  %v3254 = vsel %vm523, %v3196, 0.0
  %3255 = vadd.xlane.f32.xlu0 %v3254
  %v3256 = vpop.xlane.xlu0 %3255
  %v3257 = vsel %vm523, %v3198, 0.0
  %3258 = vadd.xlane.f32.xlu0 %v3257
  %v3259 = vpop.xlane.xlu0 %3258
  %v3260 = vsel %vm523, %v3200, 0.0
  %3261 = vadd.xlane.f32.xlu0 %v3260
  %v3262 = vpop.xlane.xlu0 %3261
  %v3263 = vsel %vm523, %v3202, 0.0
  %3264 = vadd.xlane.f32.xlu0 %v3263
  %v3265 = vpop.xlane.xlu0 %3264
  %v3266 = vsel %vm523, %v3204, 0.0
  %3267 = vadd.xlane.f32.xlu0 %v3266
  %v3268 = vpop.xlane.xlu0 %3267
  %v3269 = vadd.f32 %v3223, %v575
  %v3270 = vadd.f32 %v3226, %v575
  %v3271 = vadd.f32 %v3229, %v575
  %v3272 = vadd.f32 %v3232, %v575
  %v3273 = vadd.f32 %v3235, %v575
  %v3274 = vadd.f32 %v3238, %v575
  %v3275 = vadd.f32 %v3241, %v575
  %v3276 = vadd.f32 %v3244, %v575
  %v3277 = vadd.f32 %v3247, %v575
  %v3278 = vadd.f32 %v3250, %v575
  %v3279 = vadd.f32 %v3253, %v575
  %v3280 = vadd.f32 %v3256, %v575
  %v3281 = vadd.f32 %v3259, %v575
  %v3282 = vadd.f32 %v3262, %v575
  %v3283 = vadd.f32 %v3265, %v575
  %v3284 = vadd.f32 %v3268, %v575
  %3301 = vset.pattern.permute.xlu0 0
  %3302 = vperm.xlu0 %3301, %v3269
  %v3303 = vpop.permute.xlu0 %3302
  %3304 = vset.pattern.permute.xlu0 0
  %3305 = vperm.xlu0 %3304, %v3270
  %v3306 = vpop.permute.xlu0 %3305
  %3307 = vset.pattern.permute.xlu0 0
  %3308 = vperm.xlu0 %3307, %v3271
  %v3309 = vpop.permute.xlu0 %3308
  %3310 = vset.pattern.permute.xlu0 0
  %3311 = vperm.xlu0 %3310, %v3272
  %v3312 = vpop.permute.xlu0 %3311
  %3313 = vset.pattern.permute.xlu0 0
  %3314 = vperm.xlu0 %3313, %v3273
  %v3315 = vpop.permute.xlu0 %3314
  %3316 = vset.pattern.permute.xlu0 0
  %3317 = vperm.xlu0 %3316, %v3274
  %v3318 = vpop.permute.xlu0 %3317
  %3319 = vset.pattern.permute.xlu0 0
  %3320 = vperm.xlu0 %3319, %v3275
  %v3321 = vpop.permute.xlu0 %3320
  %3322 = vset.pattern.permute.xlu0 0
  %3323 = vperm.xlu0 %3322, %v3276
  %v3324 = vpop.permute.xlu0 %3323
  %3325 = vset.pattern.permute.xlu0 0
  %3326 = vperm.xlu0 %3325, %v3277
  %v3327 = vpop.permute.xlu0 %3326
  %3328 = vset.pattern.permute.xlu0 0
  %3329 = vperm.xlu0 %3328, %v3278
  %v3330 = vpop.permute.xlu0 %3329
  %3331 = vset.pattern.permute.xlu0 0
  %3332 = vperm.xlu0 %3331, %v3279
  %v3333 = vpop.permute.xlu0 %3332
  %3334 = vset.pattern.permute.xlu0 0
  %3335 = vperm.xlu0 %3334, %v3280
  %v3336 = vpop.permute.xlu0 %3335
  %3337 = vset.pattern.permute.xlu0 0
  %3338 = vperm.xlu0 %3337, %v3281
  %v3339 = vpop.permute.xlu0 %3338
  %3340 = vset.pattern.permute.xlu0 0
  %3341 = vperm.xlu0 %3340, %v3282
  %v3342 = vpop.permute.xlu0 %3341
  %3343 = vset.pattern.permute.xlu0 0
  %3344 = vperm.xlu0 %3343, %v3283
  %v3345 = vpop.permute.xlu0 %3344
  %3346 = vset.pattern.permute.xlu0 0
  %3347 = vperm.xlu0 %3346, %v3284
  %v3348 = vpop.permute.xlu0 %3347
  %v3349 = vlaneseq
  %v3350 = vshrl.u32 %v3349, 7
  %v3351 = vsub.s32 %v211, %v3350
  %v3352 = vrot.slane %v3303, %v3351
  %v3353 = vlaneseq
  %v3354 = vshrl.u32 %v3353, 7
  %v3355 = vsub.s32 %v211, %v3354
  %v3356 = vrot.slane %v3306, %v3355
  %v3357 = vlaneseq
  %v3358 = vshrl.u32 %v3357, 7
  %v3359 = vsub.s32 %v211, %v3358
  %v3360 = vrot.slane %v3309, %v3359
  %v3361 = vlaneseq
  %v3362 = vshrl.u32 %v3361, 7
  %v3363 = vsub.s32 %v211, %v3362
  %v3364 = vrot.slane %v3312, %v3363
  %v3365 = vlaneseq
  %v3366 = vshrl.u32 %v3365, 7
  %v3367 = vsub.s32 %v211, %v3366
  %v3368 = vrot.slane %v3315, %v3367
  %v3369 = vlaneseq
  %v3370 = vshrl.u32 %v3369, 7
  %v3371 = vsub.s32 %v211, %v3370
  %v3372 = vrot.slane %v3318, %v3371
  %v3373 = vlaneseq
  %v3374 = vshrl.u32 %v3373, 7
  %v3375 = vsub.s32 %v211, %v3374
  %v3376 = vrot.slane %v3321, %v3375
  %v3377 = vlaneseq
  %v3378 = vshrl.u32 %v3377, 7
  %v3379 = vsub.s32 %v211, %v3378
  %v3380 = vrot.slane %v3324, %v3379
  %v3381 = vlaneseq
  %v3382 = vshrl.u32 %v3381, 7
  %v3383 = vsub.s32 %v211, %v3382
  %v3384 = vrot.slane %v3327, %v3383
  %v3385 = vlaneseq
  %v3386 = vshrl.u32 %v3385, 7
  %v3387 = vsub.s32 %v211, %v3386
  %v3388 = vrot.slane %v3330, %v3387
  %v3389 = vlaneseq
  %v3390 = vshrl.u32 %v3389, 7
  %v3391 = vsub.s32 %v211, %v3390
  %v3392 = vrot.slane %v3333, %v3391
  %v3393 = vlaneseq
  %v3394 = vshrl.u32 %v3393, 7
  %v3395 = vsub.s32 %v211, %v3394
  %v3396 = vrot.slane %v3336, %v3395
  %v3397 = vlaneseq
  %v3398 = vshrl.u32 %v3397, 7
  %v3399 = vsub.s32 %v211, %v3398
  %v3400 = vrot.slane %v3339, %v3399
  %v3401 = vlaneseq
  %v3402 = vshrl.u32 %v3401, 7
  %v3403 = vsub.s32 %v211, %v3402
  %v3404 = vrot.slane %v3342, %v3403
  %v3405 = vlaneseq
  %v3406 = vshrl.u32 %v3405, 7
  %v3407 = vsub.s32 %v211, %v3406
  %v3408 = vrot.slane %v3345, %v3407
  %v3409 = vlaneseq
  %v3410 = vshrl.u32 %v3409, 7
  %v3411 = vsub.s32 %v211, %v3410
  %v3412 = vrot.slane %v3348, %v3411
  %v3413 = vsel %vm721, %v3356, %v3352
  %v3414 = vsel %vm723, %v3360, %v3413
  %v3415 = vsel %vm725, %v3364, %v3414
  %v3416 = vsel %vm727, %v3368, %v3415
  %v3417 = vsel %vm729, %v3372, %v3416
  %v3418 = vsel %vm731, %v3376, %v3417
  %v3419 = vsel %vm733, %v3380, %v3418
  %v3420 = vsel %vm721, %v3388, %v3384
  %v3421 = vsel %vm723, %v3392, %v3420
  %v3422 = vsel %vm725, %v3396, %v3421
  %v3423 = vsel %vm727, %v3400, %v3422
  %v3424 = vsel %vm729, %v3404, %v3423
  %v3425 = vsel %vm731, %v3408, %v3424
  %v3426 = vsel %vm733, %v3412, %v3425
  %v3429 = vsel %vm523, %v3419, -inf
  %3430 = vmax.xlane.f32.xlu0 %v3429
  %v3431 = vpop.xlane.xlu0 %3430
  %v3432 = vsel %vm523, %v3426, -inf
  %3433 = vmax.xlane.f32.xlu0 %v3432
  %v3434 = vpop.xlane.xlu0 %3433
  %v3437 = vlaneseq
  %v3438 = vshrl.u32 %v3437, 7
  %v3439 = vsub.s32 0, %v3438
  %v3440 = vrot.slane %v3431, %v3439
  %v3441 = vlaneseq
  %v3442 = vshrl.u32 %v3441, 7
  %v3443 = vsub.s32 1, %v3442
  %v3444 = vrot.slane %v3431, %v3443
  %v3445 = vlaneseq
  %v3446 = vshrl.u32 %v3445, 7
  %v3447 = vsub.s32 2, %v3446
  %v3448 = vrot.slane %v3431, %v3447
  %v3449 = vlaneseq
  %v3450 = vshrl.u32 %v3449, 7
  %v3451 = vsub.s32 3, %v3450
  %v3452 = vrot.slane %v3431, %v3451
  %v3453 = vlaneseq
  %v3454 = vshrl.u32 %v3453, 7
  %v3455 = vsub.s32 4, %v3454
  %v3456 = vrot.slane %v3431, %v3455
  %v3457 = vlaneseq
  %v3458 = vshrl.u32 %v3457, 7
  %v3459 = vsub.s32 5, %v3458
  %v3460 = vrot.slane %v3431, %v3459
  %v3461 = vlaneseq
  %v3462 = vshrl.u32 %v3461, 7
  %v3463 = vsub.s32 6, %v3462
  %v3464 = vrot.slane %v3431, %v3463
  %v3465 = vlaneseq
  %v3466 = vshrl.u32 %v3465, 7
  %v3467 = vsub.s32 7, %v3466
  %v3468 = vrot.slane %v3431, %v3467
  %v3469 = vlaneseq
  %v3470 = vshrl.u32 %v3469, 7
  %v3471 = vsub.s32 0, %v3470
  %v3472 = vrot.slane %v3434, %v3471
  %v3473 = vlaneseq
  %v3474 = vshrl.u32 %v3473, 7
  %v3475 = vsub.s32 1, %v3474
  %v3476 = vrot.slane %v3434, %v3475
  %v3477 = vlaneseq
  %v3478 = vshrl.u32 %v3477, 7
  %v3479 = vsub.s32 2, %v3478
  %v3480 = vrot.slane %v3434, %v3479
  %v3481 = vlaneseq
  %v3482 = vshrl.u32 %v3481, 7
  %v3483 = vsub.s32 3, %v3482
  %v3484 = vrot.slane %v3434, %v3483
  %v3485 = vlaneseq
  %v3486 = vshrl.u32 %v3485, 7
  %v3487 = vsub.s32 4, %v3486
  %v3488 = vrot.slane %v3434, %v3487
  %v3489 = vlaneseq
  %v3490 = vshrl.u32 %v3489, 7
  %v3491 = vsub.s32 5, %v3490
  %v3492 = vrot.slane %v3434, %v3491
  %v3493 = vlaneseq
  %v3494 = vshrl.u32 %v3493, 7
  %v3495 = vsub.s32 6, %v3494
  %v3496 = vrot.slane %v3434, %v3495
  %v3497 = vlaneseq
  %v3498 = vshrl.u32 %v3497, 7
  %v3499 = vsub.s32 7, %v3498
  %v3500 = vrot.slane %v3434, %v3499
  %v3517 = vsub.f32 %v3269, %v3440
  %v3518 = vsub.f32 %v3270, %v3444
  %v3519 = vsub.f32 %v3271, %v3448
  %v3520 = vsub.f32 %v3272, %v3452
  %v3521 = vsub.f32 %v3273, %v3456
  %v3522 = vsub.f32 %v3274, %v3460
  %v3523 = vsub.f32 %v3275, %v3464
  %v3524 = vsub.f32 %v3276, %v3468
  %v3525 = vsub.f32 %v3277, %v3472
  %v3526 = vsub.f32 %v3278, %v3476
  %v3527 = vsub.f32 %v3279, %v3480
  %v3528 = vsub.f32 %v3280, %v3484
  %v3529 = vsub.f32 %v3281, %v3488
  %v3530 = vsub.f32 %v3282, %v3492
  %v3531 = vsub.f32 %v3283, %v3496
  %v3532 = vsub.f32 %v3284, %v3500
  %v3533 = vmul.f32 %v3517, 1.442695
  %v3534 = vpow.pop %v3533
  %v3535 = vmul.f32 %v3518, 1.442695
  %v3536 = vpow.pop %v3535
  %v3537 = vmul.f32 %v3519, 1.442695
  %v3538 = vpow.pop %v3537
  %v3539 = vmul.f32 %v3520, 1.442695
  %v3540 = vpow.pop %v3539
  %v3541 = vmul.f32 %v3521, 1.442695
  %v3542 = vpow.pop %v3541
  %v3543 = vmul.f32 %v3522, 1.442695
  %v3544 = vpow.pop %v3543
  %v3545 = vmul.f32 %v3523, 1.442695
  %v3546 = vpow.pop %v3545
  %v3547 = vmul.f32 %v3524, 1.442695
  %v3548 = vpow.pop %v3547
  %v3549 = vmul.f32 %v3525, 1.442695
  %v3550 = vpow.pop %v3549
  %v3551 = vmul.f32 %v3526, 1.442695
  %v3552 = vpow.pop %v3551
  %v3553 = vmul.f32 %v3527, 1.442695
  %v3554 = vpow.pop %v3553
  %v3555 = vmul.f32 %v3528, 1.442695
  %v3556 = vpow.pop %v3555
  %v3557 = vmul.f32 %v3529, 1.442695
  %v3558 = vpow.pop %v3557
  %v3559 = vmul.f32 %v3530, 1.442695
  %v3560 = vpow.pop %v3559
  %v3561 = vmul.f32 %v3531, 1.442695
  %v3562 = vpow.pop %v3561
  %v3563 = vmul.f32 %v3532, 1.442695
  %v3564 = vpow.pop %v3563
  %3581 = vset.pattern.permute.xlu0 0
  %3582 = vperm.xlu0 %3581, %v3534
  %v3583 = vpop.permute.xlu0 %3582
  %3584 = vset.pattern.permute.xlu0 0
  %3585 = vperm.xlu0 %3584, %v3536
  %v3586 = vpop.permute.xlu0 %3585
  %3587 = vset.pattern.permute.xlu0 0
  %3588 = vperm.xlu0 %3587, %v3538
  %v3589 = vpop.permute.xlu0 %3588
  %3590 = vset.pattern.permute.xlu0 0
  %3591 = vperm.xlu0 %3590, %v3540
  %v3592 = vpop.permute.xlu0 %3591
  %3593 = vset.pattern.permute.xlu0 0
  %3594 = vperm.xlu0 %3593, %v3542
  %v3595 = vpop.permute.xlu0 %3594
  %3596 = vset.pattern.permute.xlu0 0
  %3597 = vperm.xlu0 %3596, %v3544
  %v3598 = vpop.permute.xlu0 %3597
  %3599 = vset.pattern.permute.xlu0 0
  %3600 = vperm.xlu0 %3599, %v3546
  %v3601 = vpop.permute.xlu0 %3600
  %3602 = vset.pattern.permute.xlu0 0
  %3603 = vperm.xlu0 %3602, %v3548
  %v3604 = vpop.permute.xlu0 %3603
  %3605 = vset.pattern.permute.xlu0 0
  %3606 = vperm.xlu0 %3605, %v3550
  %v3607 = vpop.permute.xlu0 %3606
  %3608 = vset.pattern.permute.xlu0 0
  %3609 = vperm.xlu0 %3608, %v3552
  %v3610 = vpop.permute.xlu0 %3609
  %3611 = vset.pattern.permute.xlu0 0
  %3612 = vperm.xlu0 %3611, %v3554
  %v3613 = vpop.permute.xlu0 %3612
  %3614 = vset.pattern.permute.xlu0 0
  %3615 = vperm.xlu0 %3614, %v3556
  %v3616 = vpop.permute.xlu0 %3615
  %3617 = vset.pattern.permute.xlu0 0
  %3618 = vperm.xlu0 %3617, %v3558
  %v3619 = vpop.permute.xlu0 %3618
  %3620 = vset.pattern.permute.xlu0 0
  %3621 = vperm.xlu0 %3620, %v3560
  %v3622 = vpop.permute.xlu0 %3621
  %3623 = vset.pattern.permute.xlu0 0
  %3624 = vperm.xlu0 %3623, %v3562
  %v3625 = vpop.permute.xlu0 %3624
  %3626 = vset.pattern.permute.xlu0 0
  %3627 = vperm.xlu0 %3626, %v3564
  %v3628 = vpop.permute.xlu0 %3627
  %v3629 = vlaneseq
  %v3630 = vshrl.u32 %v3629, 7
  %v3631 = vsub.s32 %v211, %v3630
  %v3632 = vrot.slane %v3583, %v3631
  %v3633 = vlaneseq
  %v3634 = vshrl.u32 %v3633, 7
  %v3635 = vsub.s32 %v211, %v3634
  %v3636 = vrot.slane %v3586, %v3635
  %v3637 = vlaneseq
  %v3638 = vshrl.u32 %v3637, 7
  %v3639 = vsub.s32 %v211, %v3638
  %v3640 = vrot.slane %v3589, %v3639
  %v3641 = vlaneseq
  %v3642 = vshrl.u32 %v3641, 7
  %v3643 = vsub.s32 %v211, %v3642
  %v3644 = vrot.slane %v3592, %v3643
  %v3645 = vlaneseq
  %v3646 = vshrl.u32 %v3645, 7
  %v3647 = vsub.s32 %v211, %v3646
  %v3648 = vrot.slane %v3595, %v3647
  %v3649 = vlaneseq
  %v3650 = vshrl.u32 %v3649, 7
  %v3651 = vsub.s32 %v211, %v3650
  %v3652 = vrot.slane %v3598, %v3651
  %v3653 = vlaneseq
  %v3654 = vshrl.u32 %v3653, 7
  %v3655 = vsub.s32 %v211, %v3654
  %v3656 = vrot.slane %v3601, %v3655
  %v3657 = vlaneseq
  %v3658 = vshrl.u32 %v3657, 7
  %v3659 = vsub.s32 %v211, %v3658
  %v3660 = vrot.slane %v3604, %v3659
  %v3661 = vlaneseq
  %v3662 = vshrl.u32 %v3661, 7
  %v3663 = vsub.s32 %v211, %v3662
  %v3664 = vrot.slane %v3607, %v3663
  %v3665 = vlaneseq
  %v3666 = vshrl.u32 %v3665, 7
  %v3667 = vsub.s32 %v211, %v3666
  %v3668 = vrot.slane %v3610, %v3667
  %v3669 = vlaneseq
  %v3670 = vshrl.u32 %v3669, 7
  %v3671 = vsub.s32 %v211, %v3670
  %v3672 = vrot.slane %v3613, %v3671
  %v3673 = vlaneseq
  %v3674 = vshrl.u32 %v3673, 7
  %v3675 = vsub.s32 %v211, %v3674
  %v3676 = vrot.slane %v3616, %v3675
  %v3677 = vlaneseq
  %v3678 = vshrl.u32 %v3677, 7
  %v3679 = vsub.s32 %v211, %v3678
  %v3680 = vrot.slane %v3619, %v3679
  %v3681 = vlaneseq
  %v3682 = vshrl.u32 %v3681, 7
  %v3683 = vsub.s32 %v211, %v3682
  %v3684 = vrot.slane %v3622, %v3683
  %v3685 = vlaneseq
  %v3686 = vshrl.u32 %v3685, 7
  %v3687 = vsub.s32 %v211, %v3686
  %v3688 = vrot.slane %v3625, %v3687
  %v3689 = vlaneseq
  %v3690 = vshrl.u32 %v3689, 7
  %v3691 = vsub.s32 %v211, %v3690
  %v3692 = vrot.slane %v3628, %v3691
  %v3693 = vsel %vm721, %v3636, %v3632
  %v3694 = vsel %vm723, %v3640, %v3693
  %v3695 = vsel %vm725, %v3644, %v3694
  %v3696 = vsel %vm727, %v3648, %v3695
  %v3697 = vsel %vm729, %v3652, %v3696
  %v3698 = vsel %vm731, %v3656, %v3697
  %v3699 = vsel %vm733, %v3660, %v3698
  %v3700 = vsel %vm721, %v3668, %v3664
  %v3701 = vsel %vm723, %v3672, %v3700
  %v3702 = vsel %vm725, %v3676, %v3701
  %v3703 = vsel %vm727, %v3680, %v3702
  %v3704 = vsel %vm729, %v3684, %v3703
  %v3705 = vsel %vm731, %v3688, %v3704
  %v3706 = vsel %vm733, %v3692, %v3705
  %v3709 = vsel %vm523, %v3699, 0.0
  %3710 = vadd.xlane.f32.xlu0 %v3709
  %v3711 = vpop.xlane.xlu0 %3710
  %v3712 = vsel %vm523, %v3706, 0.0
  %3713 = vadd.xlane.f32.xlu0 %v3712
  %v3714 = vpop.xlane.xlu0 %3713
  %v3715 = vrcp.pop %v3711
  %v3716 = vrcp.pop %v3714
  %v3719 = vlaneseq
  %v3720 = vshrl.u32 %v3719, 7
  %v3721 = vsub.s32 0, %v3720
  %v3722 = vrot.slane %v3715, %v3721
  %v3723 = vlaneseq
  %v3724 = vshrl.u32 %v3723, 7
  %v3725 = vsub.s32 1, %v3724
  %v3726 = vrot.slane %v3715, %v3725
  %v3727 = vlaneseq
  %v3728 = vshrl.u32 %v3727, 7
  %v3729 = vsub.s32 2, %v3728
  %v3730 = vrot.slane %v3715, %v3729
  %v3731 = vlaneseq
  %v3732 = vshrl.u32 %v3731, 7
  %v3733 = vsub.s32 3, %v3732
  %v3734 = vrot.slane %v3715, %v3733
  %v3735 = vlaneseq
  %v3736 = vshrl.u32 %v3735, 7
  %v3737 = vsub.s32 4, %v3736
  %v3738 = vrot.slane %v3715, %v3737
  %v3739 = vlaneseq
  %v3740 = vshrl.u32 %v3739, 7
  %v3741 = vsub.s32 5, %v3740
  %v3742 = vrot.slane %v3715, %v3741
  %v3743 = vlaneseq
  %v3744 = vshrl.u32 %v3743, 7
  %v3745 = vsub.s32 6, %v3744
  %v3746 = vrot.slane %v3715, %v3745
  %v3747 = vlaneseq
  %v3748 = vshrl.u32 %v3747, 7
  %v3749 = vsub.s32 7, %v3748
  %v3750 = vrot.slane %v3715, %v3749
  %v3751 = vlaneseq
  %v3752 = vshrl.u32 %v3751, 7
  %v3753 = vsub.s32 0, %v3752
  %v3754 = vrot.slane %v3716, %v3753
  %v3755 = vlaneseq
  %v3756 = vshrl.u32 %v3755, 7
  %v3757 = vsub.s32 1, %v3756
  %v3758 = vrot.slane %v3716, %v3757
  %v3759 = vlaneseq
  %v3760 = vshrl.u32 %v3759, 7
  %v3761 = vsub.s32 2, %v3760
  %v3762 = vrot.slane %v3716, %v3761
  %v3763 = vlaneseq
  %v3764 = vshrl.u32 %v3763, 7
  %v3765 = vsub.s32 3, %v3764
  %v3766 = vrot.slane %v3716, %v3765
  %v3767 = vlaneseq
  %v3768 = vshrl.u32 %v3767, 7
  %v3769 = vsub.s32 4, %v3768
  %v3770 = vrot.slane %v3716, %v3769
  %v3771 = vlaneseq
  %v3772 = vshrl.u32 %v3771, 7
  %v3773 = vsub.s32 5, %v3772
  %v3774 = vrot.slane %v3716, %v3773
  %v3775 = vlaneseq
  %v3776 = vshrl.u32 %v3775, 7
  %v3777 = vsub.s32 6, %v3776
  %v3778 = vrot.slane %v3716, %v3777
  %v3779 = vlaneseq
  %v3780 = vshrl.u32 %v3779, 7
  %v3781 = vsub.s32 7, %v3780
  %v3782 = vrot.slane %v3716, %v3781
  %v3799 = vmul.f32 %v3534, %v3722
  %v3800 = vmul.f32 %v3536, %v3726
  %v3801 = vmul.f32 %v3538, %v3730
  %v3802 = vmul.f32 %v3540, %v3734
  %v3803 = vmul.f32 %v3542, %v3738
  %v3804 = vmul.f32 %v3544, %v3742
  %v3805 = vmul.f32 %v3546, %v3746
  %v3806 = vmul.f32 %v3548, %v3750
  %v3807 = vmul.f32 %v3550, %v3754
  %v3808 = vmul.f32 %v3552, %v3758
  %v3809 = vmul.f32 %v3554, %v3762
  %v3810 = vmul.f32 %v3556, %v3766
  %v3811 = vmul.f32 %v3558, %v3770
  %v3812 = vmul.f32 %v3560, %v3774
  %v3813 = vmul.f32 %v3562, %v3778
  %v3814 = vmul.f32 %v3564, %v3782
  %3816 = vset.pattern.permute.xlu0 0
  %3817 = vperm.xlu0 %3816, %v3799
  %v3818 = vpop.permute.xlu0 %3817
  %3821 = vset.pattern.permute.xlu0 0
  %3822 = vperm.xlu0 %3821, %v3800
  %v3823 = vpop.permute.xlu0 %3822
  %3826 = vset.pattern.permute.xlu0 0
  %3827 = vperm.xlu0 %3826, %v3801
  %v3828 = vpop.permute.xlu0 %3827
  %3831 = vset.pattern.permute.xlu0 0
  %3832 = vperm.xlu0 %3831, %v3802
  %v3833 = vpop.permute.xlu0 %3832
  %3836 = vset.pattern.permute.xlu0 0
  %3837 = vperm.xlu0 %3836, %v3803
  %v3838 = vpop.permute.xlu0 %3837
  %3841 = vset.pattern.permute.xlu0 0
  %3842 = vperm.xlu0 %3841, %v3804
  %v3843 = vpop.permute.xlu0 %3842
  %3846 = vset.pattern.permute.xlu0 0
  %3847 = vperm.xlu0 %3846, %v3805
  %v3848 = vpop.permute.xlu0 %3847
  %3851 = vset.pattern.permute.xlu0 0
  %3852 = vperm.xlu0 %3851, %v3806
  %v3853 = vpop.permute.xlu0 %3852
  %3856 = vset.pattern.permute.xlu0 0
  %3857 = vperm.xlu0 %3856, %v3807
  %v3858 = vpop.permute.xlu0 %3857
  %3861 = vset.pattern.permute.xlu0 0
  %3862 = vperm.xlu0 %3861, %v3808
  %v3863 = vpop.permute.xlu0 %3862
  %3866 = vset.pattern.permute.xlu0 0
  %3867 = vperm.xlu0 %3866, %v3809
  %v3868 = vpop.permute.xlu0 %3867
  %3871 = vset.pattern.permute.xlu0 0
  %3872 = vperm.xlu0 %3871, %v3810
  %v3873 = vpop.permute.xlu0 %3872
  %3876 = vset.pattern.permute.xlu0 0
  %3877 = vperm.xlu0 %3876, %v3811
  %v3878 = vpop.permute.xlu0 %3877
  %3881 = vset.pattern.permute.xlu0 0
  %3882 = vperm.xlu0 %3881, %v3812
  %v3883 = vpop.permute.xlu0 %3882
  %3886 = vset.pattern.permute.xlu0 0
  %3887 = vperm.xlu0 %3886, %v3813
  %v3888 = vpop.permute.xlu0 %3887
  %3891 = vset.pattern.permute.xlu0 0
  %3892 = vperm.xlu0 %3891, %v3814
  %v3893 = vpop.permute.xlu0 %3892
  %v3895 = vmul.f32 %v3818, %v315
  %v3896 = vmul.f32 %v3823, %v315
  %v3897 = vmul.f32 %v3828, %v315
  %v3898 = vmul.f32 %v3833, %v315
  %v3899 = vmul.f32 %v3838, %v315
  %v3900 = vmul.f32 %v3843, %v315
  %v3901 = vmul.f32 %v3848, %v315
  %v3902 = vmul.f32 %v3853, %v315
  %v3903 = vmul.f32 %v3858, %v318
  %v3904 = vmul.f32 %v3863, %v318
  %v3905 = vmul.f32 %v3868, %v318
  %v3906 = vmul.f32 %v3873, %v318
  %v3907 = vmul.f32 %v3878, %v318
  %v3908 = vmul.f32 %v3883, %v318
  %v3909 = vmul.f32 %v3888, %v318
  %v3910 = vmul.f32 %v3893, %v318
  %vm3911 = vcmask 786112
  %v3912 = vsel %vm3911, %v3895, 0.0
  %v3913 = vrot.slane %v3912, 4
  %v3914 = vadd.f32 %v3912, %v3913
  %v3915 = vrot.slane %v3914, 2
  %v3916 = vadd.f32 %v3914, %v3915
  %v3917 = vrot.slane %v3916, 1
  %v3918 = vadd.f32 %v3916, %v3917
  %v3919 = vsel %vm3911, %v3896, 0.0
  %v3920 = vrot.slane %v3919, 4
  %v3921 = vadd.f32 %v3919, %v3920
  %v3922 = vrot.slane %v3921, 2
  %v3923 = vadd.f32 %v3921, %v3922
  %v3924 = vrot.slane %v3923, 1
  %v3925 = vadd.f32 %v3923, %v3924
  %v3926 = vsel %vm3911, %v3897, 0.0
  %v3927 = vrot.slane %v3926, 4
  %v3928 = vadd.f32 %v3926, %v3927
  %v3929 = vrot.slane %v3928, 2
  %v3930 = vadd.f32 %v3928, %v3929
  %v3931 = vrot.slane %v3930, 1
  %v3932 = vadd.f32 %v3930, %v3931
  %v3933 = vsel %vm3911, %v3898, 0.0
  %v3934 = vrot.slane %v3933, 4
  %v3935 = vadd.f32 %v3933, %v3934
  %v3936 = vrot.slane %v3935, 2
  %v3937 = vadd.f32 %v3935, %v3936
  %v3938 = vrot.slane %v3937, 1
  %v3939 = vadd.f32 %v3937, %v3938
  %v3940 = vsel %vm3911, %v3899, 0.0
  %v3941 = vrot.slane %v3940, 4
  %v3942 = vadd.f32 %v3940, %v3941
  %v3943 = vrot.slane %v3942, 2
  %v3944 = vadd.f32 %v3942, %v3943
  %v3945 = vrot.slane %v3944, 1
  %v3946 = vadd.f32 %v3944, %v3945
  %v3947 = vsel %vm3911, %v3900, 0.0
  %v3948 = vrot.slane %v3947, 4
  %v3949 = vadd.f32 %v3947, %v3948
  %v3950 = vrot.slane %v3949, 2
  %v3951 = vadd.f32 %v3949, %v3950
  %v3952 = vrot.slane %v3951, 1
  %v3953 = vadd.f32 %v3951, %v3952
  %v3954 = vsel %vm3911, %v3901, 0.0
  %v3955 = vrot.slane %v3954, 4
  %v3956 = vadd.f32 %v3954, %v3955
  %v3957 = vrot.slane %v3956, 2
  %v3958 = vadd.f32 %v3956, %v3957
  %v3959 = vrot.slane %v3958, 1
  %v3960 = vadd.f32 %v3958, %v3959
  %v3961 = vsel %vm3911, %v3902, 0.0
  %v3962 = vrot.slane %v3961, 4
  %v3963 = vadd.f32 %v3961, %v3962
  %v3964 = vrot.slane %v3963, 2
  %v3965 = vadd.f32 %v3963, %v3964
  %v3966 = vrot.slane %v3965, 1
  %v3967 = vadd.f32 %v3965, %v3966
  %v3968 = vsel %vm3911, %v3903, 0.0
  %v3969 = vrot.slane %v3968, 4
  %v3970 = vadd.f32 %v3968, %v3969
  %v3971 = vrot.slane %v3970, 2
  %v3972 = vadd.f32 %v3970, %v3971
  %v3973 = vrot.slane %v3972, 1
  %v3974 = vadd.f32 %v3972, %v3973
  %v3975 = vsel %vm3911, %v3904, 0.0
  %v3976 = vrot.slane %v3975, 4
  %v3977 = vadd.f32 %v3975, %v3976
  %v3978 = vrot.slane %v3977, 2
  %v3979 = vadd.f32 %v3977, %v3978
  %v3980 = vrot.slane %v3979, 1
  %v3981 = vadd.f32 %v3979, %v3980
  %v3982 = vsel %vm3911, %v3905, 0.0
  %v3983 = vrot.slane %v3982, 4
  %v3984 = vadd.f32 %v3982, %v3983
  %v3985 = vrot.slane %v3984, 2
  %v3986 = vadd.f32 %v3984, %v3985
  %v3987 = vrot.slane %v3986, 1
  %v3988 = vadd.f32 %v3986, %v3987
  %v3989 = vsel %vm3911, %v3906, 0.0
  %v3990 = vrot.slane %v3989, 4
  %v3991 = vadd.f32 %v3989, %v3990
  %v3992 = vrot.slane %v3991, 2
  %v3993 = vadd.f32 %v3991, %v3992
  %v3994 = vrot.slane %v3993, 1
  %v3995 = vadd.f32 %v3993, %v3994
  %v3996 = vsel %vm3911, %v3907, 0.0
  %v3997 = vrot.slane %v3996, 4
  %v3998 = vadd.f32 %v3996, %v3997
  %v3999 = vrot.slane %v3998, 2
  %v4000 = vadd.f32 %v3998, %v3999
  %v4001 = vrot.slane %v4000, 1
  %v4002 = vadd.f32 %v4000, %v4001
  %v4003 = vsel %vm3911, %v3908, 0.0
  %v4004 = vrot.slane %v4003, 4
  %v4005 = vadd.f32 %v4003, %v4004
  %v4006 = vrot.slane %v4005, 2
  %v4007 = vadd.f32 %v4005, %v4006
  %v4008 = vrot.slane %v4007, 1
  %v4009 = vadd.f32 %v4007, %v4008
  %v4010 = vsel %vm3911, %v3909, 0.0
  %v4011 = vrot.slane %v4010, 4
  %v4012 = vadd.f32 %v4010, %v4011
  %v4013 = vrot.slane %v4012, 2
  %v4014 = vadd.f32 %v4012, %v4013
  %v4015 = vrot.slane %v4014, 1
  %v4016 = vadd.f32 %v4014, %v4015
  %v4017 = vsel %vm3911, %v3910, 0.0
  %v4018 = vrot.slane %v4017, 4
  %v4019 = vadd.f32 %v4017, %v4018
  %v4020 = vrot.slane %v4019, 2
  %v4021 = vadd.f32 %v4019, %v4020
  %v4022 = vrot.slane %v4021, 1
  %v4023 = vadd.f32 %v4021, %v4022
  %v4040 = vsel %vm721, %v3925, %v3918
  %v4041 = vsel %vm723, %v3932, %v4040
  %v4042 = vsel %vm725, %v3939, %v4041
  %v4043 = vsel %vm727, %v3946, %v4042
  %v4044 = vsel %vm729, %v3953, %v4043
  %v4045 = vsel %vm731, %v3960, %v4044
  %v4046 = vsel %vm733, %v3967, %v4045
  %v4047 = vsel %vm721, %v3981, %v3974
  %v4048 = vsel %vm723, %v3988, %v4047
  %v4049 = vsel %vm725, %v3995, %v4048
  %v4050 = vsel %vm727, %v4002, %v4049
  %v4051 = vsel %vm729, %v4009, %v4050
  %v4052 = vsel %vm731, %v4016, %v4051
  %v4053 = vsel %vm733, %v4023, %v4052
  %4054 = vrot.lane.b32.xlu0 %v4046, 64
  %v4055 = vpop.permute.xlu0 %4054
  %4056 = vrot.lane.b32.xlu0 %v4053, 64
  %v4057 = vpop.permute.xlu0 %4056
  %vm4060 = vcmask 261312
  %4061 = vst.msk [vmem:[#allocation2] sm:$0xff] %vm4060, %v4055
  %4062 = vst.msk [vmem:[#allocation2 + $0x8] sm:$0xff] %vm4060, %v4057
  %v4063 = vld [vmem:[#allocation2] sm:$0xff]
  %v4064 = vld [vmem:[#allocation2 + $0x8] sm:$0xff]
  %v4065 = vpack.c.bf16 %v4064, %v4063
  %v4066 = vld [vmem:[%s6] sm:$0xf]
  %v4067 = vld [vmem:[%s6 + $0x4] sm:$0xf]
  %v4068 = vld [vmem:[%s6 + $0x8] sm:$0xf]
  %v4069 = vld [vmem:[%s6 + $0xc] sm:$0xf]
  %v4070 = vld [vmem:[%s7] sm:$0x1]
  %v4072 = vlaneseq
  %v4073 = vshrl.u32 %v4072, 7
  %v4074 = vsub.s32 0, %v4073
  %v4075 = vrot.slane %v4070, %v4074
  %v4081 = vunpack.c.l.b16 %v4066
  %v4082 = vunpack.c.l.b16 %v4067
  %v4083 = vunpack.c.l.b16 %v4068
  %v4084 = vunpack.c.l.b16 %v4069
  %v4085 = vpack.c.b16 %v4082, %v4081
  %v4086 = vpack.c.b16 %v4084, %v4083
  %v4090 = vsel %vm216, %v4065, 0
  %4092 = vmatprep.subr.bf16.mxu0 0
  %4093 = vmatpush1.bf16.msra.mxu0 %v4085
  %4094 = vmatprep.subr.bf16.mxu0 0
  %4095 = vmatpush1.bf16.msra.mxu0 %v4086
  %4096 = vmatprep.subr.bf16.mxu0 0
  %4097 = vmatpush1.bf16.msra.mxu0 0
  %4098 = vmatprep.subr.bf16.mxu0 0
  %4099 = vmatpush1.bf16.msra.mxu0 0
  %4100 = vmatprep.subr.bf16.mxu0 0
  %4101 = vmatpush1.bf16.msra.mxu0 0
  %4102 = vmatprep.subr.bf16.mxu0 0
  %4103 = vmatpush1.bf16.msra.mxu0 0
  %4104 = vmatprep.subr.bf16.mxu0 0
  %4105 = vmatpush1.bf16.msra.mxu0 0
  %4106 = vmatprep.subr.bf16.mxu0 0
  %4107 = vmatpush1.bf16.msra.mxu0 0
  %4108 = vmatprep.subr.bf16.mxu0 0
  %4109 = vmatpush1.bf16.msra.mxu0 0
  %4110 = vmatprep.subr.bf16.mxu0 0
  %4111 = vmatpush1.bf16.msra.mxu0 0
  %4112 = vmatprep.subr.bf16.mxu0 0
  %4113 = vmatpush1.bf16.msra.mxu0 0
  %4114 = vmatprep.subr.bf16.mxu0 0
  %4115 = vmatpush1.bf16.msra.mxu0 0
  %4116 = vmatprep.subr.bf16.mxu0 0
  %4117 = vmatpush1.bf16.msra.mxu0 0
  %4118 = vmatprep.subr.bf16.mxu0 0
  %4119 = vmatpush1.bf16.msra.mxu0 0
  %4120 = vmatprep.subr.bf16.mxu0 0
  %4121 = vmatpush1.bf16.msra.mxu0 0
  %4122 = vmatprep.subr.bf16.mxu0 0
  %4123 = vmatpush1.bf16.msra.mxu0 0
  %4124 = vmatprep.mubr.bf16.mxu0 0
  %4125 = vmatmul.mubr.bf16.gmra.mrb[0].mxu0 %v4090
  %v4126 = vpop.f32.mrb[0].mxu0
  %v4127 = vadd.f32 %v4075, %v4126
  %v4128 = vpop.f32.mrb[0].mxu0
  %v4129 = vpop.f32.mrb[0].mxu0
  %v4130 = vadd.f32 %v4075, %v4129
  %v4131 = vpop.f32.mrb[0].mxu0
  %4132 = vdwg.mxu0
  %v4133 = vadd.f32 %v208, %v4127
  %v4134 = vadd.f32 %v209, %v4130
  %v4135 = vld [vmem:[%s8] sm:$0x1]
  %v4136 = vld [vmem:[%s9] sm:$0x1]
  %v4137 = vsel %vm216, %v4133, 0.0
  %4138 = vadd.xlane.f32.xlu0 %v4137
  %v4139 = vpop.xlane.xlu0 %4138
  %v4140 = vsel %vm216, %v4134, 0.0
  %4141 = vadd.xlane.f32.xlu0 %v4140
  %v4142 = vpop.xlane.xlu0 %4141
  %v4143 = vmul.f32 %v4139, %v223
  %v4144 = vmul.f32 %v4142, %v223
  %v4145 = vsub.f32 %v4133, %v4143
  %v4146 = vsub.f32 %v4134, %v4144
  %v4147 = vmul.f32 %v4145, %v4145
  %v4148 = vmul.f32 %v4146, %v4146
  %v4149 = vsel %vm216, %v4147, 0.0
  %4150 = vadd.xlane.f32.xlu0 %v4149
  %v4151 = vpop.xlane.xlu0 %4150
  %v4152 = vsel %vm216, %v4148, 0.0
  %4153 = vadd.xlane.f32.xlu0 %v4152
  %v4154 = vpop.xlane.xlu0 %4153
  %v4155 = vmul.f32 %v4151, %v223
  %v4156 = vmul.f32 %v4154, %v223
  %v4157 = vadd.f32 %v4155, 1e-05
  %v4158 = vadd.f32 %v4156, 1e-05
  %v4159 = vrsqrt.pop %v4157
  %v4160 = vrsqrt.pop %v4158
  %v4161 = vmul.f32 %v4145, %v4159
  %v4162 = vmul.f32 %v4146, %v4160
  %v4164 = vlaneseq
  %v4165 = vshrl.u32 %v4164, 7
  %v4166 = vsub.s32 0, %v4165
  %v4167 = vrot.slane %v4135, %v4166
  %v4169 = vmul.f32 %v4161, %v4167
  %v4170 = vmul.f32 %v4162, %v4167
  %v4172 = vlaneseq
  %v4173 = vshrl.u32 %v4172, 7
  %v4174 = vsub.s32 0, %v4173
  %v4175 = vrot.slane %v4136, %v4174
  %v4177 = vadd.f32 %v4169, %v4175
  %v4178 = vadd.f32 %v4170, %v4175
  %v4179 = vpack.c.bf16 %v4178, %v4177
  %v4180 = vld [vmem:[%s10] sm:$0xf]
  %v4181 = vld [vmem:[%s10 + $0x4] sm:$0xf]
  %v4182 = vld [vmem:[%s10 + $0x8] sm:$0xf]
  %v4183 = vld [vmem:[%s10 + $0xc] sm:$0xf]
  %v4184 = vld [vmem:[%s11] sm:$0x1]
  %v4186 = vlaneseq
  %v4187 = vshrl.u32 %v4186, 7
  %v4188 = vsub.s32 0, %v4187
  %v4189 = vrot.slane %v4184, %v4188
  %v4195 = vunpack.c.l.b16 %v4180
  %v4196 = vunpack.c.l.b16 %v4181
  %v4197 = vunpack.c.l.b16 %v4182
  %v4198 = vunpack.c.l.b16 %v4183
  %v4199 = vpack.c.b16 %v4196, %v4195
  %v4200 = vpack.c.b16 %v4198, %v4197
  %v4204 = vsel %vm216, %v4179, 0
  %4206 = vmatprep.subr.bf16.mxu0 0
  %4207 = vmatpush1.bf16.msra.mxu0 %v4199
  %4208 = vmatprep.subr.bf16.mxu0 0
  %4209 = vmatpush1.bf16.msra.mxu0 %v4200
  %4210 = vmatprep.subr.bf16.mxu0 0
  %4211 = vmatpush1.bf16.msra.mxu0 0
  %4212 = vmatprep.subr.bf16.mxu0 0
  %4213 = vmatpush1.bf16.msra.mxu0 0
  %4214 = vmatprep.subr.bf16.mxu0 0
  %4215 = vmatpush1.bf16.msra.mxu0 0
  %4216 = vmatprep.subr.bf16.mxu0 0
  %4217 = vmatpush1.bf16.msra.mxu0 0
  %4218 = vmatprep.subr.bf16.mxu0 0
  %4219 = vmatpush1.bf16.msra.mxu0 0
  %4220 = vmatprep.subr.bf16.mxu0 0
  %4221 = vmatpush1.bf16.msra.mxu0 0
  %4222 = vmatprep.subr.bf16.mxu0 0
  %4223 = vmatpush1.bf16.msra.mxu0 0
  %4224 = vmatprep.subr.bf16.mxu0 0
  %4225 = vmatpush1.bf16.msra.mxu0 0
  %4226 = vmatprep.subr.bf16.mxu0 0
  %4227 = vmatpush1.bf16.msra.mxu0 0
  %4228 = vmatprep.subr.bf16.mxu0 0
  %4229 = vmatpush1.bf16.msra.mxu0 0
  %4230 = vmatprep.subr.bf16.mxu0 0
  %4231 = vmatpush1.bf16.msra.mxu0 0
  %4232 = vmatprep.subr.bf16.mxu0 0
  %4233 = vmatpush1.bf16.msra.mxu0 0
  %4234 = vmatprep.subr.bf16.mxu0 0
  %4235 = vmatpush1.bf16.msra.mxu0 0
  %4236 = vmatprep.subr.bf16.mxu0 0
  %4237 = vmatpush1.bf16.msra.mxu0 0
  %4238 = vmatprep.mubr.bf16.mxu0 0
  %4239 = vmatmul.mubr.bf16.gmra.mrb[0].mxu0 %v4204
  %v4240 = vpop.f32.mrb[0].mxu0
  %v4241 = vadd.f32 %v4189, %v4240
  %v4242 = vpop.f32.mrb[0].mxu0
  %v4243 = vpop.f32.mrb[0].mxu0
  %v4244 = vadd.f32 %v4189, %v4243
  %v4245 = vpop.f32.mrb[0].mxu0
  %4246 = vdwg.mxu0
  %v4247 = vmul.f32 %v4241, 0.5
  %v4248 = vmul.f32 %v4244, 0.5
  %v4249 = vmul.f32 %v4241, 0.044715
  %v4250 = vmul.f32 %v4244, 0.044715
  %v4251 = vmul.f32 %v4249, %v4241
  %v4252 = vmul.f32 %v4250, %v4244
  %v4253 = vmul.f32 %v4251, %v4241
  %v4254 = vmul.f32 %v4252, %v4244
  %v4255 = vadd.f32 %v4241, %v4253
  %v4256 = vadd.f32 %v4244, %v4254
  %v4257 = vmul.f32 %v4255, 0.7978846
  %v4258 = vmul.f32 %v4256, 0.7978846
  %v4259 = vtanh.pop %v4257
  %v4260 = vtanh.pop %v4258
  %v4261 = vadd.f32 %v4259, 1.0
  %v4262 = vadd.f32 %v4260, 1.0
  %v4263 = vmul.f32 %v4247, %v4261
  %v4264 = vmul.f32 %v4248, %v4262
  %v4265 = vpack.c.bf16 %v4264, %v4263
  %v4266 = vld [vmem:[%s12] sm:$0xf]
  %v4267 = vld [vmem:[%s12 + $0x4] sm:$0xf]
  %v4268 = vld [vmem:[%s12 + $0x8] sm:$0xf]
  %v4269 = vld [vmem:[%s12 + $0xc] sm:$0xf]
  %v4270 = vld [vmem:[%s12 + $0x10] sm:$0xf]
  %v4271 = vld [vmem:[%s12 + $0x14] sm:$0xf]
  %v4272 = vld [vmem:[%s12 + $0x18] sm:$0xf]
  %v4273 = vld [vmem:[%s12 + $0x1c] sm:$0xf]
  %v4274 = vld [vmem:[%s12 + $0x20] sm:$0xf]
  %v4275 = vld [vmem:[%s12 + $0x24] sm:$0xf]
  %v4276 = vld [vmem:[%s12 + $0x28] sm:$0xf]
  %v4277 = vld [vmem:[%s12 + $0x2c] sm:$0xf]
  %v4278 = vld [vmem:[%s12 + $0x30] sm:$0xf]
  %v4279 = vld [vmem:[%s12 + $0x34] sm:$0xf]
  %v4280 = vld [vmem:[%s12 + $0x38] sm:$0xf]
  %v4281 = vld [vmem:[%s12 + $0x3c] sm:$0xf]
  %v4282 = vld [vmem:[%s13] sm:$0x1]
  %v4284 = vlaneseq
  %v4285 = vshrl.u32 %v4284, 7
  %v4286 = vsub.s32 0, %v4285
  %v4287 = vrot.slane %v4282, %v4286
  %v4305 = vunpack.c.l.b16 %v4266
  %v4306 = vunpack.c.l.b16 %v4267
  %v4307 = vunpack.c.l.b16 %v4268
  %v4308 = vunpack.c.l.b16 %v4269
  %v4309 = vunpack.c.l.b16 %v4270
  %v4310 = vunpack.c.l.b16 %v4271
  %v4311 = vunpack.c.l.b16 %v4272
  %v4312 = vunpack.c.l.b16 %v4273
  %v4313 = vunpack.c.l.b16 %v4274
  %v4314 = vunpack.c.l.b16 %v4275
  %v4315 = vunpack.c.l.b16 %v4276
  %v4316 = vunpack.c.l.b16 %v4277
  %v4317 = vunpack.c.l.b16 %v4278
  %v4318 = vunpack.c.l.b16 %v4279
  %v4319 = vunpack.c.l.b16 %v4280
  %v4320 = vunpack.c.l.b16 %v4281
  %v4321 = vpack.c.b16 %v4306, %v4305
  %v4322 = vpack.c.b16 %v4308, %v4307
  %v4323 = vpack.c.b16 %v4310, %v4309
  %v4324 = vpack.c.b16 %v4312, %v4311
  %v4325 = vpack.c.b16 %v4314, %v4313
  %v4326 = vpack.c.b16 %v4316, %v4315
  %v4327 = vpack.c.b16 %v4318, %v4317
  %v4328 = vpack.c.b16 %v4320, %v4319
  %4337 = vmatprep.subr.bf16.mxu0 0
  %4338 = vmatpush1.bf16.msra.mxu0 %v4321
  %4339 = vmatprep.subr.bf16.mxu0 0
  %4340 = vmatpush1.bf16.msra.mxu0 %v4322
  %4341 = vmatprep.subr.bf16.mxu0 0
  %4342 = vmatpush1.bf16.msra.mxu0 %v4323
  %4343 = vmatprep.subr.bf16.mxu0 0
  %4344 = vmatpush1.bf16.msra.mxu0 %v4324
  %4345 = vmatprep.subr.bf16.mxu0 0
  %4346 = vmatpush1.bf16.msra.mxu0 %v4325
  %4347 = vmatprep.subr.bf16.mxu0 0
  %4348 = vmatpush1.bf16.msra.mxu0 %v4326
  %4349 = vmatprep.subr.bf16.mxu0 0
  %4350 = vmatpush1.bf16.msra.mxu0 %v4327
  %4351 = vmatprep.subr.bf16.mxu0 0
  %4352 = vmatpush1.bf16.msra.mxu0 %v4328
  %4353 = vmatprep.subr.bf16.mxu0 0
  %4354 = vmatpush1.bf16.msra.mxu0 0
  %4355 = vmatprep.subr.bf16.mxu0 0
  %4356 = vmatpush1.bf16.msra.mxu0 0
  %4357 = vmatprep.subr.bf16.mxu0 0
  %4358 = vmatpush1.bf16.msra.mxu0 0
  %4359 = vmatprep.subr.bf16.mxu0 0
  %4360 = vmatpush1.bf16.msra.mxu0 0
  %4361 = vmatprep.subr.bf16.mxu0 0
  %4362 = vmatpush1.bf16.msra.mxu0 0
  %4363 = vmatprep.subr.bf16.mxu0 0
  %4364 = vmatpush1.bf16.msra.mxu0 0
  %4365 = vmatprep.subr.bf16.mxu0 0
  %4366 = vmatpush1.bf16.msra.mxu0 0
  %4367 = vmatprep.subr.bf16.mxu0 0
  %4368 = vmatpush1.bf16.msra.mxu0 0
  %4369 = vmatprep.mubr.bf16.mxu0 0
  %4370 = vmatmul.mubr.bf16.gmra.mrb[0].mxu0 %v4265
  %v4371 = vpop.f32.mrb[0].mxu0
  %v4372 = vadd.f32 %v4287, %v4371
  %v4373 = vpop.f32.mrb[0].mxu0
  %v4374 = vpop.f32.mrb[0].mxu0
  %v4375 = vadd.f32 %v4287, %v4374
  %v4376 = vpop.f32.mrb[0].mxu0
  %4377 = vdwg.mxu0
  %v4378 = vadd.f32 %v4177, %v4372
  %v4379 = vadd.f32 %v4178, %v4375
  %s4380 = scalar_lea.vmem %s3, 1
  %v4381 = vld [vmem:[%s4380] sm:$0x1]
  %s4382 = scalar_lea.vmem %s4, 1
  %v4383 = vld [vmem:[%s4382] sm:$0x1]
  %v4384 = vsel %vm216, %v4378, 0.0
  %4385 = vadd.xlane.f32.xlu0 %v4384
  %v4386 = vpop.xlane.xlu0 %4385
  %v4387 = vsel %vm216, %v4379, 0.0
  %4388 = vadd.xlane.f32.xlu0 %v4387
  %v4389 = vpop.xlane.xlu0 %4388
  %v4390 = vmul.f32 %v4386, %v223
  %v4391 = vmul.f32 %v4389, %v223
  %v4392 = vsub.f32 %v4378, %v4390
  %v4393 = vsub.f32 %v4379, %v4391
  %v4394 = vmul.f32 %v4392, %v4392
  %v4395 = vmul.f32 %v4393, %v4393
  %v4396 = vsel %vm216, %v4394, 0.0
  %4397 = vadd.xlane.f32.xlu0 %v4396
  %v4398 = vpop.xlane.xlu0 %4397
  %v4399 = vsel %vm216, %v4395, 0.0
  %4400 = vadd.xlane.f32.xlu0 %v4399
  %v4401 = vpop.xlane.xlu0 %4400
  %v4402 = vmul.f32 %v4398, %v223
  %v4403 = vmul.f32 %v4401, %v223
  %v4404 = vadd.f32 %v4402, 1e-05
  %v4405 = vadd.f32 %v4403, 1e-05
  %v4406 = vrsqrt.pop %v4404
  %v4407 = vrsqrt.pop %v4405
  %v4408 = vmul.f32 %v4392, %v4406
  %v4409 = vmul.f32 %v4393, %v4407
  %v4411 = vlaneseq
  %v4412 = vshrl.u32 %v4411, 7
  %v4413 = vsub.s32 0, %v4412
  %v4414 = vrot.slane %v4381, %v4413
  %v4416 = vmul.f32 %v4408, %v4414
  %v4417 = vmul.f32 %v4409, %v4414
  %v4419 = vlaneseq
  %v4420 = vshrl.u32 %v4419, 7
  %v4421 = vsub.s32 0, %v4420
  %v4422 = vrot.slane %v4383, %v4421
  %v4424 = vadd.f32 %v4416, %v4422
  %v4425 = vadd.f32 %v4417, %v4422
  %v4426 = vpack.c.bf16 %v4425, %v4424
  %s4427 = scalar_lea.vmem %s5, 16
  %v4428 = vld [vmem:[%s4427] sm:$0xf]
  %v4429 = vld [vmem:[%s4427 + $0x4] sm:$0xf]
  %v4430 = vld [vmem:[%s4427 + $0x8] sm:$0xf]
  %v4431 = vld [vmem:[%s4427 + $0xc] sm:$0xf]
  %v4436 = vunpack.c.l.b16 %v4428
  %v4437 = vunpack.c.l.b16 %v4429
  %v4438 = vunpack.c.l.b16 %v4430
  %v4439 = vunpack.c.l.b16 %v4431
  %v4440 = vpack.c.b16 %v4437, %v4436
  %v4441 = vpack.c.b16 %v4439, %v4438
  %v4445 = vsel %vm216, %v4426, 0
  %4447 = vmatprep.subr.bf16.mxu0 0
  %4448 = vmatpush1.bf16.msra.mxu0 %v4440
  %4449 = vmatprep.subr.bf16.mxu0 0
  %4450 = vmatpush1.bf16.msra.mxu0 %v4441
  %4451 = vmatprep.subr.bf16.mxu0 0
  %4452 = vmatpush1.bf16.msra.mxu0 0
  %4453 = vmatprep.subr.bf16.mxu0 0
  %4454 = vmatpush1.bf16.msra.mxu0 0
  %4455 = vmatprep.subr.bf16.mxu0 0
  %4456 = vmatpush1.bf16.msra.mxu0 0
  %4457 = vmatprep.subr.bf16.mxu0 0
  %4458 = vmatpush1.bf16.msra.mxu0 0
  %4459 = vmatprep.subr.bf16.mxu0 0
  %4460 = vmatpush1.bf16.msra.mxu0 0
  %4461 = vmatprep.subr.bf16.mxu0 0
  %4462 = vmatpush1.bf16.msra.mxu0 0
  %4463 = vmatprep.subr.bf16.mxu0 0
  %4464 = vmatpush1.bf16.msra.mxu0 0
  %4465 = vmatprep.subr.bf16.mxu0 0
  %4466 = vmatpush1.bf16.msra.mxu0 0
  %4467 = vmatprep.subr.bf16.mxu0 0
  %4468 = vmatpush1.bf16.msra.mxu0 0
  %4469 = vmatprep.subr.bf16.mxu0 0
  %4470 = vmatpush1.bf16.msra.mxu0 0
  %4471 = vmatprep.subr.bf16.mxu0 0
  %4472 = vmatpush1.bf16.msra.mxu0 0
  %4473 = vmatprep.subr.bf16.mxu0 0
  %4474 = vmatpush1.bf16.msra.mxu0 0
  %4475 = vmatprep.subr.bf16.mxu0 0
  %4476 = vmatpush1.bf16.msra.mxu0 0
  %4477 = vmatprep.subr.bf16.mxu0 0
  %4478 = vmatpush1.bf16.msra.mxu0 0
  %4479 = vmatprep.mubr.bf16.mxu0 0
  %4480 = vmatmul.mubr.bf16.gmra.mrb[0].mxu0 %v4445
  %v4481 = vpop.f32.mrb[0].mxu0
  %v4482 = vadd.f32 0.0, %v4481
  %v4483 = vpop.f32.mrb[0].mxu0
  %v4484 = vpop.f32.mrb[0].mxu0
  %v4485 = vadd.f32 0.0, %v4484
  %v4486 = vpop.f32.mrb[0].mxu0
  %4487 = vdwg.mxu0
  %v4490 = vcombine.high %v4482, %v4482
  %v4492 = vunpack.c.l.s4 1966171168
  %v4493 = vunpack.c.0.s8 %v4492
  %v4494 = vlaneseq
  %v4495 = vshrl.u32 %v4494, 7
  %v4496 = vsub.s32 %v4493, %v4495
  %v4497 = vrot.slane %v4482, %v4496
  %v4499 = vunpack.c.l.s4 1966171168
  %v4500 = vunpack.c.0.s8 %v4499
  %v4501 = vlaneseq
  %v4502 = vshrl.u32 %v4501, 7
  %v4503 = vsub.s32 %v4500, %v4502
  %v4504 = vrot.slane %v4490, %v4503
  %v4505 = vcombine.high %v4497, %v4497
  %v4506 = vcombine.high %v4504, %v4504
  %v4508 = vunpack.c.l.s4 1966171168
  %v4509 = vunpack.c.0.s8 %v4508
  %v4510 = vlaneseq
  %v4511 = vshrl.u32 %v4510, 7
  %v4512 = vsub.s32 %v4509, %v4511
  %v4513 = vrot.slane %v4497, %v4512
  %v4515 = vunpack.c.l.s4 1966171168
  %v4516 = vunpack.c.0.s8 %v4515
  %v4517 = vlaneseq
  %v4518 = vshrl.u32 %v4517, 7
  %v4519 = vsub.s32 %v4516, %v4518
  %v4520 = vrot.slane %v4504, %v4519
  %v4522 = vunpack.c.l.s4 1966171168
  %v4523 = vunpack.c.0.s8 %v4522
  %v4524 = vlaneseq
  %v4525 = vshrl.u32 %v4524, 7
  %v4526 = vsub.s32 %v4523, %v4525
  %v4527 = vrot.slane %v4505, %v4526
  %v4529 = vunpack.c.l.s4 1966171168
  %v4530 = vunpack.c.0.s8 %v4529
  %v4531 = vlaneseq
  %v4532 = vshrl.u32 %v4531, 7
  %v4533 = vsub.s32 %v4530, %v4532
  %v4534 = vrot.slane %v4506, %v4533
  %v4535 = vcombine.high %v4513, %v4513
  %v4536 = vcombine.high %v4520, %v4520
  %v4537 = vcombine.high %v4527, %v4527
  %v4538 = vcombine.high %v4534, %v4534
  %v4539 = vcombine.high %v4485, %v4485
  %v4541 = vunpack.c.l.s4 1966171168
  %v4542 = vunpack.c.0.s8 %v4541
  %v4543 = vlaneseq
  %v4544 = vshrl.u32 %v4543, 7
  %v4545 = vsub.s32 %v4542, %v4544
  %v4546 = vrot.slane %v4485, %v4545
  %v4548 = vunpack.c.l.s4 1966171168
  %v4549 = vunpack.c.0.s8 %v4548
  %v4550 = vlaneseq
  %v4551 = vshrl.u32 %v4550, 7
  %v4552 = vsub.s32 %v4549, %v4551
  %v4553 = vrot.slane %v4539, %v4552
  %v4554 = vcombine.high %v4546, %v4546
  %v4555 = vcombine.high %v4553, %v4553
  %v4557 = vunpack.c.l.s4 1966171168
  %v4558 = vunpack.c.0.s8 %v4557
  %v4559 = vlaneseq
  %v4560 = vshrl.u32 %v4559, 7
  %v4561 = vsub.s32 %v4558, %v4560
  %v4562 = vrot.slane %v4546, %v4561
  %v4564 = vunpack.c.l.s4 1966171168
  %v4565 = vunpack.c.0.s8 %v4564
  %v4566 = vlaneseq
  %v4567 = vshrl.u32 %v4566, 7
  %v4568 = vsub.s32 %v4565, %v4567
  %v4569 = vrot.slane %v4553, %v4568
  %v4571 = vunpack.c.l.s4 1966171168
  %v4572 = vunpack.c.0.s8 %v4571
  %v4573 = vlaneseq
  %v4574 = vshrl.u32 %v4573, 7
  %v4575 = vsub.s32 %v4572, %v4574
  %v4576 = vrot.slane %v4554, %v4575
  %v4578 = vunpack.c.l.s4 1966171168
  %v4579 = vunpack.c.0.s8 %v4578
  %v4580 = vlaneseq
  %v4581 = vshrl.u32 %v4580, 7
  %v4582 = vsub.s32 %v4579, %v4581
  %v4583 = vrot.slane %v4555, %v4582
  %v4584 = vcombine.high %v4562, %v4562
  %v4585 = vcombine.high %v4569, %v4569
  %v4586 = vcombine.high %v4576, %v4576
  %v4587 = vcombine.high %v4583, %v4583
  %v4588 = vlaneseq
  %v4589 = vshrl.u32 %v4588, 7
  %v4590 = vsub.s32 0, %v4589
  %v4591 = vrot.slane %v4513, %v4590
  %v4592 = vlaneseq
  %v4593 = vshrl.u32 %v4592, 7
  %v4594 = vsub.s32 0, %v4593
  %v4595 = vrot.slane %v4527, %v4594
  %v4596 = vlaneseq
  %v4597 = vshrl.u32 %v4596, 7
  %v4598 = vsub.s32 0, %v4597
  %v4599 = vrot.slane %v4535, %v4598
  %v4600 = vlaneseq
  %v4601 = vshrl.u32 %v4600, 7
  %v4602 = vsub.s32 0, %v4601
  %v4603 = vrot.slane %v4537, %v4602
  %v4604 = vlaneseq
  %v4605 = vshrl.u32 %v4604, 7
  %v4606 = vsub.s32 0, %v4605
  %v4607 = vrot.slane %v4520, %v4606
  %v4608 = vlaneseq
  %v4609 = vshrl.u32 %v4608, 7
  %v4610 = vsub.s32 0, %v4609
  %v4611 = vrot.slane %v4534, %v4610
  %v4612 = vlaneseq
  %v4613 = vshrl.u32 %v4612, 7
  %v4614 = vsub.s32 0, %v4613
  %v4615 = vrot.slane %v4536, %v4614
  %v4616 = vlaneseq
  %v4617 = vshrl.u32 %v4616, 7
  %v4618 = vsub.s32 0, %v4617
  %v4619 = vrot.slane %v4538, %v4618
  %v4620 = vlaneseq
  %v4621 = vshrl.u32 %v4620, 7
  %v4622 = vsub.s32 0, %v4621
  %v4623 = vrot.slane %v4562, %v4622
  %v4624 = vlaneseq
  %v4625 = vshrl.u32 %v4624, 7
  %v4626 = vsub.s32 0, %v4625
  %v4627 = vrot.slane %v4576, %v4626
  %v4628 = vlaneseq
  %v4629 = vshrl.u32 %v4628, 7
  %v4630 = vsub.s32 0, %v4629
  %v4631 = vrot.slane %v4584, %v4630
  %v4632 = vlaneseq
  %v4633 = vshrl.u32 %v4632, 7
  %v4634 = vsub.s32 0, %v4633
  %v4635 = vrot.slane %v4586, %v4634
  %v4636 = vlaneseq
  %v4637 = vshrl.u32 %v4636, 7
  %v4638 = vsub.s32 0, %v4637
  %v4639 = vrot.slane %v4569, %v4638
  %v4640 = vlaneseq
  %v4641 = vshrl.u32 %v4640, 7
  %v4642 = vsub.s32 0, %v4641
  %v4643 = vrot.slane %v4583, %v4642
  %v4644 = vlaneseq
  %v4645 = vshrl.u32 %v4644, 7
  %v4646 = vsub.s32 0, %v4645
  %v4647 = vrot.slane %v4585, %v4646
  %v4648 = vlaneseq
  %v4649 = vshrl.u32 %v4648, 7
  %v4650 = vsub.s32 0, %v4649
  %v4651 = vrot.slane %v4587, %v4650
  %4668 = vrot.lane.b32.xlu0 %v4482, 96
  %v4669 = vpop.permute.xlu0 %4668
  %4670 = vrot.lane.b32.xlu0 %v4485, 96
  %v4671 = vpop.permute.xlu0 %4670
  %v4674 = vmul.f32 %v4591, %v4669
  %v4675 = vmul.f32 %v4595, %v4669
  %v4676 = vmul.f32 %v4599, %v4669
  %v4677 = vmul.f32 %v4603, %v4669
  %v4678 = vmul.f32 %v4607, %v4669
  %v4679 = vmul.f32 %v4611, %v4669
  %v4680 = vmul.f32 %v4615, %v4669
  %v4681 = vmul.f32 %v4619, %v4669
  %v4682 = vmul.f32 %v4623, %v4671
  %v4683 = vmul.f32 %v4627, %v4671
  %v4684 = vmul.f32 %v4631, %v4671
  %v4685 = vmul.f32 %v4635, %v4671
  %v4686 = vmul.f32 %v4639, %v4671
  %v4687 = vmul.f32 %v4643, %v4671
  %v4688 = vmul.f32 %v4647, %v4671
  %v4689 = vmul.f32 %v4651, %v4671
  %v4690 = vsel %vm523, %v4674, 0.0
  %4691 = vadd.xlane.f32.xlu0 %v4690
  %v4692 = vpop.xlane.xlu0 %4691
  %v4693 = vsel %vm523, %v4675, 0.0
  %4694 = vadd.xlane.f32.xlu0 %v4693
  %v4695 = vpop.xlane.xlu0 %4694
  %v4696 = vsel %vm523, %v4676, 0.0
  %4697 = vadd.xlane.f32.xlu0 %v4696
  %v4698 = vpop.xlane.xlu0 %4697
  %v4699 = vsel %vm523, %v4677, 0.0
  %4700 = vadd.xlane.f32.xlu0 %v4699
  %v4701 = vpop.xlane.xlu0 %4700
  %v4702 = vsel %vm523, %v4678, 0.0
  %4703 = vadd.xlane.f32.xlu0 %v4702
  %v4704 = vpop.xlane.xlu0 %4703
  %v4705 = vsel %vm523, %v4679, 0.0
  %4706 = vadd.xlane.f32.xlu0 %v4705
  %v4707 = vpop.xlane.xlu0 %4706
  %v4708 = vsel %vm523, %v4680, 0.0
  %4709 = vadd.xlane.f32.xlu0 %v4708
  %v4710 = vpop.xlane.xlu0 %4709
  %v4711 = vsel %vm523, %v4681, 0.0
  %4712 = vadd.xlane.f32.xlu0 %v4711
  %v4713 = vpop.xlane.xlu0 %4712
  %v4714 = vsel %vm523, %v4682, 0.0
  %4715 = vadd.xlane.f32.xlu0 %v4714
  %v4716 = vpop.xlane.xlu0 %4715
  %v4717 = vsel %vm523, %v4683, 0.0
  %4718 = vadd.xlane.f32.xlu0 %v4717
  %v4719 = vpop.xlane.xlu0 %4718
  %v4720 = vsel %vm523, %v4684, 0.0
  %4721 = vadd.xlane.f32.xlu0 %v4720
  %v4722 = vpop.xlane.xlu0 %4721
  %v4723 = vsel %vm523, %v4685, 0.0
  %4724 = vadd.xlane.f32.xlu0 %v4723
  %v4725 = vpop.xlane.xlu0 %4724
  %v4726 = vsel %vm523, %v4686, 0.0
  %4727 = vadd.xlane.f32.xlu0 %v4726
  %v4728 = vpop.xlane.xlu0 %4727
  %v4729 = vsel %vm523, %v4687, 0.0
  %4730 = vadd.xlane.f32.xlu0 %v4729
  %v4731 = vpop.xlane.xlu0 %4730
  %v4732 = vsel %vm523, %v4688, 0.0
  %4733 = vadd.xlane.f32.xlu0 %v4732
  %v4734 = vpop.xlane.xlu0 %4733
  %v4735 = vsel %vm523, %v4689, 0.0
  %4736 = vadd.xlane.f32.xlu0 %v4735
  %v4737 = vpop.xlane.xlu0 %4736
  %v4738 = vadd.f32 %v4692, %v575
  %v4739 = vadd.f32 %v4695, %v575
  %v4740 = vadd.f32 %v4698, %v575
  %v4741 = vadd.f32 %v4701, %v575
  %v4742 = vadd.f32 %v4704, %v575
  %v4743 = vadd.f32 %v4707, %v575
  %v4744 = vadd.f32 %v4710, %v575
  %v4745 = vadd.f32 %v4713, %v575
  %v4746 = vadd.f32 %v4716, %v575
  %v4747 = vadd.f32 %v4719, %v575
  %v4748 = vadd.f32 %v4722, %v575
  %v4749 = vadd.f32 %v4725, %v575
  %v4750 = vadd.f32 %v4728, %v575
  %v4751 = vadd.f32 %v4731, %v575
  %v4752 = vadd.f32 %v4734, %v575
  %v4753 = vadd.f32 %v4737, %v575
  %4770 = vset.pattern.permute.xlu0 0
  %4771 = vperm.xlu0 %4770, %v4738
  %v4772 = vpop.permute.xlu0 %4771
  %4773 = vset.pattern.permute.xlu0 0
  %4774 = vperm.xlu0 %4773, %v4739
  %v4775 = vpop.permute.xlu0 %4774
  %4776 = vset.pattern.permute.xlu0 0
  %4777 = vperm.xlu0 %4776, %v4740
  %v4778 = vpop.permute.xlu0 %4777
  %4779 = vset.pattern.permute.xlu0 0
  %4780 = vperm.xlu0 %4779, %v4741
  %v4781 = vpop.permute.xlu0 %4780
  %4782 = vset.pattern.permute.xlu0 0
  %4783 = vperm.xlu0 %4782, %v4742
  %v4784 = vpop.permute.xlu0 %4783
  %4785 = vset.pattern.permute.xlu0 0
  %4786 = vperm.xlu0 %4785, %v4743
  %v4787 = vpop.permute.xlu0 %4786
  %4788 = vset.pattern.permute.xlu0 0
  %4789 = vperm.xlu0 %4788, %v4744
  %v4790 = vpop.permute.xlu0 %4789
  %4791 = vset.pattern.permute.xlu0 0
  %4792 = vperm.xlu0 %4791, %v4745
  %v4793 = vpop.permute.xlu0 %4792
  %4794 = vset.pattern.permute.xlu0 0
  %4795 = vperm.xlu0 %4794, %v4746
  %v4796 = vpop.permute.xlu0 %4795
  %4797 = vset.pattern.permute.xlu0 0
  %4798 = vperm.xlu0 %4797, %v4747
  %v4799 = vpop.permute.xlu0 %4798
  %4800 = vset.pattern.permute.xlu0 0
  %4801 = vperm.xlu0 %4800, %v4748
  %v4802 = vpop.permute.xlu0 %4801
  %4803 = vset.pattern.permute.xlu0 0
  %4804 = vperm.xlu0 %4803, %v4749
  %v4805 = vpop.permute.xlu0 %4804
  %4806 = vset.pattern.permute.xlu0 0
  %4807 = vperm.xlu0 %4806, %v4750
  %v4808 = vpop.permute.xlu0 %4807
  %4809 = vset.pattern.permute.xlu0 0
  %4810 = vperm.xlu0 %4809, %v4751
  %v4811 = vpop.permute.xlu0 %4810
  %4812 = vset.pattern.permute.xlu0 0
  %4813 = vperm.xlu0 %4812, %v4752
  %v4814 = vpop.permute.xlu0 %4813
  %4815 = vset.pattern.permute.xlu0 0
  %4816 = vperm.xlu0 %4815, %v4753
  %v4817 = vpop.permute.xlu0 %4816
  %v4818 = vlaneseq
  %v4819 = vshrl.u32 %v4818, 7
  %v4820 = vsub.s32 %v211, %v4819
  %v4821 = vrot.slane %v4772, %v4820
  %v4822 = vlaneseq
  %v4823 = vshrl.u32 %v4822, 7
  %v4824 = vsub.s32 %v211, %v4823
  %v4825 = vrot.slane %v4775, %v4824
  %v4826 = vlaneseq
  %v4827 = vshrl.u32 %v4826, 7
  %v4828 = vsub.s32 %v211, %v4827
  %v4829 = vrot.slane %v4778, %v4828
  %v4830 = vlaneseq
  %v4831 = vshrl.u32 %v4830, 7
  %v4832 = vsub.s32 %v211, %v4831
  %v4833 = vrot.slane %v4781, %v4832
  %v4834 = vlaneseq
  %v4835 = vshrl.u32 %v4834, 7
  %v4836 = vsub.s32 %v211, %v4835
  %v4837 = vrot.slane %v4784, %v4836
  %v4838 = vlaneseq
  %v4839 = vshrl.u32 %v4838, 7
  %v4840 = vsub.s32 %v211, %v4839
  %v4841 = vrot.slane %v4787, %v4840
  %v4842 = vlaneseq
  %v4843 = vshrl.u32 %v4842, 7
  %v4844 = vsub.s32 %v211, %v4843
  %v4845 = vrot.slane %v4790, %v4844
  %v4846 = vlaneseq
  %v4847 = vshrl.u32 %v4846, 7
  %v4848 = vsub.s32 %v211, %v4847
  %v4849 = vrot.slane %v4793, %v4848
  %v4850 = vlaneseq
  %v4851 = vshrl.u32 %v4850, 7
  %v4852 = vsub.s32 %v211, %v4851
  %v4853 = vrot.slane %v4796, %v4852
  %v4854 = vlaneseq
  %v4855 = vshrl.u32 %v4854, 7
  %v4856 = vsub.s32 %v211, %v4855
  %v4857 = vrot.slane %v4799, %v4856
  %v4858 = vlaneseq
  %v4859 = vshrl.u32 %v4858, 7
  %v4860 = vsub.s32 %v211, %v4859
  %v4861 = vrot.slane %v4802, %v4860
  %v4862 = vlaneseq
  %v4863 = vshrl.u32 %v4862, 7
  %v4864 = vsub.s32 %v211, %v4863
  %v4865 = vrot.slane %v4805, %v4864
  %v4866 = vlaneseq
  %v4867 = vshrl.u32 %v4866, 7
  %v4868 = vsub.s32 %v211, %v4867
  %v4869 = vrot.slane %v4808, %v4868
  %v4870 = vlaneseq
  %v4871 = vshrl.u32 %v4870, 7
  %v4872 = vsub.s32 %v211, %v4871
  %v4873 = vrot.slane %v4811, %v4872
  %v4874 = vlaneseq
  %v4875 = vshrl.u32 %v4874, 7
  %v4876 = vsub.s32 %v211, %v4875
  %v4877 = vrot.slane %v4814, %v4876
  %v4878 = vlaneseq
  %v4879 = vshrl.u32 %v4878, 7
  %v4880 = vsub.s32 %v211, %v4879
  %v4881 = vrot.slane %v4817, %v4880
  %v4882 = vsel %vm721, %v4825, %v4821
  %v4883 = vsel %vm723, %v4829, %v4882
  %v4884 = vsel %vm725, %v4833, %v4883
  %v4885 = vsel %vm727, %v4837, %v4884
  %v4886 = vsel %vm729, %v4841, %v4885
  %v4887 = vsel %vm731, %v4845, %v4886
  %v4888 = vsel %vm733, %v4849, %v4887
  %v4889 = vsel %vm721, %v4857, %v4853
  %v4890 = vsel %vm723, %v4861, %v4889
  %v4891 = vsel %vm725, %v4865, %v4890
  %v4892 = vsel %vm727, %v4869, %v4891
  %v4893 = vsel %vm729, %v4873, %v4892
  %v4894 = vsel %vm731, %v4877, %v4893
  %v4895 = vsel %vm733, %v4881, %v4894
  %v4898 = vsel %vm523, %v4888, -inf
  %4899 = vmax.xlane.f32.xlu0 %v4898
  %v4900 = vpop.xlane.xlu0 %4899
  %v4901 = vsel %vm523, %v4895, -inf
  %4902 = vmax.xlane.f32.xlu0 %v4901
  %v4903 = vpop.xlane.xlu0 %4902
  %v4906 = vlaneseq
  %v4907 = vshrl.u32 %v4906, 7
  %v4908 = vsub.s32 0, %v4907
  %v4909 = vrot.slane %v4900, %v4908
  %v4910 = vlaneseq
  %v4911 = vshrl.u32 %v4910, 7
  %v4912 = vsub.s32 1, %v4911
  %v4913 = vrot.slane %v4900, %v4912
  %v4914 = vlaneseq
  %v4915 = vshrl.u32 %v4914, 7
  %v4916 = vsub.s32 2, %v4915
  %v4917 = vrot.slane %v4900, %v4916
  %v4918 = vlaneseq
  %v4919 = vshrl.u32 %v4918, 7
  %v4920 = vsub.s32 3, %v4919
  %v4921 = vrot.slane %v4900, %v4920
  %v4922 = vlaneseq
  %v4923 = vshrl.u32 %v4922, 7
  %v4924 = vsub.s32 4, %v4923
  %v4925 = vrot.slane %v4900, %v4924
  %v4926 = vlaneseq
  %v4927 = vshrl.u32 %v4926, 7
  %v4928 = vsub.s32 5, %v4927
  %v4929 = vrot.slane %v4900, %v4928
  %v4930 = vlaneseq
  %v4931 = vshrl.u32 %v4930, 7
  %v4932 = vsub.s32 6, %v4931
  %v4933 = vrot.slane %v4900, %v4932
  %v4934 = vlaneseq
  %v4935 = vshrl.u32 %v4934, 7
  %v4936 = vsub.s32 7, %v4935
  %v4937 = vrot.slane %v4900, %v4936
  %v4938 = vlaneseq
  %v4939 = vshrl.u32 %v4938, 7
  %v4940 = vsub.s32 0, %v4939
  %v4941 = vrot.slane %v4903, %v4940
  %v4942 = vlaneseq
  %v4943 = vshrl.u32 %v4942, 7
  %v4944 = vsub.s32 1, %v4943
  %v4945 = vrot.slane %v4903, %v4944
  %v4946 = vlaneseq
  %v4947 = vshrl.u32 %v4946, 7
  %v4948 = vsub.s32 2, %v4947
  %v4949 = vrot.slane %v4903, %v4948
  %v4950 = vlaneseq
  %v4951 = vshrl.u32 %v4950, 7
  %v4952 = vsub.s32 3, %v4951
  %v4953 = vrot.slane %v4903, %v4952
  %v4954 = vlaneseq
  %v4955 = vshrl.u32 %v4954, 7
  %v4956 = vsub.s32 4, %v4955
  %v4957 = vrot.slane %v4903, %v4956
  %v4958 = vlaneseq
  %v4959 = vshrl.u32 %v4958, 7
  %v4960 = vsub.s32 5, %v4959
  %v4961 = vrot.slane %v4903, %v4960
  %v4962 = vlaneseq
  %v4963 = vshrl.u32 %v4962, 7
  %v4964 = vsub.s32 6, %v4963
  %v4965 = vrot.slane %v4903, %v4964
  %v4966 = vlaneseq
  %v4967 = vshrl.u32 %v4966, 7
  %v4968 = vsub.s32 7, %v4967
  %v4969 = vrot.slane %v4903, %v4968
  %v4986 = vsub.f32 %v4738, %v4909
  %v4987 = vsub.f32 %v4739, %v4913
  %v4988 = vsub.f32 %v4740, %v4917
  %v4989 = vsub.f32 %v4741, %v4921
  %v4990 = vsub.f32 %v4742, %v4925
  %v4991 = vsub.f32 %v4743, %v4929
  %v4992 = vsub.f32 %v4744, %v4933
  %v4993 = vsub.f32 %v4745, %v4937
  %v4994 = vsub.f32 %v4746, %v4941
  %v4995 = vsub.f32 %v4747, %v4945
  %v4996 = vsub.f32 %v4748, %v4949
  %v4997 = vsub.f32 %v4749, %v4953
  %v4998 = vsub.f32 %v4750, %v4957
  %v4999 = vsub.f32 %v4751, %v4961
  %v5000 = vsub.f32 %v4752, %v4965
  %v5001 = vsub.f32 %v4753, %v4969
  %v5002 = vmul.f32 %v4986, 1.442695
  %v5003 = vpow.pop %v5002
  %v5004 = vmul.f32 %v4987, 1.442695
  %v5005 = vpow.pop %v5004
  %v5006 = vmul.f32 %v4988, 1.442695
  %v5007 = vpow.pop %v5006
  %v5008 = vmul.f32 %v4989, 1.442695
  %v5009 = vpow.pop %v5008
  %v5010 = vmul.f32 %v4990, 1.442695
  %v5011 = vpow.pop %v5010
  %v5012 = vmul.f32 %v4991, 1.442695
  %v5013 = vpow.pop %v5012
  %v5014 = vmul.f32 %v4992, 1.442695
  %v5015 = vpow.pop %v5014
  %v5016 = vmul.f32 %v4993, 1.442695
  %v5017 = vpow.pop %v5016
  %v5018 = vmul.f32 %v4994, 1.442695
  %v5019 = vpow.pop %v5018
  %v5020 = vmul.f32 %v4995, 1.442695
  %v5021 = vpow.pop %v5020
  %v5022 = vmul.f32 %v4996, 1.442695
  %v5023 = vpow.pop %v5022
  %v5024 = vmul.f32 %v4997, 1.442695
  %v5025 = vpow.pop %v5024
  %v5026 = vmul.f32 %v4998, 1.442695
  %v5027 = vpow.pop %v5026
  %v5028 = vmul.f32 %v4999, 1.442695
  %v5029 = vpow.pop %v5028
  %v5030 = vmul.f32 %v5000, 1.442695
  %v5031 = vpow.pop %v5030
  %v5032 = vmul.f32 %v5001, 1.442695
  %v5033 = vpow.pop %v5032
  %5050 = vset.pattern.permute.xlu0 0
  %5051 = vperm.xlu0 %5050, %v5003
  %v5052 = vpop.permute.xlu0 %5051
  %5053 = vset.pattern.permute.xlu0 0
  %5054 = vperm.xlu0 %5053, %v5005
  %v5055 = vpop.permute.xlu0 %5054
  %5056 = vset.pattern.permute.xlu0 0
  %5057 = vperm.xlu0 %5056, %v5007
  %v5058 = vpop.permute.xlu0 %5057
  %5059 = vset.pattern.permute.xlu0 0
  %5060 = vperm.xlu0 %5059, %v5009
  %v5061 = vpop.permute.xlu0 %5060
  %5062 = vset.pattern.permute.xlu0 0
  %5063 = vperm.xlu0 %5062, %v5011
  %v5064 = vpop.permute.xlu0 %5063
  %5065 = vset.pattern.permute.xlu0 0
  %5066 = vperm.xlu0 %5065, %v5013
  %v5067 = vpop.permute.xlu0 %5066
  %5068 = vset.pattern.permute.xlu0 0
  %5069 = vperm.xlu0 %5068, %v5015
  %v5070 = vpop.permute.xlu0 %5069
  %5071 = vset.pattern.permute.xlu0 0
  %5072 = vperm.xlu0 %5071, %v5017
  %v5073 = vpop.permute.xlu0 %5072
  %5074 = vset.pattern.permute.xlu0 0
  %5075 = vperm.xlu0 %5074, %v5019
  %v5076 = vpop.permute.xlu0 %5075
  %5077 = vset.pattern.permute.xlu0 0
  %5078 = vperm.xlu0 %5077, %v5021
  %v5079 = vpop.permute.xlu0 %5078
  %5080 = vset.pattern.permute.xlu0 0
  %5081 = vperm.xlu0 %5080, %v5023
  %v5082 = vpop.permute.xlu0 %5081
  %5083 = vset.pattern.permute.xlu0 0
  %5084 = vperm.xlu0 %5083, %v5025
  %v5085 = vpop.permute.xlu0 %5084
  %5086 = vset.pattern.permute.xlu0 0
  %5087 = vperm.xlu0 %5086, %v5027
  %v5088 = vpop.permute.xlu0 %5087
  %5089 = vset.pattern.permute.xlu0 0
  %5090 = vperm.xlu0 %5089, %v5029
  %v5091 = vpop.permute.xlu0 %5090
  %5092 = vset.pattern.permute.xlu0 0
  %5093 = vperm.xlu0 %5092, %v5031
  %v5094 = vpop.permute.xlu0 %5093
  %5095 = vset.pattern.permute.xlu0 0
  %5096 = vperm.xlu0 %5095, %v5033
  %v5097 = vpop.permute.xlu0 %5096
  %v5098 = vlaneseq
  %v5099 = vshrl.u32 %v5098, 7
  %v5100 = vsub.s32 %v211, %v5099
  %v5101 = vrot.slane %v5052, %v5100
  %v5102 = vlaneseq
  %v5103 = vshrl.u32 %v5102, 7
  %v5104 = vsub.s32 %v211, %v5103
  %v5105 = vrot.slane %v5055, %v5104
  %v5106 = vlaneseq
  %v5107 = vshrl.u32 %v5106, 7
  %v5108 = vsub.s32 %v211, %v5107
  %v5109 = vrot.slane %v5058, %v5108
  %v5110 = vlaneseq
  %v5111 = vshrl.u32 %v5110, 7
  %v5112 = vsub.s32 %v211, %v5111
  %v5113 = vrot.slane %v5061, %v5112
  %v5114 = vlaneseq
  %v5115 = vshrl.u32 %v5114, 7
  %v5116 = vsub.s32 %v211, %v5115
  %v5117 = vrot.slane %v5064, %v5116
  %v5118 = vlaneseq
  %v5119 = vshrl.u32 %v5118, 7
  %v5120 = vsub.s32 %v211, %v5119
  %v5121 = vrot.slane %v5067, %v5120
  %v5122 = vlaneseq
  %v5123 = vshrl.u32 %v5122, 7
  %v5124 = vsub.s32 %v211, %v5123
  %v5125 = vrot.slane %v5070, %v5124
  %v5126 = vlaneseq
  %v5127 = vshrl.u32 %v5126, 7
  %v5128 = vsub.s32 %v211, %v5127
  %v5129 = vrot.slane %v5073, %v5128
  %v5130 = vlaneseq
  %v5131 = vshrl.u32 %v5130, 7
  %v5132 = vsub.s32 %v211, %v5131
  %v5133 = vrot.slane %v5076, %v5132
  %v5134 = vlaneseq
  %v5135 = vshrl.u32 %v5134, 7
  %v5136 = vsub.s32 %v211, %v5135
  %v5137 = vrot.slane %v5079, %v5136
  %v5138 = vlaneseq
  %v5139 = vshrl.u32 %v5138, 7
  %v5140 = vsub.s32 %v211, %v5139
  %v5141 = vrot.slane %v5082, %v5140
  %v5142 = vlaneseq
  %v5143 = vshrl.u32 %v5142, 7
  %v5144 = vsub.s32 %v211, %v5143
  %v5145 = vrot.slane %v5085, %v5144
  %v5146 = vlaneseq
  %v5147 = vshrl.u32 %v5146, 7
  %v5148 = vsub.s32 %v211, %v5147
  %v5149 = vrot.slane %v5088, %v5148
  %v5150 = vlaneseq
  %v5151 = vshrl.u32 %v5150, 7
  %v5152 = vsub.s32 %v211, %v5151
  %v5153 = vrot.slane %v5091, %v5152
  %v5154 = vlaneseq
  %v5155 = vshrl.u32 %v5154, 7
  %v5156 = vsub.s32 %v211, %v5155
  %v5157 = vrot.slane %v5094, %v5156
  %v5158 = vlaneseq
  %v5159 = vshrl.u32 %v5158, 7
  %v5160 = vsub.s32 %v211, %v5159
  %v5161 = vrot.slane %v5097, %v5160
  %v5162 = vsel %vm721, %v5105, %v5101
  %v5163 = vsel %vm723, %v5109, %v5162
  %v5164 = vsel %vm725, %v5113, %v5163
  %v5165 = vsel %vm727, %v5117, %v5164
  %v5166 = vsel %vm729, %v5121, %v5165
  %v5167 = vsel %vm731, %v5125, %v5166
  %v5168 = vsel %vm733, %v5129, %v5167
  %v5169 = vsel %vm721, %v5137, %v5133
  %v5170 = vsel %vm723, %v5141, %v5169
  %v5171 = vsel %vm725, %v5145, %v5170
  %v5172 = vsel %vm727, %v5149, %v5171
  %v5173 = vsel %vm729, %v5153, %v5172
  %v5174 = vsel %vm731, %v5157, %v5173
  %v5175 = vsel %vm733, %v5161, %v5174
  %v5178 = vsel %vm523, %v5168, 0.0
  %5179 = vadd.xlane.f32.xlu0 %v5178
  %v5180 = vpop.xlane.xlu0 %5179
  %v5181 = vsel %vm523, %v5175, 0.0
  %5182 = vadd.xlane.f32.xlu0 %v5181
  %v5183 = vpop.xlane.xlu0 %5182
  %v5184 = vrcp.pop %v5180
  %v5185 = vrcp.pop %v5183
  %v5188 = vlaneseq
  %v5189 = vshrl.u32 %v5188, 7
  %v5190 = vsub.s32 0, %v5189
  %v5191 = vrot.slane %v5184, %v5190
  %v5192 = vlaneseq
  %v5193 = vshrl.u32 %v5192, 7
  %v5194 = vsub.s32 1, %v5193
  %v5195 = vrot.slane %v5184, %v5194
  %v5196 = vlaneseq
  %v5197 = vshrl.u32 %v5196, 7
  %v5198 = vsub.s32 2, %v5197
  %v5199 = vrot.slane %v5184, %v5198
  %v5200 = vlaneseq
  %v5201 = vshrl.u32 %v5200, 7
  %v5202 = vsub.s32 3, %v5201
  %v5203 = vrot.slane %v5184, %v5202
  %v5204 = vlaneseq
  %v5205 = vshrl.u32 %v5204, 7
  %v5206 = vsub.s32 4, %v5205
  %v5207 = vrot.slane %v5184, %v5206
  %v5208 = vlaneseq
  %v5209 = vshrl.u32 %v5208, 7
  %v5210 = vsub.s32 5, %v5209
  %v5211 = vrot.slane %v5184, %v5210
  %v5212 = vlaneseq
  %v5213 = vshrl.u32 %v5212, 7
  %v5214 = vsub.s32 6, %v5213
  %v5215 = vrot.slane %v5184, %v5214
  %v5216 = vlaneseq
  %v5217 = vshrl.u32 %v5216, 7
  %v5218 = vsub.s32 7, %v5217
  %v5219 = vrot.slane %v5184, %v5218
  %v5220 = vlaneseq
  %v5221 = vshrl.u32 %v5220, 7
  %v5222 = vsub.s32 0, %v5221
  %v5223 = vrot.slane %v5185, %v5222
  %v5224 = vlaneseq
  %v5225 = vshrl.u32 %v5224, 7
  %v5226 = vsub.s32 1, %v5225
  %v5227 = vrot.slane %v5185, %v5226
  %v5228 = vlaneseq
  %v5229 = vshrl.u32 %v5228, 7
  %v5230 = vsub.s32 2, %v5229
  %v5231 = vrot.slane %v5185, %v5230
  %v5232 = vlaneseq
  %v5233 = vshrl.u32 %v5232, 7
  %v5234 = vsub.s32 3, %v5233
  %v5235 = vrot.slane %v5185, %v5234
  %v5236 = vlaneseq
  %v5237 = vshrl.u32 %v5236, 7
  %v5238 = vsub.s32 4, %v5237
  %v5239 = vrot.slane %v5185, %v5238
  %v5240 = vlaneseq
  %v5241 = vshrl.u32 %v5240, 7
  %v5242 = vsub.s32 5, %v5241
  %v5243 = vrot.slane %v5185, %v5242
  %v5244 = vlaneseq
  %v5245 = vshrl.u32 %v5244, 7
  %v5246 = vsub.s32 6, %v5245
  %v5247 = vrot.slane %v5185, %v5246
  %v5248 = vlaneseq
  %v5249 = vshrl.u32 %v5248, 7
  %v5250 = vsub.s32 7, %v5249
  %v5251 = vrot.slane %v5185, %v5250
  %v5268 = vmul.f32 %v5003, %v5191
  %v5269 = vmul.f32 %v5005, %v5195
  %v5270 = vmul.f32 %v5007, %v5199
  %v5271 = vmul.f32 %v5009, %v5203
  %v5272 = vmul.f32 %v5011, %v5207
  %v5273 = vmul.f32 %v5013, %v5211
  %v5274 = vmul.f32 %v5015, %v5215
  %v5275 = vmul.f32 %v5017, %v5219
  %v5276 = vmul.f32 %v5019, %v5223
  %v5277 = vmul.f32 %v5021, %v5227
  %v5278 = vmul.f32 %v5023, %v5231
  %v5279 = vmul.f32 %v5025, %v5235
  %v5280 = vmul.f32 %v5027, %v5239
  %v5281 = vmul.f32 %v5029, %v5243
  %v5282 = vmul.f32 %v5031, %v5247
  %v5283 = vmul.f32 %v5033, %v5251
  %5285 = vset.pattern.permute.xlu0 0
  %5286 = vperm.xlu0 %5285, %v5268
  %v5287 = vpop.permute.xlu0 %5286
  %5290 = vset.pattern.permute.xlu0 0
  %5291 = vperm.xlu0 %5290, %v5269
  %v5292 = vpop.permute.xlu0 %5291
  %5295 = vset.pattern.permute.xlu0 0
  %5296 = vperm.xlu0 %5295, %v5270
  %v5297 = vpop.permute.xlu0 %5296
  %5300 = vset.pattern.permute.xlu0 0
  %5301 = vperm.xlu0 %5300, %v5271
  %v5302 = vpop.permute.xlu0 %5301
  %5305 = vset.pattern.permute.xlu0 0
  %5306 = vperm.xlu0 %5305, %v5272
  %v5307 = vpop.permute.xlu0 %5306
  %5310 = vset.pattern.permute.xlu0 0
  %5311 = vperm.xlu0 %5310, %v5273
  %v5312 = vpop.permute.xlu0 %5311
  %5315 = vset.pattern.permute.xlu0 0
  %5316 = vperm.xlu0 %5315, %v5274
  %v5317 = vpop.permute.xlu0 %5316
  %5320 = vset.pattern.permute.xlu0 0
  %5321 = vperm.xlu0 %5320, %v5275
  %v5322 = vpop.permute.xlu0 %5321
  %5325 = vset.pattern.permute.xlu0 0
  %5326 = vperm.xlu0 %5325, %v5276
  %v5327 = vpop.permute.xlu0 %5326
  %5330 = vset.pattern.permute.xlu0 0
  %5331 = vperm.xlu0 %5330, %v5277
  %v5332 = vpop.permute.xlu0 %5331
  %5335 = vset.pattern.permute.xlu0 0
  %5336 = vperm.xlu0 %5335, %v5278
  %v5337 = vpop.permute.xlu0 %5336
  %5340 = vset.pattern.permute.xlu0 0
  %5341 = vperm.xlu0 %5340, %v5279
  %v5342 = vpop.permute.xlu0 %5341
  %5345 = vset.pattern.permute.xlu0 0
  %5346 = vperm.xlu0 %5345, %v5280
  %v5347 = vpop.permute.xlu0 %5346
  %5350 = vset.pattern.permute.xlu0 0
  %5351 = vperm.xlu0 %5350, %v5281
  %v5352 = vpop.permute.xlu0 %5351
  %5355 = vset.pattern.permute.xlu0 0
  %5356 = vperm.xlu0 %5355, %v5282
  %v5357 = vpop.permute.xlu0 %5356
  %5360 = vset.pattern.permute.xlu0 0
  %5361 = vperm.xlu0 %5360, %v5283
  %v5362 = vpop.permute.xlu0 %5361
  %v5364 = vmul.f32 %v5287, %v4482
  %v5365 = vmul.f32 %v5292, %v4482
  %v5366 = vmul.f32 %v5297, %v4482
  %v5367 = vmul.f32 %v5302, %v4482
  %v5368 = vmul.f32 %v5307, %v4482
  %v5369 = vmul.f32 %v5312, %v4482
  %v5370 = vmul.f32 %v5317, %v4482
  %v5371 = vmul.f32 %v5322, %v4482
  %v5372 = vmul.f32 %v5327, %v4485
  %v5373 = vmul.f32 %v5332, %v4485
  %v5374 = vmul.f32 %v5337, %v4485
  %v5375 = vmul.f32 %v5342, %v4485
  %v5376 = vmul.f32 %v5347, %v4485
  %v5377 = vmul.f32 %v5352, %v4485
  %v5378 = vmul.f32 %v5357, %v4485
  %v5379 = vmul.f32 %v5362, %v4485
  %v5380 = vsel %vm1226, %v5364, 0.0
  %v5381 = vrot.slane %v5380, 4
  %v5382 = vadd.f32 %v5380, %v5381
  %v5383 = vrot.slane %v5382, 2
  %v5384 = vadd.f32 %v5382, %v5383
  %v5385 = vrot.slane %v5384, 1
  %v5386 = vadd.f32 %v5384, %v5385
  %v5387 = vsel %vm1226, %v5365, 0.0
  %v5388 = vrot.slane %v5387, 4
  %v5389 = vadd.f32 %v5387, %v5388
  %v5390 = vrot.slane %v5389, 2
  %v5391 = vadd.f32 %v5389, %v5390
  %v5392 = vrot.slane %v5391, 1
  %v5393 = vadd.f32 %v5391, %v5392
  %v5394 = vsel %vm1226, %v5366, 0.0
  %v5395 = vrot.slane %v5394, 4
  %v5396 = vadd.f32 %v5394, %v5395
  %v5397 = vrot.slane %v5396, 2
  %v5398 = vadd.f32 %v5396, %v5397
  %v5399 = vrot.slane %v5398, 1
  %v5400 = vadd.f32 %v5398, %v5399
  %v5401 = vsel %vm1226, %v5367, 0.0
  %v5402 = vrot.slane %v5401, 4
  %v5403 = vadd.f32 %v5401, %v5402
  %v5404 = vrot.slane %v5403, 2
  %v5405 = vadd.f32 %v5403, %v5404
  %v5406 = vrot.slane %v5405, 1
  %v5407 = vadd.f32 %v5405, %v5406
  %v5408 = vsel %vm1226, %v5368, 0.0
  %v5409 = vrot.slane %v5408, 4
  %v5410 = vadd.f32 %v5408, %v5409
  %v5411 = vrot.slane %v5410, 2
  %v5412 = vadd.f32 %v5410, %v5411
  %v5413 = vrot.slane %v5412, 1
  %v5414 = vadd.f32 %v5412, %v5413
  %v5415 = vsel %vm1226, %v5369, 0.0
  %v5416 = vrot.slane %v5415, 4
  %v5417 = vadd.f32 %v5415, %v5416
  %v5418 = vrot.slane %v5417, 2
  %v5419 = vadd.f32 %v5417, %v5418
  %v5420 = vrot.slane %v5419, 1
  %v5421 = vadd.f32 %v5419, %v5420
  %v5422 = vsel %vm1226, %v5370, 0.0
  %v5423 = vrot.slane %v5422, 4
  %v5424 = vadd.f32 %v5422, %v5423
  %v5425 = vrot.slane %v5424, 2
  %v5426 = vadd.f32 %v5424, %v5425
  %v5427 = vrot.slane %v5426, 1
  %v5428 = vadd.f32 %v5426, %v5427
  %v5429 = vsel %vm1226, %v5371, 0.0
  %v5430 = vrot.slane %v5429, 4
  %v5431 = vadd.f32 %v5429, %v5430
  %v5432 = vrot.slane %v5431, 2
  %v5433 = vadd.f32 %v5431, %v5432
  %v5434 = vrot.slane %v5433, 1
  %v5435 = vadd.f32 %v5433, %v5434
  %v5436 = vsel %vm1226, %v5372, 0.0
  %v5437 = vrot.slane %v5436, 4
  %v5438 = vadd.f32 %v5436, %v5437
  %v5439 = vrot.slane %v5438, 2
  %v5440 = vadd.f32 %v5438, %v5439
  %v5441 = vrot.slane %v5440, 1
  %v5442 = vadd.f32 %v5440, %v5441
  %v5443 = vsel %vm1226, %v5373, 0.0
  %v5444 = vrot.slane %v5443, 4
  %v5445 = vadd.f32 %v5443, %v5444
  %v5446 = vrot.slane %v5445, 2
  %v5447 = vadd.f32 %v5445, %v5446
  %v5448 = vrot.slane %v5447, 1
  %v5449 = vadd.f32 %v5447, %v5448
  %v5450 = vsel %vm1226, %v5374, 0.0
  %v5451 = vrot.slane %v5450, 4
  %v5452 = vadd.f32 %v5450, %v5451
  %v5453 = vrot.slane %v5452, 2
  %v5454 = vadd.f32 %v5452, %v5453
  %v5455 = vrot.slane %v5454, 1
  %v5456 = vadd.f32 %v5454, %v5455
  %v5457 = vsel %vm1226, %v5375, 0.0
  %v5458 = vrot.slane %v5457, 4
  %v5459 = vadd.f32 %v5457, %v5458
  %v5460 = vrot.slane %v5459, 2
  %v5461 = vadd.f32 %v5459, %v5460
  %v5462 = vrot.slane %v5461, 1
  %v5463 = vadd.f32 %v5461, %v5462
  %v5464 = vsel %vm1226, %v5376, 0.0
  %v5465 = vrot.slane %v5464, 4
  %v5466 = vadd.f32 %v5464, %v5465
  %v5467 = vrot.slane %v5466, 2
  %v5468 = vadd.f32 %v5466, %v5467
  %v5469 = vrot.slane %v5468, 1
  %v5470 = vadd.f32 %v5468, %v5469
  %v5471 = vsel %vm1226, %v5377, 0.0
  %v5472 = vrot.slane %v5471, 4
  %v5473 = vadd.f32 %v5471, %v5472
  %v5474 = vrot.slane %v5473, 2
  %v5475 = vadd.f32 %v5473, %v5474
  %v5476 = vrot.slane %v5475, 1
  %v5477 = vadd.f32 %v5475, %v5476
  %v5478 = vsel %vm1226, %v5378, 0.0
  %v5479 = vrot.slane %v5478, 4
  %v5480 = vadd.f32 %v5478, %v5479
  %v5481 = vrot.slane %v5480, 2
  %v5482 = vadd.f32 %v5480, %v5481
  %v5483 = vrot.slane %v5482, 1
  %v5484 = vadd.f32 %v5482, %v5483
  %v5485 = vsel %vm1226, %v5379, 0.0
  %v5486 = vrot.slane %v5485, 4
  %v5487 = vadd.f32 %v5485, %v5486
  %v5488 = vrot.slane %v5487, 2
  %v5489 = vadd.f32 %v5487, %v5488
  %v5490 = vrot.slane %v5489, 1
  %v5491 = vadd.f32 %v5489, %v5490
  %v5508 = vsel %vm721, %v5393, %v5386
  %v5509 = vsel %vm723, %v5400, %v5508
  %v5510 = vsel %vm725, %v5407, %v5509
  %v5511 = vsel %vm727, %v5414, %v5510
  %v5512 = vsel %vm729, %v5421, %v5511
  %v5513 = vsel %vm731, %v5428, %v5512
  %v5514 = vsel %vm733, %v5435, %v5513
  %v5515 = vsel %vm721, %v5449, %v5442
  %v5516 = vsel %vm723, %v5456, %v5515
  %v5517 = vsel %vm725, %v5463, %v5516
  %v5518 = vsel %vm727, %v5470, %v5517
  %v5519 = vsel %vm729, %v5477, %v5518
  %v5520 = vsel %vm731, %v5484, %v5519
  %v5521 = vsel %vm733, %v5491, %v5520
  %5522 = vrot.lane.b32.xlu0 %v5514, 64
  %v5523 = vpop.permute.xlu0 %5522
  %5524 = vrot.lane.b32.xlu0 %v5521, 64
  %v5525 = vpop.permute.xlu0 %5524
  %5528 = vst.msk [vmem:[#allocation2] sm:$0xff] %vm523, %v5523
  %5529 = vst.msk [vmem:[#allocation2 + $0x8] sm:$0xff] %vm523, %v5525
  %5546 = vrot.lane.b32.xlu0 %v4674, 120
  %v5547 = vpop.permute.xlu0 %5546
  %5548 = vrot.lane.b32.xlu0 %v4675, 120
  %v5549 = vpop.permute.xlu0 %5548
  %5550 = vrot.lane.b32.xlu0 %v4676, 120
  %v5551 = vpop.permute.xlu0 %5550
  %5552 = vrot.lane.b32.xlu0 %v4677, 120
  %v5553 = vpop.permute.xlu0 %5552
  %5554 = vrot.lane.b32.xlu0 %v4678, 120
  %v5555 = vpop.permute.xlu0 %5554
  %5556 = vrot.lane.b32.xlu0 %v4679, 120
  %v5557 = vpop.permute.xlu0 %5556
  %5558 = vrot.lane.b32.xlu0 %v4680, 120
  %v5559 = vpop.permute.xlu0 %5558
  %5560 = vrot.lane.b32.xlu0 %v4681, 120
  %v5561 = vpop.permute.xlu0 %5560
  %5562 = vrot.lane.b32.xlu0 %v4682, 120
  %v5563 = vpop.permute.xlu0 %5562
  %5564 = vrot.lane.b32.xlu0 %v4683, 120
  %v5565 = vpop.permute.xlu0 %5564
  %5566 = vrot.lane.b32.xlu0 %v4684, 120
  %v5567 = vpop.permute.xlu0 %5566
  %5568 = vrot.lane.b32.xlu0 %v4685, 120
  %v5569 = vpop.permute.xlu0 %5568
  %5570 = vrot.lane.b32.xlu0 %v4686, 120
  %v5571 = vpop.permute.xlu0 %5570
  %5572 = vrot.lane.b32.xlu0 %v4687, 120
  %v5573 = vpop.permute.xlu0 %5572
  %5574 = vrot.lane.b32.xlu0 %v4688, 120
  %v5575 = vpop.permute.xlu0 %5574
  %5576 = vrot.lane.b32.xlu0 %v4689, 120
  %v5577 = vpop.permute.xlu0 %5576
  %v5594 = vsel %vm523, %v5547, 0.0
  %5595 = vadd.xlane.f32.xlu0 %v5594
  %v5596 = vpop.xlane.xlu0 %5595
  %v5597 = vsel %vm523, %v5549, 0.0
  %5598 = vadd.xlane.f32.xlu0 %v5597
  %v5599 = vpop.xlane.xlu0 %5598
  %v5600 = vsel %vm523, %v5551, 0.0
  %5601 = vadd.xlane.f32.xlu0 %v5600
  %v5602 = vpop.xlane.xlu0 %5601
  %v5603 = vsel %vm523, %v5553, 0.0
  %5604 = vadd.xlane.f32.xlu0 %v5603
  %v5605 = vpop.xlane.xlu0 %5604
  %v5606 = vsel %vm523, %v5555, 0.0
  %5607 = vadd.xlane.f32.xlu0 %v5606
  %v5608 = vpop.xlane.xlu0 %5607
  %v5609 = vsel %vm523, %v5557, 0.0
  %5610 = vadd.xlane.f32.xlu0 %v5609
  %v5611 = vpop.xlane.xlu0 %5610
  %v5612 = vsel %vm523, %v5559, 0.0
  %5613 = vadd.xlane.f32.xlu0 %v5612
  %v5614 = vpop.xlane.xlu0 %5613
  %v5615 = vsel %vm523, %v5561, 0.0
  %5616 = vadd.xlane.f32.xlu0 %v5615
  %v5617 = vpop.xlane.xlu0 %5616
  %v5618 = vsel %vm523, %v5563, 0.0
  %5619 = vadd.xlane.f32.xlu0 %v5618
  %v5620 = vpop.xlane.xlu0 %5619
  %v5621 = vsel %vm523, %v5565, 0.0
  %5622 = vadd.xlane.f32.xlu0 %v5621
  %v5623 = vpop.xlane.xlu0 %5622
  %v5624 = vsel %vm523, %v5567, 0.0
  %5625 = vadd.xlane.f32.xlu0 %v5624
  %v5626 = vpop.xlane.xlu0 %5625
  %v5627 = vsel %vm523, %v5569, 0.0
  %5628 = vadd.xlane.f32.xlu0 %v5627
  %v5629 = vpop.xlane.xlu0 %5628
  %v5630 = vsel %vm523, %v5571, 0.0
  %5631 = vadd.xlane.f32.xlu0 %v5630
  %v5632 = vpop.xlane.xlu0 %5631
  %v5633 = vsel %vm523, %v5573, 0.0
  %5634 = vadd.xlane.f32.xlu0 %v5633
  %v5635 = vpop.xlane.xlu0 %5634
  %v5636 = vsel %vm523, %v5575, 0.0
  %5637 = vadd.xlane.f32.xlu0 %v5636
  %v5638 = vpop.xlane.xlu0 %5637
  %v5639 = vsel %vm523, %v5577, 0.0
  %5640 = vadd.xlane.f32.xlu0 %v5639
  %v5641 = vpop.xlane.xlu0 %5640
  %v5642 = vadd.f32 %v5596, %v575
  %v5643 = vadd.f32 %v5599, %v575
  %v5644 = vadd.f32 %v5602, %v575
  %v5645 = vadd.f32 %v5605, %v575
  %v5646 = vadd.f32 %v5608, %v575
  %v5647 = vadd.f32 %v5611, %v575
  %v5648 = vadd.f32 %v5614, %v575
  %v5649 = vadd.f32 %v5617, %v575
  %v5650 = vadd.f32 %v5620, %v575
  %v5651 = vadd.f32 %v5623, %v575
  %v5652 = vadd.f32 %v5626, %v575
  %v5653 = vadd.f32 %v5629, %v575
  %v5654 = vadd.f32 %v5632, %v575
  %v5655 = vadd.f32 %v5635, %v575
  %v5656 = vadd.f32 %v5638, %v575
  %v5657 = vadd.f32 %v5641, %v575
  %5674 = vset.pattern.permute.xlu0 0
  %5675 = vperm.xlu0 %5674, %v5642
  %v5676 = vpop.permute.xlu0 %5675
  %5677 = vset.pattern.permute.xlu0 0
  %5678 = vperm.xlu0 %5677, %v5643
  %v5679 = vpop.permute.xlu0 %5678
  %5680 = vset.pattern.permute.xlu0 0
  %5681 = vperm.xlu0 %5680, %v5644
  %v5682 = vpop.permute.xlu0 %5681
  %5683 = vset.pattern.permute.xlu0 0
  %5684 = vperm.xlu0 %5683, %v5645
  %v5685 = vpop.permute.xlu0 %5684
  %5686 = vset.pattern.permute.xlu0 0
  %5687 = vperm.xlu0 %5686, %v5646
  %v5688 = vpop.permute.xlu0 %5687
  %5689 = vset.pattern.permute.xlu0 0
  %5690 = vperm.xlu0 %5689, %v5647
  %v5691 = vpop.permute.xlu0 %5690
  %5692 = vset.pattern.permute.xlu0 0
  %5693 = vperm.xlu0 %5692, %v5648
  %v5694 = vpop.permute.xlu0 %5693
  %5695 = vset.pattern.permute.xlu0 0
  %5696 = vperm.xlu0 %5695, %v5649
  %v5697 = vpop.permute.xlu0 %5696
  %5698 = vset.pattern.permute.xlu0 0
  %5699 = vperm.xlu0 %5698, %v5650
  %v5700 = vpop.permute.xlu0 %5699
  %5701 = vset.pattern.permute.xlu0 0
  %5702 = vperm.xlu0 %5701, %v5651
  %v5703 = vpop.permute.xlu0 %5702
  %5704 = vset.pattern.permute.xlu0 0
  %5705 = vperm.xlu0 %5704, %v5652
  %v5706 = vpop.permute.xlu0 %5705
  %5707 = vset.pattern.permute.xlu0 0
  %5708 = vperm.xlu0 %5707, %v5653
  %v5709 = vpop.permute.xlu0 %5708
  %5710 = vset.pattern.permute.xlu0 0
  %5711 = vperm.xlu0 %5710, %v5654
  %v5712 = vpop.permute.xlu0 %5711
  %5713 = vset.pattern.permute.xlu0 0
  %5714 = vperm.xlu0 %5713, %v5655
  %v5715 = vpop.permute.xlu0 %5714
  %5716 = vset.pattern.permute.xlu0 0
  %5717 = vperm.xlu0 %5716, %v5656
  %v5718 = vpop.permute.xlu0 %5717
  %5719 = vset.pattern.permute.xlu0 0
  %5720 = vperm.xlu0 %5719, %v5657
  %v5721 = vpop.permute.xlu0 %5720
  %v5722 = vlaneseq
  %v5723 = vshrl.u32 %v5722, 7
  %v5724 = vsub.s32 %v211, %v5723
  %v5725 = vrot.slane %v5676, %v5724
  %v5726 = vlaneseq
  %v5727 = vshrl.u32 %v5726, 7
  %v5728 = vsub.s32 %v211, %v5727
  %v5729 = vrot.slane %v5679, %v5728
  %v5730 = vlaneseq
  %v5731 = vshrl.u32 %v5730, 7
  %v5732 = vsub.s32 %v211, %v5731
  %v5733 = vrot.slane %v5682, %v5732
  %v5734 = vlaneseq
  %v5735 = vshrl.u32 %v5734, 7
  %v5736 = vsub.s32 %v211, %v5735
  %v5737 = vrot.slane %v5685, %v5736
  %v5738 = vlaneseq
  %v5739 = vshrl.u32 %v5738, 7
  %v5740 = vsub.s32 %v211, %v5739
  %v5741 = vrot.slane %v5688, %v5740
  %v5742 = vlaneseq
  %v5743 = vshrl.u32 %v5742, 7
  %v5744 = vsub.s32 %v211, %v5743
  %v5745 = vrot.slane %v5691, %v5744
  %v5746 = vlaneseq
  %v5747 = vshrl.u32 %v5746, 7
  %v5748 = vsub.s32 %v211, %v5747
  %v5749 = vrot.slane %v5694, %v5748
  %v5750 = vlaneseq
  %v5751 = vshrl.u32 %v5750, 7
  %v5752 = vsub.s32 %v211, %v5751
  %v5753 = vrot.slane %v5697, %v5752
  %v5754 = vlaneseq
  %v5755 = vshrl.u32 %v5754, 7
  %v5756 = vsub.s32 %v211, %v5755
  %v5757 = vrot.slane %v5700, %v5756
  %v5758 = vlaneseq
  %v5759 = vshrl.u32 %v5758, 7
  %v5760 = vsub.s32 %v211, %v5759
  %v5761 = vrot.slane %v5703, %v5760
  %v5762 = vlaneseq
  %v5763 = vshrl.u32 %v5762, 7
  %v5764 = vsub.s32 %v211, %v5763
  %v5765 = vrot.slane %v5706, %v5764
  %v5766 = vlaneseq
  %v5767 = vshrl.u32 %v5766, 7
  %v5768 = vsub.s32 %v211, %v5767
  %v5769 = vrot.slane %v5709, %v5768
  %v5770 = vlaneseq
  %v5771 = vshrl.u32 %v5770, 7
  %v5772 = vsub.s32 %v211, %v5771
  %v5773 = vrot.slane %v5712, %v5772
  %v5774 = vlaneseq
  %v5775 = vshrl.u32 %v5774, 7
  %v5776 = vsub.s32 %v211, %v5775
  %v5777 = vrot.slane %v5715, %v5776
  %v5778 = vlaneseq
  %v5779 = vshrl.u32 %v5778, 7
  %v5780 = vsub.s32 %v211, %v5779
  %v5781 = vrot.slane %v5718, %v5780
  %v5782 = vlaneseq
  %v5783 = vshrl.u32 %v5782, 7
  %v5784 = vsub.s32 %v211, %v5783
  %v5785 = vrot.slane %v5721, %v5784
  %v5786 = vsel %vm721, %v5729, %v5725
  %v5787 = vsel %vm723, %v5733, %v5786
  %v5788 = vsel %vm725, %v5737, %v5787
  %v5789 = vsel %vm727, %v5741, %v5788
  %v5790 = vsel %vm729, %v5745, %v5789
  %v5791 = vsel %vm731, %v5749, %v5790
  %v5792 = vsel %vm733, %v5753, %v5791
  %v5793 = vsel %vm721, %v5761, %v5757
  %v5794 = vsel %vm723, %v5765, %v5793
  %v5795 = vsel %vm725, %v5769, %v5794
  %v5796 = vsel %vm727, %v5773, %v5795
  %v5797 = vsel %vm729, %v5777, %v5796
  %v5798 = vsel %vm731, %v5781, %v5797
  %v5799 = vsel %vm733, %v5785, %v5798
  %v5802 = vsel %vm523, %v5792, -inf
  %5803 = vmax.xlane.f32.xlu0 %v5802
  %v5804 = vpop.xlane.xlu0 %5803
  %v5805 = vsel %vm523, %v5799, -inf
  %5806 = vmax.xlane.f32.xlu0 %v5805
  %v5807 = vpop.xlane.xlu0 %5806
  %v5810 = vlaneseq
  %v5811 = vshrl.u32 %v5810, 7
  %v5812 = vsub.s32 0, %v5811
  %v5813 = vrot.slane %v5804, %v5812
  %v5814 = vlaneseq
  %v5815 = vshrl.u32 %v5814, 7
  %v5816 = vsub.s32 1, %v5815
  %v5817 = vrot.slane %v5804, %v5816
  %v5818 = vlaneseq
  %v5819 = vshrl.u32 %v5818, 7
  %v5820 = vsub.s32 2, %v5819
  %v5821 = vrot.slane %v5804, %v5820
  %v5822 = vlaneseq
  %v5823 = vshrl.u32 %v5822, 7
  %v5824 = vsub.s32 3, %v5823
  %v5825 = vrot.slane %v5804, %v5824
  %v5826 = vlaneseq
  %v5827 = vshrl.u32 %v5826, 7
  %v5828 = vsub.s32 4, %v5827
  %v5829 = vrot.slane %v5804, %v5828
  %v5830 = vlaneseq
  %v5831 = vshrl.u32 %v5830, 7
  %v5832 = vsub.s32 5, %v5831
  %v5833 = vrot.slane %v5804, %v5832
  %v5834 = vlaneseq
  %v5835 = vshrl.u32 %v5834, 7
  %v5836 = vsub.s32 6, %v5835
  %v5837 = vrot.slane %v5804, %v5836
  %v5838 = vlaneseq
  %v5839 = vshrl.u32 %v5838, 7
  %v5840 = vsub.s32 7, %v5839
  %v5841 = vrot.slane %v5804, %v5840
  %v5842 = vlaneseq
  %v5843 = vshrl.u32 %v5842, 7
  %v5844 = vsub.s32 0, %v5843
  %v5845 = vrot.slane %v5807, %v5844
  %v5846 = vlaneseq
  %v5847 = vshrl.u32 %v5846, 7
  %v5848 = vsub.s32 1, %v5847
  %v5849 = vrot.slane %v5807, %v5848
  %v5850 = vlaneseq
  %v5851 = vshrl.u32 %v5850, 7
  %v5852 = vsub.s32 2, %v5851
  %v5853 = vrot.slane %v5807, %v5852
  %v5854 = vlaneseq
  %v5855 = vshrl.u32 %v5854, 7
  %v5856 = vsub.s32 3, %v5855
  %v5857 = vrot.slane %v5807, %v5856
  %v5858 = vlaneseq
  %v5859 = vshrl.u32 %v5858, 7
  %v5860 = vsub.s32 4, %v5859
  %v5861 = vrot.slane %v5807, %v5860
  %v5862 = vlaneseq
  %v5863 = vshrl.u32 %v5862, 7
  %v5864 = vsub.s32 5, %v5863
  %v5865 = vrot.slane %v5807, %v5864
  %v5866 = vlaneseq
  %v5867 = vshrl.u32 %v5866, 7
  %v5868 = vsub.s32 6, %v5867
  %v5869 = vrot.slane %v5807, %v5868
  %v5870 = vlaneseq
  %v5871 = vshrl.u32 %v5870, 7
  %v5872 = vsub.s32 7, %v5871
  %v5873 = vrot.slane %v5807, %v5872
  %v5890 = vsub.f32 %v5642, %v5813
  %v5891 = vsub.f32 %v5643, %v5817
  %v5892 = vsub.f32 %v5644, %v5821
  %v5893 = vsub.f32 %v5645, %v5825
  %v5894 = vsub.f32 %v5646, %v5829
  %v5895 = vsub.f32 %v5647, %v5833
  %v5896 = vsub.f32 %v5648, %v5837
  %v5897 = vsub.f32 %v5649, %v5841
  %v5898 = vsub.f32 %v5650, %v5845
  %v5899 = vsub.f32 %v5651, %v5849
  %v5900 = vsub.f32 %v5652, %v5853
  %v5901 = vsub.f32 %v5653, %v5857
  %v5902 = vsub.f32 %v5654, %v5861
  %v5903 = vsub.f32 %v5655, %v5865
  %v5904 = vsub.f32 %v5656, %v5869
  %v5905 = vsub.f32 %v5657, %v5873
  %v5906 = vmul.f32 %v5890, 1.442695
  %v5907 = vpow.pop %v5906
  %v5908 = vmul.f32 %v5891, 1.442695
  %v5909 = vpow.pop %v5908
  %v5910 = vmul.f32 %v5892, 1.442695
  %v5911 = vpow.pop %v5910
  %v5912 = vmul.f32 %v5893, 1.442695
  %v5913 = vpow.pop %v5912
  %v5914 = vmul.f32 %v5894, 1.442695
  %v5915 = vpow.pop %v5914
  %v5916 = vmul.f32 %v5895, 1.442695
  %v5917 = vpow.pop %v5916
  %v5918 = vmul.f32 %v5896, 1.442695
  %v5919 = vpow.pop %v5918
  %v5920 = vmul.f32 %v5897, 1.442695
  %v5921 = vpow.pop %v5920
  %v5922 = vmul.f32 %v5898, 1.442695
  %v5923 = vpow.pop %v5922
  %v5924 = vmul.f32 %v5899, 1.442695
  %v5925 = vpow.pop %v5924
  %v5926 = vmul.f32 %v5900, 1.442695
  %v5927 = vpow.pop %v5926
  %v5928 = vmul.f32 %v5901, 1.442695
  %v5929 = vpow.pop %v5928
  %v5930 = vmul.f32 %v5902, 1.442695
  %v5931 = vpow.pop %v5930
  %v5932 = vmul.f32 %v5903, 1.442695
  %v5933 = vpow.pop %v5932
  %v5934 = vmul.f32 %v5904, 1.442695
  %v5935 = vpow.pop %v5934
  %v5936 = vmul.f32 %v5905, 1.442695
  %v5937 = vpow.pop %v5936
  %5954 = vset.pattern.permute.xlu0 0
  %5955 = vperm.xlu0 %5954, %v5907
  %v5956 = vpop.permute.xlu0 %5955
  %5957 = vset.pattern.permute.xlu0 0
  %5958 = vperm.xlu0 %5957, %v5909
  %v5959 = vpop.permute.xlu0 %5958
  %5960 = vset.pattern.permute.xlu0 0
  %5961 = vperm.xlu0 %5960, %v5911
  %v5962 = vpop.permute.xlu0 %5961
  %5963 = vset.pattern.permute.xlu0 0
  %5964 = vperm.xlu0 %5963, %v5913
  %v5965 = vpop.permute.xlu0 %5964
  %5966 = vset.pattern.permute.xlu0 0
  %5967 = vperm.xlu0 %5966, %v5915
  %v5968 = vpop.permute.xlu0 %5967
  %5969 = vset.pattern.permute.xlu0 0
  %5970 = vperm.xlu0 %5969, %v5917
  %v5971 = vpop.permute.xlu0 %5970
  %5972 = vset.pattern.permute.xlu0 0
  %5973 = vperm.xlu0 %5972, %v5919
  %v5974 = vpop.permute.xlu0 %5973
  %5975 = vset.pattern.permute.xlu0 0
  %5976 = vperm.xlu0 %5975, %v5921
  %v5977 = vpop.permute.xlu0 %5976
  %5978 = vset.pattern.permute.xlu0 0
  %5979 = vperm.xlu0 %5978, %v5923
  %v5980 = vpop.permute.xlu0 %5979
  %5981 = vset.pattern.permute.xlu0 0
  %5982 = vperm.xlu0 %5981, %v5925
  %v5983 = vpop.permute.xlu0 %5982
  %5984 = vset.pattern.permute.xlu0 0
  %5985 = vperm.xlu0 %5984, %v5927
  %v5986 = vpop.permute.xlu0 %5985
  %5987 = vset.pattern.permute.xlu0 0
  %5988 = vperm.xlu0 %5987, %v5929
  %v5989 = vpop.permute.xlu0 %5988
  %5990 = vset.pattern.permute.xlu0 0
  %5991 = vperm.xlu0 %5990, %v5931
  %v5992 = vpop.permute.xlu0 %5991
  %5993 = vset.pattern.permute.xlu0 0
  %5994 = vperm.xlu0 %5993, %v5933
  %v5995 = vpop.permute.xlu0 %5994
  %5996 = vset.pattern.permute.xlu0 0
  %5997 = vperm.xlu0 %5996, %v5935
  %v5998 = vpop.permute.xlu0 %5997
  %5999 = vset.pattern.permute.xlu0 0
  %6000 = vperm.xlu0 %5999, %v5937
  %v6001 = vpop.permute.xlu0 %6000
  %v6002 = vlaneseq
  %v6003 = vshrl.u32 %v6002, 7
  %v6004 = vsub.s32 %v211, %v6003
  %v6005 = vrot.slane %v5956, %v6004
  %v6006 = vlaneseq
  %v6007 = vshrl.u32 %v6006, 7
  %v6008 = vsub.s32 %v211, %v6007
  %v6009 = vrot.slane %v5959, %v6008
  %v6010 = vlaneseq
  %v6011 = vshrl.u32 %v6010, 7
  %v6012 = vsub.s32 %v211, %v6011
  %v6013 = vrot.slane %v5962, %v6012
  %v6014 = vlaneseq
  %v6015 = vshrl.u32 %v6014, 7
  %v6016 = vsub.s32 %v211, %v6015
  %v6017 = vrot.slane %v5965, %v6016
  %v6018 = vlaneseq
  %v6019 = vshrl.u32 %v6018, 7
  %v6020 = vsub.s32 %v211, %v6019
  %v6021 = vrot.slane %v5968, %v6020
  %v6022 = vlaneseq
  %v6023 = vshrl.u32 %v6022, 7
  %v6024 = vsub.s32 %v211, %v6023
  %v6025 = vrot.slane %v5971, %v6024
  %v6026 = vlaneseq
  %v6027 = vshrl.u32 %v6026, 7
  %v6028 = vsub.s32 %v211, %v6027
  %v6029 = vrot.slane %v5974, %v6028
  %v6030 = vlaneseq
  %v6031 = vshrl.u32 %v6030, 7
  %v6032 = vsub.s32 %v211, %v6031
  %v6033 = vrot.slane %v5977, %v6032
  %v6034 = vlaneseq
  %v6035 = vshrl.u32 %v6034, 7
  %v6036 = vsub.s32 %v211, %v6035
  %v6037 = vrot.slane %v5980, %v6036
  %v6038 = vlaneseq
  %v6039 = vshrl.u32 %v6038, 7
  %v6040 = vsub.s32 %v211, %v6039
  %v6041 = vrot.slane %v5983, %v6040
  %v6042 = vlaneseq
  %v6043 = vshrl.u32 %v6042, 7
  %v6044 = vsub.s32 %v211, %v6043
  %v6045 = vrot.slane %v5986, %v6044
  %v6046 = vlaneseq
  %v6047 = vshrl.u32 %v6046, 7
  %v6048 = vsub.s32 %v211, %v6047
  %v6049 = vrot.slane %v5989, %v6048
  %v6050 = vlaneseq
  %v6051 = vshrl.u32 %v6050, 7
  %v6052 = vsub.s32 %v211, %v6051
  %v6053 = vrot.slane %v5992, %v6052
  %v6054 = vlaneseq
  %v6055 = vshrl.u32 %v6054, 7
  %v6056 = vsub.s32 %v211, %v6055
  %v6057 = vrot.slane %v5995, %v6056
  %v6058 = vlaneseq
  %v6059 = vshrl.u32 %v6058, 7
  %v6060 = vsub.s32 %v211, %v6059
  %v6061 = vrot.slane %v5998, %v6060
  %v6062 = vlaneseq
  %v6063 = vshrl.u32 %v6062, 7
  %v6064 = vsub.s32 %v211, %v6063
  %v6065 = vrot.slane %v6001, %v6064
  %v6066 = vsel %vm721, %v6009, %v6005
  %v6067 = vsel %vm723, %v6013, %v6066
  %v6068 = vsel %vm725, %v6017, %v6067
  %v6069 = vsel %vm727, %v6021, %v6068
  %v6070 = vsel %vm729, %v6025, %v6069
  %v6071 = vsel %vm731, %v6029, %v6070
  %v6072 = vsel %vm733, %v6033, %v6071
  %v6073 = vsel %vm721, %v6041, %v6037
  %v6074 = vsel %vm723, %v6045, %v6073
  %v6075 = vsel %vm725, %v6049, %v6074
  %v6076 = vsel %vm727, %v6053, %v6075
  %v6077 = vsel %vm729, %v6057, %v6076
  %v6078 = vsel %vm731, %v6061, %v6077
  %v6079 = vsel %vm733, %v6065, %v6078
  %v6082 = vsel %vm523, %v6072, 0.0
  %6083 = vadd.xlane.f32.xlu0 %v6082
  %v6084 = vpop.xlane.xlu0 %6083
  %v6085 = vsel %vm523, %v6079, 0.0
  %6086 = vadd.xlane.f32.xlu0 %v6085
  %v6087 = vpop.xlane.xlu0 %6086
  %v6088 = vrcp.pop %v6084
  %v6089 = vrcp.pop %v6087
  %v6092 = vlaneseq
  %v6093 = vshrl.u32 %v6092, 7
  %v6094 = vsub.s32 0, %v6093
  %v6095 = vrot.slane %v6088, %v6094
  %v6096 = vlaneseq
  %v6097 = vshrl.u32 %v6096, 7
  %v6098 = vsub.s32 1, %v6097
  %v6099 = vrot.slane %v6088, %v6098
  %v6100 = vlaneseq
  %v6101 = vshrl.u32 %v6100, 7
  %v6102 = vsub.s32 2, %v6101
  %v6103 = vrot.slane %v6088, %v6102
  %v6104 = vlaneseq
  %v6105 = vshrl.u32 %v6104, 7
  %v6106 = vsub.s32 3, %v6105
  %v6107 = vrot.slane %v6088, %v6106
  %v6108 = vlaneseq
  %v6109 = vshrl.u32 %v6108, 7
  %v6110 = vsub.s32 4, %v6109
  %v6111 = vrot.slane %v6088, %v6110
  %v6112 = vlaneseq
  %v6113 = vshrl.u32 %v6112, 7
  %v6114 = vsub.s32 5, %v6113
  %v6115 = vrot.slane %v6088, %v6114
  %v6116 = vlaneseq
  %v6117 = vshrl.u32 %v6116, 7
  %v6118 = vsub.s32 6, %v6117
  %v6119 = vrot.slane %v6088, %v6118
  %v6120 = vlaneseq
  %v6121 = vshrl.u32 %v6120, 7
  %v6122 = vsub.s32 7, %v6121
  %v6123 = vrot.slane %v6088, %v6122
  %v6124 = vlaneseq
  %v6125 = vshrl.u32 %v6124, 7
  %v6126 = vsub.s32 0, %v6125
  %v6127 = vrot.slane %v6089, %v6126
  %v6128 = vlaneseq
  %v6129 = vshrl.u32 %v6128, 7
  %v6130 = vsub.s32 1, %v6129
  %v6131 = vrot.slane %v6089, %v6130
  %v6132 = vlaneseq
  %v6133 = vshrl.u32 %v6132, 7
  %v6134 = vsub.s32 2, %v6133
  %v6135 = vrot.slane %v6089, %v6134
  %v6136 = vlaneseq
  %v6137 = vshrl.u32 %v6136, 7
  %v6138 = vsub.s32 3, %v6137
  %v6139 = vrot.slane %v6089, %v6138
  %v6140 = vlaneseq
  %v6141 = vshrl.u32 %v6140, 7
  %v6142 = vsub.s32 4, %v6141
  %v6143 = vrot.slane %v6089, %v6142
  %v6144 = vlaneseq
  %v6145 = vshrl.u32 %v6144, 7
  %v6146 = vsub.s32 5, %v6145
  %v6147 = vrot.slane %v6089, %v6146
  %v6148 = vlaneseq
  %v6149 = vshrl.u32 %v6148, 7
  %v6150 = vsub.s32 6, %v6149
  %v6151 = vrot.slane %v6089, %v6150
  %v6152 = vlaneseq
  %v6153 = vshrl.u32 %v6152, 7
  %v6154 = vsub.s32 7, %v6153
  %v6155 = vrot.slane %v6089, %v6154
  %v6172 = vmul.f32 %v5907, %v6095
  %v6173 = vmul.f32 %v5909, %v6099
  %v6174 = vmul.f32 %v5911, %v6103
  %v6175 = vmul.f32 %v5913, %v6107
  %v6176 = vmul.f32 %v5915, %v6111
  %v6177 = vmul.f32 %v5917, %v6115
  %v6178 = vmul.f32 %v5919, %v6119
  %v6179 = vmul.f32 %v5921, %v6123
  %v6180 = vmul.f32 %v5923, %v6127
  %v6181 = vmul.f32 %v5925, %v6131
  %v6182 = vmul.f32 %v5927, %v6135
  %v6183 = vmul.f32 %v5929, %v6139
  %v6184 = vmul.f32 %v5931, %v6143
  %v6185 = vmul.f32 %v5933, %v6147
  %v6186 = vmul.f32 %v5935, %v6151
  %v6187 = vmul.f32 %v5937, %v6155
  %6189 = vset.pattern.permute.xlu0 0
  %6190 = vperm.xlu0 %6189, %v6172
  %v6191 = vpop.permute.xlu0 %6190
  %6194 = vset.pattern.permute.xlu0 0
  %6195 = vperm.xlu0 %6194, %v6173
  %v6196 = vpop.permute.xlu0 %6195
  %6199 = vset.pattern.permute.xlu0 0
  %6200 = vperm.xlu0 %6199, %v6174
  %v6201 = vpop.permute.xlu0 %6200
  %6204 = vset.pattern.permute.xlu0 0
  %6205 = vperm.xlu0 %6204, %v6175
  %v6206 = vpop.permute.xlu0 %6205
  %6209 = vset.pattern.permute.xlu0 0
  %6210 = vperm.xlu0 %6209, %v6176
  %v6211 = vpop.permute.xlu0 %6210
  %6214 = vset.pattern.permute.xlu0 0
  %6215 = vperm.xlu0 %6214, %v6177
  %v6216 = vpop.permute.xlu0 %6215
  %6219 = vset.pattern.permute.xlu0 0
  %6220 = vperm.xlu0 %6219, %v6178
  %v6221 = vpop.permute.xlu0 %6220
  %6224 = vset.pattern.permute.xlu0 0
  %6225 = vperm.xlu0 %6224, %v6179
  %v6226 = vpop.permute.xlu0 %6225
  %6229 = vset.pattern.permute.xlu0 0
  %6230 = vperm.xlu0 %6229, %v6180
  %v6231 = vpop.permute.xlu0 %6230
  %6234 = vset.pattern.permute.xlu0 0
  %6235 = vperm.xlu0 %6234, %v6181
  %v6236 = vpop.permute.xlu0 %6235
  %6239 = vset.pattern.permute.xlu0 0
  %6240 = vperm.xlu0 %6239, %v6182
  %v6241 = vpop.permute.xlu0 %6240
  %6244 = vset.pattern.permute.xlu0 0
  %6245 = vperm.xlu0 %6244, %v6183
  %v6246 = vpop.permute.xlu0 %6245
  %6249 = vset.pattern.permute.xlu0 0
  %6250 = vperm.xlu0 %6249, %v6184
  %v6251 = vpop.permute.xlu0 %6250
  %6254 = vset.pattern.permute.xlu0 0
  %6255 = vperm.xlu0 %6254, %v6185
  %v6256 = vpop.permute.xlu0 %6255
  %6259 = vset.pattern.permute.xlu0 0
  %6260 = vperm.xlu0 %6259, %v6186
  %v6261 = vpop.permute.xlu0 %6260
  %6264 = vset.pattern.permute.xlu0 0
  %6265 = vperm.xlu0 %6264, %v6187
  %v6266 = vpop.permute.xlu0 %6265
  %v6268 = vmul.f32 %v6191, %v4482
  %v6269 = vmul.f32 %v6196, %v4482
  %v6270 = vmul.f32 %v6201, %v4482
  %v6271 = vmul.f32 %v6206, %v4482
  %v6272 = vmul.f32 %v6211, %v4482
  %v6273 = vmul.f32 %v6216, %v4482
  %v6274 = vmul.f32 %v6221, %v4482
  %v6275 = vmul.f32 %v6226, %v4482
  %v6276 = vmul.f32 %v6231, %v4485
  %v6277 = vmul.f32 %v6236, %v4485
  %v6278 = vmul.f32 %v6241, %v4485
  %v6279 = vmul.f32 %v6246, %v4485
  %v6280 = vmul.f32 %v6251, %v4485
  %v6281 = vmul.f32 %v6256, %v4485
  %v6282 = vmul.f32 %v6261, %v4485
  %v6283 = vmul.f32 %v6266, %v4485
  %v6284 = vsel %vm2131, %v6268, 0.0
  %v6285 = vrot.slane %v6284, 4
  %v6286 = vadd.f32 %v6284, %v6285
  %v6287 = vrot.slane %v6286, 2
  %v6288 = vadd.f32 %v6286, %v6287
  %v6289 = vrot.slane %v6288, 1
  %v6290 = vadd.f32 %v6288, %v6289
  %v6291 = vsel %vm2131, %v6269, 0.0
  %v6292 = vrot.slane %v6291, 4
  %v6293 = vadd.f32 %v6291, %v6292
  %v6294 = vrot.slane %v6293, 2
  %v6295 = vadd.f32 %v6293, %v6294
  %v6296 = vrot.slane %v6295, 1
  %v6297 = vadd.f32 %v6295, %v6296
  %v6298 = vsel %vm2131, %v6270, 0.0
  %v6299 = vrot.slane %v6298, 4
  %v6300 = vadd.f32 %v6298, %v6299
  %v6301 = vrot.slane %v6300, 2
  %v6302 = vadd.f32 %v6300, %v6301
  %v6303 = vrot.slane %v6302, 1
  %v6304 = vadd.f32 %v6302, %v6303
  %v6305 = vsel %vm2131, %v6271, 0.0
  %v6306 = vrot.slane %v6305, 4
  %v6307 = vadd.f32 %v6305, %v6306
  %v6308 = vrot.slane %v6307, 2
  %v6309 = vadd.f32 %v6307, %v6308
  %v6310 = vrot.slane %v6309, 1
  %v6311 = vadd.f32 %v6309, %v6310
  %v6312 = vsel %vm2131, %v6272, 0.0
  %v6313 = vrot.slane %v6312, 4
  %v6314 = vadd.f32 %v6312, %v6313
  %v6315 = vrot.slane %v6314, 2
  %v6316 = vadd.f32 %v6314, %v6315
  %v6317 = vrot.slane %v6316, 1
  %v6318 = vadd.f32 %v6316, %v6317
  %v6319 = vsel %vm2131, %v6273, 0.0
  %v6320 = vrot.slane %v6319, 4
  %v6321 = vadd.f32 %v6319, %v6320
  %v6322 = vrot.slane %v6321, 2
  %v6323 = vadd.f32 %v6321, %v6322
  %v6324 = vrot.slane %v6323, 1
  %v6325 = vadd.f32 %v6323, %v6324
  %v6326 = vsel %vm2131, %v6274, 0.0
  %v6327 = vrot.slane %v6326, 4
  %v6328 = vadd.f32 %v6326, %v6327
  %v6329 = vrot.slane %v6328, 2
  %v6330 = vadd.f32 %v6328, %v6329
  %v6331 = vrot.slane %v6330, 1
  %v6332 = vadd.f32 %v6330, %v6331
  %v6333 = vsel %vm2131, %v6275, 0.0
  %v6334 = vrot.slane %v6333, 4
  %v6335 = vadd.f32 %v6333, %v6334
  %v6336 = vrot.slane %v6335, 2
  %v6337 = vadd.f32 %v6335, %v6336
  %v6338 = vrot.slane %v6337, 1
  %v6339 = vadd.f32 %v6337, %v6338
  %v6340 = vsel %vm2131, %v6276, 0.0
  %v6341 = vrot.slane %v6340, 4
  %v6342 = vadd.f32 %v6340, %v6341
  %v6343 = vrot.slane %v6342, 2
  %v6344 = vadd.f32 %v6342, %v6343
  %v6345 = vrot.slane %v6344, 1
  %v6346 = vadd.f32 %v6344, %v6345
  %v6347 = vsel %vm2131, %v6277, 0.0
  %v6348 = vrot.slane %v6347, 4
  %v6349 = vadd.f32 %v6347, %v6348
  %v6350 = vrot.slane %v6349, 2
  %v6351 = vadd.f32 %v6349, %v6350
  %v6352 = vrot.slane %v6351, 1
  %v6353 = vadd.f32 %v6351, %v6352
  %v6354 = vsel %vm2131, %v6278, 0.0
  %v6355 = vrot.slane %v6354, 4
  %v6356 = vadd.f32 %v6354, %v6355
  %v6357 = vrot.slane %v6356, 2
  %v6358 = vadd.f32 %v6356, %v6357
  %v6359 = vrot.slane %v6358, 1
  %v6360 = vadd.f32 %v6358, %v6359
  %v6361 = vsel %vm2131, %v6279, 0.0
  %v6362 = vrot.slane %v6361, 4
  %v6363 = vadd.f32 %v6361, %v6362
  %v6364 = vrot.slane %v6363, 2
  %v6365 = vadd.f32 %v6363, %v6364
  %v6366 = vrot.slane %v6365, 1
  %v6367 = vadd.f32 %v6365, %v6366
  %v6368 = vsel %vm2131, %v6280, 0.0
  %v6369 = vrot.slane %v6368, 4
  %v6370 = vadd.f32 %v6368, %v6369
  %v6371 = vrot.slane %v6370, 2
  %v6372 = vadd.f32 %v6370, %v6371
  %v6373 = vrot.slane %v6372, 1
  %v6374 = vadd.f32 %v6372, %v6373
  %v6375 = vsel %vm2131, %v6281, 0.0
  %v6376 = vrot.slane %v6375, 4
  %v6377 = vadd.f32 %v6375, %v6376
  %v6378 = vrot.slane %v6377, 2
  %v6379 = vadd.f32 %v6377, %v6378
  %v6380 = vrot.slane %v6379, 1
  %v6381 = vadd.f32 %v6379, %v6380
  %v6382 = vsel %vm2131, %v6282, 0.0
  %v6383 = vrot.slane %v6382, 4
  %v6384 = vadd.f32 %v6382, %v6383
  %v6385 = vrot.slane %v6384, 2
  %v6386 = vadd.f32 %v6384, %v6385
  %v6387 = vrot.slane %v6386, 1
  %v6388 = vadd.f32 %v6386, %v6387
  %v6389 = vsel %vm2131, %v6283, 0.0
  %v6390 = vrot.slane %v6389, 4
  %v6391 = vadd.f32 %v6389, %v6390
  %v6392 = vrot.slane %v6391, 2
  %v6393 = vadd.f32 %v6391, %v6392
  %v6394 = vrot.slane %v6393, 1
  %v6395 = vadd.f32 %v6393, %v6394
  %v6412 = vsel %vm721, %v6297, %v6290
  %v6413 = vsel %vm723, %v6304, %v6412
  %v6414 = vsel %vm725, %v6311, %v6413
  %v6415 = vsel %vm727, %v6318, %v6414
  %v6416 = vsel %vm729, %v6325, %v6415
  %v6417 = vsel %vm731, %v6332, %v6416
  %v6418 = vsel %vm733, %v6339, %v6417
  %v6419 = vsel %vm721, %v6353, %v6346
  %v6420 = vsel %vm723, %v6360, %v6419
  %v6421 = vsel %vm725, %v6367, %v6420
  %v6422 = vsel %vm727, %v6374, %v6421
  %v6423 = vsel %vm729, %v6381, %v6422
  %v6424 = vsel %vm731, %v6388, %v6423
  %v6425 = vsel %vm733, %v6395, %v6424
  %6426 = vrot.lane.b32.xlu0 %v6418, 64
  %v6427 = vpop.permute.xlu0 %6426
  %6428 = vrot.lane.b32.xlu0 %v6425, 64
  %v6429 = vpop.permute.xlu0 %6428
  %6432 = vst.msk [vmem:[#allocation2] sm:$0xff] %vm2280, %v6427
  %6433 = vst.msk [vmem:[#allocation2 + $0x8] sm:$0xff] %vm2280, %v6429
  %6434 = vrot.lane.b32.xlu0 %v4674, 112
  %v6435 = vpop.permute.xlu0 %6434
  %6436 = vrot.lane.b32.xlu0 %v4675, 112
  %v6437 = vpop.permute.xlu0 %6436
  %6438 = vrot.lane.b32.xlu0 %v4676, 112
  %v6439 = vpop.permute.xlu0 %6438
  %6440 = vrot.lane.b32.xlu0 %v4677, 112
  %v6441 = vpop.permute.xlu0 %6440
  %6442 = vrot.lane.b32.xlu0 %v4678, 112
  %v6443 = vpop.permute.xlu0 %6442
  %6444 = vrot.lane.b32.xlu0 %v4679, 112
  %v6445 = vpop.permute.xlu0 %6444
  %6446 = vrot.lane.b32.xlu0 %v4680, 112
  %v6447 = vpop.permute.xlu0 %6446
  %6448 = vrot.lane.b32.xlu0 %v4681, 112
  %v6449 = vpop.permute.xlu0 %6448
  %6450 = vrot.lane.b32.xlu0 %v4682, 112
  %v6451 = vpop.permute.xlu0 %6450
  %6452 = vrot.lane.b32.xlu0 %v4683, 112
  %v6453 = vpop.permute.xlu0 %6452
  %6454 = vrot.lane.b32.xlu0 %v4684, 112
  %v6455 = vpop.permute.xlu0 %6454
  %6456 = vrot.lane.b32.xlu0 %v4685, 112
  %v6457 = vpop.permute.xlu0 %6456
  %6458 = vrot.lane.b32.xlu0 %v4686, 112
  %v6459 = vpop.permute.xlu0 %6458
  %6460 = vrot.lane.b32.xlu0 %v4687, 112
  %v6461 = vpop.permute.xlu0 %6460
  %6462 = vrot.lane.b32.xlu0 %v4688, 112
  %v6463 = vpop.permute.xlu0 %6462
  %6464 = vrot.lane.b32.xlu0 %v4689, 112
  %v6465 = vpop.permute.xlu0 %6464
  %v6482 = vsel %vm523, %v6435, 0.0
  %6483 = vadd.xlane.f32.xlu0 %v6482
  %v6484 = vpop.xlane.xlu0 %6483
  %v6485 = vsel %vm523, %v6437, 0.0
  %6486 = vadd.xlane.f32.xlu0 %v6485
  %v6487 = vpop.xlane.xlu0 %6486
  %v6488 = vsel %vm523, %v6439, 0.0
  %6489 = vadd.xlane.f32.xlu0 %v6488
  %v6490 = vpop.xlane.xlu0 %6489
  %v6491 = vsel %vm523, %v6441, 0.0
  %6492 = vadd.xlane.f32.xlu0 %v6491
  %v6493 = vpop.xlane.xlu0 %6492
  %v6494 = vsel %vm523, %v6443, 0.0
  %6495 = vadd.xlane.f32.xlu0 %v6494
  %v6496 = vpop.xlane.xlu0 %6495
  %v6497 = vsel %vm523, %v6445, 0.0
  %6498 = vadd.xlane.f32.xlu0 %v6497
  %v6499 = vpop.xlane.xlu0 %6498
  %v6500 = vsel %vm523, %v6447, 0.0
  %6501 = vadd.xlane.f32.xlu0 %v6500
  %v6502 = vpop.xlane.xlu0 %6501
  %v6503 = vsel %vm523, %v6449, 0.0
  %6504 = vadd.xlane.f32.xlu0 %v6503
  %v6505 = vpop.xlane.xlu0 %6504
  %v6506 = vsel %vm523, %v6451, 0.0
  %6507 = vadd.xlane.f32.xlu0 %v6506
  %v6508 = vpop.xlane.xlu0 %6507
  %v6509 = vsel %vm523, %v6453, 0.0
  %6510 = vadd.xlane.f32.xlu0 %v6509
  %v6511 = vpop.xlane.xlu0 %6510
  %v6512 = vsel %vm523, %v6455, 0.0
  %6513 = vadd.xlane.f32.xlu0 %v6512
  %v6514 = vpop.xlane.xlu0 %6513
  %v6515 = vsel %vm523, %v6457, 0.0
  %6516 = vadd.xlane.f32.xlu0 %v6515
  %v6517 = vpop.xlane.xlu0 %6516
  %v6518 = vsel %vm523, %v6459, 0.0
  %6519 = vadd.xlane.f32.xlu0 %v6518
  %v6520 = vpop.xlane.xlu0 %6519
  %v6521 = vsel %vm523, %v6461, 0.0
  %6522 = vadd.xlane.f32.xlu0 %v6521
  %v6523 = vpop.xlane.xlu0 %6522
  %v6524 = vsel %vm523, %v6463, 0.0
  %6525 = vadd.xlane.f32.xlu0 %v6524
  %v6526 = vpop.xlane.xlu0 %6525
  %v6527 = vsel %vm523, %v6465, 0.0
  %6528 = vadd.xlane.f32.xlu0 %v6527
  %v6529 = vpop.xlane.xlu0 %6528
  %v6530 = vadd.f32 %v6484, %v575
  %v6531 = vadd.f32 %v6487, %v575
  %v6532 = vadd.f32 %v6490, %v575
  %v6533 = vadd.f32 %v6493, %v575
  %v6534 = vadd.f32 %v6496, %v575
  %v6535 = vadd.f32 %v6499, %v575
  %v6536 = vadd.f32 %v6502, %v575
  %v6537 = vadd.f32 %v6505, %v575
  %v6538 = vadd.f32 %v6508, %v575
  %v6539 = vadd.f32 %v6511, %v575
  %v6540 = vadd.f32 %v6514, %v575
  %v6541 = vadd.f32 %v6517, %v575
  %v6542 = vadd.f32 %v6520, %v575
  %v6543 = vadd.f32 %v6523, %v575
  %v6544 = vadd.f32 %v6526, %v575
  %v6545 = vadd.f32 %v6529, %v575
  %6562 = vset.pattern.permute.xlu0 0
  %6563 = vperm.xlu0 %6562, %v6530
  %v6564 = vpop.permute.xlu0 %6563
  %6565 = vset.pattern.permute.xlu0 0
  %6566 = vperm.xlu0 %6565, %v6531
  %v6567 = vpop.permute.xlu0 %6566
  %6568 = vset.pattern.permute.xlu0 0
  %6569 = vperm.xlu0 %6568, %v6532
  %v6570 = vpop.permute.xlu0 %6569
  %6571 = vset.pattern.permute.xlu0 0
  %6572 = vperm.xlu0 %6571, %v6533
  %v6573 = vpop.permute.xlu0 %6572
  %6574 = vset.pattern.permute.xlu0 0
  %6575 = vperm.xlu0 %6574, %v6534
  %v6576 = vpop.permute.xlu0 %6575
  %6577 = vset.pattern.permute.xlu0 0
  %6578 = vperm.xlu0 %6577, %v6535
  %v6579 = vpop.permute.xlu0 %6578
  %6580 = vset.pattern.permute.xlu0 0
  %6581 = vperm.xlu0 %6580, %v6536
  %v6582 = vpop.permute.xlu0 %6581
  %6583 = vset.pattern.permute.xlu0 0
  %6584 = vperm.xlu0 %6583, %v6537
  %v6585 = vpop.permute.xlu0 %6584
  %6586 = vset.pattern.permute.xlu0 0
  %6587 = vperm.xlu0 %6586, %v6538
  %v6588 = vpop.permute.xlu0 %6587
  %6589 = vset.pattern.permute.xlu0 0
  %6590 = vperm.xlu0 %6589, %v6539
  %v6591 = vpop.permute.xlu0 %6590
  %6592 = vset.pattern.permute.xlu0 0
  %6593 = vperm.xlu0 %6592, %v6540
  %v6594 = vpop.permute.xlu0 %6593
  %6595 = vset.pattern.permute.xlu0 0
  %6596 = vperm.xlu0 %6595, %v6541
  %v6597 = vpop.permute.xlu0 %6596
  %6598 = vset.pattern.permute.xlu0 0
  %6599 = vperm.xlu0 %6598, %v6542
  %v6600 = vpop.permute.xlu0 %6599
  %6601 = vset.pattern.permute.xlu0 0
  %6602 = vperm.xlu0 %6601, %v6543
  %v6603 = vpop.permute.xlu0 %6602
  %6604 = vset.pattern.permute.xlu0 0
  %6605 = vperm.xlu0 %6604, %v6544
  %v6606 = vpop.permute.xlu0 %6605
  %6607 = vset.pattern.permute.xlu0 0
  %6608 = vperm.xlu0 %6607, %v6545
  %v6609 = vpop.permute.xlu0 %6608
  %v6610 = vlaneseq
  %v6611 = vshrl.u32 %v6610, 7
  %v6612 = vsub.s32 %v211, %v6611
  %v6613 = vrot.slane %v6564, %v6612
  %v6614 = vlaneseq
  %v6615 = vshrl.u32 %v6614, 7
  %v6616 = vsub.s32 %v211, %v6615
  %v6617 = vrot.slane %v6567, %v6616
  %v6618 = vlaneseq
  %v6619 = vshrl.u32 %v6618, 7
  %v6620 = vsub.s32 %v211, %v6619
  %v6621 = vrot.slane %v6570, %v6620
  %v6622 = vlaneseq
  %v6623 = vshrl.u32 %v6622, 7
  %v6624 = vsub.s32 %v211, %v6623
  %v6625 = vrot.slane %v6573, %v6624
  %v6626 = vlaneseq
  %v6627 = vshrl.u32 %v6626, 7
  %v6628 = vsub.s32 %v211, %v6627
  %v6629 = vrot.slane %v6576, %v6628
  %v6630 = vlaneseq
  %v6631 = vshrl.u32 %v6630, 7
  %v6632 = vsub.s32 %v211, %v6631
  %v6633 = vrot.slane %v6579, %v6632
  %v6634 = vlaneseq
  %v6635 = vshrl.u32 %v6634, 7
  %v6636 = vsub.s32 %v211, %v6635
  %v6637 = vrot.slane %v6582, %v6636
  %v6638 = vlaneseq
  %v6639 = vshrl.u32 %v6638, 7
  %v6640 = vsub.s32 %v211, %v6639
  %v6641 = vrot.slane %v6585, %v6640
  %v6642 = vlaneseq
  %v6643 = vshrl.u32 %v6642, 7
  %v6644 = vsub.s32 %v211, %v6643
  %v6645 = vrot.slane %v6588, %v6644
  %v6646 = vlaneseq
  %v6647 = vshrl.u32 %v6646, 7
  %v6648 = vsub.s32 %v211, %v6647
  %v6649 = vrot.slane %v6591, %v6648
  %v6650 = vlaneseq
  %v6651 = vshrl.u32 %v6650, 7
  %v6652 = vsub.s32 %v211, %v6651
  %v6653 = vrot.slane %v6594, %v6652
  %v6654 = vlaneseq
  %v6655 = vshrl.u32 %v6654, 7
  %v6656 = vsub.s32 %v211, %v6655
  %v6657 = vrot.slane %v6597, %v6656
  %v6658 = vlaneseq
  %v6659 = vshrl.u32 %v6658, 7
  %v6660 = vsub.s32 %v211, %v6659
  %v6661 = vrot.slane %v6600, %v6660
  %v6662 = vlaneseq
  %v6663 = vshrl.u32 %v6662, 7
  %v6664 = vsub.s32 %v211, %v6663
  %v6665 = vrot.slane %v6603, %v6664
  %v6666 = vlaneseq
  %v6667 = vshrl.u32 %v6666, 7
  %v6668 = vsub.s32 %v211, %v6667
  %v6669 = vrot.slane %v6606, %v6668
  %v6670 = vlaneseq
  %v6671 = vshrl.u32 %v6670, 7
  %v6672 = vsub.s32 %v211, %v6671
  %v6673 = vrot.slane %v6609, %v6672
  %v6674 = vsel %vm721, %v6617, %v6613
  %v6675 = vsel %vm723, %v6621, %v6674
  %v6676 = vsel %vm725, %v6625, %v6675
  %v6677 = vsel %vm727, %v6629, %v6676
  %v6678 = vsel %vm729, %v6633, %v6677
  %v6679 = vsel %vm731, %v6637, %v6678
  %v6680 = vsel %vm733, %v6641, %v6679
  %v6681 = vsel %vm721, %v6649, %v6645
  %v6682 = vsel %vm723, %v6653, %v6681
  %v6683 = vsel %vm725, %v6657, %v6682
  %v6684 = vsel %vm727, %v6661, %v6683
  %v6685 = vsel %vm729, %v6665, %v6684
  %v6686 = vsel %vm731, %v6669, %v6685
  %v6687 = vsel %vm733, %v6673, %v6686
  %v6690 = vsel %vm523, %v6680, -inf
  %6691 = vmax.xlane.f32.xlu0 %v6690
  %v6692 = vpop.xlane.xlu0 %6691
  %v6693 = vsel %vm523, %v6687, -inf
  %6694 = vmax.xlane.f32.xlu0 %v6693
  %v6695 = vpop.xlane.xlu0 %6694
  %v6698 = vlaneseq
  %v6699 = vshrl.u32 %v6698, 7
  %v6700 = vsub.s32 0, %v6699
  %v6701 = vrot.slane %v6692, %v6700
  %v6702 = vlaneseq
  %v6703 = vshrl.u32 %v6702, 7
  %v6704 = vsub.s32 1, %v6703
  %v6705 = vrot.slane %v6692, %v6704
  %v6706 = vlaneseq
  %v6707 = vshrl.u32 %v6706, 7
  %v6708 = vsub.s32 2, %v6707
  %v6709 = vrot.slane %v6692, %v6708
  %v6710 = vlaneseq
  %v6711 = vshrl.u32 %v6710, 7
  %v6712 = vsub.s32 3, %v6711
  %v6713 = vrot.slane %v6692, %v6712
  %v6714 = vlaneseq
  %v6715 = vshrl.u32 %v6714, 7
  %v6716 = vsub.s32 4, %v6715
  %v6717 = vrot.slane %v6692, %v6716
  %v6718 = vlaneseq
  %v6719 = vshrl.u32 %v6718, 7
  %v6720 = vsub.s32 5, %v6719
  %v6721 = vrot.slane %v6692, %v6720
  %v6722 = vlaneseq
  %v6723 = vshrl.u32 %v6722, 7
  %v6724 = vsub.s32 6, %v6723
  %v6725 = vrot.slane %v6692, %v6724
  %v6726 = vlaneseq
  %v6727 = vshrl.u32 %v6726, 7
  %v6728 = vsub.s32 7, %v6727
  %v6729 = vrot.slane %v6692, %v6728
  %v6730 = vlaneseq
  %v6731 = vshrl.u32 %v6730, 7
  %v6732 = vsub.s32 0, %v6731
  %v6733 = vrot.slane %v6695, %v6732
  %v6734 = vlaneseq
  %v6735 = vshrl.u32 %v6734, 7
  %v6736 = vsub.s32 1, %v6735
  %v6737 = vrot.slane %v6695, %v6736
  %v6738 = vlaneseq
  %v6739 = vshrl.u32 %v6738, 7
  %v6740 = vsub.s32 2, %v6739
  %v6741 = vrot.slane %v6695, %v6740
  %v6742 = vlaneseq
  %v6743 = vshrl.u32 %v6742, 7
  %v6744 = vsub.s32 3, %v6743
  %v6745 = vrot.slane %v6695, %v6744
  %v6746 = vlaneseq
  %v6747 = vshrl.u32 %v6746, 7
  %v6748 = vsub.s32 4, %v6747
  %v6749 = vrot.slane %v6695, %v6748
  %v6750 = vlaneseq
  %v6751 = vshrl.u32 %v6750, 7
  %v6752 = vsub.s32 5, %v6751
  %v6753 = vrot.slane %v6695, %v6752
  %v6754 = vlaneseq
  %v6755 = vshrl.u32 %v6754, 7
  %v6756 = vsub.s32 6, %v6755
  %v6757 = vrot.slane %v6695, %v6756
  %v6758 = vlaneseq
  %v6759 = vshrl.u32 %v6758, 7
  %v6760 = vsub.s32 7, %v6759
  %v6761 = vrot.slane %v6695, %v6760
  %v6778 = vsub.f32 %v6530, %v6701
  %v6779 = vsub.f32 %v6531, %v6705
  %v6780 = vsub.f32 %v6532, %v6709
  %v6781 = vsub.f32 %v6533, %v6713
  %v6782 = vsub.f32 %v6534, %v6717
  %v6783 = vsub.f32 %v6535, %v6721
  %v6784 = vsub.f32 %v6536, %v6725
  %v6785 = vsub.f32 %v6537, %v6729
  %v6786 = vsub.f32 %v6538, %v6733
  %v6787 = vsub.f32 %v6539, %v6737
  %v6788 = vsub.f32 %v6540, %v6741
  %v6789 = vsub.f32 %v6541, %v6745
  %v6790 = vsub.f32 %v6542, %v6749
  %v6791 = vsub.f32 %v6543, %v6753
  %v6792 = vsub.f32 %v6544, %v6757
  %v6793 = vsub.f32 %v6545, %v6761
  %v6794 = vmul.f32 %v6778, 1.442695
  %v6795 = vpow.pop %v6794
  %v6796 = vmul.f32 %v6779, 1.442695
  %v6797 = vpow.pop %v6796
  %v6798 = vmul.f32 %v6780, 1.442695
  %v6799 = vpow.pop %v6798
  %v6800 = vmul.f32 %v6781, 1.442695
  %v6801 = vpow.pop %v6800
  %v6802 = vmul.f32 %v6782, 1.442695
  %v6803 = vpow.pop %v6802
  %v6804 = vmul.f32 %v6783, 1.442695
  %v6805 = vpow.pop %v6804
  %v6806 = vmul.f32 %v6784, 1.442695
  %v6807 = vpow.pop %v6806
  %v6808 = vmul.f32 %v6785, 1.442695
  %v6809 = vpow.pop %v6808
  %v6810 = vmul.f32 %v6786, 1.442695
  %v6811 = vpow.pop %v6810
  %v6812 = vmul.f32 %v6787, 1.442695
  %v6813 = vpow.pop %v6812
  %v6814 = vmul.f32 %v6788, 1.442695
  %v6815 = vpow.pop %v6814
  %v6816 = vmul.f32 %v6789, 1.442695
  %v6817 = vpow.pop %v6816
  %v6818 = vmul.f32 %v6790, 1.442695
  %v6819 = vpow.pop %v6818
  %v6820 = vmul.f32 %v6791, 1.442695
  %v6821 = vpow.pop %v6820
  %v6822 = vmul.f32 %v6792, 1.442695
  %v6823 = vpow.pop %v6822
  %v6824 = vmul.f32 %v6793, 1.442695
  %v6825 = vpow.pop %v6824
  %6842 = vset.pattern.permute.xlu0 0
  %6843 = vperm.xlu0 %6842, %v6795
  %v6844 = vpop.permute.xlu0 %6843
  %6845 = vset.pattern.permute.xlu0 0
  %6846 = vperm.xlu0 %6845, %v6797
  %v6847 = vpop.permute.xlu0 %6846
  %6848 = vset.pattern.permute.xlu0 0
  %6849 = vperm.xlu0 %6848, %v6799
  %v6850 = vpop.permute.xlu0 %6849
  %6851 = vset.pattern.permute.xlu0 0
  %6852 = vperm.xlu0 %6851, %v6801
  %v6853 = vpop.permute.xlu0 %6852
  %6854 = vset.pattern.permute.xlu0 0
  %6855 = vperm.xlu0 %6854, %v6803
  %v6856 = vpop.permute.xlu0 %6855
  %6857 = vset.pattern.permute.xlu0 0
  %6858 = vperm.xlu0 %6857, %v6805
  %v6859 = vpop.permute.xlu0 %6858
  %6860 = vset.pattern.permute.xlu0 0
  %6861 = vperm.xlu0 %6860, %v6807
  %v6862 = vpop.permute.xlu0 %6861
  %6863 = vset.pattern.permute.xlu0 0
  %6864 = vperm.xlu0 %6863, %v6809
  %v6865 = vpop.permute.xlu0 %6864
  %6866 = vset.pattern.permute.xlu0 0
  %6867 = vperm.xlu0 %6866, %v6811
  %v6868 = vpop.permute.xlu0 %6867
  %6869 = vset.pattern.permute.xlu0 0
  %6870 = vperm.xlu0 %6869, %v6813
  %v6871 = vpop.permute.xlu0 %6870
  %6872 = vset.pattern.permute.xlu0 0
  %6873 = vperm.xlu0 %6872, %v6815
  %v6874 = vpop.permute.xlu0 %6873
  %6875 = vset.pattern.permute.xlu0 0
  %6876 = vperm.xlu0 %6875, %v6817
  %v6877 = vpop.permute.xlu0 %6876
  %6878 = vset.pattern.permute.xlu0 0
  %6879 = vperm.xlu0 %6878, %v6819
  %v6880 = vpop.permute.xlu0 %6879
  %6881 = vset.pattern.permute.xlu0 0
  %6882 = vperm.xlu0 %6881, %v6821
  %v6883 = vpop.permute.xlu0 %6882
  %6884 = vset.pattern.permute.xlu0 0
  %6885 = vperm.xlu0 %6884, %v6823
  %v6886 = vpop.permute.xlu0 %6885
  %6887 = vset.pattern.permute.xlu0 0
  %6888 = vperm.xlu0 %6887, %v6825
  %v6889 = vpop.permute.xlu0 %6888
  %v6890 = vlaneseq
  %v6891 = vshrl.u32 %v6890, 7
  %v6892 = vsub.s32 %v211, %v6891
  %v6893 = vrot.slane %v6844, %v6892
  %v6894 = vlaneseq
  %v6895 = vshrl.u32 %v6894, 7
  %v6896 = vsub.s32 %v211, %v6895
  %v6897 = vrot.slane %v6847, %v6896
  %v6898 = vlaneseq
  %v6899 = vshrl.u32 %v6898, 7
  %v6900 = vsub.s32 %v211, %v6899
  %v6901 = vrot.slane %v6850, %v6900
  %v6902 = vlaneseq
  %v6903 = vshrl.u32 %v6902, 7
  %v6904 = vsub.s32 %v211, %v6903
  %v6905 = vrot.slane %v6853, %v6904
  %v6906 = vlaneseq
  %v6907 = vshrl.u32 %v6906, 7
  %v6908 = vsub.s32 %v211, %v6907
  %v6909 = vrot.slane %v6856, %v6908
  %v6910 = vlaneseq
  %v6911 = vshrl.u32 %v6910, 7
  %v6912 = vsub.s32 %v211, %v6911
  %v6913 = vrot.slane %v6859, %v6912
  %v6914 = vlaneseq
  %v6915 = vshrl.u32 %v6914, 7
  %v6916 = vsub.s32 %v211, %v6915
  %v6917 = vrot.slane %v6862, %v6916
  %v6918 = vlaneseq
  %v6919 = vshrl.u32 %v6918, 7
  %v6920 = vsub.s32 %v211, %v6919
  %v6921 = vrot.slane %v6865, %v6920
  %v6922 = vlaneseq
  %v6923 = vshrl.u32 %v6922, 7
  %v6924 = vsub.s32 %v211, %v6923
  %v6925 = vrot.slane %v6868, %v6924
  %v6926 = vlaneseq
  %v6927 = vshrl.u32 %v6926, 7
  %v6928 = vsub.s32 %v211, %v6927
  %v6929 = vrot.slane %v6871, %v6928
  %v6930 = vlaneseq
  %v6931 = vshrl.u32 %v6930, 7
  %v6932 = vsub.s32 %v211, %v6931
  %v6933 = vrot.slane %v6874, %v6932
  %v6934 = vlaneseq
  %v6935 = vshrl.u32 %v6934, 7
  %v6936 = vsub.s32 %v211, %v6935
  %v6937 = vrot.slane %v6877, %v6936
  %v6938 = vlaneseq
  %v6939 = vshrl.u32 %v6938, 7
  %v6940 = vsub.s32 %v211, %v6939
  %v6941 = vrot.slane %v6880, %v6940
  %v6942 = vlaneseq
  %v6943 = vshrl.u32 %v6942, 7
  %v6944 = vsub.s32 %v211, %v6943
  %v6945 = vrot.slane %v6883, %v6944
  %v6946 = vlaneseq
  %v6947 = vshrl.u32 %v6946, 7
  %v6948 = vsub.s32 %v211, %v6947
  %v6949 = vrot.slane %v6886, %v6948
  %v6950 = vlaneseq
  %v6951 = vshrl.u32 %v6950, 7
  %v6952 = vsub.s32 %v211, %v6951
  %v6953 = vrot.slane %v6889, %v6952
  %v6954 = vsel %vm721, %v6897, %v6893
  %v6955 = vsel %vm723, %v6901, %v6954
  %v6956 = vsel %vm725, %v6905, %v6955
  %v6957 = vsel %vm727, %v6909, %v6956
  %v6958 = vsel %vm729, %v6913, %v6957
  %v6959 = vsel %vm731, %v6917, %v6958
  %v6960 = vsel %vm733, %v6921, %v6959
  %v6961 = vsel %vm721, %v6929, %v6925
  %v6962 = vsel %vm723, %v6933, %v6961
  %v6963 = vsel %vm725, %v6937, %v6962
  %v6964 = vsel %vm727, %v6941, %v6963
  %v6965 = vsel %vm729, %v6945, %v6964
  %v6966 = vsel %vm731, %v6949, %v6965
  %v6967 = vsel %vm733, %v6953, %v6966
  %v6970 = vsel %vm523, %v6960, 0.0
  %6971 = vadd.xlane.f32.xlu0 %v6970
  %v6972 = vpop.xlane.xlu0 %6971
  %v6973 = vsel %vm523, %v6967, 0.0
  %6974 = vadd.xlane.f32.xlu0 %v6973
  %v6975 = vpop.xlane.xlu0 %6974
  %v6976 = vrcp.pop %v6972
  %v6977 = vrcp.pop %v6975
  %v6980 = vlaneseq
  %v6981 = vshrl.u32 %v6980, 7
  %v6982 = vsub.s32 0, %v6981
  %v6983 = vrot.slane %v6976, %v6982
  %v6984 = vlaneseq
  %v6985 = vshrl.u32 %v6984, 7
  %v6986 = vsub.s32 1, %v6985
  %v6987 = vrot.slane %v6976, %v6986
  %v6988 = vlaneseq
  %v6989 = vshrl.u32 %v6988, 7
  %v6990 = vsub.s32 2, %v6989
  %v6991 = vrot.slane %v6976, %v6990
  %v6992 = vlaneseq
  %v6993 = vshrl.u32 %v6992, 7
  %v6994 = vsub.s32 3, %v6993
  %v6995 = vrot.slane %v6976, %v6994
  %v6996 = vlaneseq
  %v6997 = vshrl.u32 %v6996, 7
  %v6998 = vsub.s32 4, %v6997
  %v6999 = vrot.slane %v6976, %v6998
  %v7000 = vlaneseq
  %v7001 = vshrl.u32 %v7000, 7
  %v7002 = vsub.s32 5, %v7001
  %v7003 = vrot.slane %v6976, %v7002
  %v7004 = vlaneseq
  %v7005 = vshrl.u32 %v7004, 7
  %v7006 = vsub.s32 6, %v7005
  %v7007 = vrot.slane %v6976, %v7006
  %v7008 = vlaneseq
  %v7009 = vshrl.u32 %v7008, 7
  %v7010 = vsub.s32 7, %v7009
  %v7011 = vrot.slane %v6976, %v7010
  %v7012 = vlaneseq
  %v7013 = vshrl.u32 %v7012, 7
  %v7014 = vsub.s32 0, %v7013
  %v7015 = vrot.slane %v6977, %v7014
  %v7016 = vlaneseq
  %v7017 = vshrl.u32 %v7016, 7
  %v7018 = vsub.s32 1, %v7017
  %v7019 = vrot.slane %v6977, %v7018
  %v7020 = vlaneseq
  %v7021 = vshrl.u32 %v7020, 7
  %v7022 = vsub.s32 2, %v7021
  %v7023 = vrot.slane %v6977, %v7022
  %v7024 = vlaneseq
  %v7025 = vshrl.u32 %v7024, 7
  %v7026 = vsub.s32 3, %v7025
  %v7027 = vrot.slane %v6977, %v7026
  %v7028 = vlaneseq
  %v7029 = vshrl.u32 %v7028, 7
  %v7030 = vsub.s32 4, %v7029
  %v7031 = vrot.slane %v6977, %v7030
  %v7032 = vlaneseq
  %v7033 = vshrl.u32 %v7032, 7
  %v7034 = vsub.s32 5, %v7033
  %v7035 = vrot.slane %v6977, %v7034
  %v7036 = vlaneseq
  %v7037 = vshrl.u32 %v7036, 7
  %v7038 = vsub.s32 6, %v7037
  %v7039 = vrot.slane %v6977, %v7038
  %v7040 = vlaneseq
  %v7041 = vshrl.u32 %v7040, 7
  %v7042 = vsub.s32 7, %v7041
  %v7043 = vrot.slane %v6977, %v7042
  %v7060 = vmul.f32 %v6795, %v6983
  %v7061 = vmul.f32 %v6797, %v6987
  %v7062 = vmul.f32 %v6799, %v6991
  %v7063 = vmul.f32 %v6801, %v6995
  %v7064 = vmul.f32 %v6803, %v6999
  %v7065 = vmul.f32 %v6805, %v7003
  %v7066 = vmul.f32 %v6807, %v7007
  %v7067 = vmul.f32 %v6809, %v7011
  %v7068 = vmul.f32 %v6811, %v7015
  %v7069 = vmul.f32 %v6813, %v7019
  %v7070 = vmul.f32 %v6815, %v7023
  %v7071 = vmul.f32 %v6817, %v7027
  %v7072 = vmul.f32 %v6819, %v7031
  %v7073 = vmul.f32 %v6821, %v7035
  %v7074 = vmul.f32 %v6823, %v7039
  %v7075 = vmul.f32 %v6825, %v7043
  %7077 = vset.pattern.permute.xlu0 0
  %7078 = vperm.xlu0 %7077, %v7060
  %v7079 = vpop.permute.xlu0 %7078
  %7082 = vset.pattern.permute.xlu0 0
  %7083 = vperm.xlu0 %7082, %v7061
  %v7084 = vpop.permute.xlu0 %7083
  %7087 = vset.pattern.permute.xlu0 0
  %7088 = vperm.xlu0 %7087, %v7062
  %v7089 = vpop.permute.xlu0 %7088
  %7092 = vset.pattern.permute.xlu0 0
  %7093 = vperm.xlu0 %7092, %v7063
  %v7094 = vpop.permute.xlu0 %7093
  %7097 = vset.pattern.permute.xlu0 0
  %7098 = vperm.xlu0 %7097, %v7064
  %v7099 = vpop.permute.xlu0 %7098
  %7102 = vset.pattern.permute.xlu0 0
  %7103 = vperm.xlu0 %7102, %v7065
  %v7104 = vpop.permute.xlu0 %7103
  %7107 = vset.pattern.permute.xlu0 0
  %7108 = vperm.xlu0 %7107, %v7066
  %v7109 = vpop.permute.xlu0 %7108
  %7112 = vset.pattern.permute.xlu0 0
  %7113 = vperm.xlu0 %7112, %v7067
  %v7114 = vpop.permute.xlu0 %7113
  %7117 = vset.pattern.permute.xlu0 0
  %7118 = vperm.xlu0 %7117, %v7068
  %v7119 = vpop.permute.xlu0 %7118
  %7122 = vset.pattern.permute.xlu0 0
  %7123 = vperm.xlu0 %7122, %v7069
  %v7124 = vpop.permute.xlu0 %7123
  %7127 = vset.pattern.permute.xlu0 0
  %7128 = vperm.xlu0 %7127, %v7070
  %v7129 = vpop.permute.xlu0 %7128
  %7132 = vset.pattern.permute.xlu0 0
  %7133 = vperm.xlu0 %7132, %v7071
  %v7134 = vpop.permute.xlu0 %7133
  %7137 = vset.pattern.permute.xlu0 0
  %7138 = vperm.xlu0 %7137, %v7072
  %v7139 = vpop.permute.xlu0 %7138
  %7142 = vset.pattern.permute.xlu0 0
  %7143 = vperm.xlu0 %7142, %v7073
  %v7144 = vpop.permute.xlu0 %7143
  %7147 = vset.pattern.permute.xlu0 0
  %7148 = vperm.xlu0 %7147, %v7074
  %v7149 = vpop.permute.xlu0 %7148
  %7152 = vset.pattern.permute.xlu0 0
  %7153 = vperm.xlu0 %7152, %v7075
  %v7154 = vpop.permute.xlu0 %7153
  %v7156 = vmul.f32 %v7079, %v4482
  %v7157 = vmul.f32 %v7084, %v4482
  %v7158 = vmul.f32 %v7089, %v4482
  %v7159 = vmul.f32 %v7094, %v4482
  %v7160 = vmul.f32 %v7099, %v4482
  %v7161 = vmul.f32 %v7104, %v4482
  %v7162 = vmul.f32 %v7109, %v4482
  %v7163 = vmul.f32 %v7114, %v4482
  %v7164 = vmul.f32 %v7119, %v4485
  %v7165 = vmul.f32 %v7124, %v4485
  %v7166 = vmul.f32 %v7129, %v4485
  %v7167 = vmul.f32 %v7134, %v4485
  %v7168 = vmul.f32 %v7139, %v4485
  %v7169 = vmul.f32 %v7144, %v4485
  %v7170 = vmul.f32 %v7149, %v4485
  %v7171 = vmul.f32 %v7154, %v4485
  %v7172 = vsel %vm3021, %v7156, 0.0
  %v7173 = vrot.slane %v7172, 4
  %v7174 = vadd.f32 %v7172, %v7173
  %v7175 = vrot.slane %v7174, 2
  %v7176 = vadd.f32 %v7174, %v7175
  %v7177 = vrot.slane %v7176, 1
  %v7178 = vadd.f32 %v7176, %v7177
  %v7179 = vsel %vm3021, %v7157, 0.0
  %v7180 = vrot.slane %v7179, 4
  %v7181 = vadd.f32 %v7179, %v7180
  %v7182 = vrot.slane %v7181, 2
  %v7183 = vadd.f32 %v7181, %v7182
  %v7184 = vrot.slane %v7183, 1
  %v7185 = vadd.f32 %v7183, %v7184
  %v7186 = vsel %vm3021, %v7158, 0.0
  %v7187 = vrot.slane %v7186, 4
  %v7188 = vadd.f32 %v7186, %v7187
  %v7189 = vrot.slane %v7188, 2
  %v7190 = vadd.f32 %v7188, %v7189
  %v7191 = vrot.slane %v7190, 1
  %v7192 = vadd.f32 %v7190, %v7191
  %v7193 = vsel %vm3021, %v7159, 0.0
  %v7194 = vrot.slane %v7193, 4
  %v7195 = vadd.f32 %v7193, %v7194
  %v7196 = vrot.slane %v7195, 2
  %v7197 = vadd.f32 %v7195, %v7196
  %v7198 = vrot.slane %v7197, 1
  %v7199 = vadd.f32 %v7197, %v7198
  %v7200 = vsel %vm3021, %v7160, 0.0
  %v7201 = vrot.slane %v7200, 4
  %v7202 = vadd.f32 %v7200, %v7201
  %v7203 = vrot.slane %v7202, 2
  %v7204 = vadd.f32 %v7202, %v7203
  %v7205 = vrot.slane %v7204, 1
  %v7206 = vadd.f32 %v7204, %v7205
  %v7207 = vsel %vm3021, %v7161, 0.0
  %v7208 = vrot.slane %v7207, 4
  %v7209 = vadd.f32 %v7207, %v7208
  %v7210 = vrot.slane %v7209, 2
  %v7211 = vadd.f32 %v7209, %v7210
  %v7212 = vrot.slane %v7211, 1
  %v7213 = vadd.f32 %v7211, %v7212
  %v7214 = vsel %vm3021, %v7162, 0.0
  %v7215 = vrot.slane %v7214, 4
  %v7216 = vadd.f32 %v7214, %v7215
  %v7217 = vrot.slane %v7216, 2
  %v7218 = vadd.f32 %v7216, %v7217
  %v7219 = vrot.slane %v7218, 1
  %v7220 = vadd.f32 %v7218, %v7219
  %v7221 = vsel %vm3021, %v7163, 0.0
  %v7222 = vrot.slane %v7221, 4
  %v7223 = vadd.f32 %v7221, %v7222
  %v7224 = vrot.slane %v7223, 2
  %v7225 = vadd.f32 %v7223, %v7224
  %v7226 = vrot.slane %v7225, 1
  %v7227 = vadd.f32 %v7225, %v7226
  %v7228 = vsel %vm3021, %v7164, 0.0
  %v7229 = vrot.slane %v7228, 4
  %v7230 = vadd.f32 %v7228, %v7229
  %v7231 = vrot.slane %v7230, 2
  %v7232 = vadd.f32 %v7230, %v7231
  %v7233 = vrot.slane %v7232, 1
  %v7234 = vadd.f32 %v7232, %v7233
  %v7235 = vsel %vm3021, %v7165, 0.0
  %v7236 = vrot.slane %v7235, 4
  %v7237 = vadd.f32 %v7235, %v7236
  %v7238 = vrot.slane %v7237, 2
  %v7239 = vadd.f32 %v7237, %v7238
  %v7240 = vrot.slane %v7239, 1
  %v7241 = vadd.f32 %v7239, %v7240
  %v7242 = vsel %vm3021, %v7166, 0.0
  %v7243 = vrot.slane %v7242, 4
  %v7244 = vadd.f32 %v7242, %v7243
  %v7245 = vrot.slane %v7244, 2
  %v7246 = vadd.f32 %v7244, %v7245
  %v7247 = vrot.slane %v7246, 1
  %v7248 = vadd.f32 %v7246, %v7247
  %v7249 = vsel %vm3021, %v7167, 0.0
  %v7250 = vrot.slane %v7249, 4
  %v7251 = vadd.f32 %v7249, %v7250
  %v7252 = vrot.slane %v7251, 2
  %v7253 = vadd.f32 %v7251, %v7252
  %v7254 = vrot.slane %v7253, 1
  %v7255 = vadd.f32 %v7253, %v7254
  %v7256 = vsel %vm3021, %v7168, 0.0
  %v7257 = vrot.slane %v7256, 4
  %v7258 = vadd.f32 %v7256, %v7257
  %v7259 = vrot.slane %v7258, 2
  %v7260 = vadd.f32 %v7258, %v7259
  %v7261 = vrot.slane %v7260, 1
  %v7262 = vadd.f32 %v7260, %v7261
  %v7263 = vsel %vm3021, %v7169, 0.0
  %v7264 = vrot.slane %v7263, 4
  %v7265 = vadd.f32 %v7263, %v7264
  %v7266 = vrot.slane %v7265, 2
  %v7267 = vadd.f32 %v7265, %v7266
  %v7268 = vrot.slane %v7267, 1
  %v7269 = vadd.f32 %v7267, %v7268
  %v7270 = vsel %vm3021, %v7170, 0.0
  %v7271 = vrot.slane %v7270, 4
  %v7272 = vadd.f32 %v7270, %v7271
  %v7273 = vrot.slane %v7272, 2
  %v7274 = vadd.f32 %v7272, %v7273
  %v7275 = vrot.slane %v7274, 1
  %v7276 = vadd.f32 %v7274, %v7275
  %v7277 = vsel %vm3021, %v7171, 0.0
  %v7278 = vrot.slane %v7277, 4
  %v7279 = vadd.f32 %v7277, %v7278
  %v7280 = vrot.slane %v7279, 2
  %v7281 = vadd.f32 %v7279, %v7280
  %v7282 = vrot.slane %v7281, 1
  %v7283 = vadd.f32 %v7281, %v7282
  %v7300 = vsel %vm721, %v7185, %v7178
  %v7301 = vsel %vm723, %v7192, %v7300
  %v7302 = vsel %vm725, %v7199, %v7301
  %v7303 = vsel %vm727, %v7206, %v7302
  %v7304 = vsel %vm729, %v7213, %v7303
  %v7305 = vsel %vm731, %v7220, %v7304
  %v7306 = vsel %vm733, %v7227, %v7305
  %v7307 = vsel %vm721, %v7241, %v7234
  %v7308 = vsel %vm723, %v7248, %v7307
  %v7309 = vsel %vm725, %v7255, %v7308
  %v7310 = vsel %vm727, %v7262, %v7309
  %v7311 = vsel %vm729, %v7269, %v7310
  %v7312 = vsel %vm731, %v7276, %v7311
  %v7313 = vsel %vm733, %v7283, %v7312
  %7314 = vrot.lane.b32.xlu0 %v7306, 64
  %v7315 = vpop.permute.xlu0 %7314
  %7316 = vrot.lane.b32.xlu0 %v7313, 64
  %v7317 = vpop.permute.xlu0 %7316
  %7320 = vst.msk [vmem:[#allocation2] sm:$0xff] %vm3170, %v7315
  %7321 = vst.msk [vmem:[#allocation2 + $0x8] sm:$0xff] %vm3170, %v7317
  %7322 = vrot.lane.b32.xlu0 %v4674, 104
  %v7323 = vpop.permute.xlu0 %7322
  %7324 = vrot.lane.b32.xlu0 %v4675, 104
  %v7325 = vpop.permute.xlu0 %7324
  %7326 = vrot.lane.b32.xlu0 %v4676, 104
  %v7327 = vpop.permute.xlu0 %7326
  %7328 = vrot.lane.b32.xlu0 %v4677, 104
  %v7329 = vpop.permute.xlu0 %7328
  %7330 = vrot.lane.b32.xlu0 %v4678, 104
  %v7331 = vpop.permute.xlu0 %7330
  %7332 = vrot.lane.b32.xlu0 %v4679, 104
  %v7333 = vpop.permute.xlu0 %7332
  %7334 = vrot.lane.b32.xlu0 %v4680, 104
  %v7335 = vpop.permute.xlu0 %7334
  %7336 = vrot.lane.b32.xlu0 %v4681, 104
  %v7337 = vpop.permute.xlu0 %7336
  %7338 = vrot.lane.b32.xlu0 %v4682, 104
  %v7339 = vpop.permute.xlu0 %7338
  %7340 = vrot.lane.b32.xlu0 %v4683, 104
  %v7341 = vpop.permute.xlu0 %7340
  %7342 = vrot.lane.b32.xlu0 %v4684, 104
  %v7343 = vpop.permute.xlu0 %7342
  %7344 = vrot.lane.b32.xlu0 %v4685, 104
  %v7345 = vpop.permute.xlu0 %7344
  %7346 = vrot.lane.b32.xlu0 %v4686, 104
  %v7347 = vpop.permute.xlu0 %7346
  %7348 = vrot.lane.b32.xlu0 %v4687, 104
  %v7349 = vpop.permute.xlu0 %7348
  %7350 = vrot.lane.b32.xlu0 %v4688, 104
  %v7351 = vpop.permute.xlu0 %7350
  %7352 = vrot.lane.b32.xlu0 %v4689, 104
  %v7353 = vpop.permute.xlu0 %7352
  %v7370 = vsel %vm523, %v7323, 0.0
  %7371 = vadd.xlane.f32.xlu0 %v7370
  %v7372 = vpop.xlane.xlu0 %7371
  %v7373 = vsel %vm523, %v7325, 0.0
  %7374 = vadd.xlane.f32.xlu0 %v7373
  %v7375 = vpop.xlane.xlu0 %7374
  %v7376 = vsel %vm523, %v7327, 0.0
  %7377 = vadd.xlane.f32.xlu0 %v7376
  %v7378 = vpop.xlane.xlu0 %7377
  %v7379 = vsel %vm523, %v7329, 0.0
  %7380 = vadd.xlane.f32.xlu0 %v7379
  %v7381 = vpop.xlane.xlu0 %7380
  %v7382 = vsel %vm523, %v7331, 0.0
  %7383 = vadd.xlane.f32.xlu0 %v7382
  %v7384 = vpop.xlane.xlu0 %7383
  %v7385 = vsel %vm523, %v7333, 0.0
  %7386 = vadd.xlane.f32.xlu0 %v7385
  %v7387 = vpop.xlane.xlu0 %7386
  %v7388 = vsel %vm523, %v7335, 0.0
  %7389 = vadd.xlane.f32.xlu0 %v7388
  %v7390 = vpop.xlane.xlu0 %7389
  %v7391 = vsel %vm523, %v7337, 0.0
  %7392 = vadd.xlane.f32.xlu0 %v7391
  %v7393 = vpop.xlane.xlu0 %7392
  %v7394 = vsel %vm523, %v7339, 0.0
  %7395 = vadd.xlane.f32.xlu0 %v7394
  %v7396 = vpop.xlane.xlu0 %7395
  %v7397 = vsel %vm523, %v7341, 0.0
  %7398 = vadd.xlane.f32.xlu0 %v7397
  %v7399 = vpop.xlane.xlu0 %7398
  %v7400 = vsel %vm523, %v7343, 0.0
  %7401 = vadd.xlane.f32.xlu0 %v7400
  %v7402 = vpop.xlane.xlu0 %7401
  %v7403 = vsel %vm523, %v7345, 0.0
  %7404 = vadd.xlane.f32.xlu0 %v7403
  %v7405 = vpop.xlane.xlu0 %7404
  %v7406 = vsel %vm523, %v7347, 0.0
  %7407 = vadd.xlane.f32.xlu0 %v7406
  %v7408 = vpop.xlane.xlu0 %7407
  %v7409 = vsel %vm523, %v7349, 0.0
  %7410 = vadd.xlane.f32.xlu0 %v7409
  %v7411 = vpop.xlane.xlu0 %7410
  %v7412 = vsel %vm523, %v7351, 0.0
  %7413 = vadd.xlane.f32.xlu0 %v7412
  %v7414 = vpop.xlane.xlu0 %7413
  %v7415 = vsel %vm523, %v7353, 0.0
  %7416 = vadd.xlane.f32.xlu0 %v7415
  %v7417 = vpop.xlane.xlu0 %7416
  %v7418 = vadd.f32 %v7372, %v575
  %v7419 = vadd.f32 %v7375, %v575
  %v7420 = vadd.f32 %v7378, %v575
  %v7421 = vadd.f32 %v7381, %v575
  %v7422 = vadd.f32 %v7384, %v575
  %v7423 = vadd.f32 %v7387, %v575
  %v7424 = vadd.f32 %v7390, %v575
  %v7425 = vadd.f32 %v7393, %v575
  %v7426 = vadd.f32 %v7396, %v575
  %v7427 = vadd.f32 %v7399, %v575
  %v7428 = vadd.f32 %v7402, %v575
  %v7429 = vadd.f32 %v7405, %v575
  %v7430 = vadd.f32 %v7408, %v575
  %v7431 = vadd.f32 %v7411, %v575
  %v7432 = vadd.f32 %v7414, %v575
  %v7433 = vadd.f32 %v7417, %v575
  %7450 = vset.pattern.permute.xlu0 0
  %7451 = vperm.xlu0 %7450, %v7418
  %v7452 = vpop.permute.xlu0 %7451
  %7453 = vset.pattern.permute.xlu0 0
  %7454 = vperm.xlu0 %7453, %v7419
  %v7455 = vpop.permute.xlu0 %7454
  %7456 = vset.pattern.permute.xlu0 0
  %7457 = vperm.xlu0 %7456, %v7420
  %v7458 = vpop.permute.xlu0 %7457
  %7459 = vset.pattern.permute.xlu0 0
  %7460 = vperm.xlu0 %7459, %v7421
  %v7461 = vpop.permute.xlu0 %7460
  %7462 = vset.pattern.permute.xlu0 0
  %7463 = vperm.xlu0 %7462, %v7422
  %v7464 = vpop.permute.xlu0 %7463
  %7465 = vset.pattern.permute.xlu0 0
  %7466 = vperm.xlu0 %7465, %v7423
  %v7467 = vpop.permute.xlu0 %7466
  %7468 = vset.pattern.permute.xlu0 0
  %7469 = vperm.xlu0 %7468, %v7424
  %v7470 = vpop.permute.xlu0 %7469
  %7471 = vset.pattern.permute.xlu0 0
  %7472 = vperm.xlu0 %7471, %v7425
  %v7473 = vpop.permute.xlu0 %7472
  %7474 = vset.pattern.permute.xlu0 0
  %7475 = vperm.xlu0 %7474, %v7426
  %v7476 = vpop.permute.xlu0 %7475
  %7477 = vset.pattern.permute.xlu0 0
  %7478 = vperm.xlu0 %7477, %v7427
  %v7479 = vpop.permute.xlu0 %7478
  %7480 = vset.pattern.permute.xlu0 0
  %7481 = vperm.xlu0 %7480, %v7428
  %v7482 = vpop.permute.xlu0 %7481
  %7483 = vset.pattern.permute.xlu0 0
  %7484 = vperm.xlu0 %7483, %v7429
  %v7485 = vpop.permute.xlu0 %7484
  %7486 = vset.pattern.permute.xlu0 0
  %7487 = vperm.xlu0 %7486, %v7430
  %v7488 = vpop.permute.xlu0 %7487
  %7489 = vset.pattern.permute.xlu0 0
  %7490 = vperm.xlu0 %7489, %v7431
  %v7491 = vpop.permute.xlu0 %7490
  %7492 = vset.pattern.permute.xlu0 0
  %7493 = vperm.xlu0 %7492, %v7432
  %v7494 = vpop.permute.xlu0 %7493
  %7495 = vset.pattern.permute.xlu0 0
  %7496 = vperm.xlu0 %7495, %v7433
  %v7497 = vpop.permute.xlu0 %7496
  %v7498 = vlaneseq
  %v7499 = vshrl.u32 %v7498, 7
  %v7500 = vsub.s32 %v211, %v7499
  %v7501 = vrot.slane %v7452, %v7500
  %v7502 = vlaneseq
  %v7503 = vshrl.u32 %v7502, 7
  %v7504 = vsub.s32 %v211, %v7503
  %v7505 = vrot.slane %v7455, %v7504
  %v7506 = vlaneseq
  %v7507 = vshrl.u32 %v7506, 7
  %v7508 = vsub.s32 %v211, %v7507
  %v7509 = vrot.slane %v7458, %v7508
  %v7510 = vlaneseq
  %v7511 = vshrl.u32 %v7510, 7
  %v7512 = vsub.s32 %v211, %v7511
  %v7513 = vrot.slane %v7461, %v7512
  %v7514 = vlaneseq
  %v7515 = vshrl.u32 %v7514, 7
  %v7516 = vsub.s32 %v211, %v7515
  %v7517 = vrot.slane %v7464, %v7516
  %v7518 = vlaneseq
  %v7519 = vshrl.u32 %v7518, 7
  %v7520 = vsub.s32 %v211, %v7519
  %v7521 = vrot.slane %v7467, %v7520
  %v7522 = vlaneseq
  %v7523 = vshrl.u32 %v7522, 7
  %v7524 = vsub.s32 %v211, %v7523
  %v7525 = vrot.slane %v7470, %v7524
  %v7526 = vlaneseq
  %v7527 = vshrl.u32 %v7526, 7
  %v7528 = vsub.s32 %v211, %v7527
  %v7529 = vrot.slane %v7473, %v7528
  %v7530 = vlaneseq
  %v7531 = vshrl.u32 %v7530, 7
  %v7532 = vsub.s32 %v211, %v7531
  %v7533 = vrot.slane %v7476, %v7532
  %v7534 = vlaneseq
  %v7535 = vshrl.u32 %v7534, 7
  %v7536 = vsub.s32 %v211, %v7535
  %v7537 = vrot.slane %v7479, %v7536
  %v7538 = vlaneseq
  %v7539 = vshrl.u32 %v7538, 7
  %v7540 = vsub.s32 %v211, %v7539
  %v7541 = vrot.slane %v7482, %v7540
  %v7542 = vlaneseq
  %v7543 = vshrl.u32 %v7542, 7
  %v7544 = vsub.s32 %v211, %v7543
  %v7545 = vrot.slane %v7485, %v7544
  %v7546 = vlaneseq
  %v7547 = vshrl.u32 %v7546, 7
  %v7548 = vsub.s32 %v211, %v7547
  %v7549 = vrot.slane %v7488, %v7548
  %v7550 = vlaneseq
  %v7551 = vshrl.u32 %v7550, 7
  %v7552 = vsub.s32 %v211, %v7551
  %v7553 = vrot.slane %v7491, %v7552
  %v7554 = vlaneseq
  %v7555 = vshrl.u32 %v7554, 7
  %v7556 = vsub.s32 %v211, %v7555
  %v7557 = vrot.slane %v7494, %v7556
  %v7558 = vlaneseq
  %v7559 = vshrl.u32 %v7558, 7
  %v7560 = vsub.s32 %v211, %v7559
  %v7561 = vrot.slane %v7497, %v7560
  %v7562 = vsel %vm721, %v7505, %v7501
  %v7563 = vsel %vm723, %v7509, %v7562
  %v7564 = vsel %vm725, %v7513, %v7563
  %v7565 = vsel %vm727, %v7517, %v7564
  %v7566 = vsel %vm729, %v7521, %v7565
  %v7567 = vsel %vm731, %v7525, %v7566
  %v7568 = vsel %vm733, %v7529, %v7567
  %v7569 = vsel %vm721, %v7537, %v7533
  %v7570 = vsel %vm723, %v7541, %v7569
  %v7571 = vsel %vm725, %v7545, %v7570
  %v7572 = vsel %vm727, %v7549, %v7571
  %v7573 = vsel %vm729, %v7553, %v7572
  %v7574 = vsel %vm731, %v7557, %v7573
  %v7575 = vsel %vm733, %v7561, %v7574
  %v7578 = vsel %vm523, %v7568, -inf
  %7579 = vmax.xlane.f32.xlu0 %v7578
  %v7580 = vpop.xlane.xlu0 %7579
  %v7581 = vsel %vm523, %v7575, -inf
  %7582 = vmax.xlane.f32.xlu0 %v7581
  %v7583 = vpop.xlane.xlu0 %7582
  %v7586 = vlaneseq
  %v7587 = vshrl.u32 %v7586, 7
  %v7588 = vsub.s32 0, %v7587
  %v7589 = vrot.slane %v7580, %v7588
  %v7590 = vlaneseq
  %v7591 = vshrl.u32 %v7590, 7
  %v7592 = vsub.s32 1, %v7591
  %v7593 = vrot.slane %v7580, %v7592
  %v7594 = vlaneseq
  %v7595 = vshrl.u32 %v7594, 7
  %v7596 = vsub.s32 2, %v7595
  %v7597 = vrot.slane %v7580, %v7596
  %v7598 = vlaneseq
  %v7599 = vshrl.u32 %v7598, 7
  %v7600 = vsub.s32 3, %v7599
  %v7601 = vrot.slane %v7580, %v7600
  %v7602 = vlaneseq
  %v7603 = vshrl.u32 %v7602, 7
  %v7604 = vsub.s32 4, %v7603
  %v7605 = vrot.slane %v7580, %v7604
  %v7606 = vlaneseq
  %v7607 = vshrl.u32 %v7606, 7
  %v7608 = vsub.s32 5, %v7607
  %v7609 = vrot.slane %v7580, %v7608
  %v7610 = vlaneseq
  %v7611 = vshrl.u32 %v7610, 7
  %v7612 = vsub.s32 6, %v7611
  %v7613 = vrot.slane %v7580, %v7612
  %v7614 = vlaneseq
  %v7615 = vshrl.u32 %v7614, 7
  %v7616 = vsub.s32 7, %v7615
  %v7617 = vrot.slane %v7580, %v7616
  %v7618 = vlaneseq
  %v7619 = vshrl.u32 %v7618, 7
  %v7620 = vsub.s32 0, %v7619
  %v7621 = vrot.slane %v7583, %v7620
  %v7622 = vlaneseq
  %v7623 = vshrl.u32 %v7622, 7
  %v7624 = vsub.s32 1, %v7623
  %v7625 = vrot.slane %v7583, %v7624
  %v7626 = vlaneseq
  %v7627 = vshrl.u32 %v7626, 7
  %v7628 = vsub.s32 2, %v7627
  %v7629 = vrot.slane %v7583, %v7628
  %v7630 = vlaneseq
  %v7631 = vshrl.u32 %v7630, 7
  %v7632 = vsub.s32 3, %v7631
  %v7633 = vrot.slane %v7583, %v7632
  %v7634 = vlaneseq
  %v7635 = vshrl.u32 %v7634, 7
  %v7636 = vsub.s32 4, %v7635
  %v7637 = vrot.slane %v7583, %v7636
  %v7638 = vlaneseq
  %v7639 = vshrl.u32 %v7638, 7
  %v7640 = vsub.s32 5, %v7639
  %v7641 = vrot.slane %v7583, %v7640
  %v7642 = vlaneseq
  %v7643 = vshrl.u32 %v7642, 7
  %v7644 = vsub.s32 6, %v7643
  %v7645 = vrot.slane %v7583, %v7644
  %v7646 = vlaneseq
  %v7647 = vshrl.u32 %v7646, 7
  %v7648 = vsub.s32 7, %v7647
  %v7649 = vrot.slane %v7583, %v7648
  %v7666 = vsub.f32 %v7418, %v7589
  %v7667 = vsub.f32 %v7419, %v7593
  %v7668 = vsub.f32 %v7420, %v7597
  %v7669 = vsub.f32 %v7421, %v7601
  %v7670 = vsub.f32 %v7422, %v7605
  %v7671 = vsub.f32 %v7423, %v7609
  %v7672 = vsub.f32 %v7424, %v7613
  %v7673 = vsub.f32 %v7425, %v7617
  %v7674 = vsub.f32 %v7426, %v7621
  %v7675 = vsub.f32 %v7427, %v7625
  %v7676 = vsub.f32 %v7428, %v7629
  %v7677 = vsub.f32 %v7429, %v7633
  %v7678 = vsub.f32 %v7430, %v7637
  %v7679 = vsub.f32 %v7431, %v7641
  %v7680 = vsub.f32 %v7432, %v7645
  %v7681 = vsub.f32 %v7433, %v7649
  %v7682 = vmul.f32 %v7666, 1.442695
  %v7683 = vpow.pop %v7682
  %v7684 = vmul.f32 %v7667, 1.442695
  %v7685 = vpow.pop %v7684
  %v7686 = vmul.f32 %v7668, 1.442695
  %v7687 = vpow.pop %v7686
  %v7688 = vmul.f32 %v7669, 1.442695
  %v7689 = vpow.pop %v7688
  %v7690 = vmul.f32 %v7670, 1.442695
  %v7691 = vpow.pop %v7690
  %v7692 = vmul.f32 %v7671, 1.442695
  %v7693 = vpow.pop %v7692
  %v7694 = vmul.f32 %v7672, 1.442695
  %v7695 = vpow.pop %v7694
  %v7696 = vmul.f32 %v7673, 1.442695
  %v7697 = vpow.pop %v7696
  %v7698 = vmul.f32 %v7674, 1.442695
  %v7699 = vpow.pop %v7698
  %v7700 = vmul.f32 %v7675, 1.442695
  %v7701 = vpow.pop %v7700
  %v7702 = vmul.f32 %v7676, 1.442695
  %v7703 = vpow.pop %v7702
  %v7704 = vmul.f32 %v7677, 1.442695
  %v7705 = vpow.pop %v7704
  %v7706 = vmul.f32 %v7678, 1.442695
  %v7707 = vpow.pop %v7706
  %v7708 = vmul.f32 %v7679, 1.442695
  %v7709 = vpow.pop %v7708
  %v7710 = vmul.f32 %v7680, 1.442695
  %v7711 = vpow.pop %v7710
  %v7712 = vmul.f32 %v7681, 1.442695
  %v7713 = vpow.pop %v7712
  %7730 = vset.pattern.permute.xlu0 0
  %7731 = vperm.xlu0 %7730, %v7683
  %v7732 = vpop.permute.xlu0 %7731
  %7733 = vset.pattern.permute.xlu0 0
  %7734 = vperm.xlu0 %7733, %v7685
  %v7735 = vpop.permute.xlu0 %7734
  %7736 = vset.pattern.permute.xlu0 0
  %7737 = vperm.xlu0 %7736, %v7687
  %v7738 = vpop.permute.xlu0 %7737
  %7739 = vset.pattern.permute.xlu0 0
  %7740 = vperm.xlu0 %7739, %v7689
  %v7741 = vpop.permute.xlu0 %7740
  %7742 = vset.pattern.permute.xlu0 0
  %7743 = vperm.xlu0 %7742, %v7691
  %v7744 = vpop.permute.xlu0 %7743
  %7745 = vset.pattern.permute.xlu0 0
  %7746 = vperm.xlu0 %7745, %v7693
  %v7747 = vpop.permute.xlu0 %7746
  %7748 = vset.pattern.permute.xlu0 0
  %7749 = vperm.xlu0 %7748, %v7695
  %v7750 = vpop.permute.xlu0 %7749
  %7751 = vset.pattern.permute.xlu0 0
  %7752 = vperm.xlu0 %7751, %v7697
  %v7753 = vpop.permute.xlu0 %7752
  %7754 = vset.pattern.permute.xlu0 0
  %7755 = vperm.xlu0 %7754, %v7699
  %v7756 = vpop.permute.xlu0 %7755
  %7757 = vset.pattern.permute.xlu0 0
  %7758 = vperm.xlu0 %7757, %v7701
  %v7759 = vpop.permute.xlu0 %7758
  %7760 = vset.pattern.permute.xlu0 0
  %7761 = vperm.xlu0 %7760, %v7703
  %v7762 = vpop.permute.xlu0 %7761
  %7763 = vset.pattern.permute.xlu0 0
  %7764 = vperm.xlu0 %7763, %v7705
  %v7765 = vpop.permute.xlu0 %7764
  %7766 = vset.pattern.permute.xlu0 0
  %7767 = vperm.xlu0 %7766, %v7707
  %v7768 = vpop.permute.xlu0 %7767
  %7769 = vset.pattern.permute.xlu0 0
  %7770 = vperm.xlu0 %7769, %v7709
  %v7771 = vpop.permute.xlu0 %7770
  %7772 = vset.pattern.permute.xlu0 0
  %7773 = vperm.xlu0 %7772, %v7711
  %v7774 = vpop.permute.xlu0 %7773
  %7775 = vset.pattern.permute.xlu0 0
  %7776 = vperm.xlu0 %7775, %v7713
  %v7777 = vpop.permute.xlu0 %7776
  %v7778 = vlaneseq
  %v7779 = vshrl.u32 %v7778, 7
  %v7780 = vsub.s32 %v211, %v7779
  %v7781 = vrot.slane %v7732, %v7780
  %v7782 = vlaneseq
  %v7783 = vshrl.u32 %v7782, 7
  %v7784 = vsub.s32 %v211, %v7783
  %v7785 = vrot.slane %v7735, %v7784
  %v7786 = vlaneseq
  %v7787 = vshrl.u32 %v7786, 7
  %v7788 = vsub.s32 %v211, %v7787
  %v7789 = vrot.slane %v7738, %v7788
  %v7790 = vlaneseq
  %v7791 = vshrl.u32 %v7790, 7
  %v7792 = vsub.s32 %v211, %v7791
  %v7793 = vrot.slane %v7741, %v7792
  %v7794 = vlaneseq
  %v7795 = vshrl.u32 %v7794, 7
  %v7796 = vsub.s32 %v211, %v7795
  %v7797 = vrot.slane %v7744, %v7796
  %v7798 = vlaneseq
  %v7799 = vshrl.u32 %v7798, 7
  %v7800 = vsub.s32 %v211, %v7799
  %v7801 = vrot.slane %v7747, %v7800
  %v7802 = vlaneseq
  %v7803 = vshrl.u32 %v7802, 7
  %v7804 = vsub.s32 %v211, %v7803
  %v7805 = vrot.slane %v7750, %v7804
  %v7806 = vlaneseq
  %v7807 = vshrl.u32 %v7806, 7
  %v7808 = vsub.s32 %v211, %v7807
  %v7809 = vrot.slane %v7753, %v7808
  %v7810 = vlaneseq
  %v7811 = vshrl.u32 %v7810, 7
  %v7812 = vsub.s32 %v211, %v7811
  %v7813 = vrot.slane %v7756, %v7812
  %v7814 = vlaneseq
  %v7815 = vshrl.u32 %v7814, 7
  %v7816 = vsub.s32 %v211, %v7815
  %v7817 = vrot.slane %v7759, %v7816
  %v7818 = vlaneseq
  %v7819 = vshrl.u32 %v7818, 7
  %v7820 = vsub.s32 %v211, %v7819
  %v7821 = vrot.slane %v7762, %v7820
  %v7822 = vlaneseq
  %v7823 = vshrl.u32 %v7822, 7
  %v7824 = vsub.s32 %v211, %v7823
  %v7825 = vrot.slane %v7765, %v7824
  %v7826 = vlaneseq
  %v7827 = vshrl.u32 %v7826, 7
  %v7828 = vsub.s32 %v211, %v7827
  %v7829 = vrot.slane %v7768, %v7828
  %v7830 = vlaneseq
  %v7831 = vshrl.u32 %v7830, 7
  %v7832 = vsub.s32 %v211, %v7831
  %v7833 = vrot.slane %v7771, %v7832
  %v7834 = vlaneseq
  %v7835 = vshrl.u32 %v7834, 7
  %v7836 = vsub.s32 %v211, %v7835
  %v7837 = vrot.slane %v7774, %v7836
  %v7838 = vlaneseq
  %v7839 = vshrl.u32 %v7838, 7
  %v7840 = vsub.s32 %v211, %v7839
  %v7841 = vrot.slane %v7777, %v7840
  %v7842 = vsel %vm721, %v7785, %v7781
  %v7843 = vsel %vm723, %v7789, %v7842
  %v7844 = vsel %vm725, %v7793, %v7843
  %v7845 = vsel %vm727, %v7797, %v7844
  %v7846 = vsel %vm729, %v7801, %v7845
  %v7847 = vsel %vm731, %v7805, %v7846
  %v7848 = vsel %vm733, %v7809, %v7847
  %v7849 = vsel %vm721, %v7817, %v7813
  %v7850 = vsel %vm723, %v7821, %v7849
  %v7851 = vsel %vm725, %v7825, %v7850
  %v7852 = vsel %vm727, %v7829, %v7851
  %v7853 = vsel %vm729, %v7833, %v7852
  %v7854 = vsel %vm731, %v7837, %v7853
  %v7855 = vsel %vm733, %v7841, %v7854
  %v7858 = vsel %vm523, %v7848, 0.0
  %7859 = vadd.xlane.f32.xlu0 %v7858
  %v7860 = vpop.xlane.xlu0 %7859
  %v7861 = vsel %vm523, %v7855, 0.0
  %7862 = vadd.xlane.f32.xlu0 %v7861
  %v7863 = vpop.xlane.xlu0 %7862
  %v7864 = vrcp.pop %v7860
  %v7865 = vrcp.pop %v7863
  %v7868 = vlaneseq
  %v7869 = vshrl.u32 %v7868, 7
  %v7870 = vsub.s32 0, %v7869
  %v7871 = vrot.slane %v7864, %v7870
  %v7872 = vlaneseq
  %v7873 = vshrl.u32 %v7872, 7
  %v7874 = vsub.s32 1, %v7873
  %v7875 = vrot.slane %v7864, %v7874
  %v7876 = vlaneseq
  %v7877 = vshrl.u32 %v7876, 7
  %v7878 = vsub.s32 2, %v7877
  %v7879 = vrot.slane %v7864, %v7878
  %v7880 = vlaneseq
  %v7881 = vshrl.u32 %v7880, 7
  %v7882 = vsub.s32 3, %v7881
  %v7883 = vrot.slane %v7864, %v7882
  %v7884 = vlaneseq
  %v7885 = vshrl.u32 %v7884, 7
  %v7886 = vsub.s32 4, %v7885
  %v7887 = vrot.slane %v7864, %v7886
  %v7888 = vlaneseq
  %v7889 = vshrl.u32 %v7888, 7
  %v7890 = vsub.s32 5, %v7889
  %v7891 = vrot.slane %v7864, %v7890
  %v7892 = vlaneseq
  %v7893 = vshrl.u32 %v7892, 7
  %v7894 = vsub.s32 6, %v7893
  %v7895 = vrot.slane %v7864, %v7894
  %v7896 = vlaneseq
  %v7897 = vshrl.u32 %v7896, 7
  %v7898 = vsub.s32 7, %v7897
  %v7899 = vrot.slane %v7864, %v7898
  %v7900 = vlaneseq
  %v7901 = vshrl.u32 %v7900, 7
  %v7902 = vsub.s32 0, %v7901
  %v7903 = vrot.slane %v7865, %v7902
  %v7904 = vlaneseq
  %v7905 = vshrl.u32 %v7904, 7
  %v7906 = vsub.s32 1, %v7905
  %v7907 = vrot.slane %v7865, %v7906
  %v7908 = vlaneseq
  %v7909 = vshrl.u32 %v7908, 7
  %v7910 = vsub.s32 2, %v7909
  %v7911 = vrot.slane %v7865, %v7910
  %v7912 = vlaneseq
  %v7913 = vshrl.u32 %v7912, 7
  %v7914 = vsub.s32 3, %v7913
  %v7915 = vrot.slane %v7865, %v7914
  %v7916 = vlaneseq
  %v7917 = vshrl.u32 %v7916, 7
  %v7918 = vsub.s32 4, %v7917
  %v7919 = vrot.slane %v7865, %v7918
  %v7920 = vlaneseq
  %v7921 = vshrl.u32 %v7920, 7
  %v7922 = vsub.s32 5, %v7921
  %v7923 = vrot.slane %v7865, %v7922
  %v7924 = vlaneseq
  %v7925 = vshrl.u32 %v7924, 7
  %v7926 = vsub.s32 6, %v7925
  %v7927 = vrot.slane %v7865, %v7926
  %v7928 = vlaneseq
  %v7929 = vshrl.u32 %v7928, 7
  %v7930 = vsub.s32 7, %v7929
  %v7931 = vrot.slane %v7865, %v7930
  %v7948 = vmul.f32 %v7683, %v7871
  %v7949 = vmul.f32 %v7685, %v7875
  %v7950 = vmul.f32 %v7687, %v7879
  %v7951 = vmul.f32 %v7689, %v7883
  %v7952 = vmul.f32 %v7691, %v7887
  %v7953 = vmul.f32 %v7693, %v7891
  %v7954 = vmul.f32 %v7695, %v7895
  %v7955 = vmul.f32 %v7697, %v7899
  %v7956 = vmul.f32 %v7699, %v7903
  %v7957 = vmul.f32 %v7701, %v7907
  %v7958 = vmul.f32 %v7703, %v7911
  %v7959 = vmul.f32 %v7705, %v7915
  %v7960 = vmul.f32 %v7707, %v7919
  %v7961 = vmul.f32 %v7709, %v7923
  %v7962 = vmul.f32 %v7711, %v7927
  %v7963 = vmul.f32 %v7713, %v7931
  %7965 = vset.pattern.permute.xlu0 0
  %7966 = vperm.xlu0 %7965, %v7948
  %v7967 = vpop.permute.xlu0 %7966
  %7970 = vset.pattern.permute.xlu0 0
  %7971 = vperm.xlu0 %7970, %v7949
  %v7972 = vpop.permute.xlu0 %7971
  %7975 = vset.pattern.permute.xlu0 0
  %7976 = vperm.xlu0 %7975, %v7950
  %v7977 = vpop.permute.xlu0 %7976
  %7980 = vset.pattern.permute.xlu0 0
  %7981 = vperm.xlu0 %7980, %v7951
  %v7982 = vpop.permute.xlu0 %7981
  %7985 = vset.pattern.permute.xlu0 0
  %7986 = vperm.xlu0 %7985, %v7952
  %v7987 = vpop.permute.xlu0 %7986
  %7990 = vset.pattern.permute.xlu0 0
  %7991 = vperm.xlu0 %7990, %v7953
  %v7992 = vpop.permute.xlu0 %7991
  %7995 = vset.pattern.permute.xlu0 0
  %7996 = vperm.xlu0 %7995, %v7954
  %v7997 = vpop.permute.xlu0 %7996
  %8000 = vset.pattern.permute.xlu0 0
  %8001 = vperm.xlu0 %8000, %v7955
  %v8002 = vpop.permute.xlu0 %8001
  %8005 = vset.pattern.permute.xlu0 0
  %8006 = vperm.xlu0 %8005, %v7956
  %v8007 = vpop.permute.xlu0 %8006
  %8010 = vset.pattern.permute.xlu0 0
  %8011 = vperm.xlu0 %8010, %v7957
  %v8012 = vpop.permute.xlu0 %8011
  %8015 = vset.pattern.permute.xlu0 0
  %8016 = vperm.xlu0 %8015, %v7958
  %v8017 = vpop.permute.xlu0 %8016
  %8020 = vset.pattern.permute.xlu0 0
  %8021 = vperm.xlu0 %8020, %v7959
  %v8022 = vpop.permute.xlu0 %8021
  %8025 = vset.pattern.permute.xlu0 0
  %8026 = vperm.xlu0 %8025, %v7960
  %v8027 = vpop.permute.xlu0 %8026
  %8030 = vset.pattern.permute.xlu0 0
  %8031 = vperm.xlu0 %8030, %v7961
  %v8032 = vpop.permute.xlu0 %8031
  %8035 = vset.pattern.permute.xlu0 0
  %8036 = vperm.xlu0 %8035, %v7962
  %v8037 = vpop.permute.xlu0 %8036
  %8040 = vset.pattern.permute.xlu0 0
  %8041 = vperm.xlu0 %8040, %v7963
  %v8042 = vpop.permute.xlu0 %8041
  %v8044 = vmul.f32 %v7967, %v4482
  %v8045 = vmul.f32 %v7972, %v4482
  %v8046 = vmul.f32 %v7977, %v4482
  %v8047 = vmul.f32 %v7982, %v4482
  %v8048 = vmul.f32 %v7987, %v4482
  %v8049 = vmul.f32 %v7992, %v4482
  %v8050 = vmul.f32 %v7997, %v4482
  %v8051 = vmul.f32 %v8002, %v4482
  %v8052 = vmul.f32 %v8007, %v4485
  %v8053 = vmul.f32 %v8012, %v4485
  %v8054 = vmul.f32 %v8017, %v4485
  %v8055 = vmul.f32 %v8022, %v4485
  %v8056 = vmul.f32 %v8027, %v4485
  %v8057 = vmul.f32 %v8032, %v4485
  %v8058 = vmul.f32 %v8037, %v4485
  %v8059 = vmul.f32 %v8042, %v4485
  %v8060 = vsel %vm3911, %v8044, 0.0
  %v8061 = vrot.slane %v8060, 4
  %v8062 = vadd.f32 %v8060, %v8061
  %v8063 = vrot.slane %v8062, 2
  %v8064 = vadd.f32 %v8062, %v8063
  %v8065 = vrot.slane %v8064, 1
  %v8066 = vadd.f32 %v8064, %v8065
  %v8067 = vsel %vm3911, %v8045, 0.0
  %v8068 = vrot.slane %v8067, 4
  %v8069 = vadd.f32 %v8067, %v8068
  %v8070 = vrot.slane %v8069, 2
  %v8071 = vadd.f32 %v8069, %v8070
  %v8072 = vrot.slane %v8071, 1
  %v8073 = vadd.f32 %v8071, %v8072
  %v8074 = vsel %vm3911, %v8046, 0.0
  %v8075 = vrot.slane %v8074, 4
  %v8076 = vadd.f32 %v8074, %v8075
  %v8077 = vrot.slane %v8076, 2
  %v8078 = vadd.f32 %v8076, %v8077
  %v8079 = vrot.slane %v8078, 1
  %v8080 = vadd.f32 %v8078, %v8079
  %v8081 = vsel %vm3911, %v8047, 0.0
  %v8082 = vrot.slane %v8081, 4
  %v8083 = vadd.f32 %v8081, %v8082
  %v8084 = vrot.slane %v8083, 2
  %v8085 = vadd.f32 %v8083, %v8084
  %v8086 = vrot.slane %v8085, 1
  %v8087 = vadd.f32 %v8085, %v8086
  %v8088 = vsel %vm3911, %v8048, 0.0
  %v8089 = vrot.slane %v8088, 4
  %v8090 = vadd.f32 %v8088, %v8089
  %v8091 = vrot.slane %v8090, 2
  %v8092 = vadd.f32 %v8090, %v8091
  %v8093 = vrot.slane %v8092, 1
  %v8094 = vadd.f32 %v8092, %v8093
  %v8095 = vsel %vm3911, %v8049, 0.0
  %v8096 = vrot.slane %v8095, 4
  %v8097 = vadd.f32 %v8095, %v8096
  %v8098 = vrot.slane %v8097, 2
  %v8099 = vadd.f32 %v8097, %v8098
  %v8100 = vrot.slane %v8099, 1
  %v8101 = vadd.f32 %v8099, %v8100
  %v8102 = vsel %vm3911, %v8050, 0.0
  %v8103 = vrot.slane %v8102, 4
  %v8104 = vadd.f32 %v8102, %v8103
  %v8105 = vrot.slane %v8104, 2
  %v8106 = vadd.f32 %v8104, %v8105
  %v8107 = vrot.slane %v8106, 1
  %v8108 = vadd.f32 %v8106, %v8107
  %v8109 = vsel %vm3911, %v8051, 0.0
  %v8110 = vrot.slane %v8109, 4
  %v8111 = vadd.f32 %v8109, %v8110
  %v8112 = vrot.slane %v8111, 2
  %v8113 = vadd.f32 %v8111, %v8112
  %v8114 = vrot.slane %v8113, 1
  %v8115 = vadd.f32 %v8113, %v8114
  %v8116 = vsel %vm3911, %v8052, 0.0
  %v8117 = vrot.slane %v8116, 4
  %v8118 = vadd.f32 %v8116, %v8117
  %v8119 = vrot.slane %v8118, 2
  %v8120 = vadd.f32 %v8118, %v8119
  %v8121 = vrot.slane %v8120, 1
  %v8122 = vadd.f32 %v8120, %v8121
  %v8123 = vsel %vm3911, %v8053, 0.0
  %v8124 = vrot.slane %v8123, 4
  %v8125 = vadd.f32 %v8123, %v8124
  %v8126 = vrot.slane %v8125, 2
  %v8127 = vadd.f32 %v8125, %v8126
  %v8128 = vrot.slane %v8127, 1
  %v8129 = vadd.f32 %v8127, %v8128
  %v8130 = vsel %vm3911, %v8054, 0.0
  %v8131 = vrot.slane %v8130, 4
  %v8132 = vadd.f32 %v8130, %v8131
  %v8133 = vrot.slane %v8132, 2
  %v8134 = vadd.f32 %v8132, %v8133
  %v8135 = vrot.slane %v8134, 1
  %v8136 = vadd.f32 %v8134, %v8135
  %v8137 = vsel %vm3911, %v8055, 0.0
  %v8138 = vrot.slane %v8137, 4
  %v8139 = vadd.f32 %v8137, %v8138
  %v8140 = vrot.slane %v8139, 2
  %v8141 = vadd.f32 %v8139, %v8140
  %v8142 = vrot.slane %v8141, 1
  %v8143 = vadd.f32 %v8141, %v8142
  %v8144 = vsel %vm3911, %v8056, 0.0
  %v8145 = vrot.slane %v8144, 4
  %v8146 = vadd.f32 %v8144, %v8145
  %v8147 = vrot.slane %v8146, 2
  %v8148 = vadd.f32 %v8146, %v8147
  %v8149 = vrot.slane %v8148, 1
  %v8150 = vadd.f32 %v8148, %v8149
  %v8151 = vsel %vm3911, %v8057, 0.0
  %v8152 = vrot.slane %v8151, 4
  %v8153 = vadd.f32 %v8151, %v8152
  %v8154 = vrot.slane %v8153, 2
  %v8155 = vadd.f32 %v8153, %v8154
  %v8156 = vrot.slane %v8155, 1
  %v8157 = vadd.f32 %v8155, %v8156
  %v8158 = vsel %vm3911, %v8058, 0.0
  %v8159 = vrot.slane %v8158, 4
  %v8160 = vadd.f32 %v8158, %v8159
  %v8161 = vrot.slane %v8160, 2
  %v8162 = vadd.f32 %v8160, %v8161
  %v8163 = vrot.slane %v8162, 1
  %v8164 = vadd.f32 %v8162, %v8163
  %v8165 = vsel %vm3911, %v8059, 0.0
  %v8166 = vrot.slane %v8165, 4
  %v8167 = vadd.f32 %v8165, %v8166
  %v8168 = vrot.slane %v8167, 2
  %v8169 = vadd.f32 %v8167, %v8168
  %v8170 = vrot.slane %v8169, 1
  %v8171 = vadd.f32 %v8169, %v8170
  %v8188 = vsel %vm721, %v8073, %v8066
  %v8189 = vsel %vm723, %v8080, %v8188
  %v8190 = vsel %vm725, %v8087, %v8189
  %v8191 = vsel %vm727, %v8094, %v8190
  %v8192 = vsel %vm729, %v8101, %v8191
  %v8193 = vsel %vm731, %v8108, %v8192
  %v8194 = vsel %vm733, %v8115, %v8193
  %v8195 = vsel %vm721, %v8129, %v8122
  %v8196 = vsel %vm723, %v8136, %v8195
  %v8197 = vsel %vm725, %v8143, %v8196
  %v8198 = vsel %vm727, %v8150, %v8197
  %v8199 = vsel %vm729, %v8157, %v8198
  %v8200 = vsel %vm731, %v8164, %v8199
  %v8201 = vsel %vm733, %v8171, %v8200
  %8202 = vrot.lane.b32.xlu0 %v8194, 64
  %v8203 = vpop.permute.xlu0 %8202
  %8204 = vrot.lane.b32.xlu0 %v8201, 64
  %v8205 = vpop.permute.xlu0 %8204
  %8208 = vst.msk [vmem:[#allocation2] sm:$0xff] %vm4060, %v8203
  %8209 = vst.msk [vmem:[#allocation2 + $0x8] sm:$0xff] %vm4060, %v8205
  %v8210 = vld [vmem:[#allocation2] sm:$0xff]
  %v8211 = vld [vmem:[#allocation2 + $0x8] sm:$0xff]
  %v8212 = vpack.c.bf16 %v8211, %v8210
  %s8213 = scalar_lea.vmem %s6, 16
  %v8214 = vld [vmem:[%s8213] sm:$0xf]
  %v8215 = vld [vmem:[%s8213 + $0x4] sm:$0xf]
  %v8216 = vld [vmem:[%s8213 + $0x8] sm:$0xf]
  %v8217 = vld [vmem:[%s8213 + $0xc] sm:$0xf]
  %s8218 = scalar_lea.vmem %s7, 1
  %v8219 = vld [vmem:[%s8218] sm:$0x1]
  %v8221 = vlaneseq
  %v8222 = vshrl.u32 %v8221, 7
  %v8223 = vsub.s32 0, %v8222
  %v8224 = vrot.slane %v8219, %v8223
  %v8230 = vunpack.c.l.b16 %v8214
  %v8231 = vunpack.c.l.b16 %v8215
  %v8232 = vunpack.c.l.b16 %v8216
  %v8233 = vunpack.c.l.b16 %v8217
  %v8234 = vpack.c.b16 %v8231, %v8230
  %v8235 = vpack.c.b16 %v8233, %v8232
  %v8239 = vsel %vm216, %v8212, 0
  %8241 = vmatprep.subr.bf16.mxu0 0
  %8242 = vmatpush1.bf16.msra.mxu0 %v8234
  %8243 = vmatprep.subr.bf16.mxu0 0
  %8244 = vmatpush1.bf16.msra.mxu0 %v8235
  %8245 = vmatprep.subr.bf16.mxu0 0
  %8246 = vmatpush1.bf16.msra.mxu0 0
  %8247 = vmatprep.subr.bf16.mxu0 0
  %8248 = vmatpush1.bf16.msra.mxu0 0
  %8249 = vmatprep.subr.bf16.mxu0 0
  %8250 = vmatpush1.bf16.msra.mxu0 0
  %8251 = vmatprep.subr.bf16.mxu0 0
  %8252 = vmatpush1.bf16.msra.mxu0 0
  %8253 = vmatprep.subr.bf16.mxu0 0
  %8254 = vmatpush1.bf16.msra.mxu0 0
  %8255 = vmatprep.subr.bf16.mxu0 0
  %8256 = vmatpush1.bf16.msra.mxu0 0
  %8257 = vmatprep.subr.bf16.mxu0 0
  %8258 = vmatpush1.bf16.msra.mxu0 0
  %8259 = vmatprep.subr.bf16.mxu0 0
  %8260 = vmatpush1.bf16.msra.mxu0 0
  %8261 = vmatprep.subr.bf16.mxu0 0
  %8262 = vmatpush1.bf16.msra.mxu0 0
  %8263 = vmatprep.subr.bf16.mxu0 0
  %8264 = vmatpush1.bf16.msra.mxu0 0
  %8265 = vmatprep.subr.bf16.mxu0 0
  %8266 = vmatpush1.bf16.msra.mxu0 0
  %8267 = vmatprep.subr.bf16.mxu0 0
  %8268 = vmatpush1.bf16.msra.mxu0 0
  %8269 = vmatprep.subr.bf16.mxu0 0
  %8270 = vmatpush1.bf16.msra.mxu0 0
  %8271 = vmatprep.subr.bf16.mxu0 0
  %8272 = vmatpush1.bf16.msra.mxu0 0
  %8273 = vmatprep.mubr.bf16.mxu0 0
  %8274 = vmatmul.mubr.bf16.gmra.mrb[0].mxu0 %v8239
  %v8275 = vpop.f32.mrb[0].mxu0
  %v8276 = vadd.f32 %v8224, %v8275
  %v8277 = vpop.f32.mrb[0].mxu0
  %v8278 = vpop.f32.mrb[0].mxu0
  %v8279 = vadd.f32 %v8224, %v8278
  %v8280 = vpop.f32.mrb[0].mxu0
  %8281 = vdwg.mxu0
  %v8282 = vadd.f32 %v4378, %v8276
  %v8283 = vadd.f32 %v4379, %v8279
  %s8284 = scalar_lea.vmem %s8, 1
  %v8285 = vld [vmem:[%s8284] sm:$0x1]
  %s8286 = scalar_lea.vmem %s9, 1
  %v8287 = vld [vmem:[%s8286] sm:$0x1]
  %v8288 = vsel %vm216, %v8282, 0.0
  %8289 = vadd.xlane.f32.xlu0 %v8288
  %v8290 = vpop.xlane.xlu0 %8289
  %v8291 = vsel %vm216, %v8283, 0.0
  %8292 = vadd.xlane.f32.xlu0 %v8291
  %v8293 = vpop.xlane.xlu0 %8292
  %v8294 = vmul.f32 %v8290, %v223
  %v8295 = vmul.f32 %v8293, %v223
  %v8296 = vsub.f32 %v8282, %v8294
  %v8297 = vsub.f32 %v8283, %v8295
  %v8298 = vmul.f32 %v8296, %v8296
  %v8299 = vmul.f32 %v8297, %v8297
  %v8300 = vsel %vm216, %v8298, 0.0
  %8301 = vadd.xlane.f32.xlu0 %v8300
  %v8302 = vpop.xlane.xlu0 %8301
  %v8303 = vsel %vm216, %v8299, 0.0
  %8304 = vadd.xlane.f32.xlu0 %v8303
  %v8305 = vpop.xlane.xlu0 %8304
  %v8306 = vmul.f32 %v8302, %v223
  %v8307 = vmul.f32 %v8305, %v223
  %v8308 = vadd.f32 %v8306, 1e-05
  %v8309 = vadd.f32 %v8307, 1e-05
  %v8310 = vrsqrt.pop %v8308
  %v8311 = vrsqrt.pop %v8309
  %v8312 = vmul.f32 %v8296, %v8310
  %v8313 = vmul.f32 %v8297, %v8311
  %v8315 = vlaneseq
  %v8316 = vshrl.u32 %v8315, 7
  %v8317 = vsub.s32 0, %v8316
  %v8318 = vrot.slane %v8285, %v8317
  %v8320 = vmul.f32 %v8312, %v8318
  %v8321 = vmul.f32 %v8313, %v8318
  %v8323 = vlaneseq
  %v8324 = vshrl.u32 %v8323, 7
  %v8325 = vsub.s32 0, %v8324
  %v8326 = vrot.slane %v8287, %v8325
  %v8328 = vadd.f32 %v8320, %v8326
  %v8329 = vadd.f32 %v8321, %v8326
  %v8330 = vpack.c.bf16 %v8329, %v8328
  %s8331 = scalar_lea.vmem %s10, 16
  %v8332 = vld [vmem:[%s8331] sm:$0xf]
  %v8333 = vld [vmem:[%s8331 + $0x4] sm:$0xf]
  %v8334 = vld [vmem:[%s8331 + $0x8] sm:$0xf]
  %v8335 = vld [vmem:[%s8331 + $0xc] sm:$0xf]
  %s8336 = scalar_lea.vmem %s11, 1
  %v8337 = vld [vmem:[%s8336] sm:$0x1]
  %v8339 = vlaneseq
  %v8340 = vshrl.u32 %v8339, 7
  %v8341 = vsub.s32 0, %v8340
  %v8342 = vrot.slane %v8337, %v8341
  %v8348 = vunpack.c.l.b16 %v8332
  %v8349 = vunpack.c.l.b16 %v8333
  %v8350 = vunpack.c.l.b16 %v8334
  %v8351 = vunpack.c.l.b16 %v8335
  %v8352 = vpack.c.b16 %v8349, %v8348
  %v8353 = vpack.c.b16 %v8351, %v8350
  %v8357 = vsel %vm216, %v8330, 0
  %8359 = vmatprep.subr.bf16.mxu0 0
  %8360 = vmatpush1.bf16.msra.mxu0 %v8352
  %8361 = vmatprep.subr.bf16.mxu0 0
  %8362 = vmatpush1.bf16.msra.mxu0 %v8353
  %8363 = vmatprep.subr.bf16.mxu0 0
  %8364 = vmatpush1.bf16.msra.mxu0 0
  %8365 = vmatprep.subr.bf16.mxu0 0
  %8366 = vmatpush1.bf16.msra.mxu0 0
  %8367 = vmatprep.subr.bf16.mxu0 0
  %8368 = vmatpush1.bf16.msra.mxu0 0
  %8369 = vmatprep.subr.bf16.mxu0 0
  %8370 = vmatpush1.bf16.msra.mxu0 0
  %8371 = vmatprep.subr.bf16.mxu0 0
  %8372 = vmatpush1.bf16.msra.mxu0 0
  %8373 = vmatprep.subr.bf16.mxu0 0
  %8374 = vmatpush1.bf16.msra.mxu0 0
  %8375 = vmatprep.subr.bf16.mxu0 0
  %8376 = vmatpush1.bf16.msra.mxu0 0
  %8377 = vmatprep.subr.bf16.mxu0 0
  %8378 = vmatpush1.bf16.msra.mxu0 0
  %8379 = vmatprep.subr.bf16.mxu0 0
  %8380 = vmatpush1.bf16.msra.mxu0 0
  %8381 = vmatprep.subr.bf16.mxu0 0
  %8382 = vmatpush1.bf16.msra.mxu0 0
  %8383 = vmatprep.subr.bf16.mxu0 0
  %8384 = vmatpush1.bf16.msra.mxu0 0
  %8385 = vmatprep.subr.bf16.mxu0 0
  %8386 = vmatpush1.bf16.msra.mxu0 0
  %8387 = vmatprep.subr.bf16.mxu0 0
  %8388 = vmatpush1.bf16.msra.mxu0 0
  %8389 = vmatprep.subr.bf16.mxu0 0
  %8390 = vmatpush1.bf16.msra.mxu0 0
  %8391 = vmatprep.mubr.bf16.mxu0 0
  %8392 = vmatmul.mubr.bf16.gmra.mrb[0].mxu0 %v8357
  %v8393 = vpop.f32.mrb[0].mxu0
  %v8394 = vadd.f32 %v8342, %v8393
  %v8395 = vpop.f32.mrb[0].mxu0
  %v8396 = vpop.f32.mrb[0].mxu0
  %v8397 = vadd.f32 %v8342, %v8396
  %v8398 = vpop.f32.mrb[0].mxu0
  %8399 = vdwg.mxu0
  %v8400 = vmul.f32 %v8394, 0.5
  %v8401 = vmul.f32 %v8397, 0.5
  %v8402 = vmul.f32 %v8394, 0.044715
  %v8403 = vmul.f32 %v8397, 0.044715
  %v8404 = vmul.f32 %v8402, %v8394
  %v8405 = vmul.f32 %v8403, %v8397
  %v8406 = vmul.f32 %v8404, %v8394
  %v8407 = vmul.f32 %v8405, %v8397
  %v8408 = vadd.f32 %v8394, %v8406
  %v8409 = vadd.f32 %v8397, %v8407
  %v8410 = vmul.f32 %v8408, 0.7978846
  %v8411 = vmul.f32 %v8409, 0.7978846
  %v8412 = vtanh.pop %v8410
  %v8413 = vtanh.pop %v8411
  %v8414 = vadd.f32 %v8412, 1.0
  %v8415 = vadd.f32 %v8413, 1.0
  %v8416 = vmul.f32 %v8400, %v8414
  %v8417 = vmul.f32 %v8401, %v8415
  %v8418 = vpack.c.bf16 %v8417, %v8416
  %s8419 = scalar_lea.vmem %s12, 64
  %v8420 = vld [vmem:[%s8419] sm:$0xf]
  %v8421 = vld [vmem:[%s8419 + $0x4] sm:$0xf]
  %v8422 = vld [vmem:[%s8419 + $0x8] sm:$0xf]
  %v8423 = vld [vmem:[%s8419 + $0xc] sm:$0xf]
  %v8424 = vld [vmem:[%s8419 + $0x10] sm:$0xf]
  %v8425 = vld [vmem:[%s8419 + $0x14] sm:$0xf]
  %v8426 = vld [vmem:[%s8419 + $0x18] sm:$0xf]
  %v8427 = vld [vmem:[%s8419 + $0x1c] sm:$0xf]
  %v8428 = vld [vmem:[%s8419 + $0x20] sm:$0xf]
  %v8429 = vld [vmem:[%s8419 + $0x24] sm:$0xf]
  %v8430 = vld [vmem:[%s8419 + $0x28] sm:$0xf]
  %v8431 = vld [vmem:[%s8419 + $0x2c] sm:$0xf]
  %v8432 = vld [vmem:[%s8419 + $0x30] sm:$0xf]
  %v8433 = vld [vmem:[%s8419 + $0x34] sm:$0xf]
  %v8434 = vld [vmem:[%s8419 + $0x38] sm:$0xf]
  %v8435 = vld [vmem:[%s8419 + $0x3c] sm:$0xf]
  %s8436 = scalar_lea.vmem %s13, 1
  %v8437 = vld [vmem:[%s8436] sm:$0x1]
  %v8439 = vlaneseq
  %v8440 = vshrl.u32 %v8439, 7
  %v8441 = vsub.s32 0, %v8440
  %v8442 = vrot.slane %v8437, %v8441
  %v8460 = vunpack.c.l.b16 %v8420
  %v8461 = vunpack.c.l.b16 %v8421
  %v8462 = vunpack.c.l.b16 %v8422
  %v8463 = vunpack.c.l.b16 %v8423
  %v8464 = vunpack.c.l.b16 %v8424
  %v8465 = vunpack.c.l.b16 %v8425
  %v8466 = vunpack.c.l.b16 %v8426
  %v8467 = vunpack.c.l.b16 %v8427
  %v8468 = vunpack.c.l.b16 %v8428
  %v8469 = vunpack.c.l.b16 %v8429
  %v8470 = vunpack.c.l.b16 %v8430
  %v8471 = vunpack.c.l.b16 %v8431
  %v8472 = vunpack.c.l.b16 %v8432
  %v8473 = vunpack.c.l.b16 %v8433
  %v8474 = vunpack.c.l.b16 %v8434
  %v8475 = vunpack.c.l.b16 %v8435
  %v8476 = vpack.c.b16 %v8461, %v8460
  %v8477 = vpack.c.b16 %v8463, %v8462
  %v8478 = vpack.c.b16 %v8465, %v8464
  %v8479 = vpack.c.b16 %v8467, %v8466
  %v8480 = vpack.c.b16 %v8469, %v8468
  %v8481 = vpack.c.b16 %v8471, %v8470
  %v8482 = vpack.c.b16 %v8473, %v8472
  %v8483 = vpack.c.b16 %v8475, %v8474
  %8492 = vmatprep.subr.bf16.mxu0 0
  %8493 = vmatpush1.bf16.msra.mxu0 %v8476
  %8494 = vmatprep.subr.bf16.mxu0 0
  %8495 = vmatpush1.bf16.msra.mxu0 %v8477
  %8496 = vmatprep.subr.bf16.mxu0 0
  %8497 = vmatpush1.bf16.msra.mxu0 %v8478
  %8498 = vmatprep.subr.bf16.mxu0 0
  %8499 = vmatpush1.bf16.msra.mxu0 %v8479
  %8500 = vmatprep.subr.bf16.mxu0 0
  %8501 = vmatpush1.bf16.msra.mxu0 %v8480
  %8502 = vmatprep.subr.bf16.mxu0 0
  %8503 = vmatpush1.bf16.msra.mxu0 %v8481
  %8504 = vmatprep.subr.bf16.mxu0 0
  %8505 = vmatpush1.bf16.msra.mxu0 %v8482
  %8506 = vmatprep.subr.bf16.mxu0 0
  %8507 = vmatpush1.bf16.msra.mxu0 %v8483
  %8508 = vmatprep.subr.bf16.mxu0 0
  %8509 = vmatpush1.bf16.msra.mxu0 0
  %8510 = vmatprep.subr.bf16.mxu0 0
  %8511 = vmatpush1.bf16.msra.mxu0 0
  %8512 = vmatprep.subr.bf16.mxu0 0
  %8513 = vmatpush1.bf16.msra.mxu0 0
  %8514 = vmatprep.subr.bf16.mxu0 0
  %8515 = vmatpush1.bf16.msra.mxu0 0
  %8516 = vmatprep.subr.bf16.mxu0 0
  %8517 = vmatpush1.bf16.msra.mxu0 0
  %8518 = vmatprep.subr.bf16.mxu0 0
  %8519 = vmatpush1.bf16.msra.mxu0 0
  %8520 = vmatprep.subr.bf16.mxu0 0
  %8521 = vmatpush1.bf16.msra.mxu0 0
  %8522 = vmatprep.subr.bf16.mxu0 0
  %8523 = vmatpush1.bf16.msra.mxu0 0
  %8524 = vmatprep.mubr.bf16.mxu0 0
  %8525 = vmatmul.mubr.bf16.gmra.mrb[0].mxu0 %v8418
  %v8526 = vpop.f32.mrb[0].mxu0
  %v8527 = vadd.f32 %v8442, %v8526
  %v8528 = vpop.f32.mrb[0].mxu0
  %v8529 = vpop.f32.mrb[0].mxu0
  %v8530 = vadd.f32 %v8442, %v8529
  %v8531 = vpop.f32.mrb[0].mxu0
  %8532 = vdwg.mxu0
  %v8533 = vadd.f32 %v8328, %v8527
  %v8534 = vadd.f32 %v8329, %v8530
  %v8535 = vld [vmem:[%s14] sm:$0x1]
  %v8536 = vld [vmem:[%s15] sm:$0x1]
  %v8537 = vsel %vm216, %v8533, 0.0
  %8538 = vadd.xlane.f32.xlu0 %v8537
  %v8539 = vpop.xlane.xlu0 %8538
  %v8540 = vsel %vm216, %v8534, 0.0
  %8541 = vadd.xlane.f32.xlu0 %v8540
  %v8542 = vpop.xlane.xlu0 %8541
  %v8543 = vmul.f32 %v8539, %v223
  %v8544 = vmul.f32 %v8542, %v223
  %v8545 = vsub.f32 %v8533, %v8543
  %v8546 = vsub.f32 %v8534, %v8544
  %v8547 = vmul.f32 %v8545, %v8545
  %v8548 = vmul.f32 %v8546, %v8546
  %v8549 = vsel %vm216, %v8547, 0.0
  %8550 = vadd.xlane.f32.xlu0 %v8549
  %v8551 = vpop.xlane.xlu0 %8550
  %v8552 = vsel %vm216, %v8548, 0.0
  %8553 = vadd.xlane.f32.xlu0 %v8552
  %v8554 = vpop.xlane.xlu0 %8553
  %v8555 = vmul.f32 %v8551, %v223
  %v8556 = vmul.f32 %v8554, %v223
  %v8557 = vadd.f32 %v8555, 1e-05
  %v8558 = vadd.f32 %v8556, 1e-05
  %v8559 = vrsqrt.pop %v8557
  %v8560 = vrsqrt.pop %v8558
  %v8561 = vmul.f32 %v8545, %v8559
  %v8562 = vmul.f32 %v8546, %v8560
  %v8564 = vlaneseq
  %v8565 = vshrl.u32 %v8564, 7
  %v8566 = vsub.s32 0, %v8565
  %v8567 = vrot.slane %v8535, %v8566
  %v8569 = vmul.f32 %v8561, %v8567
  %v8570 = vmul.f32 %v8562, %v8567
  %v8572 = vlaneseq
  %v8573 = vshrl.u32 %v8572, 7
  %v8574 = vsub.s32 0, %v8573
  %v8575 = vrot.slane %v8536, %v8574
  %v8577 = vadd.f32 %v8569, %v8575
  %v8578 = vadd.f32 %v8570, %v8575
  %v8579 = vpack.c.bf16 %v8578, %v8577
  %v8580 = vld [vmem:[%s16] sm:$0xf]
  %v8581 = vld [vmem:[%s16 + $0x4] sm:$0xf]
  %v8582 = vld [vmem:[%s16 + $0x8] sm:$0xf]
  %v8583 = vld [vmem:[%s16 + $0xc] sm:$0xf]
  %v8584 = vld [vmem:[%s17] sm:$0x1]
  %v8586 = vlaneseq
  %v8587 = vshrl.u32 %v8586, 7
  %v8588 = vsub.s32 0, %v8587
  %v8589 = vrot.slane %v8584, %v8588
  %v8595 = vunpack.c.l.b16 %v8580
  %v8596 = vunpack.c.l.b16 %v8581
  %v8597 = vunpack.c.l.b16 %v8582
  %v8598 = vunpack.c.l.b16 %v8583
  %v8599 = vpack.c.b16 %v8596, %v8595
  %v8600 = vpack.c.b16 %v8598, %v8597
  %v8604 = vsel %vm216, %v8579, 0
  %8606 = vmatprep.subr.bf16.mxu0 0
  %8607 = vmatpush1.bf16.msra.mxu0 %v8599
  %8608 = vmatprep.subr.bf16.mxu0 0
  %8609 = vmatpush1.bf16.msra.mxu0 %v8600
  %8610 = vmatprep.subr.bf16.mxu0 0
  %8611 = vmatpush1.bf16.msra.mxu0 0
  %8612 = vmatprep.subr.bf16.mxu0 0
  %8613 = vmatpush1.bf16.msra.mxu0 0
  %8614 = vmatprep.subr.bf16.mxu0 0
  %8615 = vmatpush1.bf16.msra.mxu0 0
  %8616 = vmatprep.subr.bf16.mxu0 0
  %8617 = vmatpush1.bf16.msra.mxu0 0
  %8618 = vmatprep.subr.bf16.mxu0 0
  %8619 = vmatpush1.bf16.msra.mxu0 0
  %8620 = vmatprep.subr.bf16.mxu0 0
  %8621 = vmatpush1.bf16.msra.mxu0 0
  %8622 = vmatprep.subr.bf16.mxu0 0
  %8623 = vmatpush1.bf16.msra.mxu0 0
  %8624 = vmatprep.subr.bf16.mxu0 0
  %8625 = vmatpush1.bf16.msra.mxu0 0
  %8626 = vmatprep.subr.bf16.mxu0 0
  %8627 = vmatpush1.bf16.msra.mxu0 0
  %8628 = vmatprep.subr.bf16.mxu0 0
  %8629 = vmatpush1.bf16.msra.mxu0 0
  %8630 = vmatprep.subr.bf16.mxu0 0
  %8631 = vmatpush1.bf16.msra.mxu0 0
  %8632 = vmatprep.subr.bf16.mxu0 0
  %8633 = vmatpush1.bf16.msra.mxu0 0
  %8634 = vmatprep.subr.bf16.mxu0 0
  %8635 = vmatpush1.bf16.msra.mxu0 0
  %8636 = vmatprep.subr.bf16.mxu0 0
  %8637 = vmatpush1.bf16.msra.mxu0 0
  %8638 = vmatprep.mubr.bf16.mxu0 0
  %8639 = vmatmul.mubr.bf16.gmra.mrb[0].mxu0 %v8604
  %v8640 = vpop.f32.mrb[0].mxu0
  %v8641 = vadd.f32 %v8589, %v8640
  %v8642 = vpop.f32.mrb[0].mxu0
  %v8643 = vpop.f32.mrb[0].mxu0
  %v8644 = vadd.f32 %v8589, %v8643
  %v8645 = vpop.f32.mrb[0].mxu0
  %8646 = vdwg.mxu0
  %8647 = vst [vmem:[%s18] sm:$0xff] %v8641
  %8648 = vst [vmem:[%s18 + $0x8] sm:$0xff] %v8644
  // Predicated region
  $region74: #{vit_lite_forward.1} parent=0 // pred_check
    _
  $region75: #{vit_lite_forward.1} parent=0 // pred_check_branch
    %8650 = sbr.rel (0) target = $region77
  $region76: #{vit_lite_forward.1} parent=0 // pred_region
    _
  $region77: #{vit_lite_forward.1} parent=0 // pred_fallthru
    _
  // Predicated region
  $region78: #{vit_lite_forward.1} parent=0 // pred_check
    _
  $region79: #{vit_lite_forward.1} parent=0 // pred_check_branch
    %8652 = sbr.rel (0) target = $region81
  $region80: #{vit_lite_forward.1} parent=0 // pred_region
    _
  $region81: #{vit_lite_forward.1} parent=0 // pred_fallthru
    _

</llo_original>
